<compile_context>
chip_gen: v7x
topology: tpu7x:2x2x1
jax: 0.10.0
libtpu: 0.0.40
codegen_flags: <defaults>
</compile_context>

<pallas_src>
import jax
import jax.numpy as jnp
from jax.experimental import pallas as pl
from jax.experimental.pallas import tpu as pltpu

PROB_DROPOUT = 0.5   # nn.Dropout(p=0.5) -> identity in eval mode
BN_EPS = 1e-5
_SUBLANE = 16        # bf16 sublane packing (rows per packed tile)


def _round_up(x, m):
    return (x + m - 1) // m * m


def _pick_vmem_limit():
    """Per-generation scoped-VMEM limit: physical capacity minus headroom.

    v5e/v6e (128 MiB physical) -> ~112 MiB; v7x (64 MiB) -> ~48 MiB.
    Falls back to a conservative 48 MiB if the query is unavailable.
    """
    try:
        cap = getattr(pltpu.get_tpu_info(), "vmem_capacity_bytes", None)
        if cap:
            return int(max(32 << 20, min(int(cap) - (16 << 20), 112 << 20)))
    except Exception:
        pass
    return 48 << 20


def _resident_spec(shape):
    """Grid-invariant operand (constant index map): single-buffer it."""
    idx = lambda *_: (0,) * len(shape)
    try:
        return pl.BlockSpec(shape, idx, pipeline_mode=pl.Buffered(1))
    except (TypeError, AttributeError):   # older jax without pipeline_mode
        return pl.BlockSpec(shape, idx)


# ---------------------------------------------------------------------------
# Fused Pallas kernel (one grid step == one image)
# ---------------------------------------------------------------------------
def _make_fused_kernel(H, W, LEAD, FL, CIP, CMP, COP):
    WP = W + 2                 # padded image width
    HW2 = H * WP               # implicit-GEMM rows (W+2 columns per image row)
    BASE = LEAD + WP + 1       # interior start offset; multiple of 16 (aligned)

    def kernel(x_ref, w1_ref, b1_ref, w2_ref, ws_ref, b2_ref, o_ref, y1p_ref):
        # x_ref   : (FL, CIP)    bf16 zero-padded image, flat (LEAD + (H+2)*(W+2)) rows
        # w1_ref  : (9*CIP, CMP) bf16 conv1 weights, BN1 scale folded in
        # b1_ref  : (1, CMP)     f32  folded BN1 bias
        # w2_ref  : (9*CMP, COP) bf16 conv2 weights, BN2 scale folded in
        # ws_ref  : (CIP, COP)   bf16 1x1 residual weights, BN_s scale folded in
        # b2_ref  : (1, COP)     f32  folded (BN2 bias + BN_s bias)
        # o_ref   : (HW2, COP)   out  (valid cols/channels sliced by the wrapper)
        # y1p_ref : (FL, CMP)    bf16 scratch: conv1 output with zero padding ring

        # wrap-column mask computed in-kernel (columns W, W+1 of each image row
        # are window wrap-arounds and must be zeroed before the re-embed).
        col = jax.lax.broadcasted_iota(jnp.int32, (HW2, 1), 0) % WP
        valid = col < W

        # ---- stage 1: conv1 (3x3, pad 1) + BN1 + ReLU (drop1 == identity) ----
        acc1 = None
        for t in range(9):
            dy, dx = divmod(t, 3)
            off = LEAD + dy * WP + dx
            tap = x_ref[off:off + HW2, :]                       # bf16 (HW2, CIP)
            wt = w1_ref[t * CIP:(t + 1) * CIP, :]               # bf16 (CIP, CMP)
            d = jnp.dot(tap, wt, preferred_element_type=jnp.float32)
            acc1 = d if acc1 is None else acc1 + d
        y1 = jnp.where(valid, jnp.maximum(acc1 + b1_ref[...], 0.0), 0.0)

        # re-embed y1 so stage-2 taps see conv2's "padding=1": zero ONLY the
        # ring (every step -- see header), then one aligned interior store.
        y1p_ref[0:BASE, :] = jnp.zeros((BASE, CMP), jnp.bfloat16)
        y1p_ref[BASE + HW2:FL, :] = jnp.zeros((FL - BASE - HW2, CMP), jnp.bfloat16)
        y1p_ref[BASE:BASE + HW2, :] = y1.astype(jnp.bfloat16)   # BASE % 16 == 0

        # ---- stage 2: conv2 (3x3) + BN2 + residual (1x1 conv + BN) + ReLU ----
        acc2 = None
        for t in range(9):
            dy, dx = divmod(t, 3)
            off = LEAD + dy * WP + dx
            tap = y1p_ref[off:off + HW2, :]                     # bf16 (HW2, CMP)
            wt = w2_ref[t * CMP:(t + 1) * CMP, :]               # bf16 (CMP, COP)
            d = jnp.dot(tap, wt, preferred_element_type=jnp.float32)
            acc2 = d if acc2 is None else acc2 + d
        res = x_ref[BASE:BASE + HW2, :]                          # aligned center read
        acc2 = acc2 + jnp.dot(res, ws_ref[...], preferred_element_type=jnp.float32)

        # drop2 == identity (eval mode)
        # TODO(synk): training-mode dropout would use pltpu.prng_seed/prng_random_bits.
        o_ref[...] = jnp.maximum(acc2 + b2_ref[...], 0.0).astype(o_ref.dtype)

    return kernel


# ---------------------------------------------------------------------------
# Wrapper: parameter folding / padding / layout plumbing in plain JAX
# ---------------------------------------------------------------------------
def _fold_bn(gamma, beta, mean, var):
    s = gamma / jnp.sqrt(var + BN_EPS)
    b = beta - mean * s
    return s.astype(jnp.float32), b.astype(jnp.float32)


def double_conv_bottleneck(x_nchw, params, *, out_dtype=jnp.float32, nhwc_out=False):
    x = jnp.transpose(x_nchw, (0, 2, 3, 1)).astype(jnp.bfloat16)   # NCHW -> NHWC bf16
    n, h, w, cin = x.shape
    cout = params['w1'].shape[0]

    wp = w + 2
    hw2 = h * wp                                   # implicit-GEMM rows per image
    lead = (-(wp + 1)) % _SUBLANE                  # slack so interior start is aligned
    fl = _round_up(lead + (h + 2) * wp + 2, _SUBLANE)   # flat rows incl. tap slack
    cip = _round_up(cin, _SUBLANE)                 # bf16-tile-aligned tap K
    cmp_ = _round_up(cout, 128)                    # lane-dense intermediate channels
    cop = _round_up(cout, 128)                     # lane-dense output channels
    # NOTE: on v6e/v7x (256-wide MXU) padding cmp_/cop 128->256 would fill the MXU N
    # dimension but doubles store/VMEM bytes with zeros -- not applied.

    s1, b1 = _fold_bn(params['g1'], params['be1'], params['m1'], params['v1'])
    s2, b2 = _fold_bn(params['g2'], params['be2'], params['m2'], params['v2'])
    ss, bs = _fold_bn(params['gs'], params['bes'], params['ms'], params['vs'])

    # conv weights: OIHW -> (ky, kx, ci, co), fold BN scale, pad, flatten taps.
    w1 = jnp.transpose(params['w1'], (2, 3, 1, 0)) * s1[None, None, None, :]
    w1 = jnp.pad(w1, ((0, 0), (0, 0), (0, cip - cin), (0, cmp_ - cout)))
    w1 = w1.reshape(9 * cip, cmp_).astype(jnp.bfloat16)

    w2 = jnp.transpose(params['w2'], (2, 3, 1, 0)) * s2[None, None, None, :]
    w2 = jnp.pad(w2, ((0, 0), (0, 0), (0, cmp_ - cout), (0, cop - cout)))
    w2 = w2.reshape(9 * cmp_, cop).astype(jnp.bfloat16)

    ws = jnp.transpose(params['ws'], (2, 3, 1, 0)).reshape(cin, cout) * ss[None, :]
    ws = jnp.pad(ws, ((0, cip - cin), (0, cop - cout))).astype(jnp.bfloat16)

    b1v = jnp.pad(b1, (0, cmp_ - cout)).reshape(1, cmp_)
    b2v = jnp.pad(b2 + bs, (0, cop - cout)).reshape(1, cop)

    # zero-padded NHWC image (bf16), flattened to (lead + (H+2)*(W+2) + slack, Cin_pad).
    xp = jnp.pad(x, ((0, 0), (1, 1), (1, 1), (0, cip - cin)))
    xflat = xp.reshape(n, (h + 2) * wp, cip)
    xflat = jnp.pad(xflat, ((0, 0), (lead, fl - lead - (h + 2) * wp), (0, 0)))

    kernel = _make_fused_kernel(h, w, lead, fl, cip, cmp_, cop)

    out = pl.pallas_call(
        kernel,
        out_shape=jax.ShapeDtypeStruct((n, hw2, cop), out_dtype),
        grid=(n,),
        in_specs=[
            pl.BlockSpec((None, fl, cip), lambda i: (i, 0, 0)),   # x (per image)
            _resident_spec((9 * cip, cmp_)),                      # w1 (single-buffered)
            _resident_spec((1, cmp_)),                            # b1
            _resident_spec((9 * cmp_, cop)),                      # w2 (single-buffered)
            _resident_spec((cip, cop)),                           # ws
            _resident_spec((1, cop)),                             # b2 + bs
        ],
        out_specs=pl.BlockSpec((None, hw2, cop), lambda i: (i, 0, 0)),
        scratch_shapes=[pltpu.VMEM((fl, cmp_), jnp.bfloat16)],
        compiler_params=pltpu.CompilerParams(
            dimension_semantics=("parallel",),    # shards the batch on v7x's 2 TCs
            vmem_limit_bytes=_pick_vmem_limit(),
        ),
    )(xflat, w1, b1v, w2, ws, b2v)

    out = out.reshape(n, h, wp, cop)[:, :, :w, :cout]   # drop wrap cols / pad channels
    if nhwc_out:
        return out                                       # skip the NCHW transpose pass
    return jnp.transpose(out, (0, 3, 1, 2))              # NHWC -> NCHW (module contract)


# ---------------------------------------------------------------------------
# Pure-JAX reference (NCHW, mirrors the PyTorch forward exactly, f32)
# ---------------------------------------------------------------------------
def _ref_forward(x, p):
    def conv(xx, ww, pad):
        return jax.lax.conv_general_dilated(
            xx, ww, (1, 1), [(pad, pad), (pad, pad)],
            dimension_numbers=('NCHW', 'OIHW', 'NCHW'))

    def bn(xx, g, b, mmean, vvar):
        g = g[None, :, None, None]; b = b[None, :, None, None]
        mmean = mmean[None, :, None, None]; vvar = vvar[None, :, None, None]
        return (xx - mmean) / jnp.sqrt(vvar + BN_EPS) * g + b

    y = conv(x, p['w1'], 1)
    y = jnp.maximum(bn(y, p['g1'], p['be1'], p['m1'], p['v1']), 0.0)
    y = conv(y, p['w2'], 1)
    y = bn(y, p['g2'], p['be2'], p['m2'], p['v2'])
    idp = bn(conv(x, p['ws'], 0), p['gs'], p['bes'], p['ms'], p['vs'])
    return jnp.maximum(y + idp, 0.0)


if __name__ == "__main__":
    key = jax.random.PRNGKey(0)
    n, cin, cout, hh, ww = 2, 4, 8, 16, 16
    keys = jax.random.split(key, 16)
    params = {
        'w1': 0.1 * jax.random.normal(keys[0], (cout, cin, 3, 3), jnp.float32),
        'g1': 1.0 + 0.1 * jax.random.normal(keys[1], (cout,), jnp.float32),
        'be1': 0.1 * jax.random.normal(keys[2], (cout,), jnp.float32),
        'm1': 0.1 * jax.random.normal(keys[3], (cout,), jnp.float32),
        'v1': 0.5 + jnp.abs(jax.random.normal(keys[4], (cout,), jnp.float32)),
        'w2': 0.1 * jax.random.normal(keys[5], (cout, cout, 3, 3), jnp.float32),
        'g2': 1.0 + 0.1 * jax.random.normal(keys[6], (cout,), jnp.float32),
        'be2': 0.1 * jax.random.normal(keys[7], (cout,), jnp.float32),
        'm2': 0.1 * jax.random.normal(keys[8], (cout,), jnp.float32),
        'v2': 0.5 + jnp.abs(jax.random.normal(keys[9], (cout,), jnp.float32)),
        'ws': 0.1 * jax.random.normal(keys[10], (cout, cin, 1, 1), jnp.float32),
        'gs': 1.0 + 0.1 * jax.random.normal(keys[11], (cout,), jnp.float32),
        'bes': 0.1 * jax.random.normal(keys[12], (cout,), jnp.float32),
        'ms': 0.1 * jax.random.normal(keys[13], (cout,), jnp.float32),
        'vs': 0.5 + jnp.abs(jax.random.normal(keys[14], (cout,), jnp.float32)),
    }
    x = jax.random.normal(keys[15], (n, cin, hh, ww), jnp.float32)

    fused = jax.jit(double_conv_bottleneck)
    out = jax.block_until_ready(fused(x, params))

    ref = _ref_forward(x, params)
    assert out.shape == (n, cout, hh, ww)
    max_err = float(jnp.max(jnp.abs(out - ref)))
    # bf16 MXU operands (f32 accumulation) -> looser tolerance than the pure-f32 path.
    assert jnp.allclose(out, ref, atol=5e-2, rtol=5e-2), f"max_err={max_err}"
    print("KERNEL_OK")
</pallas_src>

<mosaic_0001>
module attributes {stable_mosaic.version = 11 : i64} {
  func.func @kernel(%arg0: i32, %arg1: memref<1x352x16xbf16, #tpu.memory_space<vmem>>, %arg2: memref<144x128xbf16, #tpu.memory_space<vmem>>, %arg3: memref<1x128xf32, #tpu.memory_space<vmem>>, %arg4: memref<1152x128xbf16, #tpu.memory_space<vmem>>, %arg5: memref<16x128xbf16, #tpu.memory_space<vmem>>, %arg6: memref<1x128xf32, #tpu.memory_space<vmem>>, %arg7: memref<1x288x128xf32, #tpu.memory_space<vmem>>, %arg8: memref<352x128xbf16, #tpu.memory_space<vmem>>) attributes {dimension_semantics = [#tpu.dimension_semantics<parallel>], iteration_bounds = array<i64: 2>, scalar_prefetch = 0 : i64, scratch_operands = 1 : i64, tpu.core_type = #tpu.core_type<tc>, window_params = [{transform_indices = @transform_0, window_bounds = array<i64: 1, 352, 16>}, {pipeline_mode = #tpu.pipeline_mode<synchronous>, transform_indices = @transform_1, window_bounds = array<i64: 144, 128>}, {pipeline_mode = #tpu.pipeline_mode<synchronous>, transform_indices = @transform_2, window_bounds = array<i64: 1, 128>}, {pipeline_mode = #tpu.pipeline_mode<synchronous>, transform_indices = @transform_3, window_bounds = array<i64: 1152, 128>}, {pipeline_mode = #tpu.pipeline_mode<synchronous>, transform_indices = @transform_4, window_bounds = array<i64: 16, 128>}, {pipeline_mode = #tpu.pipeline_mode<synchronous>, transform_indices = @transform_5, window_bounds = array<i64: 1, 128>}, {transform_indices = @transform_6, window_bounds = array<i64: 1, 288, 128>}]} {
    %0 = tpu.iota {dimensions = array<i32: 0>} : vector<288x1xi32>
    %c18_i32 = arith.constant 18 : i32
    %c0_i32 = arith.constant 0 : i32
    %1 = arith.cmpi eq, %c18_i32, %c0_i32 : i32
    %c1_i32 = arith.constant 1 : i32
    %2 = arith.select %1, %c1_i32, %c18_i32 : i32
    %3 = vector.broadcast %2 : i32 to vector<288x1xi32>
    %4 = arith.remsi %0, %3 : vector<288x1xi32>
    %c0_i32_0 = arith.constant 0 : i32
    %5 = vector.broadcast %c0_i32_0 : i32 to vector<288x1xi32>
    %6 = arith.cmpi ne, %4, %5 : vector<288x1xi32>
    %c0_i32_1 = arith.constant 0 : i32
    %7 = vector.broadcast %c0_i32_1 : i32 to vector<288x1xi32>
    %8 = arith.cmpi slt, %4, %7 : vector<288x1xi32>
    %c0_i32_2 = arith.constant 0 : i32
    %9 = arith.cmpi slt, %2, %c0_i32_2 : i32
    %10 = vector.broadcast %9 : i1 to vector<288x1xi1>
    %11 = vector.broadcast %10 : vector<288x1xi1> to vector<288x1xi1>
    %12 = arith.xori %8, %11 : vector<288x1xi1>
    %13 = arith.andi %12, %6 : vector<288x1xi1>
    %14 = vector.broadcast %2 : i32 to vector<288x1xi32>
    %15 = arith.addi %4, %14 : vector<288x1xi32>
    %16 = arith.select %13, %15, %4 : vector<288x1xi1>, vector<288x1xi32>
    %c16_i32 = arith.constant 16 : i32
    %17 = vector.broadcast %c16_i32 : i32 to vector<288x1xi32>
    %18 = arith.cmpi slt, %16, %17 : vector<288x1xi32>
    %c0 = arith.constant 0 : index
    %c13 = arith.constant 13 : index
    %c0_3 = arith.constant 0 : index
    %19 = vector.load %arg1[%c0, %c13, %c0_3] : memref<1x352x16xbf16, #tpu.memory_space<vmem>>, vector<1x288x16xbf16>
    %20 = vector.shape_cast %19 : vector<1x288x16xbf16> to vector<288x16xbf16>
    %c0_4 = arith.constant 0 : index
    %c0_5 = arith.constant 0 : index
    %21 = vector.load %arg2[%c0_4, %c0_5] : memref<144x128xbf16, #tpu.memory_space<vmem>>, vector<16x128xbf16>
    %cst = arith.constant dense<0.000000e+00> : vector<288x128xf32>
    %22 = tpu.matmul %20, %21, %cst {dimension_numbers = #tpu.dot_dimension_numbers<[1], [0], [0], [1], [0, 0, 1, 1], [], []>} : vector<288x16xbf16>, vector<16x128xbf16>, vector<288x128xf32> -> vector<288x128xf32>
    %c0_6 = arith.constant 0 : index
    %c14 = arith.constant 14 : index
    %c0_7 = arith.constant 0 : index
    %23 = vector.load %arg1[%c0_6, %c14, %c0_7] : memref<1x352x16xbf16, #tpu.memory_space<vmem>>, vector<1x288x16xbf16>
    %24 = vector.shape_cast %23 : vector<1x288x16xbf16> to vector<288x16xbf16>
    %c16 = arith.constant 16 : index
    %c0_8 = arith.constant 0 : index
    %25 = vector.load %arg2[%c16, %c0_8] : memref<144x128xbf16, #tpu.memory_space<vmem>>, vector<16x128xbf16>
    %cst_9 = arith.constant dense<0.000000e+00> : vector<288x128xf32>
    %26 = tpu.matmul %24, %25, %cst_9 {dimension_numbers = #tpu.dot_dimension_numbers<[1], [0], [0], [1], [0, 0, 1, 1], [], []>} : vector<288x16xbf16>, vector<16x128xbf16>, vector<288x128xf32> -> vector<288x128xf32>
    %27 = arith.addf %22, %26 : vector<288x128xf32>
    %c0_10 = arith.constant 0 : index
    %c15 = arith.constant 15 : index
    %c0_11 = arith.constant 0 : index
    %28 = vector.load %arg1[%c0_10, %c15, %c0_11] : memref<1x352x16xbf16, #tpu.memory_space<vmem>>, vector<1x288x16xbf16>
    %29 = vector.shape_cast %28 : vector<1x288x16xbf16> to vector<288x16xbf16>
    %c32 = arith.constant 32 : index
    %c0_12 = arith.constant 0 : index
    %30 = vector.load %arg2[%c32, %c0_12] : memref<144x128xbf16, #tpu.memory_space<vmem>>, vector<16x128xbf16>
    %cst_13 = arith.constant dense<0.000000e+00> : vector<288x128xf32>
    %31 = tpu.matmul %29, %30, %cst_13 {dimension_numbers = #tpu.dot_dimension_numbers<[1], [0], [0], [1], [0, 0, 1, 1], [], []>} : vector<288x16xbf16>, vector<16x128xbf16>, vector<288x128xf32> -> vector<288x128xf32>
    %32 = arith.addf %27, %31 : vector<288x128xf32>
    %c0_14 = arith.constant 0 : index
    %c31 = arith.constant 31 : index
    %c0_15 = arith.constant 0 : index
    %33 = vector.load %arg1[%c0_14, %c31, %c0_15] : memref<1x352x16xbf16, #tpu.memory_space<vmem>>, vector<1x288x16xbf16>
    %34 = vector.shape_cast %33 : vector<1x288x16xbf16> to vector<288x16xbf16>
    %c48 = arith.constant 48 : index
    %c0_16 = arith.constant 0 : index
    %35 = vector.load %arg2[%c48, %c0_16] : memref<144x128xbf16, #tpu.memory_space<vmem>>, vector<16x128xbf16>
    %cst_17 = arith.constant dense<0.000000e+00> : vector<288x128xf32>
    %36 = tpu.matmul %34, %35, %cst_17 {dimension_numbers = #tpu.dot_dimension_numbers<[1], [0], [0], [1], [0, 0, 1, 1], [], []>} : vector<288x16xbf16>, vector<16x128xbf16>, vector<288x128xf32> -> vector<288x128xf32>
    %37 = arith.addf %32, %36 : vector<288x128xf32>
    %c0_18 = arith.constant 0 : index
    %c32_19 = arith.constant 32 : index
    %c0_20 = arith.constant 0 : index
    %38 = vector.load %arg1[%c0_18, %c32_19, %c0_20] : memref<1x352x16xbf16, #tpu.memory_space<vmem>>, vector<1x288x16xbf16>
    %39 = vector.shape_cast %38 : vector<1x288x16xbf16> to vector<288x16xbf16>
    %c64 = arith.constant 64 : index
    %c0_21 = arith.constant 0 : index
    %40 = vector.load %arg2[%c64, %c0_21] : memref<144x128xbf16, #tpu.memory_space<vmem>>, vector<16x128xbf16>
    %cst_22 = arith.constant dense<0.000000e+00> : vector<288x128xf32>
    %41 = tpu.matmul %39, %40, %cst_22 {dimension_numbers = #tpu.dot_dimension_numbers<[1], [0], [0], [1], [0, 0, 1, 1], [], []>} : vector<288x16xbf16>, vector<16x128xbf16>, vector<288x128xf32> -> vector<288x128xf32>
    %42 = arith.addf %37, %41 : vector<288x128xf32>
    %c0_23 = arith.constant 0 : index
    %c33 = arith.constant 33 : index
    %c0_24 = arith.constant 0 : index
    %43 = vector.load %arg1[%c0_23, %c33, %c0_24] : memref<1x352x16xbf16, #tpu.memory_space<vmem>>, vector<1x288x16xbf16>
    %44 = vector.shape_cast %43 : vector<1x288x16xbf16> to vector<288x16xbf16>
    %c80 = arith.constant 80 : index
    %c0_25 = arith.constant 0 : index
    %45 = vector.load %arg2[%c80, %c0_25] : memref<144x128xbf16, #tpu.memory_space<vmem>>, vector<16x128xbf16>
    %cst_26 = arith.constant dense<0.000000e+00> : vector<288x128xf32>
    %46 = tpu.matmul %44, %45, %cst_26 {dimension_numbers = #tpu.dot_dimension_numbers<[1], [0], [0], [1], [0, 0, 1, 1], [], []>} : vector<288x16xbf16>, vector<16x128xbf16>, vector<288x128xf32> -> vector<288x128xf32>
    %47 = arith.addf %42, %46 : vector<288x128xf32>
    %c0_27 = arith.constant 0 : index
    %c49 = arith.constant 49 : index
    %c0_28 = arith.constant 0 : index
    %48 = vector.load %arg1[%c0_27, %c49, %c0_28] : memref<1x352x16xbf16, #tpu.memory_space<vmem>>, vector<1x288x16xbf16>
    %49 = vector.shape_cast %48 : vector<1x288x16xbf16> to vector<288x16xbf16>
    %c96 = arith.constant 96 : index
    %c0_29 = arith.constant 0 : index
    %50 = vector.load %arg2[%c96, %c0_29] : memref<144x128xbf16, #tpu.memory_space<vmem>>, vector<16x128xbf16>
    %cst_30 = arith.constant dense<0.000000e+00> : vector<288x128xf32>
    %51 = tpu.matmul %49, %50, %cst_30 {dimension_numbers = #tpu.dot_dimension_numbers<[1], [0], [0], [1], [0, 0, 1, 1], [], []>} : vector<288x16xbf16>, vector<16x128xbf16>, vector<288x128xf32> -> vector<288x128xf32>
    %52 = arith.addf %47, %51 : vector<288x128xf32>
    %c0_31 = arith.constant 0 : index
    %c50 = arith.constant 50 : index
    %c0_32 = arith.constant 0 : index
    %53 = vector.load %arg1[%c0_31, %c50, %c0_32] : memref<1x352x16xbf16, #tpu.memory_space<vmem>>, vector<1x288x16xbf16>
    %54 = vector.shape_cast %53 : vector<1x288x16xbf16> to vector<288x16xbf16>
    %c112 = arith.constant 112 : index
    %c0_33 = arith.constant 0 : index
    %55 = vector.load %arg2[%c112, %c0_33] : memref<144x128xbf16, #tpu.memory_space<vmem>>, vector<16x128xbf16>
    %cst_34 = arith.constant dense<0.000000e+00> : vector<288x128xf32>
    %56 = tpu.matmul %54, %55, %cst_34 {dimension_numbers = #tpu.dot_dimension_numbers<[1], [0], [0], [1], [0, 0, 1, 1], [], []>} : vector<288x16xbf16>, vector<16x128xbf16>, vector<288x128xf32> -> vector<288x128xf32>
    %57 = arith.addf %52, %56 : vector<288x128xf32>
    %c0_35 = arith.constant 0 : index
    %c51 = arith.constant 51 : index
    %c0_36 = arith.constant 0 : index
    %58 = vector.load %arg1[%c0_35, %c51, %c0_36] : memref<1x352x16xbf16, #tpu.memory_space<vmem>>, vector<1x288x16xbf16>
    %59 = vector.shape_cast %58 : vector<1x288x16xbf16> to vector<288x16xbf16>
    %c128 = arith.constant 128 : index
    %c0_37 = arith.constant 0 : index
    %60 = vector.load %arg2[%c128, %c0_37] : memref<144x128xbf16, #tpu.memory_space<vmem>>, vector<16x128xbf16>
    %cst_38 = arith.constant dense<0.000000e+00> : vector<288x128xf32>
    %61 = tpu.matmul %59, %60, %cst_38 {dimension_numbers = #tpu.dot_dimension_numbers<[1], [0], [0], [1], [0, 0, 1, 1], [], []>} : vector<288x16xbf16>, vector<16x128xbf16>, vector<288x128xf32> -> vector<288x128xf32>
    %62 = arith.addf %57, %61 : vector<288x128xf32>
    %c0_39 = arith.constant 0 : index
    %c0_40 = arith.constant 0 : index
    %63 = vector.load %arg3[%c0_39, %c0_40] : memref<1x128xf32, #tpu.memory_space<vmem>>, vector<1x128xf32>
    %64 = vector.broadcast %63 : vector<1x128xf32> to vector<288x128xf32>
    %65 = arith.addf %62, %64 : vector<288x128xf32>
    %cst_41 = arith.constant 0.000000e+00 : f32
    %66 = vector.broadcast %cst_41 : f32 to vector<288x128xf32>
    %67 = arith.maximumf %65, %66 : vector<288x128xf32>
    %cst_42 = arith.constant 0.000000e+00 : f32
    %68 = vector.shape_cast %18 : vector<288x1xi1> to vector<288x1xi1>
    %69 = vector.broadcast %68 : vector<288x1xi1> to vector<288x128xi1>
    %70 = vector.broadcast %cst_42 : f32 to vector<288x128xf32>
    %71 = arith.select %69, %67, %70 : vector<288x128xi1>, vector<288x128xf32>
    %cst_43 = arith.constant 0.000000e+00 : bf16
    %72 = vector.broadcast %cst_43 : bf16 to vector<32x128xbf16>
    %c0_44 = arith.constant 0 : index
    %c0_45 = arith.constant 0 : index
    %73 = vector.load %arg8[%c0_44, %c0_45] : memref<352x128xbf16, #tpu.memory_space<vmem>>, vector<32x128xbf16>
    tpu.vector_store %arg8[%c0_44, %c0_45], %72 {strides = array<i32>} : memref<352x128xbf16, #tpu.memory_space<vmem>>, vector<32x128xbf16>,
    %cst_46 = arith.constant 0.000000e+00 : bf16
    %74 = vector.broadcast %cst_46 : bf16 to vector<32x128xbf16>
    %c320 = arith.constant 320 : index
    %c0_47 = arith.constant 0 : index
    %75 = vector.load %arg8[%c320, %c0_47] : memref<352x128xbf16, #tpu.memory_space<vmem>>, vector<32x128xbf16>
    tpu.vector_store %arg8[%c320, %c0_47], %74 {strides = array<i32>} : memref<352x128xbf16, #tpu.memory_space<vmem>>, vector<32x128xbf16>,
    %76 = arith.truncf %71 : vector<288x128xf32> to vector<288x128xbf16>
    %c32_48 = arith.constant 32 : index
    %c0_49 = arith.constant 0 : index
    %77 = vector.load %arg8[%c32_48, %c0_49] : memref<352x128xbf16, #tpu.memory_space<vmem>>, vector<288x128xbf16>
    tpu.vector_store %arg8[%c32_48, %c0_49], %76 {strides = array<i32>} : memref<352x128xbf16, #tpu.memory_space<vmem>>, vector<288x128xbf16>,
    %c13_50 = arith.constant 13 : index
    %c0_51 = arith.constant 0 : index
    %78 = vector.load %arg8[%c13_50, %c0_51] : memref<352x128xbf16, #tpu.memory_space<vmem>>, vector<288x128xbf16>
    %c0_52 = arith.constant 0 : index
    %c0_53 = arith.constant 0 : index
    %79 = vector.load %arg4[%c0_52, %c0_53] : memref<1152x128xbf16, #tpu.memory_space<vmem>>, vector<128x128xbf16>
    %cst_54 = arith.constant dense<0.000000e+00> : vector<288x128xf32>
    %80 = tpu.matmul %78, %79, %cst_54 {dimension_numbers = #tpu.dot_dimension_numbers<[1], [0], [0], [1], [0, 0, 1, 1], [], []>} : vector<288x128xbf16>, vector<128x128xbf16>, vector<288x128xf32> -> vector<288x128xf32>
    %c14_55 = arith.constant 14 : index
    %c0_56 = arith.constant 0 : index
    %81 = vector.load %arg8[%c14_55, %c0_56] : memref<352x128xbf16, #tpu.memory_space<vmem>>, vector<288x128xbf16>
    %c128_57 = arith.constant 128 : index
    %c0_58 = arith.constant 0 : index
    %82 = vector.load %arg4[%c128_57, %c0_58] : memref<1152x128xbf16, #tpu.memory_space<vmem>>, vector<128x128xbf16>
    %cst_59 = arith.constant dense<0.000000e+00> : vector<288x128xf32>
    %83 = tpu.matmul %81, %82, %cst_59 {dimension_numbers = #tpu.dot_dimension_numbers<[1], [0], [0], [1], [0, 0, 1, 1], [], []>} : vector<288x128xbf16>, vector<128x128xbf16>, vector<288x128xf32> -> vector<288x128xf32>
    %84 = arith.addf %80, %83 : vector<288x128xf32>
    %c15_60 = arith.constant 15 : index
    %c0_61 = arith.constant 0 : index
    %85 = vector.load %arg8[%c15_60, %c0_61] : memref<352x128xbf16, #tpu.memory_space<vmem>>, vector<288x128xbf16>
    %c256 = arith.constant 256 : index
    %c0_62 = arith.constant 0 : index
    %86 = vector.load %arg4[%c256, %c0_62] : memref<1152x128xbf16, #tpu.memory_space<vmem>>, vector<128x128xbf16>
    %cst_63 = arith.constant dense<0.000000e+00> : vector<288x128xf32>
    %87 = tpu.matmul %85, %86, %cst_63 {dimension_numbers = #tpu.dot_dimension_numbers<[1], [0], [0], [1], [0, 0, 1, 1], [], []>} : vector<288x128xbf16>, vector<128x128xbf16>, vector<288x128xf32> -> vector<288x128xf32>
    %88 = arith.addf %84, %87 : vector<288x128xf32>
    %c31_64 = arith.constant 31 : index
    %c0_65 = arith.constant 0 : index
    %89 = vector.load %arg8[%c31_64, %c0_65] : memref<352x128xbf16, #tpu.memory_space<vmem>>, vector<288x128xbf16>
    %c384 = arith.constant 384 : index
    %c0_66 = arith.constant 0 : index
    %90 = vector.load %arg4[%c384, %c0_66] : memref<1152x128xbf16, #tpu.memory_space<vmem>>, vector<128x128xbf16>
    %cst_67 = arith.constant dense<0.000000e+00> : vector<288x128xf32>
    %91 = tpu.matmul %89, %90, %cst_67 {dimension_numbers = #tpu.dot_dimension_numbers<[1], [0], [0], [1], [0, 0, 1, 1], [], []>} : vector<288x128xbf16>, vector<128x128xbf16>, vector<288x128xf32> -> vector<288x128xf32>
    %92 = arith.addf %88, %91 : vector<288x128xf32>
    %c32_68 = arith.constant 32 : index
    %c0_69 = arith.constant 0 : index
    %93 = vector.load %arg8[%c32_68, %c0_69] : memref<352x128xbf16, #tpu.memory_space<vmem>>, vector<288x128xbf16>
    %c512 = arith.constant 512 : index
    %c0_70 = arith.constant 0 : index
    %94 = vector.load %arg4[%c512, %c0_70] : memref<1152x128xbf16, #tpu.memory_space<vmem>>, vector<128x128xbf16>
    %cst_71 = arith.constant dense<0.000000e+00> : vector<288x128xf32>
    %95 = tpu.matmul %93, %94, %cst_71 {dimension_numbers = #tpu.dot_dimension_numbers<[1], [0], [0], [1], [0, 0, 1, 1], [], []>} : vector<288x128xbf16>, vector<128x128xbf16>, vector<288x128xf32> -> vector<288x128xf32>
    %96 = arith.addf %92, %95 : vector<288x128xf32>
    %c33_72 = arith.constant 33 : index
    %c0_73 = arith.constant 0 : index
    %97 = vector.load %arg8[%c33_72, %c0_73] : memref<352x128xbf16, #tpu.memory_space<vmem>>, vector<288x128xbf16>
    %c640 = arith.constant 640 : index
    %c0_74 = arith.constant 0 : index
    %98 = vector.load %arg4[%c640, %c0_74] : memref<1152x128xbf16, #tpu.memory_space<vmem>>, vector<128x128xbf16>
    %cst_75 = arith.constant dense<0.000000e+00> : vector<288x128xf32>
    %99 = tpu.matmul %97, %98, %cst_75 {dimension_numbers = #tpu.dot_dimension_numbers<[1], [0], [0], [1], [0, 0, 1, 1], [], []>} : vector<288x128xbf16>, vector<128x128xbf16>, vector<288x128xf32> -> vector<288x128xf32>
    %100 = arith.addf %96, %99 : vector<288x128xf32>
    %c49_76 = arith.constant 49 : index
    %c0_77 = arith.constant 0 : index
    %101 = vector.load %arg8[%c49_76, %c0_77] : memref<352x128xbf16, #tpu.memory_space<vmem>>, vector<288x128xbf16>
    %c768 = arith.constant 768 : index
    %c0_78 = arith.constant 0 : index
    %102 = vector.load %arg4[%c768, %c0_78] : memref<1152x128xbf16, #tpu.memory_space<vmem>>, vector<128x128xbf16>
    %cst_79 = arith.constant dense<0.000000e+00> : vector<288x128xf32>
    %103 = tpu.matmul %101, %102, %cst_79 {dimension_numbers = #tpu.dot_dimension_numbers<[1], [0], [0], [1], [0, 0, 1, 1], [], []>} : vector<288x128xbf16>, vector<128x128xbf16>, vector<288x128xf32> -> vector<288x128xf32>
    %104 = arith.addf %100, %103 : vector<288x128xf32>
    %c50_80 = arith.constant 50 : index
    %c0_81 = arith.constant 0 : index
    %105 = vector.load %arg8[%c50_80, %c0_81] : memref<352x128xbf16, #tpu.memory_space<vmem>>, vector<288x128xbf16>
    %c896 = arith.constant 896 : index
    %c0_82 = arith.constant 0 : index
    %106 = vector.load %arg4[%c896, %c0_82] : memref<1152x128xbf16, #tpu.memory_space<vmem>>, vector<128x128xbf16>
    %cst_83 = arith.constant dense<0.000000e+00> : vector<288x128xf32>
    %107 = tpu.matmul %105, %106, %cst_83 {dimension_numbers = #tpu.dot_dimension_numbers<[1], [0], [0], [1], [0, 0, 1, 1], [], []>} : vector<288x128xbf16>, vector<128x128xbf16>, vector<288x128xf32> -> vector<288x128xf32>
    %108 = arith.addf %104, %107 : vector<288x128xf32>
    %c51_84 = arith.constant 51 : index
    %c0_85 = arith.constant 0 : index
    %109 = vector.load %arg8[%c51_84, %c0_85] : memref<352x128xbf16, #tpu.memory_space<vmem>>, vector<288x128xbf16>
    %c1024 = arith.constant 1024 : index
    %c0_86 = arith.constant 0 : index
    %110 = vector.load %arg4[%c1024, %c0_86] : memref<1152x128xbf16, #tpu.memory_space<vmem>>, vector<128x128xbf16>
    %cst_87 = arith.constant dense<0.000000e+00> : vector<288x128xf32>
    %111 = tpu.matmul %109, %110, %cst_87 {dimension_numbers = #tpu.dot_dimension_numbers<[1], [0], [0], [1], [0, 0, 1, 1], [], []>} : vector<288x128xbf16>, vector<128x128xbf16>, vector<288x128xf32> -> vector<288x128xf32>
    %112 = arith.addf %108, %111 : vector<288x128xf32>
    %c0_88 = arith.constant 0 : index
    %c32_89 = arith.constant 32 : index
    %c0_90 = arith.constant 0 : index
    %113 = vector.load %arg1[%c0_88, %c32_89, %c0_90] : memref<1x352x16xbf16, #tpu.memory_space<vmem>>, vector<1x288x16xbf16>
    %114 = vector.shape_cast %113 : vector<1x288x16xbf16> to vector<288x16xbf16>
    %c0_91 = arith.constant 0 : index
    %c0_92 = arith.constant 0 : index
    %115 = vector.load %arg5[%c0_91, %c0_92] : memref<16x128xbf16, #tpu.memory_space<vmem>>, vector<16x128xbf16>
    %cst_93 = arith.constant dense<0.000000e+00> : vector<288x128xf32>
    %116 = tpu.matmul %114, %115, %cst_93 {dimension_numbers = #tpu.dot_dimension_numbers<[1], [0], [0], [1], [0, 0, 1, 1], [], []>} : vector<288x16xbf16>, vector<16x128xbf16>, vector<288x128xf32> -> vector<288x128xf32>
    %117 = arith.addf %112, %116 : vector<288x128xf32>
    %c0_94 = arith.constant 0 : index
    %c0_95 = arith.constant 0 : index
    %118 = vector.load %arg6[%c0_94, %c0_95] : memref<1x128xf32, #tpu.memory_space<vmem>>, vector<1x128xf32>
    %119 = vector.broadcast %118 : vector<1x128xf32> to vector<288x128xf32>
    %120 = arith.addf %117, %119 : vector<288x128xf32>
    %cst_96 = arith.constant 0.000000e+00 : f32
    %121 = vector.broadcast %cst_96 : f32 to vector<288x128xf32>
    %122 = arith.maximumf %120, %121 : vector<288x128xf32>
    %c0_97 = arith.constant 0 : index
    %c0_98 = arith.constant 0 : index
    %c0_99 = arith.constant 0 : index
    %123 = vector.load %arg7[%c0_97, %c0_98, %c0_99] : memref<1x288x128xf32, #tpu.memory_space<vmem>>, vector<1x288x128xf32>
    %124 = vector.shape_cast %123 : vector<1x288x128xf32> to vector<288x128xf32>
    %125 = vector.shape_cast %122 : vector<288x128xf32> to vector<1x288x128xf32>
    tpu.vector_store %arg7[%c0_97, %c0_98, %c0_99], %125 {strides = array<i32>} : memref<1x288x128xf32, #tpu.memory_space<vmem>>, vector<1x288x128xf32>,
    return
  }
  func.func @transform_0(%arg0: i32) -> (i32, i32, i32) {
    %c0_i32 = arith.constant 0 : i32
    %c0_i32_0 = arith.constant 0 : i32
    %c0_i32_1 = arith.constant 0 : i32
    return %arg0, %c0_i32, %c0_i32_0 : i32, i32, i32
  }
  func.func @transform_1(%arg0: i32) -> (i32, i32) {
    %c0_i32 = arith.constant 0 : i32
    %c0_i32_0 = arith.constant 0 : i32
    %c0_i32_1 = arith.constant 0 : i32
    return %c0_i32, %c0_i32_0 : i32, i32
  }
  func.func @transform_2(%arg0: i32) -> (i32, i32) {
    %c0_i32 = arith.constant 0 : i32
    %c0_i32_0 = arith.constant 0 : i32
    %c0_i32_1 = arith.constant 0 : i32
    return %c0_i32, %c0_i32_0 : i32, i32
  }
  func.func @transform_3(%arg0: i32) -> (i32, i32) {
    %c0_i32 = arith.constant 0 : i32
    %c0_i32_0 = arith.constant 0 : i32
    %c0_i32_1 = arith.constant 0 : i32
    return %c0_i32, %c0_i32_0 : i32, i32
  }
  func.func @transform_4(%arg0: i32) -> (i32, i32) {
    %c0_i32 = arith.constant 0 : i32
    %c0_i32_0 = arith.constant 0 : i32
    %c0_i32_1 = arith.constant 0 : i32
    return %c0_i32, %c0_i32_0 : i32, i32
  }
  func.func @transform_5(%arg0: i32) -> (i32, i32) {
    %c0_i32 = arith.constant 0 : i32
    %c0_i32_0 = arith.constant 0 : i32
    %c0_i32_1 = arith.constant 0 : i32
    return %c0_i32, %c0_i32_0 : i32, i32
  }
  func.func @transform_6(%arg0: i32) -> (i32, i32, i32) {
    %c0_i32 = arith.constant 0 : i32
    %c0_i32_0 = arith.constant 0 : i32
    %c0_i32_1 = arith.constant 0 : i32
    return %arg0, %c0_i32, %c0_i32_0 : i32, i32, i32
  }
}

</mosaic_0001>

<llo_original>
// kernel: double_conv_bottleneck.1
$region0: #{double_conv_bottleneck.1}
  #allocation0 [shape = 'u32[]', space=smem, size = 0x4, offset = 0x4, fixed_abs, tag = 'smem constant byte address 0x4 - core index']
  #allocation1 [shape = 'u32[144,128]{1,0:T(1,128)}', space=vmem, size = 0x12000, scoped, tag = 'internal scratch']
  #allocation2 [shape = 'bf16[352,128]{1,0:T(16,128)(2,1)}', space=vmem, size = 0x16000, scoped, tag = 'scratch operand']
  %s0 = inlined_call_operand.vmem [shape: bf16[2,352,16], index: 0, kind: input, shape index: {}]
  %s1 = inlined_call_operand.vmem [shape: bf16[144,128], index: 1, kind: input, shape index: {}]
  %s2 = inlined_call_operand.vmem [shape: f32[1,128], index: 2, kind: input, shape index: {}]
  %s3 = inlined_call_operand.vmem [shape: bf16[1152,128], index: 3, kind: input, shape index: {}]
  %s4 = inlined_call_operand.vmem [shape: bf16[16,128], index: 4, kind: input, shape index: {}]
  %s5 = inlined_call_operand.vmem [shape: f32[1,128], index: 5, kind: input, shape index: {}]
  %s6 = inlined_call_operand.vmem [shape: f32[2,288,128], index: 6, kind: output, shape index: {}]
  %s7 = sld [smem:[#allocation0]]
  $region57: #{double_conv_bottleneck.1} parent=0
    _
  %s9 = ssub.s32 1, %s7
  %s10 = scalar_select 0, %s9, %s7
  loop: start=0, step=1, limit=4
  $region2: #{double_conv_bottleneck.1} parent=0 // loop_pre_header
    _
  $region3: #{double_conv_bottleneck.1} parent=0 // loop_header
    %s12 = sphi 0, %s16
    %p13 = scmp.ge.s32.totalorder %s12, 4
    %s22 = sphi 0, %s24
    %s25 = sphi 0, %s22
    %s26 = sphi 0, %s25
    %s42 = sphi 0, %s26
    %s46 = sphi 0, %s46
    %s48 = sphi 0, %s46
    %s49 = sphi 0, %s48
    %s63 = sphi 0, %s49
    %s67 = sphi 0, %s67
    %s69 = sphi 0, %s67
    %s70 = sphi 0, %s69
    %s84 = sphi 0, %s70
    %s88 = sphi 0, %s88
    %s90 = sphi 0, %s88
    %s91 = sphi 0, %s90
    %s105 = sphi 0, %s91
    %s109 = sphi 0, %s109
    %s111 = sphi 0, %s109
    %s112 = sphi 0, %s111
    %s126 = sphi 0, %s112
    %s130 = sphi 0, %s130
    %s132 = sphi 0, %s130
    %s133 = sphi 0, %s132
    %s147 = sphi 0, %s133
    %s153 = sphi 0, %s155
    %s156 = sphi 0, %s153
    %s157 = sphi 0, %s156
    %s173 = sphi 0, %s157
  $region4: #{double_conv_bottleneck.1} parent=0 // loop_header_branch
    %15 = sbr.rel (%p13) target = $region8
  $region5: #{double_conv_bottleneck.1} parent=0 // loop_body
    %s17 = ssub.s32 %s12, 1
    %s18 = ssub.s32 %s12, 2
    %s19 = sadd.s32 %s12, 1
    %s20 = ssub.s32 %s12, %s19
    %p21 = scmp.eq.s32.totalorder %s20, 0
    %s23 = sadd.s32 %s22, 1
    %s24 = scalar_select %p21, %s22, %s23
    %p27 = pneg %p21
    %p28 = scmp.eq.s32.totalorder %s12, 1
    %p29 = por %p27, %p28
    %p30 = scmp.ne.s32.totalorder %s22, %s25
    %p31 = scmp.eq.s32.totalorder %s12, 0
    %p32 = por %p30, %p31
    %p33 = scmp.ne.s32.totalorder %s22, %s25
    %p34 = scmp.eq.s32.totalorder %s17, 1
    %p35 = por %p33, %p34
    %p36 = scmp.ne.s32.totalorder %s25, %s26
    %p37 = scmp.eq.s32.totalorder %s17, 0
    %p38 = por %p36, %p37
    %p39 = scmp.ne.s32.totalorder %s25, %s26
    %p40 = scmp.eq.s32.totalorder %s18, 1
    %p41 = por %p39, %p40
    %p43 = scmp.ne.s32.totalorder %s26, %s42
    %p44 = scmp.eq.s32.totalorder %s18, 0
    %p45 = por %p43, %p44
    %s47 = sadd.s32 %s46, 1
    %p50 = scmp.eq.s32.totalorder %s12, 1
    %p51 = scmp.ne.s32.totalorder %s46, %s48
    %p52 = scmp.eq.s32.totalorder %s12, 0
    %p53 = por %p51, %p52
    %p54 = scmp.ne.s32.totalorder %s46, %s48
    %p55 = scmp.eq.s32.totalorder %s17, 1
    %p56 = por %p54, %p55
    %p57 = scmp.ne.s32.totalorder %s48, %s49
    %p58 = scmp.eq.s32.totalorder %s17, 0
    %p59 = por %p57, %p58
    %p60 = scmp.ne.s32.totalorder %s48, %s49
    %p61 = scmp.eq.s32.totalorder %s18, 1
    %p62 = por %p60, %p61
    %p64 = scmp.ne.s32.totalorder %s49, %s63
    %p65 = scmp.eq.s32.totalorder %s18, 0
    %p66 = por %p64, %p65
    %s68 = sadd.s32 %s67, 1
    %p71 = scmp.eq.s32.totalorder %s12, 1
    %p72 = scmp.ne.s32.totalorder %s67, %s69
    %p73 = scmp.eq.s32.totalorder %s12, 0
    %p74 = por %p72, %p73
    %p75 = scmp.ne.s32.totalorder %s67, %s69
    %p76 = scmp.eq.s32.totalorder %s17, 1
    %p77 = por %p75, %p76
    %p78 = scmp.ne.s32.totalorder %s69, %s70
    %p79 = scmp.eq.s32.totalorder %s17, 0
    %p80 = por %p78, %p79
    %p81 = scmp.ne.s32.totalorder %s69, %s70
    %p82 = scmp.eq.s32.totalorder %s18, 1
    %p83 = por %p81, %p82
    %p85 = scmp.ne.s32.totalorder %s70, %s84
    %p86 = scmp.eq.s32.totalorder %s18, 0
    %p87 = por %p85, %p86
    %s89 = sadd.s32 %s88, 1
    %p92 = scmp.eq.s32.totalorder %s12, 1
    %p93 = scmp.ne.s32.totalorder %s88, %s90
    %p94 = scmp.eq.s32.totalorder %s12, 0
    %p95 = por %p93, %p94
    %p96 = scmp.ne.s32.totalorder %s88, %s90
    %p97 = scmp.eq.s32.totalorder %s17, 1
    %p98 = por %p96, %p97
    %p99 = scmp.ne.s32.totalorder %s90, %s91
    %p100 = scmp.eq.s32.totalorder %s17, 0
    %p101 = por %p99, %p100
    %p102 = scmp.ne.s32.totalorder %s90, %s91
    %p103 = scmp.eq.s32.totalorder %s18, 1
    %p104 = por %p102, %p103
    %p106 = scmp.ne.s32.totalorder %s91, %s105
    %p107 = scmp.eq.s32.totalorder %s18, 0
    %p108 = por %p106, %p107
    %s110 = sadd.s32 %s109, 1
    %p113 = scmp.eq.s32.totalorder %s12, 1
    %p114 = scmp.ne.s32.totalorder %s109, %s111
    %p115 = scmp.eq.s32.totalorder %s12, 0
    %p116 = por %p114, %p115
    %p117 = scmp.ne.s32.totalorder %s109, %s111
    %p118 = scmp.eq.s32.totalorder %s17, 1
    %p119 = por %p117, %p118
    %p120 = scmp.ne.s32.totalorder %s111, %s112
    %p121 = scmp.eq.s32.totalorder %s17, 0
    %p122 = por %p120, %p121
    %p123 = scmp.ne.s32.totalorder %s111, %s112
    %p124 = scmp.eq.s32.totalorder %s18, 1
    %p125 = por %p123, %p124
    %p127 = scmp.ne.s32.totalorder %s112, %s126
    %p128 = scmp.eq.s32.totalorder %s18, 0
    %p129 = por %p127, %p128
    %s131 = sadd.s32 %s130, 1
    %p134 = scmp.eq.s32.totalorder %s12, 1
    %p135 = scmp.ne.s32.totalorder %s130, %s132
    %p136 = scmp.eq.s32.totalorder %s12, 0
    %p137 = por %p135, %p136
    %p138 = scmp.ne.s32.totalorder %s130, %s132
    %p139 = scmp.eq.s32.totalorder %s17, 1
    %p140 = por %p138, %p139
    %p141 = scmp.ne.s32.totalorder %s132, %s133
    %p142 = scmp.eq.s32.totalorder %s17, 0
    %p143 = por %p141, %p142
    %p144 = scmp.ne.s32.totalorder %s132, %s133
    %p145 = scmp.eq.s32.totalorder %s18, 1
    %p146 = por %p144, %p145
    %p148 = scmp.ne.s32.totalorder %s133, %s147
    %p149 = scmp.eq.s32.totalorder %s18, 0
    %p150 = por %p148, %p149
    %s151 = ssub.s32 %s12, %s19
    %p152 = scmp.eq.s32.totalorder %s151, 0
    %s154 = sadd.s32 %s153, 1
    %s155 = scalar_select %p152, %s153, %s154
    %p158 = pneg %p152
    %p159 = scmp.eq.s32.totalorder %s12, 1
    %p160 = por %p158, %p159
    %p161 = scmp.ne.s32.totalorder %s153, %s156
    %p162 = scmp.eq.s32.totalorder %s12, 0
    %p163 = por %p161, %p162
    %p164 = scmp.ne.s32.totalorder %s153, %s156
    %p165 = scmp.eq.s32.totalorder %s17, 1
    %p166 = por %p164, %p165
    %p167 = scmp.ne.s32.totalorder %s156, %s157
    %p168 = scmp.eq.s32.totalorder %s17, 0
    %p169 = por %p167, %p168
    %p170 = scmp.ne.s32.totalorder %s156, %s157
    %p171 = scmp.eq.s32.totalorder %s18, 1
    %p172 = por %p170, %p171
    %p174 = scmp.ne.s32.totalorder %s157, %s173
    %p175 = scmp.eq.s32.totalorder %s18, 0
    %p176 = por %p174, %p175
    %p177 = scmp.le.s32.totalorder 1, %s12
    %p178 = scmp.lt.s32.totalorder %s12, 3
    %p179 = pnand %p177, %p178
    %p180 = pneg %p179
    // Predicated region
    $region9: #{double_conv_bottleneck.1} parent=5 // pred_check
      _
    $region10: #{double_conv_bottleneck.1} parent=5 // pred_check_branch
      %182 = sbr.rel (%p179) target = $region12
    $region11: #{double_conv_bottleneck.1} parent=5 // pred_region
      %s183 = ssub.s32 %s12, 1
      // Predicated region
      $region13: #{double_conv_bottleneck.1} parent=11 // pred_check
        %p184 = pneg %p59
      $region14: #{double_conv_bottleneck.1} parent=11 // pred_check_branch
        %186 = sbr.rel (%p184) target = $region16
      $region15: #{double_conv_bottleneck.1} parent=11 // pred_region
        _
      $region16: #{double_conv_bottleneck.1} parent=11 // pred_fallthru
        _
      // Predicated region
      $region17: #{double_conv_bottleneck.1} parent=11 // pred_check
        %p187 = pneg %p80
      $region18: #{double_conv_bottleneck.1} parent=11 // pred_check_branch
        %189 = sbr.rel (%p187) target = $region20
      $region19: #{double_conv_bottleneck.1} parent=11 // pred_region
        _
      $region20: #{double_conv_bottleneck.1} parent=11 // pred_fallthru
        _
      // Predicated region
      $region21: #{double_conv_bottleneck.1} parent=11 // pred_check
        %p190 = pneg %p101
      $region22: #{double_conv_bottleneck.1} parent=11 // pred_check_branch
        %192 = sbr.rel (%p190) target = $region24
      $region23: #{double_conv_bottleneck.1} parent=11 // pred_region
        _
      $region24: #{double_conv_bottleneck.1} parent=11 // pred_fallthru
        _
      // Predicated region
      $region25: #{double_conv_bottleneck.1} parent=11 // pred_check
        %p193 = pneg %p122
      $region26: #{double_conv_bottleneck.1} parent=11 // pred_check_branch
        %195 = sbr.rel (%p193) target = $region28
      $region27: #{double_conv_bottleneck.1} parent=11 // pred_region
        _
      $region28: #{double_conv_bottleneck.1} parent=11 // pred_fallthru
        _
      // Predicated region
      $region29: #{double_conv_bottleneck.1} parent=11 // pred_check
        %p196 = pneg %p143
      $region30: #{double_conv_bottleneck.1} parent=11 // pred_check_branch
        %198 = sbr.rel (%p196) target = $region32
      $region31: #{double_conv_bottleneck.1} parent=11 // pred_region
        _
      $region32: #{double_conv_bottleneck.1} parent=11 // pred_fallthru
        _
    $region12: #{double_conv_bottleneck.1} parent=5 // pred_fallthru
      _
    %p199 = scmp.lt.s32.totalorder %s12, 2
    // Predicated region
    $region33: #{double_conv_bottleneck.1} parent=5 // pred_check
      %p200 = pneg %p199
    $region34: #{double_conv_bottleneck.1} parent=5 // pred_check_branch
      %202 = sbr.rel (%p200) target = $region36
    $region35: #{double_conv_bottleneck.1} parent=5 // pred_region
      // Predicated region
      $region37: #{double_conv_bottleneck.1} parent=35 // pred_check
        %p203 = pneg %p32
      $region38: #{double_conv_bottleneck.1} parent=35 // pred_check_branch
        %205 = sbr.rel (%p203) target = $region40
      $region39: #{double_conv_bottleneck.1} parent=35 // pred_region
        %p206 = scmp.lt.s32.totalorder %s12, 1
        %s207 = scalar_select %p206, %s12, 1
        %s208 = smul.addr %s207, 44
        %s209 = smul.addr %s208, 4
        %s210 = scalar_lea.vmem %s0, %s209
      $region40: #{double_conv_bottleneck.1} parent=35 // pred_fallthru
        _
    $region36: #{double_conv_bottleneck.1} parent=5 // pred_fallthru
      _
    %p211 = scmp.le.s32.totalorder 1, %s12
    %p212 = scmp.lt.s32.totalorder %s12, 3
    %p213 = pnand %p211, %p212
    %p214 = pneg %p213
    // Predicated region
    $region41: #{double_conv_bottleneck.1} parent=5 // pred_check
      _
    $region42: #{double_conv_bottleneck.1} parent=5 // pred_check_branch
      %216 = sbr.rel (%p213) target = $region44
    $region43: #{double_conv_bottleneck.1} parent=5 // pred_region
      %s217 = ssub.s32 %s12, 1
      %p218 = scmp.lt.s32.totalorder %s17, 1
      %s219 = scalar_select %p218, %s17, 1
      %s220 = smul.addr %s219, 44
      %s221 = smul.addr %s220, 4
      %s222 = scalar_lea.vmem %s0, %s221
      %p223 = pneg %p38
      %p224 = pneg %p35
      %p225 = pneg %p59
      %p226 = pneg %p56
      %p227 = pneg %p80
      %p228 = pneg %p77
      %p229 = pneg %p101
      %p230 = pneg %p98
      %p231 = pneg %p122
      %p232 = pneg %p119
      %p233 = pneg %p143
      %p234 = pneg %p140
      %p235 = pneg %p169
      %p236 = pneg %p166
      %p237 = scmp.lt.s32.totalorder %s17, 1
      %s238 = scalar_select %p237, %s17, 1
      %s239 = smul.addr %s238, 36
      %s240 = smul.addr %s239, 8
      %s241 = scalar_lea.vmem %s6, %s240
      %p242 = scmp.lt.s32.totalorder %s17, 1
      %s243 = scalar_select %p242, %s17, 1
      %s244 = smul.addr %s243, 44
      %s245 = smul.addr %s244, 4
      %s246 = scalar_lea.vmem %s0, %s245
      %p247 = scmp.lt.s32.totalorder %s17, 1
      %s248 = scalar_select %p247, %s17, 1
      %s249 = smul.addr %s248, 36
      %s250 = smul.addr %s249, 8
      %s251 = scalar_lea.vmem %s6, %s250
      %v253 = vlaneseq
      %v254 = vshrl.u32 %v253, 7
      %v255 = vadd.s32 %v254, 8
      %v256 = vadd.s32 %v254, 16
      %v257 = vadd.s32 %v254, 24
      %v258 = vadd.s32 %v254, 32
      %v259 = vadd.s32 %v254, 40
      %v260 = vadd.s32 %v254, 48
      %v261 = vadd.s32 %v254, 56
      %v262 = vadd.s32 %v254, 64
      %v263 = vadd.s32 %v254, 72
      %v264 = vadd.s32 %v254, 80
      %v265 = vadd.s32 %v254, 88
      %v266 = vadd.s32 %v254, 96
      %v267 = vadd.s32 %v254, 104
      %v268 = vadd.s32 %v254, 112
      %v269 = vadd.s32 %v254, 120
      %v270 = vadd.s32 %v254, 128
      %v271 = vadd.s32 %v254, 136
      %v272 = vadd.s32 %v254, 144
      %v273 = vadd.s32 %v254, 152
      %v274 = vadd.s32 %v254, 160
      %v275 = vadd.s32 %v254, 168
      %v276 = vadd.s32 %v254, 176
      %v277 = vadd.s32 %v254, 184
      %v278 = vadd.s32 %v254, 192
      %v279 = vadd.s32 %v254, 200
      %v280 = vadd.s32 %v254, 208
      %v281 = vadd.s32 %v254, 216
      %v282 = vadd.s32 %v254, 224
      %v283 = vadd.s32 %v254, 232
      %v284 = vadd.s32 %v254, 240
      %v285 = vadd.s32 %v254, 248
      %v286 = vadd.s32 %v254, 256
      %v287 = vadd.s32 %v254, 264
      %v288 = vadd.s32 %v254, 272
      %v289 = vadd.s32 %v254, 280
      %vm290 = vcmp.lt.s32.totalorder %v254, 0
      %v291 = vsub.s32 0, %v254
      %v292 = vsel %vm290, %v291, %v254
      %v293 = vmul.u32.u64.compose %v292, 3817748708
      %v294 = vextract.low.u32 %v293
      %v295 = vextract.high.u32 %v293
      %v296 = vshrl.u32 %v295, 4
      %v297 = vmul.u32 %v296, 18
      %v298 = vsub.s32 %v292, %v297
      %v299 = vsub.s32 0, %v298
      %v300 = vsel %vm290, %v299, %v298
      %vm301 = vcmp.lt.s32.totalorder %v255, 0
      %v302 = vsub.s32 0, %v255
      %v303 = vsel %vm301, %v302, %v255
      %v304 = vmul.u32.u64.compose %v303, 3817748708
      %v305 = vextract.low.u32 %v304
      %v306 = vextract.high.u32 %v304
      %v307 = vshrl.u32 %v306, 4
      %v308 = vmul.u32 %v307, 18
      %v309 = vsub.s32 %v303, %v308
      %v310 = vsub.s32 0, %v309
      %v311 = vsel %vm301, %v310, %v309
      %vm312 = vcmp.lt.s32.totalorder %v256, 0
      %v313 = vsub.s32 0, %v256
      %v314 = vsel %vm312, %v313, %v256
      %v315 = vmul.u32.u64.compose %v314, 3817748708
      %v316 = vextract.low.u32 %v315
      %v317 = vextract.high.u32 %v315
      %v318 = vshrl.u32 %v317, 4
      %v319 = vmul.u32 %v318, 18
      %v320 = vsub.s32 %v314, %v319
      %v321 = vsub.s32 0, %v320
      %v322 = vsel %vm312, %v321, %v320
      %vm323 = vcmp.lt.s32.totalorder %v257, 0
      %v324 = vsub.s32 0, %v257
      %v325 = vsel %vm323, %v324, %v257
      %v326 = vmul.u32.u64.compose %v325, 3817748708
      %v327 = vextract.low.u32 %v326
      %v328 = vextract.high.u32 %v326
      %v329 = vshrl.u32 %v328, 4
      %v330 = vmul.u32 %v329, 18
      %v331 = vsub.s32 %v325, %v330
      %v332 = vsub.s32 0, %v331
      %v333 = vsel %vm323, %v332, %v331
      %vm334 = vcmp.lt.s32.totalorder %v258, 0
      %v335 = vsub.s32 0, %v258
      %v336 = vsel %vm334, %v335, %v258
      %v337 = vmul.u32.u64.compose %v336, 3817748708
      %v338 = vextract.low.u32 %v337
      %v339 = vextract.high.u32 %v337
      %v340 = vshrl.u32 %v339, 4
      %v341 = vmul.u32 %v340, 18
      %v342 = vsub.s32 %v336, %v341
      %v343 = vsub.s32 0, %v342
      %v344 = vsel %vm334, %v343, %v342
      %vm345 = vcmp.lt.s32.totalorder %v259, 0
      %v346 = vsub.s32 0, %v259
      %v347 = vsel %vm345, %v346, %v259
      %v348 = vmul.u32.u64.compose %v347, 3817748708
      %v349 = vextract.low.u32 %v348
      %v350 = vextract.high.u32 %v348
      %v351 = vshrl.u32 %v350, 4
      %v352 = vmul.u32 %v351, 18
      %v353 = vsub.s32 %v347, %v352
      %v354 = vsub.s32 0, %v353
      %v355 = vsel %vm345, %v354, %v353
      %vm356 = vcmp.lt.s32.totalorder %v260, 0
      %v357 = vsub.s32 0, %v260
      %v358 = vsel %vm356, %v357, %v260
      %v359 = vmul.u32.u64.compose %v358, 3817748708
      %v360 = vextract.low.u32 %v359
      %v361 = vextract.high.u32 %v359
      %v362 = vshrl.u32 %v361, 4
      %v363 = vmul.u32 %v362, 18
      %v364 = vsub.s32 %v358, %v363
      %v365 = vsub.s32 0, %v364
      %v366 = vsel %vm356, %v365, %v364
      %vm367 = vcmp.lt.s32.totalorder %v261, 0
      %v368 = vsub.s32 0, %v261
      %v369 = vsel %vm367, %v368, %v261
      %v370 = vmul.u32.u64.compose %v369, 3817748708
      %v371 = vextract.low.u32 %v370
      %v372 = vextract.high.u32 %v370
      %v373 = vshrl.u32 %v372, 4
      %v374 = vmul.u32 %v373, 18
      %v375 = vsub.s32 %v369, %v374
      %v376 = vsub.s32 0, %v375
      %v377 = vsel %vm367, %v376, %v375
      %vm378 = vcmp.lt.s32.totalorder %v262, 0
      %v379 = vsub.s32 0, %v262
      %v380 = vsel %vm378, %v379, %v262
      %v381 = vmul.u32.u64.compose %v380, 3817748708
      %v382 = vextract.low.u32 %v381
      %v383 = vextract.high.u32 %v381
      %v384 = vshrl.u32 %v383, 4
      %v385 = vmul.u32 %v384, 18
      %v386 = vsub.s32 %v380, %v385
      %v387 = vsub.s32 0, %v386
      %v388 = vsel %vm378, %v387, %v386
      %vm389 = vcmp.lt.s32.totalorder %v263, 0
      %v390 = vsub.s32 0, %v263
      %v391 = vsel %vm389, %v390, %v263
      %v392 = vmul.u32.u64.compose %v391, 3817748708
      %v393 = vextract.low.u32 %v392
      %v394 = vextract.high.u32 %v392
      %v395 = vshrl.u32 %v394, 4
      %v396 = vmul.u32 %v395, 18
      %v397 = vsub.s32 %v391, %v396
      %v398 = vsub.s32 0, %v397
      %v399 = vsel %vm389, %v398, %v397
      %vm400 = vcmp.lt.s32.totalorder %v264, 0
      %v401 = vsub.s32 0, %v264
      %v402 = vsel %vm400, %v401, %v264
      %v403 = vmul.u32.u64.compose %v402, 3817748708
      %v404 = vextract.low.u32 %v403
      %v405 = vextract.high.u32 %v403
      %v406 = vshrl.u32 %v405, 4
      %v407 = vmul.u32 %v406, 18
      %v408 = vsub.s32 %v402, %v407
      %v409 = vsub.s32 0, %v408
      %v410 = vsel %vm400, %v409, %v408
      %vm411 = vcmp.lt.s32.totalorder %v265, 0
      %v412 = vsub.s32 0, %v265
      %v413 = vsel %vm411, %v412, %v265
      %v414 = vmul.u32.u64.compose %v413, 3817748708
      %v415 = vextract.low.u32 %v414
      %v416 = vextract.high.u32 %v414
      %v417 = vshrl.u32 %v416, 4
      %v418 = vmul.u32 %v417, 18
      %v419 = vsub.s32 %v413, %v418
      %v420 = vsub.s32 0, %v419
      %v421 = vsel %vm411, %v420, %v419
      %vm422 = vcmp.lt.s32.totalorder %v266, 0
      %v423 = vsub.s32 0, %v266
      %v424 = vsel %vm422, %v423, %v266
      %v425 = vmul.u32.u64.compose %v424, 3817748708
      %v426 = vextract.low.u32 %v425
      %v427 = vextract.high.u32 %v425
      %v428 = vshrl.u32 %v427, 4
      %v429 = vmul.u32 %v428, 18
      %v430 = vsub.s32 %v424, %v429
      %v431 = vsub.s32 0, %v430
      %v432 = vsel %vm422, %v431, %v430
      %vm433 = vcmp.lt.s32.totalorder %v267, 0
      %v434 = vsub.s32 0, %v267
      %v435 = vsel %vm433, %v434, %v267
      %v436 = vmul.u32.u64.compose %v435, 3817748708
      %v437 = vextract.low.u32 %v436
      %v438 = vextract.high.u32 %v436
      %v439 = vshrl.u32 %v438, 4
      %v440 = vmul.u32 %v439, 18
      %v441 = vsub.s32 %v435, %v440
      %v442 = vsub.s32 0, %v441
      %v443 = vsel %vm433, %v442, %v441
      %vm444 = vcmp.lt.s32.totalorder %v268, 0
      %v445 = vsub.s32 0, %v268
      %v446 = vsel %vm444, %v445, %v268
      %v447 = vmul.u32.u64.compose %v446, 3817748708
      %v448 = vextract.low.u32 %v447
      %v449 = vextract.high.u32 %v447
      %v450 = vshrl.u32 %v449, 4
      %v451 = vmul.u32 %v450, 18
      %v452 = vsub.s32 %v446, %v451
      %v453 = vsub.s32 0, %v452
      %v454 = vsel %vm444, %v453, %v452
      %vm455 = vcmp.lt.s32.totalorder %v269, 0
      %v456 = vsub.s32 0, %v269
      %v457 = vsel %vm455, %v456, %v269
      %v458 = vmul.u32.u64.compose %v457, 3817748708
      %v459 = vextract.low.u32 %v458
      %v460 = vextract.high.u32 %v458
      %v461 = vshrl.u32 %v460, 4
      %v462 = vmul.u32 %v461, 18
      %v463 = vsub.s32 %v457, %v462
      %v464 = vsub.s32 0, %v463
      %v465 = vsel %vm455, %v464, %v463
      %vm466 = vcmp.lt.s32.totalorder %v270, 0
      %v467 = vsub.s32 0, %v270
      %v468 = vsel %vm466, %v467, %v270
      %v469 = vmul.u32.u64.compose %v468, 3817748708
      %v470 = vextract.low.u32 %v469
      %v471 = vextract.high.u32 %v469
      %v472 = vshrl.u32 %v471, 4
      %v473 = vmul.u32 %v472, 18
      %v474 = vsub.s32 %v468, %v473
      %v475 = vsub.s32 0, %v474
      %v476 = vsel %vm466, %v475, %v474
      %vm477 = vcmp.lt.s32.totalorder %v271, 0
      %v478 = vsub.s32 0, %v271
      %v479 = vsel %vm477, %v478, %v271
      %v480 = vmul.u32.u64.compose %v479, 3817748708
      %v481 = vextract.low.u32 %v480
      %v482 = vextract.high.u32 %v480
      %v483 = vshrl.u32 %v482, 4
      %v484 = vmul.u32 %v483, 18
      %v485 = vsub.s32 %v479, %v484
      %v486 = vsub.s32 0, %v485
      %v487 = vsel %vm477, %v486, %v485
      %vm488 = vcmp.lt.s32.totalorder %v272, 0
      %v489 = vsub.s32 0, %v272
      %v490 = vsel %vm488, %v489, %v272
      %v491 = vmul.u32.u64.compose %v490, 3817748708
      %v492 = vextract.low.u32 %v491
      %v493 = vextract.high.u32 %v491
      %v494 = vshrl.u32 %v493, 4
      %v495 = vmul.u32 %v494, 18
      %v496 = vsub.s32 %v490, %v495
      %v497 = vsub.s32 0, %v496
      %v498 = vsel %vm488, %v497, %v496
      %vm499 = vcmp.lt.s32.totalorder %v273, 0
      %v500 = vsub.s32 0, %v273
      %v501 = vsel %vm499, %v500, %v273
      %v502 = vmul.u32.u64.compose %v501, 3817748708
      %v503 = vextract.low.u32 %v502
      %v504 = vextract.high.u32 %v502
      %v505 = vshrl.u32 %v504, 4
      %v506 = vmul.u32 %v505, 18
      %v507 = vsub.s32 %v501, %v506
      %v508 = vsub.s32 0, %v507
      %v509 = vsel %vm499, %v508, %v507
      %vm510 = vcmp.lt.s32.totalorder %v274, 0
      %v511 = vsub.s32 0, %v274
      %v512 = vsel %vm510, %v511, %v274
      %v513 = vmul.u32.u64.compose %v512, 3817748708
      %v514 = vextract.low.u32 %v513
      %v515 = vextract.high.u32 %v513
      %v516 = vshrl.u32 %v515, 4
      %v517 = vmul.u32 %v516, 18
      %v518 = vsub.s32 %v512, %v517
      %v519 = vsub.s32 0, %v518
      %v520 = vsel %vm510, %v519, %v518
      %vm521 = vcmp.lt.s32.totalorder %v275, 0
      %v522 = vsub.s32 0, %v275
      %v523 = vsel %vm521, %v522, %v275
      %v524 = vmul.u32.u64.compose %v523, 3817748708
      %v525 = vextract.low.u32 %v524
      %v526 = vextract.high.u32 %v524
      %v527 = vshrl.u32 %v526, 4
      %v528 = vmul.u32 %v527, 18
      %v529 = vsub.s32 %v523, %v528
      %v530 = vsub.s32 0, %v529
      %v531 = vsel %vm521, %v530, %v529
      %vm532 = vcmp.lt.s32.totalorder %v276, 0
      %v533 = vsub.s32 0, %v276
      %v534 = vsel %vm532, %v533, %v276
      %v535 = vmul.u32.u64.compose %v534, 3817748708
      %v536 = vextract.low.u32 %v535
      %v537 = vextract.high.u32 %v535
      %v538 = vshrl.u32 %v537, 4
      %v539 = vmul.u32 %v538, 18
      %v540 = vsub.s32 %v534, %v539
      %v541 = vsub.s32 0, %v540
      %v542 = vsel %vm532, %v541, %v540
      %vm543 = vcmp.lt.s32.totalorder %v277, 0
      %v544 = vsub.s32 0, %v277
      %v545 = vsel %vm543, %v544, %v277
      %v546 = vmul.u32.u64.compose %v545, 3817748708
      %v547 = vextract.low.u32 %v546
      %v548 = vextract.high.u32 %v546
      %v549 = vshrl.u32 %v548, 4
      %v550 = vmul.u32 %v549, 18
      %v551 = vsub.s32 %v545, %v550
      %v552 = vsub.s32 0, %v551
      %v553 = vsel %vm543, %v552, %v551
      %vm554 = vcmp.lt.s32.totalorder %v278, 0
      %v555 = vsub.s32 0, %v278
      %v556 = vsel %vm554, %v555, %v278
      %v557 = vmul.u32.u64.compose %v556, 3817748708
      %v558 = vextract.low.u32 %v557
      %v559 = vextract.high.u32 %v557
      %v560 = vshrl.u32 %v559, 4
      %v561 = vmul.u32 %v560, 18
      %v562 = vsub.s32 %v556, %v561
      %v563 = vsub.s32 0, %v562
      %v564 = vsel %vm554, %v563, %v562
      %vm565 = vcmp.lt.s32.totalorder %v279, 0
      %v566 = vsub.s32 0, %v279
      %v567 = vsel %vm565, %v566, %v279
      %v568 = vmul.u32.u64.compose %v567, 3817748708
      %v569 = vextract.low.u32 %v568
      %v570 = vextract.high.u32 %v568
      %v571 = vshrl.u32 %v570, 4
      %v572 = vmul.u32 %v571, 18
      %v573 = vsub.s32 %v567, %v572
      %v574 = vsub.s32 0, %v573
      %v575 = vsel %vm565, %v574, %v573
      %vm576 = vcmp.lt.s32.totalorder %v280, 0
      %v577 = vsub.s32 0, %v280
      %v578 = vsel %vm576, %v577, %v280
      %v579 = vmul.u32.u64.compose %v578, 3817748708
      %v580 = vextract.low.u32 %v579
      %v581 = vextract.high.u32 %v579
      %v582 = vshrl.u32 %v581, 4
      %v583 = vmul.u32 %v582, 18
      %v584 = vsub.s32 %v578, %v583
      %v585 = vsub.s32 0, %v584
      %v586 = vsel %vm576, %v585, %v584
      %vm587 = vcmp.lt.s32.totalorder %v281, 0
      %v588 = vsub.s32 0, %v281
      %v589 = vsel %vm587, %v588, %v281
      %v590 = vmul.u32.u64.compose %v589, 3817748708
      %v591 = vextract.low.u32 %v590
      %v592 = vextract.high.u32 %v590
      %v593 = vshrl.u32 %v592, 4
      %v594 = vmul.u32 %v593, 18
      %v595 = vsub.s32 %v589, %v594
      %v596 = vsub.s32 0, %v595
      %v597 = vsel %vm587, %v596, %v595
      %vm598 = vcmp.lt.s32.totalorder %v282, 0
      %v599 = vsub.s32 0, %v282
      %v600 = vsel %vm598, %v599, %v282
      %v601 = vmul.u32.u64.compose %v600, 3817748708
      %v602 = vextract.low.u32 %v601
      %v603 = vextract.high.u32 %v601
      %v604 = vshrl.u32 %v603, 4
      %v605 = vmul.u32 %v604, 18
      %v606 = vsub.s32 %v600, %v605
      %v607 = vsub.s32 0, %v606
      %v608 = vsel %vm598, %v607, %v606
      %vm609 = vcmp.lt.s32.totalorder %v283, 0
      %v610 = vsub.s32 0, %v283
      %v611 = vsel %vm609, %v610, %v283
      %v612 = vmul.u32.u64.compose %v611, 3817748708
      %v613 = vextract.low.u32 %v612
      %v614 = vextract.high.u32 %v612
      %v615 = vshrl.u32 %v614, 4
      %v616 = vmul.u32 %v615, 18
      %v617 = vsub.s32 %v611, %v616
      %v618 = vsub.s32 0, %v617
      %v619 = vsel %vm609, %v618, %v617
      %vm620 = vcmp.lt.s32.totalorder %v284, 0
      %v621 = vsub.s32 0, %v284
      %v622 = vsel %vm620, %v621, %v284
      %v623 = vmul.u32.u64.compose %v622, 3817748708
      %v624 = vextract.low.u32 %v623
      %v625 = vextract.high.u32 %v623
      %v626 = vshrl.u32 %v625, 4
      %v627 = vmul.u32 %v626, 18
      %v628 = vsub.s32 %v622, %v627
      %v629 = vsub.s32 0, %v628
      %v630 = vsel %vm620, %v629, %v628
      %vm631 = vcmp.lt.s32.totalorder %v285, 0
      %v632 = vsub.s32 0, %v285
      %v633 = vsel %vm631, %v632, %v285
      %v634 = vmul.u32.u64.compose %v633, 3817748708
      %v635 = vextract.low.u32 %v634
      %v636 = vextract.high.u32 %v634
      %v637 = vshrl.u32 %v636, 4
      %v638 = vmul.u32 %v637, 18
      %v639 = vsub.s32 %v633, %v638
      %v640 = vsub.s32 0, %v639
      %v641 = vsel %vm631, %v640, %v639
      %vm642 = vcmp.lt.s32.totalorder %v286, 0
      %v643 = vsub.s32 0, %v286
      %v644 = vsel %vm642, %v643, %v286
      %v645 = vmul.u32.u64.compose %v644, 3817748708
      %v646 = vextract.low.u32 %v645
      %v647 = vextract.high.u32 %v645
      %v648 = vshrl.u32 %v647, 4
      %v649 = vmul.u32 %v648, 18
      %v650 = vsub.s32 %v644, %v649
      %v651 = vsub.s32 0, %v650
      %v652 = vsel %vm642, %v651, %v650
      %vm653 = vcmp.lt.s32.totalorder %v287, 0
      %v654 = vsub.s32 0, %v287
      %v655 = vsel %vm653, %v654, %v287
      %v656 = vmul.u32.u64.compose %v655, 3817748708
      %v657 = vextract.low.u32 %v656
      %v658 = vextract.high.u32 %v656
      %v659 = vshrl.u32 %v658, 4
      %v660 = vmul.u32 %v659, 18
      %v661 = vsub.s32 %v655, %v660
      %v662 = vsub.s32 0, %v661
      %v663 = vsel %vm653, %v662, %v661
      %vm664 = vcmp.lt.s32.totalorder %v288, 0
      %v665 = vsub.s32 0, %v288
      %v666 = vsel %vm664, %v665, %v288
      %v667 = vmul.u32.u64.compose %v666, 3817748708
      %v668 = vextract.low.u32 %v667
      %v669 = vextract.high.u32 %v667
      %v670 = vshrl.u32 %v669, 4
      %v671 = vmul.u32 %v670, 18
      %v672 = vsub.s32 %v666, %v671
      %v673 = vsub.s32 0, %v672
      %v674 = vsel %vm664, %v673, %v672
      %vm675 = vcmp.lt.s32.totalorder %v289, 0
      %v676 = vsub.s32 0, %v289
      %v677 = vsel %vm675, %v676, %v289
      %v678 = vmul.u32.u64.compose %v677, 3817748708
      %v679 = vextract.low.u32 %v678
      %v680 = vextract.high.u32 %v678
      %v681 = vshrl.u32 %v680, 4
      %v682 = vmul.u32 %v681, 18
      %v683 = vsub.s32 %v677, %v682
      %v684 = vsub.s32 0, %v683
      %v685 = vsel %vm675, %v684, %v683
      %vm686 = vcmp.ne.s32.totalorder %v300, 0
      %vm687 = vcmp.ne.s32.totalorder %v311, 0
      %vm688 = vcmp.ne.s32.totalorder %v322, 0
      %vm689 = vcmp.ne.s32.totalorder %v333, 0
      %vm690 = vcmp.ne.s32.totalorder %v344, 0
      %vm691 = vcmp.ne.s32.totalorder %v355, 0
      %vm692 = vcmp.ne.s32.totalorder %v366, 0
      %vm693 = vcmp.ne.s32.totalorder %v377, 0
      %vm694 = vcmp.ne.s32.totalorder %v388, 0
      %vm695 = vcmp.ne.s32.totalorder %v399, 0
      %vm696 = vcmp.ne.s32.totalorder %v410, 0
      %vm697 = vcmp.ne.s32.totalorder %v421, 0
      %vm698 = vcmp.ne.s32.totalorder %v432, 0
      %vm699 = vcmp.ne.s32.totalorder %v443, 0
      %vm700 = vcmp.ne.s32.totalorder %v454, 0
      %vm701 = vcmp.ne.s32.totalorder %v465, 0
      %vm702 = vcmp.ne.s32.totalorder %v476, 0
      %vm703 = vcmp.ne.s32.totalorder %v487, 0
      %vm704 = vcmp.ne.s32.totalorder %v498, 0
      %vm705 = vcmp.ne.s32.totalorder %v509, 0
      %vm706 = vcmp.ne.s32.totalorder %v520, 0
      %vm707 = vcmp.ne.s32.totalorder %v531, 0
      %vm708 = vcmp.ne.s32.totalorder %v542, 0
      %vm709 = vcmp.ne.s32.totalorder %v553, 0
      %vm710 = vcmp.ne.s32.totalorder %v564, 0
      %vm711 = vcmp.ne.s32.totalorder %v575, 0
      %vm712 = vcmp.ne.s32.totalorder %v586, 0
      %vm713 = vcmp.ne.s32.totalorder %v597, 0
      %vm714 = vcmp.ne.s32.totalorder %v608, 0
      %vm715 = vcmp.ne.s32.totalorder %v619, 0
      %vm716 = vcmp.ne.s32.totalorder %v630, 0
      %vm717 = vcmp.ne.s32.totalorder %v641, 0
      %vm718 = vcmp.ne.s32.totalorder %v652, 0
      %vm719 = vcmp.ne.s32.totalorder %v663, 0
      %vm720 = vcmp.ne.s32.totalorder %v674, 0
      %vm721 = vcmp.ne.s32.totalorder %v685, 0
      %vm722 = vcmp.lt.s32.totalorder %v300, 0
      %vm723 = vcmp.lt.s32.totalorder %v311, 0
      %vm724 = vcmp.lt.s32.totalorder %v322, 0
      %vm725 = vcmp.lt.s32.totalorder %v333, 0
      %vm726 = vcmp.lt.s32.totalorder %v344, 0
      %vm727 = vcmp.lt.s32.totalorder %v355, 0
      %vm728 = vcmp.lt.s32.totalorder %v366, 0
      %vm729 = vcmp.lt.s32.totalorder %v377, 0
      %vm730 = vcmp.lt.s32.totalorder %v388, 0
      %vm731 = vcmp.lt.s32.totalorder %v399, 0
      %vm732 = vcmp.lt.s32.totalorder %v410, 0
      %vm733 = vcmp.lt.s32.totalorder %v421, 0
      %vm734 = vcmp.lt.s32.totalorder %v432, 0
      %vm735 = vcmp.lt.s32.totalorder %v443, 0
      %vm736 = vcmp.lt.s32.totalorder %v454, 0
      %vm737 = vcmp.lt.s32.totalorder %v465, 0
      %vm738 = vcmp.lt.s32.totalorder %v476, 0
      %vm739 = vcmp.lt.s32.totalorder %v487, 0
      %vm740 = vcmp.lt.s32.totalorder %v498, 0
      %vm741 = vcmp.lt.s32.totalorder %v509, 0
      %vm742 = vcmp.lt.s32.totalorder %v520, 0
      %vm743 = vcmp.lt.s32.totalorder %v531, 0
      %vm744 = vcmp.lt.s32.totalorder %v542, 0
      %vm745 = vcmp.lt.s32.totalorder %v553, 0
      %vm746 = vcmp.lt.s32.totalorder %v564, 0
      %vm747 = vcmp.lt.s32.totalorder %v575, 0
      %vm748 = vcmp.lt.s32.totalorder %v586, 0
      %vm749 = vcmp.lt.s32.totalorder %v597, 0
      %vm750 = vcmp.lt.s32.totalorder %v608, 0
      %vm751 = vcmp.lt.s32.totalorder %v619, 0
      %vm752 = vcmp.lt.s32.totalorder %v630, 0
      %vm753 = vcmp.lt.s32.totalorder %v641, 0
      %vm754 = vcmp.lt.s32.totalorder %v652, 0
      %vm755 = vcmp.lt.s32.totalorder %v663, 0
      %vm756 = vcmp.lt.s32.totalorder %v674, 0
      %vm757 = vcmp.lt.s32.totalorder %v685, 0
      %vm758 = vmand %vm722, %vm686
      %vm759 = vmand %vm723, %vm687
      %vm760 = vmand %vm724, %vm688
      %vm761 = vmand %vm725, %vm689
      %vm762 = vmand %vm726, %vm690
      %vm763 = vmand %vm727, %vm691
      %vm764 = vmand %vm728, %vm692
      %vm765 = vmand %vm729, %vm693
      %vm766 = vmand %vm730, %vm694
      %vm767 = vmand %vm731, %vm695
      %vm768 = vmand %vm732, %vm696
      %vm769 = vmand %vm733, %vm697
      %vm770 = vmand %vm734, %vm698
      %vm771 = vmand %vm735, %vm699
      %vm772 = vmand %vm736, %vm700
      %vm773 = vmand %vm737, %vm701
      %vm774 = vmand %vm738, %vm702
      %vm775 = vmand %vm739, %vm703
      %vm776 = vmand %vm740, %vm704
      %vm777 = vmand %vm741, %vm705
      %vm778 = vmand %vm742, %vm706
      %vm779 = vmand %vm743, %vm707
      %vm780 = vmand %vm744, %vm708
      %vm781 = vmand %vm745, %vm709
      %vm782 = vmand %vm746, %vm710
      %vm783 = vmand %vm747, %vm711
      %vm784 = vmand %vm748, %vm712
      %vm785 = vmand %vm749, %vm713
      %vm786 = vmand %vm750, %vm714
      %vm787 = vmand %vm751, %vm715
      %vm788 = vmand %vm752, %vm716
      %vm789 = vmand %vm753, %vm717
      %vm790 = vmand %vm754, %vm718
      %vm791 = vmand %vm755, %vm719
      %vm792 = vmand %vm756, %vm720
      %vm793 = vmand %vm757, %vm721
      %v794 = vadd.s32 %v300, 18
      %v795 = vadd.s32 %v311, 18
      %v796 = vadd.s32 %v322, 18
      %v797 = vadd.s32 %v333, 18
      %v798 = vadd.s32 %v344, 18
      %v799 = vadd.s32 %v355, 18
      %v800 = vadd.s32 %v366, 18
      %v801 = vadd.s32 %v377, 18
      %v802 = vadd.s32 %v388, 18
      %v803 = vadd.s32 %v399, 18
      %v804 = vadd.s32 %v410, 18
      %v805 = vadd.s32 %v421, 18
      %v806 = vadd.s32 %v432, 18
      %v807 = vadd.s32 %v443, 18
      %v808 = vadd.s32 %v454, 18
      %v809 = vadd.s32 %v465, 18
      %v810 = vadd.s32 %v476, 18
      %v811 = vadd.s32 %v487, 18
      %v812 = vadd.s32 %v498, 18
      %v813 = vadd.s32 %v509, 18
      %v814 = vadd.s32 %v520, 18
      %v815 = vadd.s32 %v531, 18
      %v816 = vadd.s32 %v542, 18
      %v817 = vadd.s32 %v553, 18
      %v818 = vadd.s32 %v564, 18
      %v819 = vadd.s32 %v575, 18
      %v820 = vadd.s32 %v586, 18
      %v821 = vadd.s32 %v597, 18
      %v822 = vadd.s32 %v608, 18
      %v823 = vadd.s32 %v619, 18
      %v824 = vadd.s32 %v630, 18
      %v825 = vadd.s32 %v641, 18
      %v826 = vadd.s32 %v652, 18
      %v827 = vadd.s32 %v663, 18
      %v828 = vadd.s32 %v674, 18
      %v829 = vadd.s32 %v685, 18
      %v830 = vsel %vm758, %v794, %v300
      %v831 = vsel %vm759, %v795, %v311
      %v832 = vsel %vm760, %v796, %v322
      %v833 = vsel %vm761, %v797, %v333
      %v834 = vsel %vm762, %v798, %v344
      %v835 = vsel %vm763, %v799, %v355
      %v836 = vsel %vm764, %v800, %v366
      %v837 = vsel %vm765, %v801, %v377
      %v838 = vsel %vm766, %v802, %v388
      %v839 = vsel %vm767, %v803, %v399
      %v840 = vsel %vm768, %v804, %v410
      %v841 = vsel %vm769, %v805, %v421
      %v842 = vsel %vm770, %v806, %v432
      %v843 = vsel %vm771, %v807, %v443
      %v844 = vsel %vm772, %v808, %v454
      %v845 = vsel %vm773, %v809, %v465
      %v846 = vsel %vm774, %v810, %v476
      %v847 = vsel %vm775, %v811, %v487
      %v848 = vsel %vm776, %v812, %v498
      %v849 = vsel %vm777, %v813, %v509
      %v850 = vsel %vm778, %v814, %v520
      %v851 = vsel %vm779, %v815, %v531
      %v852 = vsel %vm780, %v816, %v542
      %v853 = vsel %vm781, %v817, %v553
      %v854 = vsel %vm782, %v818, %v564
      %v855 = vsel %vm783, %v819, %v575
      %v856 = vsel %vm784, %v820, %v586
      %v857 = vsel %vm785, %v821, %v597
      %v858 = vsel %vm786, %v822, %v608
      %v859 = vsel %vm787, %v823, %v619
      %v860 = vsel %vm788, %v824, %v630
      %v861 = vsel %vm789, %v825, %v641
      %v862 = vsel %vm790, %v826, %v652
      %v863 = vsel %vm791, %v827, %v663
      %v864 = vsel %vm792, %v828, %v674
      %v865 = vsel %vm793, %v829, %v685
      %vm866 = vcmp.lt.s32.totalorder %v830, 16
      %vm867 = vcmp.lt.s32.totalorder %v831, 16
      %vm868 = vcmp.lt.s32.totalorder %v832, 16
      %vm869 = vcmp.lt.s32.totalorder %v833, 16
      %vm870 = vcmp.lt.s32.totalorder %v834, 16
      %vm871 = vcmp.lt.s32.totalorder %v835, 16
      %vm872 = vcmp.lt.s32.totalorder %v836, 16
      %vm873 = vcmp.lt.s32.totalorder %v837, 16
      %vm874 = vcmp.lt.s32.totalorder %v838, 16
      %vm875 = vcmp.lt.s32.totalorder %v839, 16
      %vm876 = vcmp.lt.s32.totalorder %v840, 16
      %vm877 = vcmp.lt.s32.totalorder %v841, 16
      %vm878 = vcmp.lt.s32.totalorder %v842, 16
      %vm879 = vcmp.lt.s32.totalorder %v843, 16
      %vm880 = vcmp.lt.s32.totalorder %v844, 16
      %vm881 = vcmp.lt.s32.totalorder %v845, 16
      %vm882 = vcmp.lt.s32.totalorder %v846, 16
      %vm883 = vcmp.lt.s32.totalorder %v847, 16
      %vm884 = vcmp.lt.s32.totalorder %v848, 16
      %vm885 = vcmp.lt.s32.totalorder %v849, 16
      %vm886 = vcmp.lt.s32.totalorder %v850, 16
      %vm887 = vcmp.lt.s32.totalorder %v851, 16
      %vm888 = vcmp.lt.s32.totalorder %v852, 16
      %vm889 = vcmp.lt.s32.totalorder %v853, 16
      %vm890 = vcmp.lt.s32.totalorder %v854, 16
      %vm891 = vcmp.lt.s32.totalorder %v855, 16
      %vm892 = vcmp.lt.s32.totalorder %v856, 16
      %vm893 = vcmp.lt.s32.totalorder %v857, 16
      %vm894 = vcmp.lt.s32.totalorder %v858, 16
      %vm895 = vcmp.lt.s32.totalorder %v859, 16
      %vm896 = vcmp.lt.s32.totalorder %v860, 16
      %vm897 = vcmp.lt.s32.totalorder %v861, 16
      %vm898 = vcmp.lt.s32.totalorder %v862, 16
      %vm899 = vcmp.lt.s32.totalorder %v863, 16
      %vm900 = vcmp.lt.s32.totalorder %v864, 16
      %vm901 = vcmp.lt.s32.totalorder %v865, 16
      %v902 = vld [vmem:[%s246 + $0x4] sm:$0xc]
      %v903 = vld [vmem:[%s246 + $0x8] sm:$0xf]
      %v904 = vld [vmem:[%s246 + $0xc] sm:$0xf]
      %v905 = vld [vmem:[%s246 + $0x10] sm:$0xf]
      %v906 = vld [vmem:[%s246 + $0x14] sm:$0xf]
      %v907 = vld [vmem:[%s246 + $0x18] sm:$0xf]
      %v908 = vld [vmem:[%s246 + $0x1c] sm:$0xf]
      %v909 = vld [vmem:[%s246 + $0x20] sm:$0xf]
      %v910 = vld [vmem:[%s246 + $0x24] sm:$0xf]
      %v911 = vld [vmem:[%s246 + $0x28] sm:$0xf]
      %v912 = vld [vmem:[%s246 + $0x2c] sm:$0xf]
      %v913 = vld [vmem:[%s246 + $0x30] sm:$0xf]
      %v914 = vld [vmem:[%s246 + $0x34] sm:$0xf]
      %v915 = vld [vmem:[%s246 + $0x38] sm:$0xf]
      %v916 = vld [vmem:[%s246 + $0x3c] sm:$0xf]
      %v917 = vld [vmem:[%s246 + $0x40] sm:$0xf]
      %v918 = vld [vmem:[%s246 + $0x44] sm:$0xf]
      %v919 = vld [vmem:[%s246 + $0x48] sm:$0xf]
      %v920 = vld [vmem:[%s246 + $0x4c] sm:$0xf]
      %v921 = vld [vmem:[%s246 + $0x50] sm:$0xf]
      %v922 = vld [vmem:[%s246 + $0x54] sm:$0xf]
      %v923 = vld [vmem:[%s246 + $0x58] sm:$0xf]
      %v924 = vld [vmem:[%s246 + $0x5c] sm:$0xf]
      %v925 = vld [vmem:[%s246 + $0x60] sm:$0xf]
      %v926 = vld [vmem:[%s246 + $0x64] sm:$0xf]
      %v927 = vld [vmem:[%s246 + $0x68] sm:$0xf]
      %v928 = vld [vmem:[%s246 + $0x6c] sm:$0xf]
      %v929 = vld [vmem:[%s246 + $0x70] sm:$0xf]
      %v930 = vld [vmem:[%s246 + $0x74] sm:$0xf]
      %v931 = vld [vmem:[%s246 + $0x78] sm:$0xf]
      %v932 = vld [vmem:[%s246 + $0x7c] sm:$0xf]
      %v933 = vld [vmem:[%s246 + $0x80] sm:$0xf]
      %v934 = vld [vmem:[%s246 + $0x84] sm:$0xf]
      %v935 = vld [vmem:[%s246 + $0x88] sm:$0xf]
      %v936 = vld [vmem:[%s246 + $0x8c] sm:$0xf]
      %v937 = vld [vmem:[%s246 + $0x90] sm:$0xf]
      %v938 = vld [vmem:[%s246 + $0x94] sm:$0x7]
      %v939 = vld [vmem:[%s1] sm:$0xf]
      %v940 = vld [vmem:[%s1 + $0x4] sm:$0xf]
      %v941 = vld [vmem:[%s246 + $0x4] sm:$0x8]
      %v942 = vld [vmem:[%s1 + $0x8] sm:$0xf]
      %v943 = vld [vmem:[%s1 + $0xc] sm:$0xf]
      %v981 = vunpack.c.l.b16 %v941
      %v982 = vunpack.c.l.b16 %v903
      %v983 = vunpack.c.l.b16 %v904
      %v984 = vunpack.c.l.b16 %v905
      %v985 = vunpack.c.l.b16 %v906
      %v986 = vunpack.c.l.b16 %v907
      %v987 = vunpack.c.l.b16 %v908
      %v988 = vunpack.c.l.b16 %v909
      %v989 = vunpack.c.l.b16 %v910
      %v990 = vunpack.c.l.b16 %v911
      %v991 = vunpack.c.l.b16 %v912
      %v992 = vunpack.c.l.b16 %v913
      %v993 = vunpack.c.l.b16 %v914
      %v994 = vunpack.c.l.b16 %v915
      %v995 = vunpack.c.l.b16 %v916
      %v996 = vunpack.c.l.b16 %v917
      %v997 = vunpack.c.l.b16 %v918
      %v998 = vunpack.c.l.b16 %v919
      %v999 = vunpack.c.l.b16 %v920
      %v1000 = vunpack.c.l.b16 %v921
      %v1001 = vunpack.c.l.b16 %v922
      %v1002 = vunpack.c.l.b16 %v923
      %v1003 = vunpack.c.l.b16 %v924
      %v1004 = vunpack.c.l.b16 %v925
      %v1005 = vunpack.c.l.b16 %v926
      %v1006 = vunpack.c.l.b16 %v927
      %v1007 = vunpack.c.l.b16 %v928
      %v1008 = vunpack.c.l.b16 %v929
      %v1009 = vunpack.c.l.b16 %v930
      %v1010 = vunpack.c.l.b16 %v931
      %v1011 = vunpack.c.l.b16 %v932
      %v1012 = vunpack.c.l.b16 %v933
      %v1013 = vunpack.c.l.b16 %v934
      %v1014 = vunpack.c.l.b16 %v935
      %v1015 = vunpack.c.l.b16 %v936
      %v1016 = vunpack.c.l.b16 %v937
      %v1017 = vunpack.c.l.b16 %v938
      %v1018 = vpack.c.b16 %v982, %v981
      %v1019 = vpack.c.b16 %v984, %v983
      %v1020 = vpack.c.b16 %v986, %v985
      %v1021 = vpack.c.b16 %v988, %v987
      %v1022 = vpack.c.b16 %v990, %v989
      %v1023 = vpack.c.b16 %v992, %v991
      %v1024 = vpack.c.b16 %v994, %v993
      %v1025 = vpack.c.b16 %v996, %v995
      %v1026 = vpack.c.b16 %v998, %v997
      %v1027 = vpack.c.b16 %v1000, %v999
      %v1028 = vpack.c.b16 %v1002, %v1001
      %v1029 = vpack.c.b16 %v1004, %v1003
      %v1030 = vpack.c.b16 %v1006, %v1005
      %v1031 = vpack.c.b16 %v1008, %v1007
      %v1032 = vpack.c.b16 %v1010, %v1009
      %v1033 = vpack.c.b16 %v1012, %v1011
      %v1034 = vpack.c.b16 %v1014, %v1013
      %v1035 = vpack.c.b16 %v1016, %v1015
      %v1036 = vpack.c.b16 %v1017, %v1017
      %vm1037 = vcmask 1044480
      %v1038 = vrot.slane %v1018, 3
      %v1039 = vrot.slane %v1019, 3
      %v1040 = vsel %vm1037, %v1038, %v1039
      %v1041 = vrot.slane %v1020, 3
      %v1042 = vsel %vm1037, %v1039, %v1041
      %v1043 = vrot.slane %v1021, 3
      %v1044 = vsel %vm1037, %v1041, %v1043
      %v1045 = vrot.slane %v1022, 3
      %v1046 = vsel %vm1037, %v1043, %v1045
      %v1047 = vrot.slane %v1023, 3
      %v1048 = vsel %vm1037, %v1045, %v1047
      %v1049 = vrot.slane %v1024, 3
      %v1050 = vsel %vm1037, %v1047, %v1049
      %v1051 = vrot.slane %v1025, 3
      %v1052 = vsel %vm1037, %v1049, %v1051
      %v1053 = vrot.slane %v1026, 3
      %v1054 = vsel %vm1037, %v1051, %v1053
      %v1055 = vrot.slane %v1027, 3
      %v1056 = vsel %vm1037, %v1053, %v1055
      %v1057 = vrot.slane %v1028, 3
      %v1058 = vsel %vm1037, %v1055, %v1057
      %v1059 = vrot.slane %v1029, 3
      %v1060 = vsel %vm1037, %v1057, %v1059
      %v1061 = vrot.slane %v1030, 3
      %v1062 = vsel %vm1037, %v1059, %v1061
      %v1063 = vrot.slane %v1031, 3
      %v1064 = vsel %vm1037, %v1061, %v1063
      %v1065 = vrot.slane %v1032, 3
      %v1066 = vsel %vm1037, %v1063, %v1065
      %v1067 = vrot.slane %v1033, 3
      %v1068 = vsel %vm1037, %v1065, %v1067
      %v1069 = vrot.slane %v1034, 3
      %v1070 = vsel %vm1037, %v1067, %v1069
      %v1071 = vrot.slane %v1035, 3
      %v1072 = vsel %vm1037, %v1069, %v1071
      %v1073 = vrot.slane %v1036, 3
      %v1074 = vsel %vm1037, %v1071, %v1073
      %v1077 = vunpack.c.l.b16 %v942
      %v1078 = vunpack.c.l.b16 %v943
      %v1079 = vpack.c.b16 %v1078, %v1077
      %vm1081 = vcmask 130048
      %v1083 = vsel %vm1081, %v1040, 0
      %v1086 = vsel %vm1081, %v1042, 0
      %v1089 = vsel %vm1081, %v1044, 0
      %v1092 = vsel %vm1081, %v1046, 0
      %v1095 = vsel %vm1081, %v1048, 0
      %v1098 = vsel %vm1081, %v1050, 0
      %v1101 = vsel %vm1081, %v1052, 0
      %v1104 = vsel %vm1081, %v1054, 0
      %v1107 = vsel %vm1081, %v1056, 0
      %v1110 = vsel %vm1081, %v1058, 0
      %v1113 = vsel %vm1081, %v1060, 0
      %v1116 = vsel %vm1081, %v1062, 0
      %v1119 = vsel %vm1081, %v1064, 0
      %v1122 = vsel %vm1081, %v1066, 0
      %v1125 = vsel %vm1081, %v1068, 0
      %v1128 = vsel %vm1081, %v1070, 0
      %v1131 = vsel %vm1081, %v1072, 0
      %v1134 = vsel %vm1081, %v1074, 0
      %1136 = vmatprep.subr.bf16.mxu0 0
      %1137 = vmatpush1.bf16.msra.mxu0 %v1079
      %1138 = vmatprep.subr.bf16.mxu0 0
      %1139 = vmatpush1.bf16.msra.mxu0 0
      %1140 = vmatprep.subr.bf16.mxu0 0
      %1141 = vmatpush1.bf16.msra.mxu0 0
      %1142 = vmatprep.subr.bf16.mxu0 0
      %1143 = vmatpush1.bf16.msra.mxu0 0
      %1144 = vmatprep.subr.bf16.mxu0 0
      %1145 = vmatpush1.bf16.msra.mxu0 0
      %1146 = vmatprep.subr.bf16.mxu0 0
      %1147 = vmatpush1.bf16.msra.mxu0 0
      %1148 = vmatprep.subr.bf16.mxu0 0
      %1149 = vmatpush1.bf16.msra.mxu0 0
      %1150 = vmatprep.subr.bf16.mxu0 0
      %1151 = vmatpush1.bf16.msra.mxu0 0
      %1152 = vmatprep.subr.bf16.mxu0 0
      %1153 = vmatpush1.bf16.msra.mxu0 0
      %1154 = vmatprep.subr.bf16.mxu0 0
      %1155 = vmatpush1.bf16.msra.mxu0 0
      %1156 = vmatprep.subr.bf16.mxu0 0
      %1157 = vmatpush1.bf16.msra.mxu0 0
      %1158 = vmatprep.subr.bf16.mxu0 0
      %1159 = vmatpush1.bf16.msra.mxu0 0
      %1160 = vmatprep.subr.bf16.mxu0 0
      %1161 = vmatpush1.bf16.msra.mxu0 0
      %1162 = vmatprep.subr.bf16.mxu0 0
      %1163 = vmatpush1.bf16.msra.mxu0 0
      %1164 = vmatprep.subr.bf16.mxu0 0
      %1165 = vmatpush1.bf16.msra.mxu0 0
      %1166 = vmatprep.subr.bf16.mxu0 0
      %1167 = vmatpush1.bf16.msra.mxu0 0
      %1168 = vmatprep.mubr.bf16.mxu0 0
      %1169 = vmatmul.mubr.bf16.gmra.mrb[0].mxu0 %v1083
      %v1170 = vpop.f32.mrb[0].mxu0
      %v1171 = vadd.f32 0.0, %v1170
      %v1172 = vpop.f32.mrb[0].mxu0
      %v1173 = vpop.f32.mrb[0].mxu0
      %v1174 = vadd.f32 0.0, %v1173
      %v1175 = vpop.f32.mrb[0].mxu0
      %1176 = vmatprep.mubr.bf16.mxu0 0
      %1177 = vmatmul.mubr.bf16.gmra.mrb[0].mxu0 %v1086
      %v1178 = vpop.f32.mrb[0].mxu0
      %v1179 = vadd.f32 0.0, %v1178
      %v1180 = vpop.f32.mrb[0].mxu0
      %v1181 = vpop.f32.mrb[0].mxu0
      %v1182 = vadd.f32 0.0, %v1181
      %v1183 = vpop.f32.mrb[0].mxu0
      %1184 = vmatprep.mubr.bf16.mxu0 0
      %1185 = vmatmul.mubr.bf16.gmra.mrb[0].mxu0 %v1089
      %v1186 = vpop.f32.mrb[0].mxu0
      %v1187 = vadd.f32 0.0, %v1186
      %v1188 = vpop.f32.mrb[0].mxu0
      %v1189 = vpop.f32.mrb[0].mxu0
      %v1190 = vadd.f32 0.0, %v1189
      %v1191 = vpop.f32.mrb[0].mxu0
      %1192 = vmatprep.mubr.bf16.mxu0 0
      %1193 = vmatmul.mubr.bf16.gmra.mrb[0].mxu0 %v1092
      %v1194 = vpop.f32.mrb[0].mxu0
      %v1195 = vadd.f32 0.0, %v1194
      %v1196 = vpop.f32.mrb[0].mxu0
      %v1197 = vpop.f32.mrb[0].mxu0
      %v1198 = vadd.f32 0.0, %v1197
      %v1199 = vpop.f32.mrb[0].mxu0
      %1200 = vmatprep.mubr.bf16.mxu0 0
      %1201 = vmatmul.mubr.bf16.gmra.mrb[0].mxu0 %v1095
      %v1202 = vpop.f32.mrb[0].mxu0
      %v1203 = vadd.f32 0.0, %v1202
      %v1204 = vpop.f32.mrb[0].mxu0
      %v1205 = vpop.f32.mrb[0].mxu0
      %v1206 = vadd.f32 0.0, %v1205
      %v1207 = vpop.f32.mrb[0].mxu0
      %1208 = vmatprep.mubr.bf16.mxu0 0
      %1209 = vmatmul.mubr.bf16.gmra.mrb[0].mxu0 %v1098
      %v1210 = vpop.f32.mrb[0].mxu0
      %v1211 = vadd.f32 0.0, %v1210
      %v1212 = vpop.f32.mrb[0].mxu0
      %v1213 = vpop.f32.mrb[0].mxu0
      %v1214 = vadd.f32 0.0, %v1213
      %v1215 = vpop.f32.mrb[0].mxu0
      %1216 = vmatprep.mubr.bf16.mxu0 0
      %1217 = vmatmul.mubr.bf16.gmra.mrb[0].mxu0 %v1101
      %v1218 = vpop.f32.mrb[0].mxu0
      %v1219 = vadd.f32 0.0, %v1218
      %v1220 = vpop.f32.mrb[0].mxu0
      %v1221 = vpop.f32.mrb[0].mxu0
      %v1222 = vadd.f32 0.0, %v1221
      %v1223 = vpop.f32.mrb[0].mxu0
      %1224 = vmatprep.mubr.bf16.mxu0 0
      %1225 = vmatmul.mubr.bf16.gmra.mrb[0].mxu0 %v1104
      %v1226 = vpop.f32.mrb[0].mxu0
      %v1227 = vadd.f32 0.0, %v1226
      %v1228 = vpop.f32.mrb[0].mxu0
      %v1229 = vpop.f32.mrb[0].mxu0
      %v1230 = vadd.f32 0.0, %v1229
      %v1231 = vpop.f32.mrb[0].mxu0
      %1232 = vmatprep.mubr.bf16.mxu0 0
      %1233 = vmatmul.mubr.bf16.gmra.mrb[0].mxu0 %v1107
      %v1234 = vpop.f32.mrb[0].mxu0
      %v1235 = vadd.f32 0.0, %v1234
      %v1236 = vpop.f32.mrb[0].mxu0
      %v1237 = vpop.f32.mrb[0].mxu0
      %v1238 = vadd.f32 0.0, %v1237
      %v1239 = vpop.f32.mrb[0].mxu0
      %1240 = vmatprep.mubr.bf16.mxu0 0
      %1241 = vmatmul.mubr.bf16.gmra.mrb[0].mxu0 %v1110
      %v1242 = vpop.f32.mrb[0].mxu0
      %v1243 = vadd.f32 0.0, %v1242
      %v1244 = vpop.f32.mrb[0].mxu0
      %v1245 = vpop.f32.mrb[0].mxu0
      %v1246 = vadd.f32 0.0, %v1245
      %v1247 = vpop.f32.mrb[0].mxu0
      %1248 = vmatprep.mubr.bf16.mxu0 0
      %1249 = vmatmul.mubr.bf16.gmra.mrb[0].mxu0 %v1113
      %v1250 = vpop.f32.mrb[0].mxu0
      %v1251 = vadd.f32 0.0, %v1250
      %v1252 = vpop.f32.mrb[0].mxu0
      %v1253 = vpop.f32.mrb[0].mxu0
      %v1254 = vadd.f32 0.0, %v1253
      %v1255 = vpop.f32.mrb[0].mxu0
      %1256 = vmatprep.mubr.bf16.mxu0 0
      %1257 = vmatmul.mubr.bf16.gmra.mrb[0].mxu0 %v1116
      %v1258 = vpop.f32.mrb[0].mxu0
      %v1259 = vadd.f32 0.0, %v1258
      %v1260 = vpop.f32.mrb[0].mxu0
      %v1261 = vpop.f32.mrb[0].mxu0
      %v1262 = vadd.f32 0.0, %v1261
      %v1263 = vpop.f32.mrb[0].mxu0
      %1264 = vmatprep.mubr.bf16.mxu0 0
      %1265 = vmatmul.mubr.bf16.gmra.mrb[0].mxu0 %v1119
      %v1266 = vpop.f32.mrb[0].mxu0
      %v1267 = vadd.f32 0.0, %v1266
      %v1268 = vpop.f32.mrb[0].mxu0
      %v1269 = vpop.f32.mrb[0].mxu0
      %v1270 = vadd.f32 0.0, %v1269
      %v1271 = vpop.f32.mrb[0].mxu0
      %1272 = vmatprep.mubr.bf16.mxu0 0
      %1273 = vmatmul.mubr.bf16.gmra.mrb[0].mxu0 %v1122
      %v1274 = vpop.f32.mrb[0].mxu0
      %v1275 = vadd.f32 0.0, %v1274
      %v1276 = vpop.f32.mrb[0].mxu0
      %v1277 = vpop.f32.mrb[0].mxu0
      %v1278 = vadd.f32 0.0, %v1277
      %v1279 = vpop.f32.mrb[0].mxu0
      %1280 = vmatprep.mubr.bf16.mxu0 0
      %1281 = vmatmul.mubr.bf16.gmra.mrb[0].mxu0 %v1125
      %v1282 = vpop.f32.mrb[0].mxu0
      %v1283 = vadd.f32 0.0, %v1282
      %v1284 = vpop.f32.mrb[0].mxu0
      %v1285 = vpop.f32.mrb[0].mxu0
      %v1286 = vadd.f32 0.0, %v1285
      %v1287 = vpop.f32.mrb[0].mxu0
      %1288 = vmatprep.mubr.bf16.mxu0 0
      %1289 = vmatmul.mubr.bf16.gmra.mrb[0].mxu0 %v1128
      %v1290 = vpop.f32.mrb[0].mxu0
      %v1291 = vadd.f32 0.0, %v1290
      %v1292 = vpop.f32.mrb[0].mxu0
      %v1293 = vpop.f32.mrb[0].mxu0
      %v1294 = vadd.f32 0.0, %v1293
      %v1295 = vpop.f32.mrb[0].mxu0
      %1296 = vmatprep.mubr.bf16.mxu0 0
      %1297 = vmatmul.mubr.bf16.gmra.mrb[0].mxu0 %v1131
      %v1298 = vpop.f32.mrb[0].mxu0
      %v1299 = vadd.f32 0.0, %v1298
      %v1300 = vpop.f32.mrb[0].mxu0
      %v1301 = vpop.f32.mrb[0].mxu0
      %v1302 = vadd.f32 0.0, %v1301
      %v1303 = vpop.f32.mrb[0].mxu0
      %1304 = vmatprep.mubr.bf16.mxu0 0
      %1305 = vmatmul.mubr.bf16.gmra.mrb[0].mxu0 %v1134
      %v1306 = vpop.f32.mrb[0].mxu0
      %v1307 = vadd.f32 0.0, %v1306
      %v1308 = vpop.f32.mrb[0].mxu0
      %v1309 = vpop.f32.mrb[0].mxu0
      %v1310 = vadd.f32 0.0, %v1309
      %v1311 = vpop.f32.mrb[0].mxu0
      %1312 = vdwg.mxu0
      %v1314 = vunpack.c.l.b16 %v902
      %v1315 = vpack.c.b16 %v982, %v1314
      %vm1316 = vsmask.f32 5376
      %v1318 = vshrl.u32 %v1315, 16
      %v1320 = vrot.slane %v1318, 2
      %v1321 = vshll.u32 %v1315, 16
      %v1323 = vrot.slane %v1321, 3
      %v1324 = vor.u32 %v1320, %v1323
      %v1326 = vshrl.u32 %v1019, 16
      %v1328 = vrot.slane %v1326, 2
      %v1329 = vshll.u32 %v1019, 16
      %v1331 = vrot.slane %v1329, 3
      %v1332 = vor.u32 %v1328, %v1331
      %v1333 = vsel %vm1316, %v1324, %v1332
      %v1335 = vshrl.u32 %v1020, 16
      %v1337 = vrot.slane %v1335, 2
      %v1338 = vshll.u32 %v1020, 16
      %v1340 = vrot.slane %v1338, 3
      %v1341 = vor.u32 %v1337, %v1340
      %v1342 = vsel %vm1316, %v1332, %v1341
      %v1344 = vshrl.u32 %v1021, 16
      %v1346 = vrot.slane %v1344, 2
      %v1347 = vshll.u32 %v1021, 16
      %v1349 = vrot.slane %v1347, 3
      %v1350 = vor.u32 %v1346, %v1349
      %v1351 = vsel %vm1316, %v1341, %v1350
      %v1353 = vshrl.u32 %v1022, 16
      %v1355 = vrot.slane %v1353, 2
      %v1356 = vshll.u32 %v1022, 16
      %v1358 = vrot.slane %v1356, 3
      %v1359 = vor.u32 %v1355, %v1358
      %v1360 = vsel %vm1316, %v1350, %v1359
      %v1362 = vshrl.u32 %v1023, 16
      %v1364 = vrot.slane %v1362, 2
      %v1365 = vshll.u32 %v1023, 16
      %v1367 = vrot.slane %v1365, 3
      %v1368 = vor.u32 %v1364, %v1367
      %v1369 = vsel %vm1316, %v1359, %v1368
      %v1371 = vshrl.u32 %v1024, 16
      %v1373 = vrot.slane %v1371, 2
      %v1374 = vshll.u32 %v1024, 16
      %v1376 = vrot.slane %v1374, 3
      %v1377 = vor.u32 %v1373, %v1376
      %v1378 = vsel %vm1316, %v1368, %v1377
      %v1380 = vshrl.u32 %v1025, 16
      %v1382 = vrot.slane %v1380, 2
      %v1383 = vshll.u32 %v1025, 16
      %v1385 = vrot.slane %v1383, 3
      %v1386 = vor.u32 %v1382, %v1385
      %v1387 = vsel %vm1316, %v1377, %v1386
      %v1389 = vshrl.u32 %v1026, 16
      %v1391 = vrot.slane %v1389, 2
      %v1392 = vshll.u32 %v1026, 16
      %v1394 = vrot.slane %v1392, 3
      %v1395 = vor.u32 %v1391, %v1394
      %v1396 = vsel %vm1316, %v1386, %v1395
      %v1398 = vshrl.u32 %v1027, 16
      %v1400 = vrot.slane %v1398, 2
      %v1401 = vshll.u32 %v1027, 16
      %v1403 = vrot.slane %v1401, 3
      %v1404 = vor.u32 %v1400, %v1403
      %v1405 = vsel %vm1316, %v1395, %v1404
      %v1407 = vshrl.u32 %v1028, 16
      %v1409 = vrot.slane %v1407, 2
      %v1410 = vshll.u32 %v1028, 16
      %v1412 = vrot.slane %v1410, 3
      %v1413 = vor.u32 %v1409, %v1412
      %v1414 = vsel %vm1316, %v1404, %v1413
      %v1416 = vshrl.u32 %v1029, 16
      %v1418 = vrot.slane %v1416, 2
      %v1419 = vshll.u32 %v1029, 16
      %v1421 = vrot.slane %v1419, 3
      %v1422 = vor.u32 %v1418, %v1421
      %v1423 = vsel %vm1316, %v1413, %v1422
      %v1425 = vshrl.u32 %v1030, 16
      %v1427 = vrot.slane %v1425, 2
      %v1428 = vshll.u32 %v1030, 16
      %v1430 = vrot.slane %v1428, 3
      %v1431 = vor.u32 %v1427, %v1430
      %v1432 = vsel %vm1316, %v1422, %v1431
      %v1434 = vshrl.u32 %v1031, 16
      %v1436 = vrot.slane %v1434, 2
      %v1437 = vshll.u32 %v1031, 16
      %v1439 = vrot.slane %v1437, 3
      %v1440 = vor.u32 %v1436, %v1439
      %v1441 = vsel %vm1316, %v1431, %v1440
      %v1443 = vshrl.u32 %v1032, 16
      %v1445 = vrot.slane %v1443, 2
      %v1446 = vshll.u32 %v1032, 16
      %v1448 = vrot.slane %v1446, 3
      %v1449 = vor.u32 %v1445, %v1448
      %v1450 = vsel %vm1316, %v1440, %v1449
      %v1452 = vshrl.u32 %v1033, 16
      %v1454 = vrot.slane %v1452, 2
      %v1455 = vshll.u32 %v1033, 16
      %v1457 = vrot.slane %v1455, 3
      %v1458 = vor.u32 %v1454, %v1457
      %v1459 = vsel %vm1316, %v1449, %v1458
      %v1461 = vshrl.u32 %v1034, 16
      %v1463 = vrot.slane %v1461, 2
      %v1464 = vshll.u32 %v1034, 16
      %v1466 = vrot.slane %v1464, 3
      %v1467 = vor.u32 %v1463, %v1466
      %v1468 = vsel %vm1316, %v1458, %v1467
      %v1470 = vshrl.u32 %v1035, 16
      %v1472 = vrot.slane %v1470, 2
      %v1473 = vshll.u32 %v1035, 16
      %v1475 = vrot.slane %v1473, 3
      %v1476 = vor.u32 %v1472, %v1475
      %v1477 = vsel %vm1316, %v1467, %v1476
      %v1479 = vshrl.u32 %v1036, 16
      %v1481 = vrot.slane %v1479, 2
      %v1482 = vshll.u32 %v1036, 16
      %v1484 = vrot.slane %v1482, 3
      %v1485 = vor.u32 %v1481, %v1484
      %v1486 = vsel %vm1316, %v1476, %v1485
      %v1489 = vunpack.c.l.b16 %v939
      %v1490 = vunpack.c.l.b16 %v940
      %v1491 = vpack.c.b16 %v1490, %v1489
      %v1494 = vsel %vm1081, %v1333, 0
      %v1497 = vsel %vm1081, %v1342, 0
      %v1500 = vsel %vm1081, %v1351, 0
      %v1503 = vsel %vm1081, %v1360, 0
      %v1506 = vsel %vm1081, %v1369, 0
      %v1509 = vsel %vm1081, %v1378, 0
      %v1512 = vsel %vm1081, %v1387, 0
      %v1515 = vsel %vm1081, %v1396, 0
      %v1518 = vsel %vm1081, %v1405, 0
      %v1521 = vsel %vm1081, %v1414, 0
      %v1524 = vsel %vm1081, %v1423, 0
      %v1527 = vsel %vm1081, %v1432, 0
      %v1530 = vsel %vm1081, %v1441, 0
      %v1533 = vsel %vm1081, %v1450, 0
      %v1536 = vsel %vm1081, %v1459, 0
      %v1539 = vsel %vm1081, %v1468, 0
      %v1542 = vsel %vm1081, %v1477, 0
      %v1545 = vsel %vm1081, %v1486, 0
      %1547 = vmatprep.subr.bf16.mxu0 0
      %1548 = vmatpush1.bf16.msra.mxu0 %v1491
      %1549 = vmatprep.subr.bf16.mxu0 0
      %1550 = vmatpush1.bf16.msra.mxu0 0
      %1551 = vmatprep.subr.bf16.mxu0 0
      %1552 = vmatpush1.bf16.msra.mxu0 0
      %1553 = vmatprep.subr.bf16.mxu0 0
      %1554 = vmatpush1.bf16.msra.mxu0 0
      %1555 = vmatprep.subr.bf16.mxu0 0
      %1556 = vmatpush1.bf16.msra.mxu0 0
      %1557 = vmatprep.subr.bf16.mxu0 0
      %1558 = vmatpush1.bf16.msra.mxu0 0
      %1559 = vmatprep.subr.bf16.mxu0 0
      %1560 = vmatpush1.bf16.msra.mxu0 0
      %1561 = vmatprep.subr.bf16.mxu0 0
      %1562 = vmatpush1.bf16.msra.mxu0 0
      %1563 = vmatprep.subr.bf16.mxu0 0
      %1564 = vmatpush1.bf16.msra.mxu0 0
      %1565 = vmatprep.subr.bf16.mxu0 0
      %1566 = vmatpush1.bf16.msra.mxu0 0
      %1567 = vmatprep.subr.bf16.mxu0 0
      %1568 = vmatpush1.bf16.msra.mxu0 0
      %1569 = vmatprep.subr.bf16.mxu0 0
      %1570 = vmatpush1.bf16.msra.mxu0 0
      %1571 = vmatprep.subr.bf16.mxu0 0
      %1572 = vmatpush1.bf16.msra.mxu0 0
      %1573 = vmatprep.subr.bf16.mxu0 0
      %1574 = vmatpush1.bf16.msra.mxu0 0
      %1575 = vmatprep.subr.bf16.mxu0 0
      %1576 = vmatpush1.bf16.msra.mxu0 0
      %1577 = vmatprep.subr.bf16.mxu0 0
      %1578 = vmatpush1.bf16.msra.mxu0 0
      %1579 = vmatprep.mubr.bf16.mxu0 0
      %1580 = vmatmul.mubr.bf16.gmra.mrb[0].mxu0 %v1494
      %v1581 = vpop.f32.mrb[0].mxu0
      %v1582 = vadd.f32 %v1171, %v1581
      %v1583 = vpop.f32.mrb[0].mxu0
      %v1584 = vpop.f32.mrb[0].mxu0
      %v1585 = vadd.f32 %v1174, %v1584
      %v1586 = vpop.f32.mrb[0].mxu0
      %1587 = vmatprep.mubr.bf16.mxu0 0
      %1588 = vmatmul.mubr.bf16.gmra.mrb[0].mxu0 %v1497
      %v1589 = vpop.f32.mrb[0].mxu0
      %v1590 = vadd.f32 %v1179, %v1589
      %v1591 = vpop.f32.mrb[0].mxu0
      %v1592 = vpop.f32.mrb[0].mxu0
      %v1593 = vadd.f32 %v1182, %v1592
      %v1594 = vpop.f32.mrb[0].mxu0
      %1595 = vmatprep.mubr.bf16.mxu0 0
      %1596 = vmatmul.mubr.bf16.gmra.mrb[0].mxu0 %v1500
      %v1597 = vpop.f32.mrb[0].mxu0
      %v1598 = vadd.f32 %v1187, %v1597
      %v1599 = vpop.f32.mrb[0].mxu0
      %v1600 = vpop.f32.mrb[0].mxu0
      %v1601 = vadd.f32 %v1190, %v1600
      %v1602 = vpop.f32.mrb[0].mxu0
      %1603 = vmatprep.mubr.bf16.mxu0 0
      %1604 = vmatmul.mubr.bf16.gmra.mrb[0].mxu0 %v1503
      %v1605 = vpop.f32.mrb[0].mxu0
      %v1606 = vadd.f32 %v1195, %v1605
      %v1607 = vpop.f32.mrb[0].mxu0
      %v1608 = vpop.f32.mrb[0].mxu0
      %v1609 = vadd.f32 %v1198, %v1608
      %v1610 = vpop.f32.mrb[0].mxu0
      %1611 = vmatprep.mubr.bf16.mxu0 0
      %1612 = vmatmul.mubr.bf16.gmra.mrb[0].mxu0 %v1506
      %v1613 = vpop.f32.mrb[0].mxu0
      %v1614 = vadd.f32 %v1203, %v1613
      %v1615 = vpop.f32.mrb[0].mxu0
      %v1616 = vpop.f32.mrb[0].mxu0
      %v1617 = vadd.f32 %v1206, %v1616
      %v1618 = vpop.f32.mrb[0].mxu0
      %1619 = vmatprep.mubr.bf16.mxu0 0
      %1620 = vmatmul.mubr.bf16.gmra.mrb[0].mxu0 %v1509
      %v1621 = vpop.f32.mrb[0].mxu0
      %v1622 = vadd.f32 %v1211, %v1621
      %v1623 = vpop.f32.mrb[0].mxu0
      %v1624 = vpop.f32.mrb[0].mxu0
      %v1625 = vadd.f32 %v1214, %v1624
      %v1626 = vpop.f32.mrb[0].mxu0
      %1627 = vmatprep.mubr.bf16.mxu0 0
      %1628 = vmatmul.mubr.bf16.gmra.mrb[0].mxu0 %v1512
      %v1629 = vpop.f32.mrb[0].mxu0
      %v1630 = vadd.f32 %v1219, %v1629
      %v1631 = vpop.f32.mrb[0].mxu0
      %v1632 = vpop.f32.mrb[0].mxu0
      %v1633 = vadd.f32 %v1222, %v1632
      %v1634 = vpop.f32.mrb[0].mxu0
      %1635 = vmatprep.mubr.bf16.mxu0 0
      %1636 = vmatmul.mubr.bf16.gmra.mrb[0].mxu0 %v1515
      %v1637 = vpop.f32.mrb[0].mxu0
      %v1638 = vadd.f32 %v1227, %v1637
      %v1639 = vpop.f32.mrb[0].mxu0
      %v1640 = vpop.f32.mrb[0].mxu0
      %v1641 = vadd.f32 %v1230, %v1640
      %v1642 = vpop.f32.mrb[0].mxu0
      %1643 = vmatprep.mubr.bf16.mxu0 0
      %1644 = vmatmul.mubr.bf16.gmra.mrb[0].mxu0 %v1518
      %v1645 = vpop.f32.mrb[0].mxu0
      %v1646 = vadd.f32 %v1235, %v1645
      %v1647 = vpop.f32.mrb[0].mxu0
      %v1648 = vpop.f32.mrb[0].mxu0
      %v1649 = vadd.f32 %v1238, %v1648
      %v1650 = vpop.f32.mrb[0].mxu0
      %1651 = vmatprep.mubr.bf16.mxu0 0
      %1652 = vmatmul.mubr.bf16.gmra.mrb[0].mxu0 %v1521
      %v1653 = vpop.f32.mrb[0].mxu0
      %v1654 = vadd.f32 %v1243, %v1653
      %v1655 = vpop.f32.mrb[0].mxu0
      %v1656 = vpop.f32.mrb[0].mxu0
      %v1657 = vadd.f32 %v1246, %v1656
      %v1658 = vpop.f32.mrb[0].mxu0
      %1659 = vmatprep.mubr.bf16.mxu0 0
      %1660 = vmatmul.mubr.bf16.gmra.mrb[0].mxu0 %v1524
      %v1661 = vpop.f32.mrb[0].mxu0
      %v1662 = vadd.f32 %v1251, %v1661
      %v1663 = vpop.f32.mrb[0].mxu0
      %v1664 = vpop.f32.mrb[0].mxu0
      %v1665 = vadd.f32 %v1254, %v1664
      %v1666 = vpop.f32.mrb[0].mxu0
      %1667 = vmatprep.mubr.bf16.mxu0 0
      %1668 = vmatmul.mubr.bf16.gmra.mrb[0].mxu0 %v1527
      %v1669 = vpop.f32.mrb[0].mxu0
      %v1670 = vadd.f32 %v1259, %v1669
      %v1671 = vpop.f32.mrb[0].mxu0
      %v1672 = vpop.f32.mrb[0].mxu0
      %v1673 = vadd.f32 %v1262, %v1672
      %v1674 = vpop.f32.mrb[0].mxu0
      %1675 = vmatprep.mubr.bf16.mxu0 0
      %1676 = vmatmul.mubr.bf16.gmra.mrb[0].mxu0 %v1530
      %v1677 = vpop.f32.mrb[0].mxu0
      %v1678 = vadd.f32 %v1267, %v1677
      %v1679 = vpop.f32.mrb[0].mxu0
      %v1680 = vpop.f32.mrb[0].mxu0
      %v1681 = vadd.f32 %v1270, %v1680
      %v1682 = vpop.f32.mrb[0].mxu0
      %1683 = vmatprep.mubr.bf16.mxu0 0
      %1684 = vmatmul.mubr.bf16.gmra.mrb[0].mxu0 %v1533
      %v1685 = vpop.f32.mrb[0].mxu0
      %v1686 = vadd.f32 %v1275, %v1685
      %v1687 = vpop.f32.mrb[0].mxu0
      %v1688 = vpop.f32.mrb[0].mxu0
      %v1689 = vadd.f32 %v1278, %v1688
      %v1690 = vpop.f32.mrb[0].mxu0
      %1691 = vmatprep.mubr.bf16.mxu0 0
      %1692 = vmatmul.mubr.bf16.gmra.mrb[0].mxu0 %v1536
      %v1693 = vpop.f32.mrb[0].mxu0
      %v1694 = vadd.f32 %v1283, %v1693
      %v1695 = vpop.f32.mrb[0].mxu0
      %v1696 = vpop.f32.mrb[0].mxu0
      %v1697 = vadd.f32 %v1286, %v1696
      %v1698 = vpop.f32.mrb[0].mxu0
      %1699 = vmatprep.mubr.bf16.mxu0 0
      %1700 = vmatmul.mubr.bf16.gmra.mrb[0].mxu0 %v1539
      %v1701 = vpop.f32.mrb[0].mxu0
      %v1702 = vadd.f32 %v1291, %v1701
      %v1703 = vpop.f32.mrb[0].mxu0
      %v1704 = vpop.f32.mrb[0].mxu0
      %v1705 = vadd.f32 %v1294, %v1704
      %v1706 = vpop.f32.mrb[0].mxu0
      %1707 = vmatprep.mubr.bf16.mxu0 0
      %1708 = vmatmul.mubr.bf16.gmra.mrb[0].mxu0 %v1542
      %v1709 = vpop.f32.mrb[0].mxu0
      %v1710 = vadd.f32 %v1299, %v1709
      %v1711 = vpop.f32.mrb[0].mxu0
      %v1712 = vpop.f32.mrb[0].mxu0
      %v1713 = vadd.f32 %v1302, %v1712
      %v1714 = vpop.f32.mrb[0].mxu0
      %1715 = vmatprep.mubr.bf16.mxu0 0
      %1716 = vmatmul.mubr.bf16.gmra.mrb[0].mxu0 %v1545
      %v1717 = vpop.f32.mrb[0].mxu0
      %v1718 = vadd.f32 %v1307, %v1717
      %v1719 = vpop.f32.mrb[0].mxu0
      %v1720 = vpop.f32.mrb[0].mxu0
      %v1721 = vadd.f32 %v1310, %v1720
      %v1722 = vpop.f32.mrb[0].mxu0
      %1723 = vdwg.mxu0
      %v1724 = vld [vmem:[%s246 + $0x94] sm:$0xf]
      %v1725 = vld [vmem:[%s1 + $0x10] sm:$0xf]
      %v1726 = vld [vmem:[%s1 + $0x14] sm:$0xf]
      %v1728 = vunpack.c.l.b16 %v1724
      %v1729 = vpack.c.b16 %v1728, %v1728
      %vm1730 = vsmask.f32 4352
      %v1732 = vshrl.u32 %v1018, 16
      %v1734 = vrot.slane %v1732, 3
      %v1735 = vshll.u32 %v1018, 16
      %v1737 = vrot.slane %v1735, 4
      %v1738 = vor.u32 %v1734, %v1737
      %v1739 = vrot.slane %v1326, 3
      %v1740 = vrot.slane %v1329, 4
      %v1741 = vor.u32 %v1739, %v1740
      %v1742 = vsel %vm1730, %v1738, %v1741
      %v1743 = vrot.slane %v1335, 3
      %v1744 = vrot.slane %v1338, 4
      %v1745 = vor.u32 %v1743, %v1744
      %v1746 = vsel %vm1730, %v1741, %v1745
      %v1747 = vrot.slane %v1344, 3
      %v1748 = vrot.slane %v1347, 4
      %v1749 = vor.u32 %v1747, %v1748
      %v1750 = vsel %vm1730, %v1745, %v1749
      %v1751 = vrot.slane %v1353, 3
      %v1752 = vrot.slane %v1356, 4
      %v1753 = vor.u32 %v1751, %v1752
      %v1754 = vsel %vm1730, %v1749, %v1753
      %v1755 = vrot.slane %v1362, 3
      %v1756 = vrot.slane %v1365, 4
      %v1757 = vor.u32 %v1755, %v1756
      %v1758 = vsel %vm1730, %v1753, %v1757
      %v1759 = vrot.slane %v1371, 3
      %v1760 = vrot.slane %v1374, 4
      %v1761 = vor.u32 %v1759, %v1760
      %v1762 = vsel %vm1730, %v1757, %v1761
      %v1763 = vrot.slane %v1380, 3
      %v1764 = vrot.slane %v1383, 4
      %v1765 = vor.u32 %v1763, %v1764
      %v1766 = vsel %vm1730, %v1761, %v1765
      %v1767 = vrot.slane %v1389, 3
      %v1768 = vrot.slane %v1392, 4
      %v1769 = vor.u32 %v1767, %v1768
      %v1770 = vsel %vm1730, %v1765, %v1769
      %v1771 = vrot.slane %v1398, 3
      %v1772 = vrot.slane %v1401, 4
      %v1773 = vor.u32 %v1771, %v1772
      %v1774 = vsel %vm1730, %v1769, %v1773
      %v1775 = vrot.slane %v1407, 3
      %v1776 = vrot.slane %v1410, 4
      %v1777 = vor.u32 %v1775, %v1776
      %v1778 = vsel %vm1730, %v1773, %v1777
      %v1779 = vrot.slane %v1416, 3
      %v1780 = vrot.slane %v1419, 4
      %v1781 = vor.u32 %v1779, %v1780
      %v1782 = vsel %vm1730, %v1777, %v1781
      %v1783 = vrot.slane %v1425, 3
      %v1784 = vrot.slane %v1428, 4
      %v1785 = vor.u32 %v1783, %v1784
      %v1786 = vsel %vm1730, %v1781, %v1785
      %v1787 = vrot.slane %v1434, 3
      %v1788 = vrot.slane %v1437, 4
      %v1789 = vor.u32 %v1787, %v1788
      %v1790 = vsel %vm1730, %v1785, %v1789
      %v1791 = vrot.slane %v1443, 3
      %v1792 = vrot.slane %v1446, 4
      %v1793 = vor.u32 %v1791, %v1792
      %v1794 = vsel %vm1730, %v1789, %v1793
      %v1795 = vrot.slane %v1452, 3
      %v1796 = vrot.slane %v1455, 4
      %v1797 = vor.u32 %v1795, %v1796
      %v1798 = vsel %vm1730, %v1793, %v1797
      %v1799 = vrot.slane %v1461, 3
      %v1800 = vrot.slane %v1464, 4
      %v1801 = vor.u32 %v1799, %v1800
      %v1802 = vsel %vm1730, %v1797, %v1801
      %v1803 = vrot.slane %v1470, 3
      %v1804 = vrot.slane %v1473, 4
      %v1805 = vor.u32 %v1803, %v1804
      %v1806 = vsel %vm1730, %v1801, %v1805
      %v1808 = vshrl.u32 %v1729, 16
      %v1810 = vrot.slane %v1808, 3
      %v1811 = vshll.u32 %v1729, 16
      %v1813 = vrot.slane %v1811, 4
      %v1814 = vor.u32 %v1810, %v1813
      %v1815 = vsel %vm1730, %v1805, %v1814
      %v1818 = vunpack.c.l.b16 %v1725
      %v1819 = vunpack.c.l.b16 %v1726
      %v1820 = vpack.c.b16 %v1819, %v1818
      %v1823 = vsel %vm1081, %v1742, 0
      %v1826 = vsel %vm1081, %v1746, 0
      %v1829 = vsel %vm1081, %v1750, 0
      %v1832 = vsel %vm1081, %v1754, 0
      %v1835 = vsel %vm1081, %v1758, 0
      %v1838 = vsel %vm1081, %v1762, 0
      %v1841 = vsel %vm1081, %v1766, 0
      %v1844 = vsel %vm1081, %v1770, 0
      %v1847 = vsel %vm1081, %v1774, 0
      %v1850 = vsel %vm1081, %v1778, 0
      %v1853 = vsel %vm1081, %v1782, 0
      %v1856 = vsel %vm1081, %v1786, 0
      %v1859 = vsel %vm1081, %v1790, 0
      %v1862 = vsel %vm1081, %v1794, 0
      %v1865 = vsel %vm1081, %v1798, 0
      %v1868 = vsel %vm1081, %v1802, 0
      %v1871 = vsel %vm1081, %v1806, 0
      %v1874 = vsel %vm1081, %v1815, 0
      %1876 = vmatprep.subr.bf16.mxu0 0
      %1877 = vmatpush1.bf16.msra.mxu0 %v1820
      %1878 = vmatprep.subr.bf16.mxu0 0
      %1879 = vmatpush1.bf16.msra.mxu0 0
      %1880 = vmatprep.subr.bf16.mxu0 0
      %1881 = vmatpush1.bf16.msra.mxu0 0
      %1882 = vmatprep.subr.bf16.mxu0 0
      %1883 = vmatpush1.bf16.msra.mxu0 0
      %1884 = vmatprep.subr.bf16.mxu0 0
      %1885 = vmatpush1.bf16.msra.mxu0 0
      %1886 = vmatprep.subr.bf16.mxu0 0
      %1887 = vmatpush1.bf16.msra.mxu0 0
      %1888 = vmatprep.subr.bf16.mxu0 0
      %1889 = vmatpush1.bf16.msra.mxu0 0
      %1890 = vmatprep.subr.bf16.mxu0 0
      %1891 = vmatpush1.bf16.msra.mxu0 0
      %1892 = vmatprep.subr.bf16.mxu0 0
      %1893 = vmatpush1.bf16.msra.mxu0 0
      %1894 = vmatprep.subr.bf16.mxu0 0
      %1895 = vmatpush1.bf16.msra.mxu0 0
      %1896 = vmatprep.subr.bf16.mxu0 0
      %1897 = vmatpush1.bf16.msra.mxu0 0
      %1898 = vmatprep.subr.bf16.mxu0 0
      %1899 = vmatpush1.bf16.msra.mxu0 0
      %1900 = vmatprep.subr.bf16.mxu0 0
      %1901 = vmatpush1.bf16.msra.mxu0 0
      %1902 = vmatprep.subr.bf16.mxu0 0
      %1903 = vmatpush1.bf16.msra.mxu0 0
      %1904 = vmatprep.subr.bf16.mxu0 0
      %1905 = vmatpush1.bf16.msra.mxu0 0
      %1906 = vmatprep.subr.bf16.mxu0 0
      %1907 = vmatpush1.bf16.msra.mxu0 0
      %1908 = vmatprep.mubr.bf16.mxu0 0
      %1909 = vmatmul.mubr.bf16.gmra.mrb[0].mxu0 %v1823
      %v1910 = vpop.f32.mrb[0].mxu0
      %v1911 = vadd.f32 0.0, %v1910
      %v1912 = vpop.f32.mrb[0].mxu0
      %v1913 = vpop.f32.mrb[0].mxu0
      %v1914 = vadd.f32 0.0, %v1913
      %v1915 = vpop.f32.mrb[0].mxu0
      %1916 = vmatprep.mubr.bf16.mxu0 0
      %1917 = vmatmul.mubr.bf16.gmra.mrb[0].mxu0 %v1826
      %v1918 = vpop.f32.mrb[0].mxu0
      %v1919 = vadd.f32 0.0, %v1918
      %v1920 = vpop.f32.mrb[0].mxu0
      %v1921 = vpop.f32.mrb[0].mxu0
      %v1922 = vadd.f32 0.0, %v1921
      %v1923 = vpop.f32.mrb[0].mxu0
      %1924 = vmatprep.mubr.bf16.mxu0 0
      %1925 = vmatmul.mubr.bf16.gmra.mrb[0].mxu0 %v1829
      %v1926 = vpop.f32.mrb[0].mxu0
      %v1927 = vadd.f32 0.0, %v1926
      %v1928 = vpop.f32.mrb[0].mxu0
      %v1929 = vpop.f32.mrb[0].mxu0
      %v1930 = vadd.f32 0.0, %v1929
      %v1931 = vpop.f32.mrb[0].mxu0
      %1932 = vmatprep.mubr.bf16.mxu0 0
      %1933 = vmatmul.mubr.bf16.gmra.mrb[0].mxu0 %v1832
      %v1934 = vpop.f32.mrb[0].mxu0
      %v1935 = vadd.f32 0.0, %v1934
      %v1936 = vpop.f32.mrb[0].mxu0
      %v1937 = vpop.f32.mrb[0].mxu0
      %v1938 = vadd.f32 0.0, %v1937
      %v1939 = vpop.f32.mrb[0].mxu0
      %1940 = vmatprep.mubr.bf16.mxu0 0
      %1941 = vmatmul.mubr.bf16.gmra.mrb[0].mxu0 %v1835
      %v1942 = vpop.f32.mrb[0].mxu0
      %v1943 = vadd.f32 0.0, %v1942
      %v1944 = vpop.f32.mrb[0].mxu0
      %v1945 = vpop.f32.mrb[0].mxu0
      %v1946 = vadd.f32 0.0, %v1945
      %v1947 = vpop.f32.mrb[0].mxu0
      %1948 = vmatprep.mubr.bf16.mxu0 0
      %1949 = vmatmul.mubr.bf16.gmra.mrb[0].mxu0 %v1838
      %v1950 = vpop.f32.mrb[0].mxu0
      %v1951 = vadd.f32 0.0, %v1950
      %v1952 = vpop.f32.mrb[0].mxu0
      %v1953 = vpop.f32.mrb[0].mxu0
      %v1954 = vadd.f32 0.0, %v1953
      %v1955 = vpop.f32.mrb[0].mxu0
      %1956 = vmatprep.mubr.bf16.mxu0 0
      %1957 = vmatmul.mubr.bf16.gmra.mrb[0].mxu0 %v1841
      %v1958 = vpop.f32.mrb[0].mxu0
      %v1959 = vadd.f32 0.0, %v1958
      %v1960 = vpop.f32.mrb[0].mxu0
      %v1961 = vpop.f32.mrb[0].mxu0
      %v1962 = vadd.f32 0.0, %v1961
      %v1963 = vpop.f32.mrb[0].mxu0
      %1964 = vmatprep.mubr.bf16.mxu0 0
      %1965 = vmatmul.mubr.bf16.gmra.mrb[0].mxu0 %v1844
      %v1966 = vpop.f32.mrb[0].mxu0
      %v1967 = vadd.f32 0.0, %v1966
      %v1968 = vpop.f32.mrb[0].mxu0
      %v1969 = vpop.f32.mrb[0].mxu0
      %v1970 = vadd.f32 0.0, %v1969
      %v1971 = vpop.f32.mrb[0].mxu0
      %1972 = vmatprep.mubr.bf16.mxu0 0
      %1973 = vmatmul.mubr.bf16.gmra.mrb[0].mxu0 %v1847
      %v1974 = vpop.f32.mrb[0].mxu0
      %v1975 = vadd.f32 0.0, %v1974
      %v1976 = vpop.f32.mrb[0].mxu0
      %v1977 = vpop.f32.mrb[0].mxu0
      %v1978 = vadd.f32 0.0, %v1977
      %v1979 = vpop.f32.mrb[0].mxu0
      %1980 = vmatprep.mubr.bf16.mxu0 0
      %1981 = vmatmul.mubr.bf16.gmra.mrb[0].mxu0 %v1850
      %v1982 = vpop.f32.mrb[0].mxu0
      %v1983 = vadd.f32 0.0, %v1982
      %v1984 = vpop.f32.mrb[0].mxu0
      %v1985 = vpop.f32.mrb[0].mxu0
      %v1986 = vadd.f32 0.0, %v1985
      %v1987 = vpop.f32.mrb[0].mxu0
      %1988 = vmatprep.mubr.bf16.mxu0 0
      %1989 = vmatmul.mubr.bf16.gmra.mrb[0].mxu0 %v1853
      %v1990 = vpop.f32.mrb[0].mxu0
      %v1991 = vadd.f32 0.0, %v1990
      %v1992 = vpop.f32.mrb[0].mxu0
      %v1993 = vpop.f32.mrb[0].mxu0
      %v1994 = vadd.f32 0.0, %v1993
      %v1995 = vpop.f32.mrb[0].mxu0
      %1996 = vmatprep.mubr.bf16.mxu0 0
      %1997 = vmatmul.mubr.bf16.gmra.mrb[0].mxu0 %v1856
      %v1998 = vpop.f32.mrb[0].mxu0
      %v1999 = vadd.f32 0.0, %v1998
      %v2000 = vpop.f32.mrb[0].mxu0
      %v2001 = vpop.f32.mrb[0].mxu0
      %v2002 = vadd.f32 0.0, %v2001
      %v2003 = vpop.f32.mrb[0].mxu0
      %2004 = vmatprep.mubr.bf16.mxu0 0
      %2005 = vmatmul.mubr.bf16.gmra.mrb[0].mxu0 %v1859
      %v2006 = vpop.f32.mrb[0].mxu0
      %v2007 = vadd.f32 0.0, %v2006
      %v2008 = vpop.f32.mrb[0].mxu0
      %v2009 = vpop.f32.mrb[0].mxu0
      %v2010 = vadd.f32 0.0, %v2009
      %v2011 = vpop.f32.mrb[0].mxu0
      %2012 = vmatprep.mubr.bf16.mxu0 0
      %2013 = vmatmul.mubr.bf16.gmra.mrb[0].mxu0 %v1862
      %v2014 = vpop.f32.mrb[0].mxu0
      %v2015 = vadd.f32 0.0, %v2014
      %v2016 = vpop.f32.mrb[0].mxu0
      %v2017 = vpop.f32.mrb[0].mxu0
      %v2018 = vadd.f32 0.0, %v2017
      %v2019 = vpop.f32.mrb[0].mxu0
      %2020 = vmatprep.mubr.bf16.mxu0 0
      %2021 = vmatmul.mubr.bf16.gmra.mrb[0].mxu0 %v1865
      %v2022 = vpop.f32.mrb[0].mxu0
      %v2023 = vadd.f32 0.0, %v2022
      %v2024 = vpop.f32.mrb[0].mxu0
      %v2025 = vpop.f32.mrb[0].mxu0
      %v2026 = vadd.f32 0.0, %v2025
      %v2027 = vpop.f32.mrb[0].mxu0
      %2028 = vmatprep.mubr.bf16.mxu0 0
      %2029 = vmatmul.mubr.bf16.gmra.mrb[0].mxu0 %v1868
      %v2030 = vpop.f32.mrb[0].mxu0
      %v2031 = vadd.f32 0.0, %v2030
      %v2032 = vpop.f32.mrb[0].mxu0
      %v2033 = vpop.f32.mrb[0].mxu0
      %v2034 = vadd.f32 0.0, %v2033
      %v2035 = vpop.f32.mrb[0].mxu0
      %2036 = vmatprep.mubr.bf16.mxu0 0
      %2037 = vmatmul.mubr.bf16.gmra.mrb[0].mxu0 %v1871
      %v2038 = vpop.f32.mrb[0].mxu0
      %v2039 = vadd.f32 0.0, %v2038
      %v2040 = vpop.f32.mrb[0].mxu0
      %v2041 = vpop.f32.mrb[0].mxu0
      %v2042 = vadd.f32 0.0, %v2041
      %v2043 = vpop.f32.mrb[0].mxu0
      %2044 = vmatprep.mubr.bf16.mxu0 0
      %2045 = vmatmul.mubr.bf16.gmra.mrb[0].mxu0 %v1874
      %v2046 = vpop.f32.mrb[0].mxu0
      %v2047 = vadd.f32 0.0, %v2046
      %v2048 = vpop.f32.mrb[0].mxu0
      %v2049 = vpop.f32.mrb[0].mxu0
      %v2050 = vadd.f32 0.0, %v2049
      %v2051 = vpop.f32.mrb[0].mxu0
      %2052 = vdwg.mxu0
      %v2053 = vadd.f32 %v1582, %v1911
      %v2054 = vadd.f32 %v1585, %v1914
      %v2055 = vadd.f32 %v1590, %v1919
      %v2056 = vadd.f32 %v1593, %v1922
      %v2057 = vadd.f32 %v1598, %v1927
      %v2058 = vadd.f32 %v1601, %v1930
      %v2059 = vadd.f32 %v1606, %v1935
      %v2060 = vadd.f32 %v1609, %v1938
      %v2061 = vadd.f32 %v1614, %v1943
      %v2062 = vadd.f32 %v1617, %v1946
      %v2063 = vadd.f32 %v1622, %v1951
      %v2064 = vadd.f32 %v1625, %v1954
      %v2065 = vadd.f32 %v1630, %v1959
      %v2066 = vadd.f32 %v1633, %v1962
      %v2067 = vadd.f32 %v1638, %v1967
      %v2068 = vadd.f32 %v1641, %v1970
      %v2069 = vadd.f32 %v1646, %v1975
      %v2070 = vadd.f32 %v1649, %v1978
      %v2071 = vadd.f32 %v1654, %v1983
      %v2072 = vadd.f32 %v1657, %v1986
      %v2073 = vadd.f32 %v1662, %v1991
      %v2074 = vadd.f32 %v1665, %v1994
      %v2075 = vadd.f32 %v1670, %v1999
      %v2076 = vadd.f32 %v1673, %v2002
      %v2077 = vadd.f32 %v1678, %v2007
      %v2078 = vadd.f32 %v1681, %v2010
      %v2079 = vadd.f32 %v1686, %v2015
      %v2080 = vadd.f32 %v1689, %v2018
      %v2081 = vadd.f32 %v1694, %v2023
      %v2082 = vadd.f32 %v1697, %v2026
      %v2083 = vadd.f32 %v1702, %v2031
      %v2084 = vadd.f32 %v1705, %v2034
      %v2085 = vadd.f32 %v1710, %v2039
      %v2086 = vadd.f32 %v1713, %v2042
      %v2087 = vadd.f32 %v1718, %v2047
      %v2088 = vadd.f32 %v1721, %v2050
      %v2089 = vld [vmem:[%s246 + $0xc] sm:$0x8]
      %v2090 = vld [vmem:[%s246 + $0x10] sm:$0xf]
      %v2091 = vld [vmem:[%s246 + $0x14] sm:$0xf]
      %v2092 = vld [vmem:[%s246 + $0x18] sm:$0xf]
      %v2093 = vld [vmem:[%s246 + $0x1c] sm:$0xf]
      %v2094 = vld [vmem:[%s246 + $0x20] sm:$0xf]
      %v2095 = vld [vmem:[%s246 + $0x24] sm:$0xf]
      %v2096 = vld [vmem:[%s246 + $0x28] sm:$0xf]
      %v2097 = vld [vmem:[%s246 + $0x2c] sm:$0xf]
      %v2098 = vld [vmem:[%s246 + $0x30] sm:$0xf]
      %v2099 = vld [vmem:[%s246 + $0x34] sm:$0xf]
      %v2100 = vld [vmem:[%s246 + $0x38] sm:$0xf]
      %v2101 = vld [vmem:[%s246 + $0x3c] sm:$0xf]
      %v2102 = vld [vmem:[%s246 + $0x40] sm:$0xf]
      %v2103 = vld [vmem:[%s246 + $0x44] sm:$0xf]
      %v2104 = vld [vmem:[%s246 + $0x48] sm:$0xf]
      %v2105 = vld [vmem:[%s246 + $0x4c] sm:$0xf]
      %v2106 = vld [vmem:[%s246 + $0x50] sm:$0xf]
      %v2107 = vld [vmem:[%s246 + $0x54] sm:$0xf]
      %v2108 = vld [vmem:[%s246 + $0x58] sm:$0xf]
      %v2109 = vld [vmem:[%s246 + $0x5c] sm:$0xf]
      %v2110 = vld [vmem:[%s246 + $0x60] sm:$0xf]
      %v2111 = vld [vmem:[%s246 + $0x64] sm:$0xf]
      %v2112 = vld [vmem:[%s246 + $0x68] sm:$0xf]
      %v2113 = vld [vmem:[%s246 + $0x6c] sm:$0xf]
      %v2114 = vld [vmem:[%s246 + $0x70] sm:$0xf]
      %v2115 = vld [vmem:[%s246 + $0x74] sm:$0xf]
      %v2116 = vld [vmem:[%s246 + $0x78] sm:$0xf]
      %v2117 = vld [vmem:[%s246 + $0x7c] sm:$0xf]
      %v2118 = vld [vmem:[%s246 + $0x80] sm:$0xf]
      %v2119 = vld [vmem:[%s246 + $0x84] sm:$0xf]
      %v2120 = vld [vmem:[%s246 + $0x88] sm:$0xf]
      %v2121 = vld [vmem:[%s246 + $0x8c] sm:$0xf]
      %v2122 = vld [vmem:[%s246 + $0x90] sm:$0xf]
      %v2123 = vld [vmem:[%s246 + $0x94] sm:$0xf]
      %v2124 = vld [vmem:[%s246 + $0x98] sm:$0xf]
      %v2125 = vld [vmem:[%s246 + $0x9c] sm:$0xf]
      %v2126 = vld [vmem:[%s1 + $0x18] sm:$0xf]
      %v2127 = vld [vmem:[%s1 + $0x1c] sm:$0xf]
      %v2165 = vunpack.c.l.b16 %v2089
      %v2166 = vunpack.c.l.b16 %v2090
      %v2167 = vunpack.c.l.b16 %v2091
      %v2168 = vunpack.c.l.b16 %v2092
      %v2169 = vunpack.c.l.b16 %v2093
      %v2170 = vunpack.c.l.b16 %v2094
      %v2171 = vunpack.c.l.b16 %v2095
      %v2172 = vunpack.c.l.b16 %v2096
      %v2173 = vunpack.c.l.b16 %v2097
      %v2174 = vunpack.c.l.b16 %v2098
      %v2175 = vunpack.c.l.b16 %v2099
      %v2176 = vunpack.c.l.b16 %v2100
      %v2177 = vunpack.c.l.b16 %v2101
      %v2178 = vunpack.c.l.b16 %v2102
      %v2179 = vunpack.c.l.b16 %v2103
      %v2180 = vunpack.c.l.b16 %v2104
      %v2181 = vunpack.c.l.b16 %v2105
      %v2182 = vunpack.c.l.b16 %v2106
      %v2183 = vunpack.c.l.b16 %v2107
      %v2184 = vunpack.c.l.b16 %v2108
      %v2185 = vunpack.c.l.b16 %v2109
      %v2186 = vunpack.c.l.b16 %v2110
      %v2187 = vunpack.c.l.b16 %v2111
      %v2188 = vunpack.c.l.b16 %v2112
      %v2189 = vunpack.c.l.b16 %v2113
      %v2190 = vunpack.c.l.b16 %v2114
      %v2191 = vunpack.c.l.b16 %v2115
      %v2192 = vunpack.c.l.b16 %v2116
      %v2193 = vunpack.c.l.b16 %v2117
      %v2194 = vunpack.c.l.b16 %v2118
      %v2195 = vunpack.c.l.b16 %v2119
      %v2196 = vunpack.c.l.b16 %v2120
      %v2197 = vunpack.c.l.b16 %v2121
      %v2198 = vunpack.c.l.b16 %v2122
      %v2199 = vunpack.c.l.b16 %v2123
      %v2200 = vunpack.c.l.b16 %v2124
      %v2201 = vunpack.c.l.b16 %v2125
      %v2202 = vpack.c.b16 %v2166, %v2165
      %v2203 = vpack.c.b16 %v2168, %v2167
      %v2204 = vpack.c.b16 %v2170, %v2169
      %v2205 = vpack.c.b16 %v2172, %v2171
      %v2206 = vpack.c.b16 %v2174, %v2173
      %v2207 = vpack.c.b16 %v2176, %v2175
      %v2208 = vpack.c.b16 %v2178, %v2177
      %v2209 = vpack.c.b16 %v2180, %v2179
      %v2210 = vpack.c.b16 %v2182, %v2181
      %v2211 = vpack.c.b16 %v2184, %v2183
      %v2212 = vpack.c.b16 %v2186, %v2185
      %v2213 = vpack.c.b16 %v2188, %v2187
      %v2214 = vpack.c.b16 %v2190, %v2189
      %v2215 = vpack.c.b16 %v2192, %v2191
      %v2216 = vpack.c.b16 %v2194, %v2193
      %v2217 = vpack.c.b16 %v2196, %v2195
      %v2218 = vpack.c.b16 %v2198, %v2197
      %v2219 = vpack.c.b16 %v2200, %v2199
      %v2220 = vpack.c.b16 %v2201, %v2201
      %v2222 = vshrl.u32 %v2202, 16
      %v2224 = vrot.slane %v2222, 3
      %v2225 = vshll.u32 %v2202, 16
      %v2227 = vrot.slane %v2225, 4
      %v2228 = vor.u32 %v2224, %v2227
      %v2230 = vshrl.u32 %v2203, 16
      %v2232 = vrot.slane %v2230, 3
      %v2233 = vshll.u32 %v2203, 16
      %v2235 = vrot.slane %v2233, 4
      %v2236 = vor.u32 %v2232, %v2235
      %v2237 = vsel %vm1730, %v2228, %v2236
      %v2239 = vshrl.u32 %v2204, 16
      %v2241 = vrot.slane %v2239, 3
      %v2242 = vshll.u32 %v2204, 16
      %v2244 = vrot.slane %v2242, 4
      %v2245 = vor.u32 %v2241, %v2244
      %v2246 = vsel %vm1730, %v2236, %v2245
      %v2248 = vshrl.u32 %v2205, 16
      %v2250 = vrot.slane %v2248, 3
      %v2251 = vshll.u32 %v2205, 16
      %v2253 = vrot.slane %v2251, 4
      %v2254 = vor.u32 %v2250, %v2253
      %v2255 = vsel %vm1730, %v2245, %v2254
      %v2257 = vshrl.u32 %v2206, 16
      %v2259 = vrot.slane %v2257, 3
      %v2260 = vshll.u32 %v2206, 16
      %v2262 = vrot.slane %v2260, 4
      %v2263 = vor.u32 %v2259, %v2262
      %v2264 = vsel %vm1730, %v2254, %v2263
      %v2266 = vshrl.u32 %v2207, 16
      %v2268 = vrot.slane %v2266, 3
      %v2269 = vshll.u32 %v2207, 16
      %v2271 = vrot.slane %v2269, 4
      %v2272 = vor.u32 %v2268, %v2271
      %v2273 = vsel %vm1730, %v2263, %v2272
      %v2275 = vshrl.u32 %v2208, 16
      %v2277 = vrot.slane %v2275, 3
      %v2278 = vshll.u32 %v2208, 16
      %v2280 = vrot.slane %v2278, 4
      %v2281 = vor.u32 %v2277, %v2280
      %v2282 = vsel %vm1730, %v2272, %v2281
      %v2284 = vshrl.u32 %v2209, 16
      %v2286 = vrot.slane %v2284, 3
      %v2287 = vshll.u32 %v2209, 16
      %v2289 = vrot.slane %v2287, 4
      %v2290 = vor.u32 %v2286, %v2289
      %v2291 = vsel %vm1730, %v2281, %v2290
      %v2293 = vshrl.u32 %v2210, 16
      %v2295 = vrot.slane %v2293, 3
      %v2296 = vshll.u32 %v2210, 16
      %v2298 = vrot.slane %v2296, 4
      %v2299 = vor.u32 %v2295, %v2298
      %v2300 = vsel %vm1730, %v2290, %v2299
      %v2302 = vshrl.u32 %v2211, 16
      %v2304 = vrot.slane %v2302, 3
      %v2305 = vshll.u32 %v2211, 16
      %v2307 = vrot.slane %v2305, 4
      %v2308 = vor.u32 %v2304, %v2307
      %v2309 = vsel %vm1730, %v2299, %v2308
      %v2311 = vshrl.u32 %v2212, 16
      %v2313 = vrot.slane %v2311, 3
      %v2314 = vshll.u32 %v2212, 16
      %v2316 = vrot.slane %v2314, 4
      %v2317 = vor.u32 %v2313, %v2316
      %v2318 = vsel %vm1730, %v2308, %v2317
      %v2320 = vshrl.u32 %v2213, 16
      %v2322 = vrot.slane %v2320, 3
      %v2323 = vshll.u32 %v2213, 16
      %v2325 = vrot.slane %v2323, 4
      %v2326 = vor.u32 %v2322, %v2325
      %v2327 = vsel %vm1730, %v2317, %v2326
      %v2329 = vshrl.u32 %v2214, 16
      %v2331 = vrot.slane %v2329, 3
      %v2332 = vshll.u32 %v2214, 16
      %v2334 = vrot.slane %v2332, 4
      %v2335 = vor.u32 %v2331, %v2334
      %v2336 = vsel %vm1730, %v2326, %v2335
      %v2338 = vshrl.u32 %v2215, 16
      %v2340 = vrot.slane %v2338, 3
      %v2341 = vshll.u32 %v2215, 16
      %v2343 = vrot.slane %v2341, 4
      %v2344 = vor.u32 %v2340, %v2343
      %v2345 = vsel %vm1730, %v2335, %v2344
      %v2347 = vshrl.u32 %v2216, 16
      %v2349 = vrot.slane %v2347, 3
      %v2350 = vshll.u32 %v2216, 16
      %v2352 = vrot.slane %v2350, 4
      %v2353 = vor.u32 %v2349, %v2352
      %v2354 = vsel %vm1730, %v2344, %v2353
      %v2356 = vshrl.u32 %v2217, 16
      %v2358 = vrot.slane %v2356, 3
      %v2359 = vshll.u32 %v2217, 16
      %v2361 = vrot.slane %v2359, 4
      %v2362 = vor.u32 %v2358, %v2361
      %v2363 = vsel %vm1730, %v2353, %v2362
      %v2365 = vshrl.u32 %v2218, 16
      %v2367 = vrot.slane %v2365, 3
      %v2368 = vshll.u32 %v2218, 16
      %v2370 = vrot.slane %v2368, 4
      %v2371 = vor.u32 %v2367, %v2370
      %v2372 = vsel %vm1730, %v2362, %v2371
      %v2374 = vshrl.u32 %v2219, 16
      %v2376 = vrot.slane %v2374, 3
      %v2377 = vshll.u32 %v2219, 16
      %v2379 = vrot.slane %v2377, 4
      %v2380 = vor.u32 %v2376, %v2379
      %v2381 = vsel %vm1730, %v2371, %v2380
      %v2383 = vshrl.u32 %v2220, 16
      %v2385 = vrot.slane %v2383, 3
      %v2386 = vshll.u32 %v2220, 16
      %v2388 = vrot.slane %v2386, 4
      %v2389 = vor.u32 %v2385, %v2388
      %v2390 = vsel %vm1730, %v2380, %v2389
      %v2393 = vunpack.c.l.b16 %v2126
      %v2394 = vunpack.c.l.b16 %v2127
      %v2395 = vpack.c.b16 %v2394, %v2393
      %v2398 = vsel %vm1081, %v2237, 0
      %v2401 = vsel %vm1081, %v2246, 0
      %v2404 = vsel %vm1081, %v2255, 0
      %v2407 = vsel %vm1081, %v2264, 0
      %v2410 = vsel %vm1081, %v2273, 0
      %v2413 = vsel %vm1081, %v2282, 0
      %v2416 = vsel %vm1081, %v2291, 0
      %v2419 = vsel %vm1081, %v2300, 0
      %v2422 = vsel %vm1081, %v2309, 0
      %v2425 = vsel %vm1081, %v2318, 0
      %v2428 = vsel %vm1081, %v2327, 0
      %v2431 = vsel %vm1081, %v2336, 0
      %v2434 = vsel %vm1081, %v2345, 0
      %v2437 = vsel %vm1081, %v2354, 0
      %v2440 = vsel %vm1081, %v2363, 0
      %v2443 = vsel %vm1081, %v2372, 0
      %v2446 = vsel %vm1081, %v2381, 0
      %v2449 = vsel %vm1081, %v2390, 0
      %2451 = vmatprep.subr.bf16.mxu0 0
      %2452 = vmatpush1.bf16.msra.mxu0 %v2395
      %2453 = vmatprep.subr.bf16.mxu0 0
      %2454 = vmatpush1.bf16.msra.mxu0 0
      %2455 = vmatprep.subr.bf16.mxu0 0
      %2456 = vmatpush1.bf16.msra.mxu0 0
      %2457 = vmatprep.subr.bf16.mxu0 0
      %2458 = vmatpush1.bf16.msra.mxu0 0
      %2459 = vmatprep.subr.bf16.mxu0 0
      %2460 = vmatpush1.bf16.msra.mxu0 0
      %2461 = vmatprep.subr.bf16.mxu0 0
      %2462 = vmatpush1.bf16.msra.mxu0 0
      %2463 = vmatprep.subr.bf16.mxu0 0
      %2464 = vmatpush1.bf16.msra.mxu0 0
      %2465 = vmatprep.subr.bf16.mxu0 0
      %2466 = vmatpush1.bf16.msra.mxu0 0
      %2467 = vmatprep.subr.bf16.mxu0 0
      %2468 = vmatpush1.bf16.msra.mxu0 0
      %2469 = vmatprep.subr.bf16.mxu0 0
      %2470 = vmatpush1.bf16.msra.mxu0 0
      %2471 = vmatprep.subr.bf16.mxu0 0
      %2472 = vmatpush1.bf16.msra.mxu0 0
      %2473 = vmatprep.subr.bf16.mxu0 0
      %2474 = vmatpush1.bf16.msra.mxu0 0
      %2475 = vmatprep.subr.bf16.mxu0 0
      %2476 = vmatpush1.bf16.msra.mxu0 0
      %2477 = vmatprep.subr.bf16.mxu0 0
      %2478 = vmatpush1.bf16.msra.mxu0 0
      %2479 = vmatprep.subr.bf16.mxu0 0
      %2480 = vmatpush1.bf16.msra.mxu0 0
      %2481 = vmatprep.subr.bf16.mxu0 0
      %2482 = vmatpush1.bf16.msra.mxu0 0
      %2483 = vmatprep.mubr.bf16.mxu0 0
      %2484 = vmatmul.mubr.bf16.gmra.mrb[0].mxu0 %v2398
      %v2485 = vpop.f32.mrb[0].mxu0
      %v2486 = vadd.f32 0.0, %v2485
      %v2487 = vpop.f32.mrb[0].mxu0
      %v2488 = vpop.f32.mrb[0].mxu0
      %v2489 = vadd.f32 0.0, %v2488
      %v2490 = vpop.f32.mrb[0].mxu0
      %2491 = vmatprep.mubr.bf16.mxu0 0
      %2492 = vmatmul.mubr.bf16.gmra.mrb[0].mxu0 %v2401
      %v2493 = vpop.f32.mrb[0].mxu0
      %v2494 = vadd.f32 0.0, %v2493
      %v2495 = vpop.f32.mrb[0].mxu0
      %v2496 = vpop.f32.mrb[0].mxu0
      %v2497 = vadd.f32 0.0, %v2496
      %v2498 = vpop.f32.mrb[0].mxu0
      %2499 = vmatprep.mubr.bf16.mxu0 0
      %2500 = vmatmul.mubr.bf16.gmra.mrb[0].mxu0 %v2404
      %v2501 = vpop.f32.mrb[0].mxu0
      %v2502 = vadd.f32 0.0, %v2501
      %v2503 = vpop.f32.mrb[0].mxu0
      %v2504 = vpop.f32.mrb[0].mxu0
      %v2505 = vadd.f32 0.0, %v2504
      %v2506 = vpop.f32.mrb[0].mxu0
      %2507 = vmatprep.mubr.bf16.mxu0 0
      %2508 = vmatmul.mubr.bf16.gmra.mrb[0].mxu0 %v2407
      %v2509 = vpop.f32.mrb[0].mxu0
      %v2510 = vadd.f32 0.0, %v2509
      %v2511 = vpop.f32.mrb[0].mxu0
      %v2512 = vpop.f32.mrb[0].mxu0
      %v2513 = vadd.f32 0.0, %v2512
      %v2514 = vpop.f32.mrb[0].mxu0
      %2515 = vmatprep.mubr.bf16.mxu0 0
      %2516 = vmatmul.mubr.bf16.gmra.mrb[0].mxu0 %v2410
      %v2517 = vpop.f32.mrb[0].mxu0
      %v2518 = vadd.f32 0.0, %v2517
      %v2519 = vpop.f32.mrb[0].mxu0
      %v2520 = vpop.f32.mrb[0].mxu0
      %v2521 = vadd.f32 0.0, %v2520
      %v2522 = vpop.f32.mrb[0].mxu0
      %2523 = vmatprep.mubr.bf16.mxu0 0
      %2524 = vmatmul.mubr.bf16.gmra.mrb[0].mxu0 %v2413
      %v2525 = vpop.f32.mrb[0].mxu0
      %v2526 = vadd.f32 0.0, %v2525
      %v2527 = vpop.f32.mrb[0].mxu0
      %v2528 = vpop.f32.mrb[0].mxu0
      %v2529 = vadd.f32 0.0, %v2528
      %v2530 = vpop.f32.mrb[0].mxu0
      %2531 = vmatprep.mubr.bf16.mxu0 0
      %2532 = vmatmul.mubr.bf16.gmra.mrb[0].mxu0 %v2416
      %v2533 = vpop.f32.mrb[0].mxu0
      %v2534 = vadd.f32 0.0, %v2533
      %v2535 = vpop.f32.mrb[0].mxu0
      %v2536 = vpop.f32.mrb[0].mxu0
      %v2537 = vadd.f32 0.0, %v2536
      %v2538 = vpop.f32.mrb[0].mxu0
      %2539 = vmatprep.mubr.bf16.mxu0 0
      %2540 = vmatmul.mubr.bf16.gmra.mrb[0].mxu0 %v2419
      %v2541 = vpop.f32.mrb[0].mxu0
      %v2542 = vadd.f32 0.0, %v2541
      %v2543 = vpop.f32.mrb[0].mxu0
      %v2544 = vpop.f32.mrb[0].mxu0
      %v2545 = vadd.f32 0.0, %v2544
      %v2546 = vpop.f32.mrb[0].mxu0
      %2547 = vmatprep.mubr.bf16.mxu0 0
      %2548 = vmatmul.mubr.bf16.gmra.mrb[0].mxu0 %v2422
      %v2549 = vpop.f32.mrb[0].mxu0
      %v2550 = vadd.f32 0.0, %v2549
      %v2551 = vpop.f32.mrb[0].mxu0
      %v2552 = vpop.f32.mrb[0].mxu0
      %v2553 = vadd.f32 0.0, %v2552
      %v2554 = vpop.f32.mrb[0].mxu0
      %2555 = vmatprep.mubr.bf16.mxu0 0
      %2556 = vmatmul.mubr.bf16.gmra.mrb[0].mxu0 %v2425
      %v2557 = vpop.f32.mrb[0].mxu0
      %v2558 = vadd.f32 0.0, %v2557
      %v2559 = vpop.f32.mrb[0].mxu0
      %v2560 = vpop.f32.mrb[0].mxu0
      %v2561 = vadd.f32 0.0, %v2560
      %v2562 = vpop.f32.mrb[0].mxu0
      %2563 = vmatprep.mubr.bf16.mxu0 0
      %2564 = vmatmul.mubr.bf16.gmra.mrb[0].mxu0 %v2428
      %v2565 = vpop.f32.mrb[0].mxu0
      %v2566 = vadd.f32 0.0, %v2565
      %v2567 = vpop.f32.mrb[0].mxu0
      %v2568 = vpop.f32.mrb[0].mxu0
      %v2569 = vadd.f32 0.0, %v2568
      %v2570 = vpop.f32.mrb[0].mxu0
      %2571 = vmatprep.mubr.bf16.mxu0 0
      %2572 = vmatmul.mubr.bf16.gmra.mrb[0].mxu0 %v2431
      %v2573 = vpop.f32.mrb[0].mxu0
      %v2574 = vadd.f32 0.0, %v2573
      %v2575 = vpop.f32.mrb[0].mxu0
      %v2576 = vpop.f32.mrb[0].mxu0
      %v2577 = vadd.f32 0.0, %v2576
      %v2578 = vpop.f32.mrb[0].mxu0
      %2579 = vmatprep.mubr.bf16.mxu0 0
      %2580 = vmatmul.mubr.bf16.gmra.mrb[0].mxu0 %v2434
      %v2581 = vpop.f32.mrb[0].mxu0
      %v2582 = vadd.f32 0.0, %v2581
      %v2583 = vpop.f32.mrb[0].mxu0
      %v2584 = vpop.f32.mrb[0].mxu0
      %v2585 = vadd.f32 0.0, %v2584
      %v2586 = vpop.f32.mrb[0].mxu0
      %2587 = vmatprep.mubr.bf16.mxu0 0
      %2588 = vmatmul.mubr.bf16.gmra.mrb[0].mxu0 %v2437
      %v2589 = vpop.f32.mrb[0].mxu0
      %v2590 = vadd.f32 0.0, %v2589
      %v2591 = vpop.f32.mrb[0].mxu0
      %v2592 = vpop.f32.mrb[0].mxu0
      %v2593 = vadd.f32 0.0, %v2592
      %v2594 = vpop.f32.mrb[0].mxu0
      %2595 = vmatprep.mubr.bf16.mxu0 0
      %2596 = vmatmul.mubr.bf16.gmra.mrb[0].mxu0 %v2440
      %v2597 = vpop.f32.mrb[0].mxu0
      %v2598 = vadd.f32 0.0, %v2597
      %v2599 = vpop.f32.mrb[0].mxu0
      %v2600 = vpop.f32.mrb[0].mxu0
      %v2601 = vadd.f32 0.0, %v2600
      %v2602 = vpop.f32.mrb[0].mxu0
      %2603 = vmatprep.mubr.bf16.mxu0 0
      %2604 = vmatmul.mubr.bf16.gmra.mrb[0].mxu0 %v2443
      %v2605 = vpop.f32.mrb[0].mxu0
      %v2606 = vadd.f32 0.0, %v2605
      %v2607 = vpop.f32.mrb[0].mxu0
      %v2608 = vpop.f32.mrb[0].mxu0
      %v2609 = vadd.f32 0.0, %v2608
      %v2610 = vpop.f32.mrb[0].mxu0
      %2611 = vmatprep.mubr.bf16.mxu0 0
      %2612 = vmatmul.mubr.bf16.gmra.mrb[0].mxu0 %v2446
      %v2613 = vpop.f32.mrb[0].mxu0
      %v2614 = vadd.f32 0.0, %v2613
      %v2615 = vpop.f32.mrb[0].mxu0
      %v2616 = vpop.f32.mrb[0].mxu0
      %v2617 = vadd.f32 0.0, %v2616
      %v2618 = vpop.f32.mrb[0].mxu0
      %2619 = vmatprep.mubr.bf16.mxu0 0
      %2620 = vmatmul.mubr.bf16.gmra.mrb[0].mxu0 %v2449
      %v2621 = vpop.f32.mrb[0].mxu0
      %v2622 = vadd.f32 0.0, %v2621
      %v2623 = vpop.f32.mrb[0].mxu0
      %v2624 = vpop.f32.mrb[0].mxu0
      %v2625 = vadd.f32 0.0, %v2624
      %v2626 = vpop.f32.mrb[0].mxu0
      %2627 = vdwg.mxu0
      %v2628 = vadd.f32 %v2053, %v2486
      %v2629 = vadd.f32 %v2054, %v2489
      %v2630 = vadd.f32 %v2055, %v2494
      %v2631 = vadd.f32 %v2056, %v2497
      %v2632 = vadd.f32 %v2057, %v2502
      %v2633 = vadd.f32 %v2058, %v2505
      %v2634 = vadd.f32 %v2059, %v2510
      %v2635 = vadd.f32 %v2060, %v2513
      %v2636 = vadd.f32 %v2061, %v2518
      %v2637 = vadd.f32 %v2062, %v2521
      %v2638 = vadd.f32 %v2063, %v2526
      %v2639 = vadd.f32 %v2064, %v2529
      %v2640 = vadd.f32 %v2065, %v2534
      %v2641 = vadd.f32 %v2066, %v2537
      %v2642 = vadd.f32 %v2067, %v2542
      %v2643 = vadd.f32 %v2068, %v2545
      %v2644 = vadd.f32 %v2069, %v2550
      %v2645 = vadd.f32 %v2070, %v2553
      %v2646 = vadd.f32 %v2071, %v2558
      %v2647 = vadd.f32 %v2072, %v2561
      %v2648 = vadd.f32 %v2073, %v2566
      %v2649 = vadd.f32 %v2074, %v2569
      %v2650 = vadd.f32 %v2075, %v2574
      %v2651 = vadd.f32 %v2076, %v2577
      %v2652 = vadd.f32 %v2077, %v2582
      %v2653 = vadd.f32 %v2078, %v2585
      %v2654 = vadd.f32 %v2079, %v2590
      %v2655 = vadd.f32 %v2080, %v2593
      %v2656 = vadd.f32 %v2081, %v2598
      %v2657 = vadd.f32 %v2082, %v2601
      %v2658 = vadd.f32 %v2083, %v2606
      %v2659 = vadd.f32 %v2084, %v2609
      %v2660 = vadd.f32 %v2085, %v2614
      %v2661 = vadd.f32 %v2086, %v2617
      %v2662 = vadd.f32 %v2087, %v2622
      %v2663 = vadd.f32 %v2088, %v2625
      %v2664 = vld [vmem:[%s1 + $0x20] sm:$0xf]
      %v2665 = vld [vmem:[%s1 + $0x24] sm:$0xf]
      %v2666 = vpack.c.b16 %v2167, %v2166
      %v2667 = vpack.c.b16 %v2169, %v2168
      %v2668 = vpack.c.b16 %v2171, %v2170
      %v2669 = vpack.c.b16 %v2173, %v2172
      %v2670 = vpack.c.b16 %v2175, %v2174
      %v2671 = vpack.c.b16 %v2177, %v2176
      %v2672 = vpack.c.b16 %v2179, %v2178
      %v2673 = vpack.c.b16 %v2181, %v2180
      %v2674 = vpack.c.b16 %v2183, %v2182
      %v2675 = vpack.c.b16 %v2185, %v2184
      %v2676 = vpack.c.b16 %v2187, %v2186
      %v2677 = vpack.c.b16 %v2189, %v2188
      %v2678 = vpack.c.b16 %v2191, %v2190
      %v2679 = vpack.c.b16 %v2193, %v2192
      %v2680 = vpack.c.b16 %v2195, %v2194
      %v2681 = vpack.c.b16 %v2197, %v2196
      %v2682 = vpack.c.b16 %v2199, %v2198
      %v2683 = vpack.c.b16 %v2201, %v2200
      %v2686 = vunpack.c.l.b16 %v2664
      %v2687 = vunpack.c.l.b16 %v2665
      %v2688 = vpack.c.b16 %v2687, %v2686
      %v2691 = vsel %vm1081, %v2666, 0
      %v2694 = vsel %vm1081, %v2667, 0
      %v2697 = vsel %vm1081, %v2668, 0
      %v2700 = vsel %vm1081, %v2669, 0
      %v2703 = vsel %vm1081, %v2670, 0
      %v2706 = vsel %vm1081, %v2671, 0
      %v2709 = vsel %vm1081, %v2672, 0
      %v2712 = vsel %vm1081, %v2673, 0
      %v2715 = vsel %vm1081, %v2674, 0
      %v2718 = vsel %vm1081, %v2675, 0
      %v2721 = vsel %vm1081, %v2676, 0
      %v2724 = vsel %vm1081, %v2677, 0
      %v2727 = vsel %vm1081, %v2678, 0
      %v2730 = vsel %vm1081, %v2679, 0
      %v2733 = vsel %vm1081, %v2680, 0
      %v2736 = vsel %vm1081, %v2681, 0
      %v2739 = vsel %vm1081, %v2682, 0
      %v2742 = vsel %vm1081, %v2683, 0
      %2744 = vmatprep.subr.bf16.mxu0 0
      %2745 = vmatpush1.bf16.msra.mxu0 %v2688
      %2746 = vmatprep.subr.bf16.mxu0 0
      %2747 = vmatpush1.bf16.msra.mxu0 0
      %2748 = vmatprep.subr.bf16.mxu0 0
      %2749 = vmatpush1.bf16.msra.mxu0 0
      %2750 = vmatprep.subr.bf16.mxu0 0
      %2751 = vmatpush1.bf16.msra.mxu0 0
      %2752 = vmatprep.subr.bf16.mxu0 0
      %2753 = vmatpush1.bf16.msra.mxu0 0
      %2754 = vmatprep.subr.bf16.mxu0 0
      %2755 = vmatpush1.bf16.msra.mxu0 0
      %2756 = vmatprep.subr.bf16.mxu0 0
      %2757 = vmatpush1.bf16.msra.mxu0 0
      %2758 = vmatprep.subr.bf16.mxu0 0
      %2759 = vmatpush1.bf16.msra.mxu0 0
      %2760 = vmatprep.subr.bf16.mxu0 0
      %2761 = vmatpush1.bf16.msra.mxu0 0
      %2762 = vmatprep.subr.bf16.mxu0 0
      %2763 = vmatpush1.bf16.msra.mxu0 0
      %2764 = vmatprep.subr.bf16.mxu0 0
      %2765 = vmatpush1.bf16.msra.mxu0 0
      %2766 = vmatprep.subr.bf16.mxu0 0
      %2767 = vmatpush1.bf16.msra.mxu0 0
      %2768 = vmatprep.subr.bf16.mxu0 0
      %2769 = vmatpush1.bf16.msra.mxu0 0
      %2770 = vmatprep.subr.bf16.mxu0 0
      %2771 = vmatpush1.bf16.msra.mxu0 0
      %2772 = vmatprep.subr.bf16.mxu0 0
      %2773 = vmatpush1.bf16.msra.mxu0 0
      %2774 = vmatprep.subr.bf16.mxu0 0
      %2775 = vmatpush1.bf16.msra.mxu0 0
      %2776 = vmatprep.mubr.bf16.mxu0 0
      %2777 = vmatmul.mubr.bf16.gmra.mrb[0].mxu0 %v2691
      %v2778 = vpop.f32.mrb[0].mxu0
      %v2779 = vadd.f32 0.0, %v2778
      %v2780 = vpop.f32.mrb[0].mxu0
      %v2781 = vpop.f32.mrb[0].mxu0
      %v2782 = vadd.f32 0.0, %v2781
      %v2783 = vpop.f32.mrb[0].mxu0
      %2784 = vmatprep.mubr.bf16.mxu0 0
      %2785 = vmatmul.mubr.bf16.gmra.mrb[0].mxu0 %v2694
      %v2786 = vpop.f32.mrb[0].mxu0
      %v2787 = vadd.f32 0.0, %v2786
      %v2788 = vpop.f32.mrb[0].mxu0
      %v2789 = vpop.f32.mrb[0].mxu0
      %v2790 = vadd.f32 0.0, %v2789
      %v2791 = vpop.f32.mrb[0].mxu0
      %2792 = vmatprep.mubr.bf16.mxu0 0
      %2793 = vmatmul.mubr.bf16.gmra.mrb[0].mxu0 %v2697
      %v2794 = vpop.f32.mrb[0].mxu0
      %v2795 = vadd.f32 0.0, %v2794
      %v2796 = vpop.f32.mrb[0].mxu0
      %v2797 = vpop.f32.mrb[0].mxu0
      %v2798 = vadd.f32 0.0, %v2797
      %v2799 = vpop.f32.mrb[0].mxu0
      %2800 = vmatprep.mubr.bf16.mxu0 0
      %2801 = vmatmul.mubr.bf16.gmra.mrb[0].mxu0 %v2700
      %v2802 = vpop.f32.mrb[0].mxu0
      %v2803 = vadd.f32 0.0, %v2802
      %v2804 = vpop.f32.mrb[0].mxu0
      %v2805 = vpop.f32.mrb[0].mxu0
      %v2806 = vadd.f32 0.0, %v2805
      %v2807 = vpop.f32.mrb[0].mxu0
      %2808 = vmatprep.mubr.bf16.mxu0 0
      %2809 = vmatmul.mubr.bf16.gmra.mrb[0].mxu0 %v2703
      %v2810 = vpop.f32.mrb[0].mxu0
      %v2811 = vadd.f32 0.0, %v2810
      %v2812 = vpop.f32.mrb[0].mxu0
      %v2813 = vpop.f32.mrb[0].mxu0
      %v2814 = vadd.f32 0.0, %v2813
      %v2815 = vpop.f32.mrb[0].mxu0
      %2816 = vmatprep.mubr.bf16.mxu0 0
      %2817 = vmatmul.mubr.bf16.gmra.mrb[0].mxu0 %v2706
      %v2818 = vpop.f32.mrb[0].mxu0
      %v2819 = vadd.f32 0.0, %v2818
      %v2820 = vpop.f32.mrb[0].mxu0
      %v2821 = vpop.f32.mrb[0].mxu0
      %v2822 = vadd.f32 0.0, %v2821
      %v2823 = vpop.f32.mrb[0].mxu0
      %2824 = vmatprep.mubr.bf16.mxu0 0
      %2825 = vmatmul.mubr.bf16.gmra.mrb[0].mxu0 %v2709
      %v2826 = vpop.f32.mrb[0].mxu0
      %v2827 = vadd.f32 0.0, %v2826
      %v2828 = vpop.f32.mrb[0].mxu0
      %v2829 = vpop.f32.mrb[0].mxu0
      %v2830 = vadd.f32 0.0, %v2829
      %v2831 = vpop.f32.mrb[0].mxu0
      %2832 = vmatprep.mubr.bf16.mxu0 0
      %2833 = vmatmul.mubr.bf16.gmra.mrb[0].mxu0 %v2712
      %v2834 = vpop.f32.mrb[0].mxu0
      %v2835 = vadd.f32 0.0, %v2834
      %v2836 = vpop.f32.mrb[0].mxu0
      %v2837 = vpop.f32.mrb[0].mxu0
      %v2838 = vadd.f32 0.0, %v2837
      %v2839 = vpop.f32.mrb[0].mxu0
      %2840 = vmatprep.mubr.bf16.mxu0 0
      %2841 = vmatmul.mubr.bf16.gmra.mrb[0].mxu0 %v2715
      %v2842 = vpop.f32.mrb[0].mxu0
      %v2843 = vadd.f32 0.0, %v2842
      %v2844 = vpop.f32.mrb[0].mxu0
      %v2845 = vpop.f32.mrb[0].mxu0
      %v2846 = vadd.f32 0.0, %v2845
      %v2847 = vpop.f32.mrb[0].mxu0
      %2848 = vmatprep.mubr.bf16.mxu0 0
      %2849 = vmatmul.mubr.bf16.gmra.mrb[0].mxu0 %v2718
      %v2850 = vpop.f32.mrb[0].mxu0
      %v2851 = vadd.f32 0.0, %v2850
      %v2852 = vpop.f32.mrb[0].mxu0
      %v2853 = vpop.f32.mrb[0].mxu0
      %v2854 = vadd.f32 0.0, %v2853
      %v2855 = vpop.f32.mrb[0].mxu0
      %2856 = vmatprep.mubr.bf16.mxu0 0
      %2857 = vmatmul.mubr.bf16.gmra.mrb[0].mxu0 %v2721
      %v2858 = vpop.f32.mrb[0].mxu0
      %v2859 = vadd.f32 0.0, %v2858
      %v2860 = vpop.f32.mrb[0].mxu0
      %v2861 = vpop.f32.mrb[0].mxu0
      %v2862 = vadd.f32 0.0, %v2861
      %v2863 = vpop.f32.mrb[0].mxu0
      %2864 = vmatprep.mubr.bf16.mxu0 0
      %2865 = vmatmul.mubr.bf16.gmra.mrb[0].mxu0 %v2724
      %v2866 = vpop.f32.mrb[0].mxu0
      %v2867 = vadd.f32 0.0, %v2866
      %v2868 = vpop.f32.mrb[0].mxu0
      %v2869 = vpop.f32.mrb[0].mxu0
      %v2870 = vadd.f32 0.0, %v2869
      %v2871 = vpop.f32.mrb[0].mxu0
      %2872 = vmatprep.mubr.bf16.mxu0 0
      %2873 = vmatmul.mubr.bf16.gmra.mrb[0].mxu0 %v2727
      %v2874 = vpop.f32.mrb[0].mxu0
      %v2875 = vadd.f32 0.0, %v2874
      %v2876 = vpop.f32.mrb[0].mxu0
      %v2877 = vpop.f32.mrb[0].mxu0
      %v2878 = vadd.f32 0.0, %v2877
      %v2879 = vpop.f32.mrb[0].mxu0
      %2880 = vmatprep.mubr.bf16.mxu0 0
      %2881 = vmatmul.mubr.bf16.gmra.mrb[0].mxu0 %v2730
      %v2882 = vpop.f32.mrb[0].mxu0
      %v2883 = vadd.f32 0.0, %v2882
      %v2884 = vpop.f32.mrb[0].mxu0
      %v2885 = vpop.f32.mrb[0].mxu0
      %v2886 = vadd.f32 0.0, %v2885
      %v2887 = vpop.f32.mrb[0].mxu0
      %2888 = vmatprep.mubr.bf16.mxu0 0
      %2889 = vmatmul.mubr.bf16.gmra.mrb[0].mxu0 %v2733
      %v2890 = vpop.f32.mrb[0].mxu0
      %v2891 = vadd.f32 0.0, %v2890
      %v2892 = vpop.f32.mrb[0].mxu0
      %v2893 = vpop.f32.mrb[0].mxu0
      %v2894 = vadd.f32 0.0, %v2893
      %v2895 = vpop.f32.mrb[0].mxu0
      %2896 = vmatprep.mubr.bf16.mxu0 0
      %2897 = vmatmul.mubr.bf16.gmra.mrb[0].mxu0 %v2736
      %v2898 = vpop.f32.mrb[0].mxu0
      %v2899 = vadd.f32 0.0, %v2898
      %v2900 = vpop.f32.mrb[0].mxu0
      %v2901 = vpop.f32.mrb[0].mxu0
      %v2902 = vadd.f32 0.0, %v2901
      %v2903 = vpop.f32.mrb[0].mxu0
      %2904 = vmatprep.mubr.bf16.mxu0 0
      %2905 = vmatmul.mubr.bf16.gmra.mrb[0].mxu0 %v2739
      %v2906 = vpop.f32.mrb[0].mxu0
      %v2907 = vadd.f32 0.0, %v2906
      %v2908 = vpop.f32.mrb[0].mxu0
      %v2909 = vpop.f32.mrb[0].mxu0
      %v2910 = vadd.f32 0.0, %v2909
      %v2911 = vpop.f32.mrb[0].mxu0
      %2912 = vmatprep.mubr.bf16.mxu0 0
      %2913 = vmatmul.mubr.bf16.gmra.mrb[0].mxu0 %v2742
      %v2914 = vpop.f32.mrb[0].mxu0
      %v2915 = vadd.f32 0.0, %v2914
      %v2916 = vpop.f32.mrb[0].mxu0
      %v2917 = vpop.f32.mrb[0].mxu0
      %v2918 = vadd.f32 0.0, %v2917
      %v2919 = vpop.f32.mrb[0].mxu0
      %2920 = vdwg.mxu0
      %v2921 = vadd.f32 %v2628, %v2779
      %v2922 = vadd.f32 %v2629, %v2782
      %v2923 = vadd.f32 %v2630, %v2787
      %v2924 = vadd.f32 %v2631, %v2790
      %v2925 = vadd.f32 %v2632, %v2795
      %v2926 = vadd.f32 %v2633, %v2798
      %v2927 = vadd.f32 %v2634, %v2803
      %v2928 = vadd.f32 %v2635, %v2806
      %v2929 = vadd.f32 %v2636, %v2811
      %v2930 = vadd.f32 %v2637, %v2814
      %v2931 = vadd.f32 %v2638, %v2819
      %v2932 = vadd.f32 %v2639, %v2822
      %v2933 = vadd.f32 %v2640, %v2827
      %v2934 = vadd.f32 %v2641, %v2830
      %v2935 = vadd.f32 %v2642, %v2835
      %v2936 = vadd.f32 %v2643, %v2838
      %v2937 = vadd.f32 %v2644, %v2843
      %v2938 = vadd.f32 %v2645, %v2846
      %v2939 = vadd.f32 %v2646, %v2851
      %v2940 = vadd.f32 %v2647, %v2854
      %v2941 = vadd.f32 %v2648, %v2859
      %v2942 = vadd.f32 %v2649, %v2862
      %v2943 = vadd.f32 %v2650, %v2867
      %v2944 = vadd.f32 %v2651, %v2870
      %v2945 = vadd.f32 %v2652, %v2875
      %v2946 = vadd.f32 %v2653, %v2878
      %v2947 = vadd.f32 %v2654, %v2883
      %v2948 = vadd.f32 %v2655, %v2886
      %v2949 = vadd.f32 %v2656, %v2891
      %v2950 = vadd.f32 %v2657, %v2894
      %v2951 = vadd.f32 %v2658, %v2899
      %v2952 = vadd.f32 %v2659, %v2902
      %v2953 = vadd.f32 %v2660, %v2907
      %v2954 = vadd.f32 %v2661, %v2910
      %v2955 = vadd.f32 %v2662, %v2915
      %v2956 = vadd.f32 %v2663, %v2918
      %v2957 = vld [vmem:[%s246 + $0x10] sm:$0xf]
      %v2958 = vld [vmem:[%s246 + $0x14] sm:$0xf]
      %v2959 = vld [vmem:[%s246 + $0x18] sm:$0xf]
      %v2960 = vld [vmem:[%s246 + $0x1c] sm:$0xf]
      %v2961 = vld [vmem:[%s246 + $0x20] sm:$0xf]
      %v2962 = vld [vmem:[%s246 + $0x24] sm:$0xf]
      %v2963 = vld [vmem:[%s246 + $0x28] sm:$0xf]
      %v2964 = vld [vmem:[%s246 + $0x2c] sm:$0xf]
      %v2965 = vld [vmem:[%s246 + $0x30] sm:$0xf]
      %v2966 = vld [vmem:[%s246 + $0x34] sm:$0xf]
      %v2967 = vld [vmem:[%s246 + $0x38] sm:$0xf]
      %v2968 = vld [vmem:[%s246 + $0x3c] sm:$0xf]
      %v2969 = vld [vmem:[%s246 + $0x40] sm:$0xf]
      %v2970 = vld [vmem:[%s246 + $0x44] sm:$0xf]
      %v2971 = vld [vmem:[%s246 + $0x48] sm:$0xf]
      %v2972 = vld [vmem:[%s246 + $0x4c] sm:$0xf]
      %v2973 = vld [vmem:[%s246 + $0x50] sm:$0xf]
      %v2974 = vld [vmem:[%s246 + $0x54] sm:$0xf]
      %v2975 = vld [vmem:[%s246 + $0x58] sm:$0xf]
      %v2976 = vld [vmem:[%s246 + $0x5c] sm:$0xf]
      %v2977 = vld [vmem:[%s246 + $0x60] sm:$0xf]
      %v2978 = vld [vmem:[%s246 + $0x64] sm:$0xf]
      %v2979 = vld [vmem:[%s246 + $0x68] sm:$0xf]
      %v2980 = vld [vmem:[%s246 + $0x6c] sm:$0xf]
      %v2981 = vld [vmem:[%s246 + $0x70] sm:$0xf]
      %v2982 = vld [vmem:[%s246 + $0x74] sm:$0xf]
      %v2983 = vld [vmem:[%s246 + $0x78] sm:$0xf]
      %v2984 = vld [vmem:[%s246 + $0x7c] sm:$0xf]
      %v2985 = vld [vmem:[%s246 + $0x80] sm:$0xf]
      %v2986 = vld [vmem:[%s246 + $0x84] sm:$0xf]
      %v2987 = vld [vmem:[%s246 + $0x88] sm:$0xf]
      %v2988 = vld [vmem:[%s246 + $0x8c] sm:$0xf]
      %v2989 = vld [vmem:[%s246 + $0x90] sm:$0xf]
      %v2990 = vld [vmem:[%s246 + $0x94] sm:$0xf]
      %v2991 = vld [vmem:[%s246 + $0x98] sm:$0xf]
      %v2992 = vld [vmem:[%s246 + $0x9c] sm:$0xf]
      %v2993 = vld [vmem:[%s246 + $0xa0] sm:$0x1]
      %v2994 = vld [vmem:[%s1 + $0x28] sm:$0xf]
      %v2995 = vld [vmem:[%s1 + $0x2c] sm:$0xf]
      %v3033 = vunpack.c.l.b16 %v2957
      %v3034 = vunpack.c.l.b16 %v2958
      %v3035 = vunpack.c.l.b16 %v2959
      %v3036 = vunpack.c.l.b16 %v2960
      %v3037 = vunpack.c.l.b16 %v2961
      %v3038 = vunpack.c.l.b16 %v2962
      %v3039 = vunpack.c.l.b16 %v2963
      %v3040 = vunpack.c.l.b16 %v2964
      %v3041 = vunpack.c.l.b16 %v2965
      %v3042 = vunpack.c.l.b16 %v2966
      %v3043 = vunpack.c.l.b16 %v2967
      %v3044 = vunpack.c.l.b16 %v2968
      %v3045 = vunpack.c.l.b16 %v2969
      %v3046 = vunpack.c.l.b16 %v2970
      %v3047 = vunpack.c.l.b16 %v2971
      %v3048 = vunpack.c.l.b16 %v2972
      %v3049 = vunpack.c.l.b16 %v2973
      %v3050 = vunpack.c.l.b16 %v2974
      %v3051 = vunpack.c.l.b16 %v2975
      %v3052 = vunpack.c.l.b16 %v2976
      %v3053 = vunpack.c.l.b16 %v2977
      %v3054 = vunpack.c.l.b16 %v2978
      %v3055 = vunpack.c.l.b16 %v2979
      %v3056 = vunpack.c.l.b16 %v2980
      %v3057 = vunpack.c.l.b16 %v2981
      %v3058 = vunpack.c.l.b16 %v2982
      %v3059 = vunpack.c.l.b16 %v2983
      %v3060 = vunpack.c.l.b16 %v2984
      %v3061 = vunpack.c.l.b16 %v2985
      %v3062 = vunpack.c.l.b16 %v2986
      %v3063 = vunpack.c.l.b16 %v2987
      %v3064 = vunpack.c.l.b16 %v2988
      %v3065 = vunpack.c.l.b16 %v2989
      %v3066 = vunpack.c.l.b16 %v2990
      %v3067 = vunpack.c.l.b16 %v2991
      %v3068 = vunpack.c.l.b16 %v2992
      %v3069 = vunpack.c.l.b16 %v2993
      %v3070 = vpack.c.b16 %v3034, %v3033
      %v3071 = vpack.c.b16 %v3036, %v3035
      %v3072 = vpack.c.b16 %v3038, %v3037
      %v3073 = vpack.c.b16 %v3040, %v3039
      %v3074 = vpack.c.b16 %v3042, %v3041
      %v3075 = vpack.c.b16 %v3044, %v3043
      %v3076 = vpack.c.b16 %v3046, %v3045
      %v3077 = vpack.c.b16 %v3048, %v3047
      %v3078 = vpack.c.b16 %v3050, %v3049
      %v3079 = vpack.c.b16 %v3052, %v3051
      %v3080 = vpack.c.b16 %v3054, %v3053
      %v3081 = vpack.c.b16 %v3056, %v3055
      %v3082 = vpack.c.b16 %v3058, %v3057
      %v3083 = vpack.c.b16 %v3060, %v3059
      %v3084 = vpack.c.b16 %v3062, %v3061
      %v3085 = vpack.c.b16 %v3064, %v3063
      %v3086 = vpack.c.b16 %v3066, %v3065
      %v3087 = vpack.c.b16 %v3068, %v3067
      %v3088 = vpack.c.b16 %v3069, %v3069
      %vm3089 = vsmask.f32 7424
      %v3091 = vshrl.u32 %v3070, 16
      %v3093 = vshll.u32 %v3070, 16
      %v3095 = vrot.slane %v3093, 1
      %v3096 = vor.u32 %v3091, %v3095
      %v3098 = vshll.u32 %v3071, 16
      %v3100 = vrot.slane %v3098, 1
      %v3101 = vsel %vm3089, %v3096, %v3100
      %v3102 = vshrl.u32 %v3071, 16
      %v3104 = vor.u32 %v3102, %v3100
      %v3106 = vshll.u32 %v3072, 16
      %v3108 = vrot.slane %v3106, 1
      %v3109 = vsel %vm3089, %v3104, %v3108
      %v3110 = vshrl.u32 %v3072, 16
      %v3112 = vor.u32 %v3110, %v3108
      %v3114 = vshll.u32 %v3073, 16
      %v3116 = vrot.slane %v3114, 1
      %v3117 = vsel %vm3089, %v3112, %v3116
      %v3118 = vshrl.u32 %v3073, 16
      %v3120 = vor.u32 %v3118, %v3116
      %v3122 = vshll.u32 %v3074, 16
      %v3124 = vrot.slane %v3122, 1
      %v3125 = vsel %vm3089, %v3120, %v3124
      %v3126 = vshrl.u32 %v3074, 16
      %v3128 = vor.u32 %v3126, %v3124
      %v3130 = vshll.u32 %v3075, 16
      %v3132 = vrot.slane %v3130, 1
      %v3133 = vsel %vm3089, %v3128, %v3132
      %v3134 = vshrl.u32 %v3075, 16
      %v3136 = vor.u32 %v3134, %v3132
      %v3138 = vshll.u32 %v3076, 16
      %v3140 = vrot.slane %v3138, 1
      %v3141 = vsel %vm3089, %v3136, %v3140
      %v3142 = vshrl.u32 %v3076, 16
      %v3144 = vor.u32 %v3142, %v3140
      %v3146 = vshll.u32 %v3077, 16
      %v3148 = vrot.slane %v3146, 1
      %v3149 = vsel %vm3089, %v3144, %v3148
      %v3150 = vshrl.u32 %v3077, 16
      %v3152 = vor.u32 %v3150, %v3148
      %v3154 = vshll.u32 %v3078, 16
      %v3156 = vrot.slane %v3154, 1
      %v3157 = vsel %vm3089, %v3152, %v3156
      %v3158 = vshrl.u32 %v3078, 16
      %v3160 = vor.u32 %v3158, %v3156
      %v3162 = vshll.u32 %v3079, 16
      %v3164 = vrot.slane %v3162, 1
      %v3165 = vsel %vm3089, %v3160, %v3164
      %v3166 = vshrl.u32 %v3079, 16
      %v3168 = vor.u32 %v3166, %v3164
      %v3170 = vshll.u32 %v3080, 16
      %v3172 = vrot.slane %v3170, 1
      %v3173 = vsel %vm3089, %v3168, %v3172
      %v3174 = vshrl.u32 %v3080, 16
      %v3176 = vor.u32 %v3174, %v3172
      %v3178 = vshll.u32 %v3081, 16
      %v3180 = vrot.slane %v3178, 1
      %v3181 = vsel %vm3089, %v3176, %v3180
      %v3182 = vshrl.u32 %v3081, 16
      %v3184 = vor.u32 %v3182, %v3180
      %v3186 = vshll.u32 %v3082, 16
      %v3188 = vrot.slane %v3186, 1
      %v3189 = vsel %vm3089, %v3184, %v3188
      %v3190 = vshrl.u32 %v3082, 16
      %v3192 = vor.u32 %v3190, %v3188
      %v3194 = vshll.u32 %v3083, 16
      %v3196 = vrot.slane %v3194, 1
      %v3197 = vsel %vm3089, %v3192, %v3196
      %v3198 = vshrl.u32 %v3083, 16
      %v3200 = vor.u32 %v3198, %v3196
      %v3202 = vshll.u32 %v3084, 16
      %v3204 = vrot.slane %v3202, 1
      %v3205 = vsel %vm3089, %v3200, %v3204
      %v3206 = vshrl.u32 %v3084, 16
      %v3208 = vor.u32 %v3206, %v3204
      %v3210 = vshll.u32 %v3085, 16
      %v3212 = vrot.slane %v3210, 1
      %v3213 = vsel %vm3089, %v3208, %v3212
      %v3214 = vshrl.u32 %v3085, 16
      %v3216 = vor.u32 %v3214, %v3212
      %v3218 = vshll.u32 %v3086, 16
      %v3220 = vrot.slane %v3218, 1
      %v3221 = vsel %vm3089, %v3216, %v3220
      %v3222 = vshrl.u32 %v3086, 16
      %v3224 = vor.u32 %v3222, %v3220
      %v3226 = vshll.u32 %v3087, 16
      %v3228 = vrot.slane %v3226, 1
      %v3229 = vsel %vm3089, %v3224, %v3228
      %v3230 = vshrl.u32 %v3087, 16
      %v3232 = vor.u32 %v3230, %v3228
      %v3234 = vshll.u32 %v3088, 16
      %v3236 = vrot.slane %v3234, 1
      %v3237 = vsel %vm3089, %v3232, %v3236
      %v3240 = vunpack.c.l.b16 %v2994
      %v3241 = vunpack.c.l.b16 %v2995
      %v3242 = vpack.c.b16 %v3241, %v3240
      %v3245 = vsel %vm1081, %v3101, 0
      %v3248 = vsel %vm1081, %v3109, 0
      %v3251 = vsel %vm1081, %v3117, 0
      %v3254 = vsel %vm1081, %v3125, 0
      %v3257 = vsel %vm1081, %v3133, 0
      %v3260 = vsel %vm1081, %v3141, 0
      %v3263 = vsel %vm1081, %v3149, 0
      %v3266 = vsel %vm1081, %v3157, 0
      %v3269 = vsel %vm1081, %v3165, 0
      %v3272 = vsel %vm1081, %v3173, 0
      %v3275 = vsel %vm1081, %v3181, 0
      %v3278 = vsel %vm1081, %v3189, 0
      %v3281 = vsel %vm1081, %v3197, 0
      %v3284 = vsel %vm1081, %v3205, 0
      %v3287 = vsel %vm1081, %v3213, 0
      %v3290 = vsel %vm1081, %v3221, 0
      %v3293 = vsel %vm1081, %v3229, 0
      %v3296 = vsel %vm1081, %v3237, 0
      %3298 = vmatprep.subr.bf16.mxu0 0
      %3299 = vmatpush1.bf16.msra.mxu0 %v3242
      %3300 = vmatprep.subr.bf16.mxu0 0
      %3301 = vmatpush1.bf16.msra.mxu0 0
      %3302 = vmatprep.subr.bf16.mxu0 0
      %3303 = vmatpush1.bf16.msra.mxu0 0
      %3304 = vmatprep.subr.bf16.mxu0 0
      %3305 = vmatpush1.bf16.msra.mxu0 0
      %3306 = vmatprep.subr.bf16.mxu0 0
      %3307 = vmatpush1.bf16.msra.mxu0 0
      %3308 = vmatprep.subr.bf16.mxu0 0
      %3309 = vmatpush1.bf16.msra.mxu0 0
      %3310 = vmatprep.subr.bf16.mxu0 0
      %3311 = vmatpush1.bf16.msra.mxu0 0
      %3312 = vmatprep.subr.bf16.mxu0 0
      %3313 = vmatpush1.bf16.msra.mxu0 0
      %3314 = vmatprep.subr.bf16.mxu0 0
      %3315 = vmatpush1.bf16.msra.mxu0 0
      %3316 = vmatprep.subr.bf16.mxu0 0
      %3317 = vmatpush1.bf16.msra.mxu0 0
      %3318 = vmatprep.subr.bf16.mxu0 0
      %3319 = vmatpush1.bf16.msra.mxu0 0
      %3320 = vmatprep.subr.bf16.mxu0 0
      %3321 = vmatpush1.bf16.msra.mxu0 0
      %3322 = vmatprep.subr.bf16.mxu0 0
      %3323 = vmatpush1.bf16.msra.mxu0 0
      %3324 = vmatprep.subr.bf16.mxu0 0
      %3325 = vmatpush1.bf16.msra.mxu0 0
      %3326 = vmatprep.subr.bf16.mxu0 0
      %3327 = vmatpush1.bf16.msra.mxu0 0
      %3328 = vmatprep.subr.bf16.mxu0 0
      %3329 = vmatpush1.bf16.msra.mxu0 0
      %3330 = vmatprep.mubr.bf16.mxu0 0
      %3331 = vmatmul.mubr.bf16.gmra.mrb[0].mxu0 %v3245
      %v3332 = vpop.f32.mrb[0].mxu0
      %v3333 = vadd.f32 0.0, %v3332
      %v3334 = vpop.f32.mrb[0].mxu0
      %v3335 = vpop.f32.mrb[0].mxu0
      %v3336 = vadd.f32 0.0, %v3335
      %v3337 = vpop.f32.mrb[0].mxu0
      %3338 = vmatprep.mubr.bf16.mxu0 0
      %3339 = vmatmul.mubr.bf16.gmra.mrb[0].mxu0 %v3248
      %v3340 = vpop.f32.mrb[0].mxu0
      %v3341 = vadd.f32 0.0, %v3340
      %v3342 = vpop.f32.mrb[0].mxu0
      %v3343 = vpop.f32.mrb[0].mxu0
      %v3344 = vadd.f32 0.0, %v3343
      %v3345 = vpop.f32.mrb[0].mxu0
      %3346 = vmatprep.mubr.bf16.mxu0 0
      %3347 = vmatmul.mubr.bf16.gmra.mrb[0].mxu0 %v3251
      %v3348 = vpop.f32.mrb[0].mxu0
      %v3349 = vadd.f32 0.0, %v3348
      %v3350 = vpop.f32.mrb[0].mxu0
      %v3351 = vpop.f32.mrb[0].mxu0
      %v3352 = vadd.f32 0.0, %v3351
      %v3353 = vpop.f32.mrb[0].mxu0
      %3354 = vmatprep.mubr.bf16.mxu0 0
      %3355 = vmatmul.mubr.bf16.gmra.mrb[0].mxu0 %v3254
      %v3356 = vpop.f32.mrb[0].mxu0
      %v3357 = vadd.f32 0.0, %v3356
      %v3358 = vpop.f32.mrb[0].mxu0
      %v3359 = vpop.f32.mrb[0].mxu0
      %v3360 = vadd.f32 0.0, %v3359
      %v3361 = vpop.f32.mrb[0].mxu0
      %3362 = vmatprep.mubr.bf16.mxu0 0
      %3363 = vmatmul.mubr.bf16.gmra.mrb[0].mxu0 %v3257
      %v3364 = vpop.f32.mrb[0].mxu0
      %v3365 = vadd.f32 0.0, %v3364
      %v3366 = vpop.f32.mrb[0].mxu0
      %v3367 = vpop.f32.mrb[0].mxu0
      %v3368 = vadd.f32 0.0, %v3367
      %v3369 = vpop.f32.mrb[0].mxu0
      %3370 = vmatprep.mubr.bf16.mxu0 0
      %3371 = vmatmul.mubr.bf16.gmra.mrb[0].mxu0 %v3260
      %v3372 = vpop.f32.mrb[0].mxu0
      %v3373 = vadd.f32 0.0, %v3372
      %v3374 = vpop.f32.mrb[0].mxu0
      %v3375 = vpop.f32.mrb[0].mxu0
      %v3376 = vadd.f32 0.0, %v3375
      %v3377 = vpop.f32.mrb[0].mxu0
      %3378 = vmatprep.mubr.bf16.mxu0 0
      %3379 = vmatmul.mubr.bf16.gmra.mrb[0].mxu0 %v3263
      %v3380 = vpop.f32.mrb[0].mxu0
      %v3381 = vadd.f32 0.0, %v3380
      %v3382 = vpop.f32.mrb[0].mxu0
      %v3383 = vpop.f32.mrb[0].mxu0
      %v3384 = vadd.f32 0.0, %v3383
      %v3385 = vpop.f32.mrb[0].mxu0
      %3386 = vmatprep.mubr.bf16.mxu0 0
      %3387 = vmatmul.mubr.bf16.gmra.mrb[0].mxu0 %v3266
      %v3388 = vpop.f32.mrb[0].mxu0
      %v3389 = vadd.f32 0.0, %v3388
      %v3390 = vpop.f32.mrb[0].mxu0
      %v3391 = vpop.f32.mrb[0].mxu0
      %v3392 = vadd.f32 0.0, %v3391
      %v3393 = vpop.f32.mrb[0].mxu0
      %3394 = vmatprep.mubr.bf16.mxu0 0
      %3395 = vmatmul.mubr.bf16.gmra.mrb[0].mxu0 %v3269
      %v3396 = vpop.f32.mrb[0].mxu0
      %v3397 = vadd.f32 0.0, %v3396
      %v3398 = vpop.f32.mrb[0].mxu0
      %v3399 = vpop.f32.mrb[0].mxu0
      %v3400 = vadd.f32 0.0, %v3399
      %v3401 = vpop.f32.mrb[0].mxu0
      %3402 = vmatprep.mubr.bf16.mxu0 0
      %3403 = vmatmul.mubr.bf16.gmra.mrb[0].mxu0 %v3272
      %v3404 = vpop.f32.mrb[0].mxu0
      %v3405 = vadd.f32 0.0, %v3404
      %v3406 = vpop.f32.mrb[0].mxu0
      %v3407 = vpop.f32.mrb[0].mxu0
      %v3408 = vadd.f32 0.0, %v3407
      %v3409 = vpop.f32.mrb[0].mxu0
      %3410 = vmatprep.mubr.bf16.mxu0 0
      %3411 = vmatmul.mubr.bf16.gmra.mrb[0].mxu0 %v3275
      %v3412 = vpop.f32.mrb[0].mxu0
      %v3413 = vadd.f32 0.0, %v3412
      %v3414 = vpop.f32.mrb[0].mxu0
      %v3415 = vpop.f32.mrb[0].mxu0
      %v3416 = vadd.f32 0.0, %v3415
      %v3417 = vpop.f32.mrb[0].mxu0
      %3418 = vmatprep.mubr.bf16.mxu0 0
      %3419 = vmatmul.mubr.bf16.gmra.mrb[0].mxu0 %v3278
      %v3420 = vpop.f32.mrb[0].mxu0
      %v3421 = vadd.f32 0.0, %v3420
      %v3422 = vpop.f32.mrb[0].mxu0
      %v3423 = vpop.f32.mrb[0].mxu0
      %v3424 = vadd.f32 0.0, %v3423
      %v3425 = vpop.f32.mrb[0].mxu0
      %3426 = vmatprep.mubr.bf16.mxu0 0
      %3427 = vmatmul.mubr.bf16.gmra.mrb[0].mxu0 %v3281
      %v3428 = vpop.f32.mrb[0].mxu0
      %v3429 = vadd.f32 0.0, %v3428
      %v3430 = vpop.f32.mrb[0].mxu0
      %v3431 = vpop.f32.mrb[0].mxu0
      %v3432 = vadd.f32 0.0, %v3431
      %v3433 = vpop.f32.mrb[0].mxu0
      %3434 = vmatprep.mubr.bf16.mxu0 0
      %3435 = vmatmul.mubr.bf16.gmra.mrb[0].mxu0 %v3284
      %v3436 = vpop.f32.mrb[0].mxu0
      %v3437 = vadd.f32 0.0, %v3436
      %v3438 = vpop.f32.mrb[0].mxu0
      %v3439 = vpop.f32.mrb[0].mxu0
      %v3440 = vadd.f32 0.0, %v3439
      %v3441 = vpop.f32.mrb[0].mxu0
      %3442 = vmatprep.mubr.bf16.mxu0 0
      %3443 = vmatmul.mubr.bf16.gmra.mrb[0].mxu0 %v3287
      %v3444 = vpop.f32.mrb[0].mxu0
      %v3445 = vadd.f32 0.0, %v3444
      %v3446 = vpop.f32.mrb[0].mxu0
      %v3447 = vpop.f32.mrb[0].mxu0
      %v3448 = vadd.f32 0.0, %v3447
      %v3449 = vpop.f32.mrb[0].mxu0
      %3450 = vmatprep.mubr.bf16.mxu0 0
      %3451 = vmatmul.mubr.bf16.gmra.mrb[0].mxu0 %v3290
      %v3452 = vpop.f32.mrb[0].mxu0
      %v3453 = vadd.f32 0.0, %v3452
      %v3454 = vpop.f32.mrb[0].mxu0
      %v3455 = vpop.f32.mrb[0].mxu0
      %v3456 = vadd.f32 0.0, %v3455
      %v3457 = vpop.f32.mrb[0].mxu0
      %3458 = vmatprep.mubr.bf16.mxu0 0
      %3459 = vmatmul.mubr.bf16.gmra.mrb[0].mxu0 %v3293
      %v3460 = vpop.f32.mrb[0].mxu0
      %v3461 = vadd.f32 0.0, %v3460
      %v3462 = vpop.f32.mrb[0].mxu0
      %v3463 = vpop.f32.mrb[0].mxu0
      %v3464 = vadd.f32 0.0, %v3463
      %v3465 = vpop.f32.mrb[0].mxu0
      %3466 = vmatprep.mubr.bf16.mxu0 0
      %3467 = vmatmul.mubr.bf16.gmra.mrb[0].mxu0 %v3296
      %v3468 = vpop.f32.mrb[0].mxu0
      %v3469 = vadd.f32 0.0, %v3468
      %v3470 = vpop.f32.mrb[0].mxu0
      %v3471 = vpop.f32.mrb[0].mxu0
      %v3472 = vadd.f32 0.0, %v3471
      %v3473 = vpop.f32.mrb[0].mxu0
      %3474 = vdwg.mxu0
      %v3475 = vadd.f32 %v2921, %v3333
      %v3476 = vadd.f32 %v2922, %v3336
      %v3477 = vadd.f32 %v2923, %v3341
      %v3478 = vadd.f32 %v2924, %v3344
      %v3479 = vadd.f32 %v2925, %v3349
      %v3480 = vadd.f32 %v2926, %v3352
      %v3481 = vadd.f32 %v2927, %v3357
      %v3482 = vadd.f32 %v2928, %v3360
      %v3483 = vadd.f32 %v2929, %v3365
      %v3484 = vadd.f32 %v2930, %v3368
      %v3485 = vadd.f32 %v2931, %v3373
      %v3486 = vadd.f32 %v2932, %v3376
      %v3487 = vadd.f32 %v2933, %v3381
      %v3488 = vadd.f32 %v2934, %v3384
      %v3489 = vadd.f32 %v2935, %v3389
      %v3490 = vadd.f32 %v2936, %v3392
      %v3491 = vadd.f32 %v2937, %v3397
      %v3492 = vadd.f32 %v2938, %v3400
      %v3493 = vadd.f32 %v2939, %v3405
      %v3494 = vadd.f32 %v2940, %v3408
      %v3495 = vadd.f32 %v2941, %v3413
      %v3496 = vadd.f32 %v2942, %v3416
      %v3497 = vadd.f32 %v2943, %v3421
      %v3498 = vadd.f32 %v2944, %v3424
      %v3499 = vadd.f32 %v2945, %v3429
      %v3500 = vadd.f32 %v2946, %v3432
      %v3501 = vadd.f32 %v2947, %v3437
      %v3502 = vadd.f32 %v2948, %v3440
      %v3503 = vadd.f32 %v2949, %v3445
      %v3504 = vadd.f32 %v2950, %v3448
      %v3505 = vadd.f32 %v2951, %v3453
      %v3506 = vadd.f32 %v2952, %v3456
      %v3507 = vadd.f32 %v2953, %v3461
      %v3508 = vadd.f32 %v2954, %v3464
      %v3509 = vadd.f32 %v2955, %v3469
      %v3510 = vadd.f32 %v2956, %v3472
      %v3511 = vld [vmem:[%s246 + $0x18] sm:$0xf]
      %v3512 = vld [vmem:[%s246 + $0x1c] sm:$0xf]
      %v3513 = vld [vmem:[%s246 + $0x20] sm:$0xf]
      %v3514 = vld [vmem:[%s246 + $0x24] sm:$0xf]
      %v3515 = vld [vmem:[%s246 + $0x28] sm:$0xf]
      %v3516 = vld [vmem:[%s246 + $0x2c] sm:$0xf]
      %v3517 = vld [vmem:[%s246 + $0x30] sm:$0xf]
      %v3518 = vld [vmem:[%s246 + $0x34] sm:$0xf]
      %v3519 = vld [vmem:[%s246 + $0x38] sm:$0xf]
      %v3520 = vld [vmem:[%s246 + $0x3c] sm:$0xf]
      %v3521 = vld [vmem:[%s246 + $0x40] sm:$0xf]
      %v3522 = vld [vmem:[%s246 + $0x44] sm:$0xf]
      %v3523 = vld [vmem:[%s246 + $0x48] sm:$0xf]
      %v3524 = vld [vmem:[%s246 + $0x4c] sm:$0xf]
      %v3525 = vld [vmem:[%s246 + $0x50] sm:$0xf]
      %v3526 = vld [vmem:[%s246 + $0x54] sm:$0xf]
      %v3527 = vld [vmem:[%s246 + $0x58] sm:$0xf]
      %v3528 = vld [vmem:[%s246 + $0x5c] sm:$0xf]
      %v3529 = vld [vmem:[%s246 + $0x60] sm:$0xf]
      %v3530 = vld [vmem:[%s246 + $0x64] sm:$0xf]
      %v3531 = vld [vmem:[%s246 + $0x68] sm:$0xf]
      %v3532 = vld [vmem:[%s246 + $0x6c] sm:$0xf]
      %v3533 = vld [vmem:[%s246 + $0x70] sm:$0xf]
      %v3534 = vld [vmem:[%s246 + $0x74] sm:$0xf]
      %v3535 = vld [vmem:[%s246 + $0x78] sm:$0xf]
      %v3536 = vld [vmem:[%s246 + $0x7c] sm:$0xf]
      %v3537 = vld [vmem:[%s246 + $0x80] sm:$0xf]
      %v3538 = vld [vmem:[%s246 + $0x84] sm:$0xf]
      %v3539 = vld [vmem:[%s246 + $0x88] sm:$0xf]
      %v3540 = vld [vmem:[%s246 + $0x8c] sm:$0xf]
      %v3541 = vld [vmem:[%s246 + $0x90] sm:$0xf]
      %v3542 = vld [vmem:[%s246 + $0x94] sm:$0xf]
      %v3543 = vld [vmem:[%s246 + $0x98] sm:$0xf]
      %v3544 = vld [vmem:[%s246 + $0x9c] sm:$0xf]
      %v3545 = vld [vmem:[%s246 + $0xa0] sm:$0xf]
      %v3546 = vld [vmem:[%s246 + $0xa4] sm:$0xf]
      %v3547 = vld [vmem:[%s246 + $0xa8] sm:$0x1]
      %v3548 = vld [vmem:[%s1 + $0x30] sm:$0xf]
      %v3549 = vld [vmem:[%s1 + $0x34] sm:$0xf]
      %v3587 = vunpack.c.l.b16 %v3511
      %v3588 = vunpack.c.l.b16 %v3512
      %v3589 = vunpack.c.l.b16 %v3513
      %v3590 = vunpack.c.l.b16 %v3514
      %v3591 = vunpack.c.l.b16 %v3515
      %v3592 = vunpack.c.l.b16 %v3516
      %v3593 = vunpack.c.l.b16 %v3517
      %v3594 = vunpack.c.l.b16 %v3518
      %v3595 = vunpack.c.l.b16 %v3519
      %v3596 = vunpack.c.l.b16 %v3520
      %v3597 = vunpack.c.l.b16 %v3521
      %v3598 = vunpack.c.l.b16 %v3522
      %v3599 = vunpack.c.l.b16 %v3523
      %v3600 = vunpack.c.l.b16 %v3524
      %v3601 = vunpack.c.l.b16 %v3525
      %v3602 = vunpack.c.l.b16 %v3526
      %v3603 = vunpack.c.l.b16 %v3527
      %v3604 = vunpack.c.l.b16 %v3528
      %v3605 = vunpack.c.l.b16 %v3529
      %v3606 = vunpack.c.l.b16 %v3530
      %v3607 = vunpack.c.l.b16 %v3531
      %v3608 = vunpack.c.l.b16 %v3532
      %v3609 = vunpack.c.l.b16 %v3533
      %v3610 = vunpack.c.l.b16 %v3534
      %v3611 = vunpack.c.l.b16 %v3535
      %v3612 = vunpack.c.l.b16 %v3536
      %v3613 = vunpack.c.l.b16 %v3537
      %v3614 = vunpack.c.l.b16 %v3538
      %v3615 = vunpack.c.l.b16 %v3539
      %v3616 = vunpack.c.l.b16 %v3540
      %v3617 = vunpack.c.l.b16 %v3541
      %v3618 = vunpack.c.l.b16 %v3542
      %v3619 = vunpack.c.l.b16 %v3543
      %v3620 = vunpack.c.l.b16 %v3544
      %v3621 = vunpack.c.l.b16 %v3545
      %v3622 = vunpack.c.l.b16 %v3546
      %v3623 = vunpack.c.l.b16 %v3547
      %v3624 = vpack.c.b16 %v3588, %v3587
      %v3625 = vpack.c.b16 %v3590, %v3589
      %v3626 = vpack.c.b16 %v3592, %v3591
      %v3627 = vpack.c.b16 %v3594, %v3593
      %v3628 = vpack.c.b16 %v3596, %v3595
      %v3629 = vpack.c.b16 %v3598, %v3597
      %v3630 = vpack.c.b16 %v3600, %v3599
      %v3631 = vpack.c.b16 %v3602, %v3601
      %v3632 = vpack.c.b16 %v3604, %v3603
      %v3633 = vpack.c.b16 %v3606, %v3605
      %v3634 = vpack.c.b16 %v3608, %v3607
      %v3635 = vpack.c.b16 %v3610, %v3609
      %v3636 = vpack.c.b16 %v3612, %v3611
      %v3637 = vpack.c.b16 %v3614, %v3613
      %v3638 = vpack.c.b16 %v3616, %v3615
      %v3639 = vpack.c.b16 %v3618, %v3617
      %v3640 = vpack.c.b16 %v3620, %v3619
      %v3641 = vpack.c.b16 %v3622, %v3621
      %v3642 = vpack.c.b16 %v3623, %v3623
      %v3644 = vshrl.u32 %v3624, 16
      %v3646 = vshll.u32 %v3624, 16
      %v3648 = vrot.slane %v3646, 1
      %v3649 = vor.u32 %v3644, %v3648
      %v3651 = vshll.u32 %v3625, 16
      %v3653 = vrot.slane %v3651, 1
      %v3654 = vsel %vm3089, %v3649, %v3653
      %v3655 = vshrl.u32 %v3625, 16
      %v3657 = vor.u32 %v3655, %v3653
      %v3659 = vshll.u32 %v3626, 16
      %v3661 = vrot.slane %v3659, 1
      %v3662 = vsel %vm3089, %v3657, %v3661
      %v3663 = vshrl.u32 %v3626, 16
      %v3665 = vor.u32 %v3663, %v3661
      %v3667 = vshll.u32 %v3627, 16
      %v3669 = vrot.slane %v3667, 1
      %v3670 = vsel %vm3089, %v3665, %v3669
      %v3671 = vshrl.u32 %v3627, 16
      %v3673 = vor.u32 %v3671, %v3669
      %v3675 = vshll.u32 %v3628, 16
      %v3677 = vrot.slane %v3675, 1
      %v3678 = vsel %vm3089, %v3673, %v3677
      %v3679 = vshrl.u32 %v3628, 16
      %v3681 = vor.u32 %v3679, %v3677
      %v3683 = vshll.u32 %v3629, 16
      %v3685 = vrot.slane %v3683, 1
      %v3686 = vsel %vm3089, %v3681, %v3685
      %v3687 = vshrl.u32 %v3629, 16
      %v3689 = vor.u32 %v3687, %v3685
      %v3691 = vshll.u32 %v3630, 16
      %v3693 = vrot.slane %v3691, 1
      %v3694 = vsel %vm3089, %v3689, %v3693
      %v3695 = vshrl.u32 %v3630, 16
      %v3697 = vor.u32 %v3695, %v3693
      %v3699 = vshll.u32 %v3631, 16
      %v3701 = vrot.slane %v3699, 1
      %v3702 = vsel %vm3089, %v3697, %v3701
      %v3703 = vshrl.u32 %v3631, 16
      %v3705 = vor.u32 %v3703, %v3701
      %v3707 = vshll.u32 %v3632, 16
      %v3709 = vrot.slane %v3707, 1
      %v3710 = vsel %vm3089, %v3705, %v3709
      %v3711 = vshrl.u32 %v3632, 16
      %v3713 = vor.u32 %v3711, %v3709
      %v3715 = vshll.u32 %v3633, 16
      %v3717 = vrot.slane %v3715, 1
      %v3718 = vsel %vm3089, %v3713, %v3717
      %v3719 = vshrl.u32 %v3633, 16
      %v3721 = vor.u32 %v3719, %v3717
      %v3723 = vshll.u32 %v3634, 16
      %v3725 = vrot.slane %v3723, 1
      %v3726 = vsel %vm3089, %v3721, %v3725
      %v3727 = vshrl.u32 %v3634, 16
      %v3729 = vor.u32 %v3727, %v3725
      %v3731 = vshll.u32 %v3635, 16
      %v3733 = vrot.slane %v3731, 1
      %v3734 = vsel %vm3089, %v3729, %v3733
      %v3735 = vshrl.u32 %v3635, 16
      %v3737 = vor.u32 %v3735, %v3733
      %v3739 = vshll.u32 %v3636, 16
      %v3741 = vrot.slane %v3739, 1
      %v3742 = vsel %vm3089, %v3737, %v3741
      %v3743 = vshrl.u32 %v3636, 16
      %v3745 = vor.u32 %v3743, %v3741
      %v3747 = vshll.u32 %v3637, 16
      %v3749 = vrot.slane %v3747, 1
      %v3750 = vsel %vm3089, %v3745, %v3749
      %v3751 = vshrl.u32 %v3637, 16
      %v3753 = vor.u32 %v3751, %v3749
      %v3755 = vshll.u32 %v3638, 16
      %v3757 = vrot.slane %v3755, 1
      %v3758 = vsel %vm3089, %v3753, %v3757
      %v3759 = vshrl.u32 %v3638, 16
      %v3761 = vor.u32 %v3759, %v3757
      %v3763 = vshll.u32 %v3639, 16
      %v3765 = vrot.slane %v3763, 1
      %v3766 = vsel %vm3089, %v3761, %v3765
      %v3767 = vshrl.u32 %v3639, 16
      %v3769 = vor.u32 %v3767, %v3765
      %v3771 = vshll.u32 %v3640, 16
      %v3773 = vrot.slane %v3771, 1
      %v3774 = vsel %vm3089, %v3769, %v3773
      %v3775 = vshrl.u32 %v3640, 16
      %v3777 = vor.u32 %v3775, %v3773
      %v3779 = vshll.u32 %v3641, 16
      %v3781 = vrot.slane %v3779, 1
      %v3782 = vsel %vm3089, %v3777, %v3781
      %v3783 = vshrl.u32 %v3641, 16
      %v3785 = vor.u32 %v3783, %v3781
      %v3787 = vshll.u32 %v3642, 16
      %v3789 = vrot.slane %v3787, 1
      %v3790 = vsel %vm3089, %v3785, %v3789
      %v3793 = vunpack.c.l.b16 %v3548
      %v3794 = vunpack.c.l.b16 %v3549
      %v3795 = vpack.c.b16 %v3794, %v3793
      %v3798 = vsel %vm1081, %v3654, 0
      %v3801 = vsel %vm1081, %v3662, 0
      %v3804 = vsel %vm1081, %v3670, 0
      %v3807 = vsel %vm1081, %v3678, 0
      %v3810 = vsel %vm1081, %v3686, 0
      %v3813 = vsel %vm1081, %v3694, 0
      %v3816 = vsel %vm1081, %v3702, 0
      %v3819 = vsel %vm1081, %v3710, 0
      %v3822 = vsel %vm1081, %v3718, 0
      %v3825 = vsel %vm1081, %v3726, 0
      %v3828 = vsel %vm1081, %v3734, 0
      %v3831 = vsel %vm1081, %v3742, 0
      %v3834 = vsel %vm1081, %v3750, 0
      %v3837 = vsel %vm1081, %v3758, 0
      %v3840 = vsel %vm1081, %v3766, 0
      %v3843 = vsel %vm1081, %v3774, 0
      %v3846 = vsel %vm1081, %v3782, 0
      %v3849 = vsel %vm1081, %v3790, 0
      %3851 = vmatprep.subr.bf16.mxu0 0
      %3852 = vmatpush1.bf16.msra.mxu0 %v3795
      %3853 = vmatprep.subr.bf16.mxu0 0
      %3854 = vmatpush1.bf16.msra.mxu0 0
      %3855 = vmatprep.subr.bf16.mxu0 0
      %3856 = vmatpush1.bf16.msra.mxu0 0
      %3857 = vmatprep.subr.bf16.mxu0 0
      %3858 = vmatpush1.bf16.msra.mxu0 0
      %3859 = vmatprep.subr.bf16.mxu0 0
      %3860 = vmatpush1.bf16.msra.mxu0 0
      %3861 = vmatprep.subr.bf16.mxu0 0
      %3862 = vmatpush1.bf16.msra.mxu0 0
      %3863 = vmatprep.subr.bf16.mxu0 0
      %3864 = vmatpush1.bf16.msra.mxu0 0
      %3865 = vmatprep.subr.bf16.mxu0 0
      %3866 = vmatpush1.bf16.msra.mxu0 0
      %3867 = vmatprep.subr.bf16.mxu0 0
      %3868 = vmatpush1.bf16.msra.mxu0 0
      %3869 = vmatprep.subr.bf16.mxu0 0
      %3870 = vmatpush1.bf16.msra.mxu0 0
      %3871 = vmatprep.subr.bf16.mxu0 0
      %3872 = vmatpush1.bf16.msra.mxu0 0
      %3873 = vmatprep.subr.bf16.mxu0 0
      %3874 = vmatpush1.bf16.msra.mxu0 0
      %3875 = vmatprep.subr.bf16.mxu0 0
      %3876 = vmatpush1.bf16.msra.mxu0 0
      %3877 = vmatprep.subr.bf16.mxu0 0
      %3878 = vmatpush1.bf16.msra.mxu0 0
      %3879 = vmatprep.subr.bf16.mxu0 0
      %3880 = vmatpush1.bf16.msra.mxu0 0
      %3881 = vmatprep.subr.bf16.mxu0 0
      %3882 = vmatpush1.bf16.msra.mxu0 0
      %3883 = vmatprep.mubr.bf16.mxu0 0
      %3884 = vmatmul.mubr.bf16.gmra.mrb[0].mxu0 %v3798
      %v3885 = vpop.f32.mrb[0].mxu0
      %v3886 = vadd.f32 0.0, %v3885
      %v3887 = vpop.f32.mrb[0].mxu0
      %v3888 = vpop.f32.mrb[0].mxu0
      %v3889 = vadd.f32 0.0, %v3888
      %v3890 = vpop.f32.mrb[0].mxu0
      %3891 = vmatprep.mubr.bf16.mxu0 0
      %3892 = vmatmul.mubr.bf16.gmra.mrb[0].mxu0 %v3801
      %v3893 = vpop.f32.mrb[0].mxu0
      %v3894 = vadd.f32 0.0, %v3893
      %v3895 = vpop.f32.mrb[0].mxu0
      %v3896 = vpop.f32.mrb[0].mxu0
      %v3897 = vadd.f32 0.0, %v3896
      %v3898 = vpop.f32.mrb[0].mxu0
      %3899 = vmatprep.mubr.bf16.mxu0 0
      %3900 = vmatmul.mubr.bf16.gmra.mrb[0].mxu0 %v3804
      %v3901 = vpop.f32.mrb[0].mxu0
      %v3902 = vadd.f32 0.0, %v3901
      %v3903 = vpop.f32.mrb[0].mxu0
      %v3904 = vpop.f32.mrb[0].mxu0
      %v3905 = vadd.f32 0.0, %v3904
      %v3906 = vpop.f32.mrb[0].mxu0
      %3907 = vmatprep.mubr.bf16.mxu0 0
      %3908 = vmatmul.mubr.bf16.gmra.mrb[0].mxu0 %v3807
      %v3909 = vpop.f32.mrb[0].mxu0
      %v3910 = vadd.f32 0.0, %v3909
      %v3911 = vpop.f32.mrb[0].mxu0
      %v3912 = vpop.f32.mrb[0].mxu0
      %v3913 = vadd.f32 0.0, %v3912
      %v3914 = vpop.f32.mrb[0].mxu0
      %3915 = vmatprep.mubr.bf16.mxu0 0
      %3916 = vmatmul.mubr.bf16.gmra.mrb[0].mxu0 %v3810
      %v3917 = vpop.f32.mrb[0].mxu0
      %v3918 = vadd.f32 0.0, %v3917
      %v3919 = vpop.f32.mrb[0].mxu0
      %v3920 = vpop.f32.mrb[0].mxu0
      %v3921 = vadd.f32 0.0, %v3920
      %v3922 = vpop.f32.mrb[0].mxu0
      %3923 = vmatprep.mubr.bf16.mxu0 0
      %3924 = vmatmul.mubr.bf16.gmra.mrb[0].mxu0 %v3813
      %v3925 = vpop.f32.mrb[0].mxu0
      %v3926 = vadd.f32 0.0, %v3925
      %v3927 = vpop.f32.mrb[0].mxu0
      %v3928 = vpop.f32.mrb[0].mxu0
      %v3929 = vadd.f32 0.0, %v3928
      %v3930 = vpop.f32.mrb[0].mxu0
      %3931 = vmatprep.mubr.bf16.mxu0 0
      %3932 = vmatmul.mubr.bf16.gmra.mrb[0].mxu0 %v3816
      %v3933 = vpop.f32.mrb[0].mxu0
      %v3934 = vadd.f32 0.0, %v3933
      %v3935 = vpop.f32.mrb[0].mxu0
      %v3936 = vpop.f32.mrb[0].mxu0
      %v3937 = vadd.f32 0.0, %v3936
      %v3938 = vpop.f32.mrb[0].mxu0
      %3939 = vmatprep.mubr.bf16.mxu0 0
      %3940 = vmatmul.mubr.bf16.gmra.mrb[0].mxu0 %v3819
      %v3941 = vpop.f32.mrb[0].mxu0
      %v3942 = vadd.f32 0.0, %v3941
      %v3943 = vpop.f32.mrb[0].mxu0
      %v3944 = vpop.f32.mrb[0].mxu0
      %v3945 = vadd.f32 0.0, %v3944
      %v3946 = vpop.f32.mrb[0].mxu0
      %3947 = vmatprep.mubr.bf16.mxu0 0
      %3948 = vmatmul.mubr.bf16.gmra.mrb[0].mxu0 %v3822
      %v3949 = vpop.f32.mrb[0].mxu0
      %v3950 = vadd.f32 0.0, %v3949
      %v3951 = vpop.f32.mrb[0].mxu0
      %v3952 = vpop.f32.mrb[0].mxu0
      %v3953 = vadd.f32 0.0, %v3952
      %v3954 = vpop.f32.mrb[0].mxu0
      %3955 = vmatprep.mubr.bf16.mxu0 0
      %3956 = vmatmul.mubr.bf16.gmra.mrb[0].mxu0 %v3825
      %v3957 = vpop.f32.mrb[0].mxu0
      %v3958 = vadd.f32 0.0, %v3957
      %v3959 = vpop.f32.mrb[0].mxu0
      %v3960 = vpop.f32.mrb[0].mxu0
      %v3961 = vadd.f32 0.0, %v3960
      %v3962 = vpop.f32.mrb[0].mxu0
      %3963 = vmatprep.mubr.bf16.mxu0 0
      %3964 = vmatmul.mubr.bf16.gmra.mrb[0].mxu0 %v3828
      %v3965 = vpop.f32.mrb[0].mxu0
      %v3966 = vadd.f32 0.0, %v3965
      %v3967 = vpop.f32.mrb[0].mxu0
      %v3968 = vpop.f32.mrb[0].mxu0
      %v3969 = vadd.f32 0.0, %v3968
      %v3970 = vpop.f32.mrb[0].mxu0
      %3971 = vmatprep.mubr.bf16.mxu0 0
      %3972 = vmatmul.mubr.bf16.gmra.mrb[0].mxu0 %v3831
      %v3973 = vpop.f32.mrb[0].mxu0
      %v3974 = vadd.f32 0.0, %v3973
      %v3975 = vpop.f32.mrb[0].mxu0
      %v3976 = vpop.f32.mrb[0].mxu0
      %v3977 = vadd.f32 0.0, %v3976
      %v3978 = vpop.f32.mrb[0].mxu0
      %3979 = vmatprep.mubr.bf16.mxu0 0
      %3980 = vmatmul.mubr.bf16.gmra.mrb[0].mxu0 %v3834
      %v3981 = vpop.f32.mrb[0].mxu0
      %v3982 = vadd.f32 0.0, %v3981
      %v3983 = vpop.f32.mrb[0].mxu0
      %v3984 = vpop.f32.mrb[0].mxu0
      %v3985 = vadd.f32 0.0, %v3984
      %v3986 = vpop.f32.mrb[0].mxu0
      %3987 = vmatprep.mubr.bf16.mxu0 0
      %3988 = vmatmul.mubr.bf16.gmra.mrb[0].mxu0 %v3837
      %v3989 = vpop.f32.mrb[0].mxu0
      %v3990 = vadd.f32 0.0, %v3989
      %v3991 = vpop.f32.mrb[0].mxu0
      %v3992 = vpop.f32.mrb[0].mxu0
      %v3993 = vadd.f32 0.0, %v3992
      %v3994 = vpop.f32.mrb[0].mxu0
      %3995 = vmatprep.mubr.bf16.mxu0 0
      %3996 = vmatmul.mubr.bf16.gmra.mrb[0].mxu0 %v3840
      %v3997 = vpop.f32.mrb[0].mxu0
      %v3998 = vadd.f32 0.0, %v3997
      %v3999 = vpop.f32.mrb[0].mxu0
      %v4000 = vpop.f32.mrb[0].mxu0
      %v4001 = vadd.f32 0.0, %v4000
      %v4002 = vpop.f32.mrb[0].mxu0
      %4003 = vmatprep.mubr.bf16.mxu0 0
      %4004 = vmatmul.mubr.bf16.gmra.mrb[0].mxu0 %v3843
      %v4005 = vpop.f32.mrb[0].mxu0
      %v4006 = vadd.f32 0.0, %v4005
      %v4007 = vpop.f32.mrb[0].mxu0
      %v4008 = vpop.f32.mrb[0].mxu0
      %v4009 = vadd.f32 0.0, %v4008
      %v4010 = vpop.f32.mrb[0].mxu0
      %4011 = vmatprep.mubr.bf16.mxu0 0
      %4012 = vmatmul.mubr.bf16.gmra.mrb[0].mxu0 %v3846
      %v4013 = vpop.f32.mrb[0].mxu0
      %v4014 = vadd.f32 0.0, %v4013
      %v4015 = vpop.f32.mrb[0].mxu0
      %v4016 = vpop.f32.mrb[0].mxu0
      %v4017 = vadd.f32 0.0, %v4016
      %v4018 = vpop.f32.mrb[0].mxu0
      %4019 = vmatprep.mubr.bf16.mxu0 0
      %4020 = vmatmul.mubr.bf16.gmra.mrb[0].mxu0 %v3849
      %v4021 = vpop.f32.mrb[0].mxu0
      %v4022 = vadd.f32 0.0, %v4021
      %v4023 = vpop.f32.mrb[0].mxu0
      %v4024 = vpop.f32.mrb[0].mxu0
      %v4025 = vadd.f32 0.0, %v4024
      %v4026 = vpop.f32.mrb[0].mxu0
      %4027 = vdwg.mxu0
      %v4028 = vadd.f32 %v3475, %v3886
      %v4029 = vadd.f32 %v3476, %v3889
      %v4030 = vadd.f32 %v3477, %v3894
      %v4031 = vadd.f32 %v3478, %v3897
      %v4032 = vadd.f32 %v3479, %v3902
      %v4033 = vadd.f32 %v3480, %v3905
      %v4034 = vadd.f32 %v3481, %v3910
      %v4035 = vadd.f32 %v3482, %v3913
      %v4036 = vadd.f32 %v3483, %v3918
      %v4037 = vadd.f32 %v3484, %v3921
      %v4038 = vadd.f32 %v3485, %v3926
      %v4039 = vadd.f32 %v3486, %v3929
      %v4040 = vadd.f32 %v3487, %v3934
      %v4041 = vadd.f32 %v3488, %v3937
      %v4042 = vadd.f32 %v3489, %v3942
      %v4043 = vadd.f32 %v3490, %v3945
      %v4044 = vadd.f32 %v3491, %v3950
      %v4045 = vadd.f32 %v3492, %v3953
      %v4046 = vadd.f32 %v3493, %v3958
      %v4047 = vadd.f32 %v3494, %v3961
      %v4048 = vadd.f32 %v3495, %v3966
      %v4049 = vadd.f32 %v3496, %v3969
      %v4050 = vadd.f32 %v3497, %v3974
      %v4051 = vadd.f32 %v3498, %v3977
      %v4052 = vadd.f32 %v3499, %v3982
      %v4053 = vadd.f32 %v3500, %v3985
      %v4054 = vadd.f32 %v3501, %v3990
      %v4055 = vadd.f32 %v3502, %v3993
      %v4056 = vadd.f32 %v3503, %v3998
      %v4057 = vadd.f32 %v3504, %v4001
      %v4058 = vadd.f32 %v3505, %v4006
      %v4059 = vadd.f32 %v3506, %v4009
      %v4060 = vadd.f32 %v3507, %v4014
      %v4061 = vadd.f32 %v3508, %v4017
      %v4062 = vadd.f32 %v3509, %v4022
      %v4063 = vadd.f32 %v3510, %v4025
      %v4064 = vld [vmem:[%s246 + $0x18] sm:$0xe]
      %v4065 = vld [vmem:[%s1 + $0x38] sm:$0xf]
      %v4066 = vld [vmem:[%s1 + $0x3c] sm:$0xf]
      %v4068 = vunpack.c.l.b16 %v4064
      %v4069 = vpack.c.b16 %v3588, %v4068
      %vm4070 = vcmask 1046528
      %v4071 = vrot.slane %v4069, 1
      %v4072 = vrot.slane %v3625, 1
      %v4073 = vsel %vm4070, %v4071, %v4072
      %v4074 = vrot.slane %v3626, 1
      %v4075 = vsel %vm4070, %v4072, %v4074
      %v4076 = vrot.slane %v3627, 1
      %v4077 = vsel %vm4070, %v4074, %v4076
      %v4078 = vrot.slane %v3628, 1
      %v4079 = vsel %vm4070, %v4076, %v4078
      %v4080 = vrot.slane %v3629, 1
      %v4081 = vsel %vm4070, %v4078, %v4080
      %v4082 = vrot.slane %v3630, 1
      %v4083 = vsel %vm4070, %v4080, %v4082
      %v4084 = vrot.slane %v3631, 1
      %v4085 = vsel %vm4070, %v4082, %v4084
      %v4086 = vrot.slane %v3632, 1
      %v4087 = vsel %vm4070, %v4084, %v4086
      %v4088 = vrot.slane %v3633, 1
      %v4089 = vsel %vm4070, %v4086, %v4088
      %v4090 = vrot.slane %v3634, 1
      %v4091 = vsel %vm4070, %v4088, %v4090
      %v4092 = vrot.slane %v3635, 1
      %v4093 = vsel %vm4070, %v4090, %v4092
      %v4094 = vrot.slane %v3636, 1
      %v4095 = vsel %vm4070, %v4092, %v4094
      %v4096 = vrot.slane %v3637, 1
      %v4097 = vsel %vm4070, %v4094, %v4096
      %v4098 = vrot.slane %v3638, 1
      %v4099 = vsel %vm4070, %v4096, %v4098
      %v4100 = vrot.slane %v3639, 1
      %v4101 = vsel %vm4070, %v4098, %v4100
      %v4102 = vrot.slane %v3640, 1
      %v4103 = vsel %vm4070, %v4100, %v4102
      %v4104 = vrot.slane %v3641, 1
      %v4105 = vsel %vm4070, %v4102, %v4104
      %v4106 = vrot.slane %v3642, 1
      %v4107 = vsel %vm4070, %v4104, %v4106
      %v4110 = vunpack.c.l.b16 %v4065
      %v4111 = vunpack.c.l.b16 %v4066
      %v4112 = vpack.c.b16 %v4111, %v4110
      %v4115 = vsel %vm1081, %v4073, 0
      %v4118 = vsel %vm1081, %v4075, 0
      %v4121 = vsel %vm1081, %v4077, 0
      %v4124 = vsel %vm1081, %v4079, 0
      %v4127 = vsel %vm1081, %v4081, 0
      %v4130 = vsel %vm1081, %v4083, 0
      %v4133 = vsel %vm1081, %v4085, 0
      %v4136 = vsel %vm1081, %v4087, 0
      %v4139 = vsel %vm1081, %v4089, 0
      %v4142 = vsel %vm1081, %v4091, 0
      %v4145 = vsel %vm1081, %v4093, 0
      %v4148 = vsel %vm1081, %v4095, 0
      %v4151 = vsel %vm1081, %v4097, 0
      %v4154 = vsel %vm1081, %v4099, 0
      %v4157 = vsel %vm1081, %v4101, 0
      %v4160 = vsel %vm1081, %v4103, 0
      %v4163 = vsel %vm1081, %v4105, 0
      %v4166 = vsel %vm1081, %v4107, 0
      %4168 = vmatprep.subr.bf16.mxu0 0
      %4169 = vmatpush1.bf16.msra.mxu0 %v4112
      %4170 = vmatprep.subr.bf16.mxu0 0
      %4171 = vmatpush1.bf16.msra.mxu0 0
      %4172 = vmatprep.subr.bf16.mxu0 0
      %4173 = vmatpush1.bf16.msra.mxu0 0
      %4174 = vmatprep.subr.bf16.mxu0 0
      %4175 = vmatpush1.bf16.msra.mxu0 0
      %4176 = vmatprep.subr.bf16.mxu0 0
      %4177 = vmatpush1.bf16.msra.mxu0 0
      %4178 = vmatprep.subr.bf16.mxu0 0
      %4179 = vmatpush1.bf16.msra.mxu0 0
      %4180 = vmatprep.subr.bf16.mxu0 0
      %4181 = vmatpush1.bf16.msra.mxu0 0
      %4182 = vmatprep.subr.bf16.mxu0 0
      %4183 = vmatpush1.bf16.msra.mxu0 0
      %4184 = vmatprep.subr.bf16.mxu0 0
      %4185 = vmatpush1.bf16.msra.mxu0 0
      %4186 = vmatprep.subr.bf16.mxu0 0
      %4187 = vmatpush1.bf16.msra.mxu0 0
      %4188 = vmatprep.subr.bf16.mxu0 0
      %4189 = vmatpush1.bf16.msra.mxu0 0
      %4190 = vmatprep.subr.bf16.mxu0 0
      %4191 = vmatpush1.bf16.msra.mxu0 0
      %4192 = vmatprep.subr.bf16.mxu0 0
      %4193 = vmatpush1.bf16.msra.mxu0 0
      %4194 = vmatprep.subr.bf16.mxu0 0
      %4195 = vmatpush1.bf16.msra.mxu0 0
      %4196 = vmatprep.subr.bf16.mxu0 0
      %4197 = vmatpush1.bf16.msra.mxu0 0
      %4198 = vmatprep.subr.bf16.mxu0 0
      %4199 = vmatpush1.bf16.msra.mxu0 0
      %4200 = vmatprep.mubr.bf16.mxu0 0
      %4201 = vmatmul.mubr.bf16.gmra.mrb[0].mxu0 %v4115
      %v4202 = vpop.f32.mrb[0].mxu0
      %v4203 = vadd.f32 0.0, %v4202
      %v4204 = vpop.f32.mrb[0].mxu0
      %v4205 = vpop.f32.mrb[0].mxu0
      %v4206 = vadd.f32 0.0, %v4205
      %v4207 = vpop.f32.mrb[0].mxu0
      %4208 = vmatprep.mubr.bf16.mxu0 0
      %4209 = vmatmul.mubr.bf16.gmra.mrb[0].mxu0 %v4118
      %v4210 = vpop.f32.mrb[0].mxu0
      %v4211 = vadd.f32 0.0, %v4210
      %v4212 = vpop.f32.mrb[0].mxu0
      %v4213 = vpop.f32.mrb[0].mxu0
      %v4214 = vadd.f32 0.0, %v4213
      %v4215 = vpop.f32.mrb[0].mxu0
      %4216 = vmatprep.mubr.bf16.mxu0 0
      %4217 = vmatmul.mubr.bf16.gmra.mrb[0].mxu0 %v4121
      %v4218 = vpop.f32.mrb[0].mxu0
      %v4219 = vadd.f32 0.0, %v4218
      %v4220 = vpop.f32.mrb[0].mxu0
      %v4221 = vpop.f32.mrb[0].mxu0
      %v4222 = vadd.f32 0.0, %v4221
      %v4223 = vpop.f32.mrb[0].mxu0
      %4224 = vmatprep.mubr.bf16.mxu0 0
      %4225 = vmatmul.mubr.bf16.gmra.mrb[0].mxu0 %v4124
      %v4226 = vpop.f32.mrb[0].mxu0
      %v4227 = vadd.f32 0.0, %v4226
      %v4228 = vpop.f32.mrb[0].mxu0
      %v4229 = vpop.f32.mrb[0].mxu0
      %v4230 = vadd.f32 0.0, %v4229
      %v4231 = vpop.f32.mrb[0].mxu0
      %4232 = vmatprep.mubr.bf16.mxu0 0
      %4233 = vmatmul.mubr.bf16.gmra.mrb[0].mxu0 %v4127
      %v4234 = vpop.f32.mrb[0].mxu0
      %v4235 = vadd.f32 0.0, %v4234
      %v4236 = vpop.f32.mrb[0].mxu0
      %v4237 = vpop.f32.mrb[0].mxu0
      %v4238 = vadd.f32 0.0, %v4237
      %v4239 = vpop.f32.mrb[0].mxu0
      %4240 = vmatprep.mubr.bf16.mxu0 0
      %4241 = vmatmul.mubr.bf16.gmra.mrb[0].mxu0 %v4130
      %v4242 = vpop.f32.mrb[0].mxu0
      %v4243 = vadd.f32 0.0, %v4242
      %v4244 = vpop.f32.mrb[0].mxu0
      %v4245 = vpop.f32.mrb[0].mxu0
      %v4246 = vadd.f32 0.0, %v4245
      %v4247 = vpop.f32.mrb[0].mxu0
      %4248 = vmatprep.mubr.bf16.mxu0 0
      %4249 = vmatmul.mubr.bf16.gmra.mrb[0].mxu0 %v4133
      %v4250 = vpop.f32.mrb[0].mxu0
      %v4251 = vadd.f32 0.0, %v4250
      %v4252 = vpop.f32.mrb[0].mxu0
      %v4253 = vpop.f32.mrb[0].mxu0
      %v4254 = vadd.f32 0.0, %v4253
      %v4255 = vpop.f32.mrb[0].mxu0
      %4256 = vmatprep.mubr.bf16.mxu0 0
      %4257 = vmatmul.mubr.bf16.gmra.mrb[0].mxu0 %v4136
      %v4258 = vpop.f32.mrb[0].mxu0
      %v4259 = vadd.f32 0.0, %v4258
      %v4260 = vpop.f32.mrb[0].mxu0
      %v4261 = vpop.f32.mrb[0].mxu0
      %v4262 = vadd.f32 0.0, %v4261
      %v4263 = vpop.f32.mrb[0].mxu0
      %4264 = vmatprep.mubr.bf16.mxu0 0
      %4265 = vmatmul.mubr.bf16.gmra.mrb[0].mxu0 %v4139
      %v4266 = vpop.f32.mrb[0].mxu0
      %v4267 = vadd.f32 0.0, %v4266
      %v4268 = vpop.f32.mrb[0].mxu0
      %v4269 = vpop.f32.mrb[0].mxu0
      %v4270 = vadd.f32 0.0, %v4269
      %v4271 = vpop.f32.mrb[0].mxu0
      %4272 = vmatprep.mubr.bf16.mxu0 0
      %4273 = vmatmul.mubr.bf16.gmra.mrb[0].mxu0 %v4142
      %v4274 = vpop.f32.mrb[0].mxu0
      %v4275 = vadd.f32 0.0, %v4274
      %v4276 = vpop.f32.mrb[0].mxu0
      %v4277 = vpop.f32.mrb[0].mxu0
      %v4278 = vadd.f32 0.0, %v4277
      %v4279 = vpop.f32.mrb[0].mxu0
      %4280 = vmatprep.mubr.bf16.mxu0 0
      %4281 = vmatmul.mubr.bf16.gmra.mrb[0].mxu0 %v4145
      %v4282 = vpop.f32.mrb[0].mxu0
      %v4283 = vadd.f32 0.0, %v4282
      %v4284 = vpop.f32.mrb[0].mxu0
      %v4285 = vpop.f32.mrb[0].mxu0
      %v4286 = vadd.f32 0.0, %v4285
      %v4287 = vpop.f32.mrb[0].mxu0
      %4288 = vmatprep.mubr.bf16.mxu0 0
      %4289 = vmatmul.mubr.bf16.gmra.mrb[0].mxu0 %v4148
      %v4290 = vpop.f32.mrb[0].mxu0
      %v4291 = vadd.f32 0.0, %v4290
      %v4292 = vpop.f32.mrb[0].mxu0
      %v4293 = vpop.f32.mrb[0].mxu0
      %v4294 = vadd.f32 0.0, %v4293
      %v4295 = vpop.f32.mrb[0].mxu0
      %4296 = vmatprep.mubr.bf16.mxu0 0
      %4297 = vmatmul.mubr.bf16.gmra.mrb[0].mxu0 %v4151
      %v4298 = vpop.f32.mrb[0].mxu0
      %v4299 = vadd.f32 0.0, %v4298
      %v4300 = vpop.f32.mrb[0].mxu0
      %v4301 = vpop.f32.mrb[0].mxu0
      %v4302 = vadd.f32 0.0, %v4301
      %v4303 = vpop.f32.mrb[0].mxu0
      %4304 = vmatprep.mubr.bf16.mxu0 0
      %4305 = vmatmul.mubr.bf16.gmra.mrb[0].mxu0 %v4154
      %v4306 = vpop.f32.mrb[0].mxu0
      %v4307 = vadd.f32 0.0, %v4306
      %v4308 = vpop.f32.mrb[0].mxu0
      %v4309 = vpop.f32.mrb[0].mxu0
      %v4310 = vadd.f32 0.0, %v4309
      %v4311 = vpop.f32.mrb[0].mxu0
      %4312 = vmatprep.mubr.bf16.mxu0 0
      %4313 = vmatmul.mubr.bf16.gmra.mrb[0].mxu0 %v4157
      %v4314 = vpop.f32.mrb[0].mxu0
      %v4315 = vadd.f32 0.0, %v4314
      %v4316 = vpop.f32.mrb[0].mxu0
      %v4317 = vpop.f32.mrb[0].mxu0
      %v4318 = vadd.f32 0.0, %v4317
      %v4319 = vpop.f32.mrb[0].mxu0
      %4320 = vmatprep.mubr.bf16.mxu0 0
      %4321 = vmatmul.mubr.bf16.gmra.mrb[0].mxu0 %v4160
      %v4322 = vpop.f32.mrb[0].mxu0
      %v4323 = vadd.f32 0.0, %v4322
      %v4324 = vpop.f32.mrb[0].mxu0
      %v4325 = vpop.f32.mrb[0].mxu0
      %v4326 = vadd.f32 0.0, %v4325
      %v4327 = vpop.f32.mrb[0].mxu0
      %4328 = vmatprep.mubr.bf16.mxu0 0
      %4329 = vmatmul.mubr.bf16.gmra.mrb[0].mxu0 %v4163
      %v4330 = vpop.f32.mrb[0].mxu0
      %v4331 = vadd.f32 0.0, %v4330
      %v4332 = vpop.f32.mrb[0].mxu0
      %v4333 = vpop.f32.mrb[0].mxu0
      %v4334 = vadd.f32 0.0, %v4333
      %v4335 = vpop.f32.mrb[0].mxu0
      %4336 = vmatprep.mubr.bf16.mxu0 0
      %4337 = vmatmul.mubr.bf16.gmra.mrb[0].mxu0 %v4166
      %v4338 = vpop.f32.mrb[0].mxu0
      %v4339 = vadd.f32 0.0, %v4338
      %v4340 = vpop.f32.mrb[0].mxu0
      %v4341 = vpop.f32.mrb[0].mxu0
      %v4342 = vadd.f32 0.0, %v4341
      %v4343 = vpop.f32.mrb[0].mxu0
      %4344 = vdwg.mxu0
      %v4345 = vadd.f32 %v4028, %v4203
      %v4346 = vadd.f32 %v4029, %v4206
      %v4347 = vadd.f32 %v4030, %v4211
      %v4348 = vadd.f32 %v4031, %v4214
      %v4349 = vadd.f32 %v4032, %v4219
      %v4350 = vadd.f32 %v4033, %v4222
      %v4351 = vadd.f32 %v4034, %v4227
      %v4352 = vadd.f32 %v4035, %v4230
      %v4353 = vadd.f32 %v4036, %v4235
      %v4354 = vadd.f32 %v4037, %v4238
      %v4355 = vadd.f32 %v4038, %v4243
      %v4356 = vadd.f32 %v4039, %v4246
      %v4357 = vadd.f32 %v4040, %v4251
      %v4358 = vadd.f32 %v4041, %v4254
      %v4359 = vadd.f32 %v4042, %v4259
      %v4360 = vadd.f32 %v4043, %v4262
      %v4361 = vadd.f32 %v4044, %v4267
      %v4362 = vadd.f32 %v4045, %v4270
      %v4363 = vadd.f32 %v4046, %v4275
      %v4364 = vadd.f32 %v4047, %v4278
      %v4365 = vadd.f32 %v4048, %v4283
      %v4366 = vadd.f32 %v4049, %v4286
      %v4367 = vadd.f32 %v4050, %v4291
      %v4368 = vadd.f32 %v4051, %v4294
      %v4369 = vadd.f32 %v4052, %v4299
      %v4370 = vadd.f32 %v4053, %v4302
      %v4371 = vadd.f32 %v4054, %v4307
      %v4372 = vadd.f32 %v4055, %v4310
      %v4373 = vadd.f32 %v4056, %v4315
      %v4374 = vadd.f32 %v4057, %v4318
      %v4375 = vadd.f32 %v4058, %v4323
      %v4376 = vadd.f32 %v4059, %v4326
      %v4377 = vadd.f32 %v4060, %v4331
      %v4378 = vadd.f32 %v4061, %v4334
      %v4379 = vadd.f32 %v4062, %v4339
      %v4380 = vadd.f32 %v4063, %v4342
      %v4381 = vld [vmem:[%s246 + $0xa8] sm:$0x3]
      %v4382 = vld [vmem:[%s1 + $0x40] sm:$0xf]
      %v4383 = vld [vmem:[%s1 + $0x44] sm:$0xf]
      %v4385 = vunpack.c.l.b16 %v4381
      %v4386 = vpack.c.b16 %v4385, %v4385
      %vm4387 = vsmask.f32 6400
      %v4389 = vshrl.u32 %v4069, 16
      %v4391 = vrot.slane %v4389, 1
      %v4392 = vshll.u32 %v4069, 16
      %v4394 = vrot.slane %v4392, 2
      %v4395 = vor.u32 %v4391, %v4394
      %v4396 = vrot.slane %v3655, 1
      %v4397 = vrot.slane %v3651, 2
      %v4398 = vor.u32 %v4396, %v4397
      %v4399 = vsel %vm4387, %v4395, %v4398
      %v4400 = vrot.slane %v3663, 1
      %v4401 = vrot.slane %v3659, 2
      %v4402 = vor.u32 %v4400, %v4401
      %v4403 = vsel %vm4387, %v4398, %v4402
      %v4404 = vrot.slane %v3671, 1
      %v4405 = vrot.slane %v3667, 2
      %v4406 = vor.u32 %v4404, %v4405
      %v4407 = vsel %vm4387, %v4402, %v4406
      %v4408 = vrot.slane %v3679, 1
      %v4409 = vrot.slane %v3675, 2
      %v4410 = vor.u32 %v4408, %v4409
      %v4411 = vsel %vm4387, %v4406, %v4410
      %v4412 = vrot.slane %v3687, 1
      %v4413 = vrot.slane %v3683, 2
      %v4414 = vor.u32 %v4412, %v4413
      %v4415 = vsel %vm4387, %v4410, %v4414
      %v4416 = vrot.slane %v3695, 1
      %v4417 = vrot.slane %v3691, 2
      %v4418 = vor.u32 %v4416, %v4417
      %v4419 = vsel %vm4387, %v4414, %v4418
      %v4420 = vrot.slane %v3703, 1
      %v4421 = vrot.slane %v3699, 2
      %v4422 = vor.u32 %v4420, %v4421
      %v4423 = vsel %vm4387, %v4418, %v4422
      %v4424 = vrot.slane %v3711, 1
      %v4425 = vrot.slane %v3707, 2
      %v4426 = vor.u32 %v4424, %v4425
      %v4427 = vsel %vm4387, %v4422, %v4426
      %v4428 = vrot.slane %v3719, 1
      %v4429 = vrot.slane %v3715, 2
      %v4430 = vor.u32 %v4428, %v4429
      %v4431 = vsel %vm4387, %v4426, %v4430
      %v4432 = vrot.slane %v3727, 1
      %v4433 = vrot.slane %v3723, 2
      %v4434 = vor.u32 %v4432, %v4433
      %v4435 = vsel %vm4387, %v4430, %v4434
      %v4436 = vrot.slane %v3735, 1
      %v4437 = vrot.slane %v3731, 2
      %v4438 = vor.u32 %v4436, %v4437
      %v4439 = vsel %vm4387, %v4434, %v4438
      %v4440 = vrot.slane %v3743, 1
      %v4441 = vrot.slane %v3739, 2
      %v4442 = vor.u32 %v4440, %v4441
      %v4443 = vsel %vm4387, %v4438, %v4442
      %v4444 = vrot.slane %v3751, 1
      %v4445 = vrot.slane %v3747, 2
      %v4446 = vor.u32 %v4444, %v4445
      %v4447 = vsel %vm4387, %v4442, %v4446
      %v4448 = vrot.slane %v3759, 1
      %v4449 = vrot.slane %v3755, 2
      %v4450 = vor.u32 %v4448, %v4449
      %v4451 = vsel %vm4387, %v4446, %v4450
      %v4452 = vrot.slane %v3767, 1
      %v4453 = vrot.slane %v3763, 2
      %v4454 = vor.u32 %v4452, %v4453
      %v4455 = vsel %vm4387, %v4450, %v4454
      %v4456 = vrot.slane %v3775, 1
      %v4457 = vrot.slane %v3771, 2
      %v4458 = vor.u32 %v4456, %v4457
      %v4459 = vsel %vm4387, %v4454, %v4458
      %v4460 = vrot.slane %v3783, 1
      %v4461 = vrot.slane %v3779, 2
      %v4462 = vor.u32 %v4460, %v4461
      %v4463 = vsel %vm4387, %v4458, %v4462
      %v4465 = vshrl.u32 %v4386, 16
      %v4467 = vrot.slane %v4465, 1
      %v4468 = vshll.u32 %v4386, 16
      %v4470 = vrot.slane %v4468, 2
      %v4471 = vor.u32 %v4467, %v4470
      %v4472 = vsel %vm4387, %v4462, %v4471
      %v4475 = vunpack.c.l.b16 %v4382
      %v4476 = vunpack.c.l.b16 %v4383
      %v4477 = vpack.c.b16 %v4476, %v4475
      %v4480 = vsel %vm1081, %v4399, 0
      %v4483 = vsel %vm1081, %v4403, 0
      %v4486 = vsel %vm1081, %v4407, 0
      %v4489 = vsel %vm1081, %v4411, 0
      %v4492 = vsel %vm1081, %v4415, 0
      %v4495 = vsel %vm1081, %v4419, 0
      %v4498 = vsel %vm1081, %v4423, 0
      %v4501 = vsel %vm1081, %v4427, 0
      %v4504 = vsel %vm1081, %v4431, 0
      %v4507 = vsel %vm1081, %v4435, 0
      %v4510 = vsel %vm1081, %v4439, 0
      %v4513 = vsel %vm1081, %v4443, 0
      %v4516 = vsel %vm1081, %v4447, 0
      %v4519 = vsel %vm1081, %v4451, 0
      %v4522 = vsel %vm1081, %v4455, 0
      %v4525 = vsel %vm1081, %v4459, 0
      %v4528 = vsel %vm1081, %v4463, 0
      %v4531 = vsel %vm1081, %v4472, 0
      %4533 = vmatprep.subr.bf16.mxu0 0
      %4534 = vmatpush1.bf16.msra.mxu0 %v4477
      %4535 = vmatprep.subr.bf16.mxu0 0
      %4536 = vmatpush1.bf16.msra.mxu0 0
      %4537 = vmatprep.subr.bf16.mxu0 0
      %4538 = vmatpush1.bf16.msra.mxu0 0
      %4539 = vmatprep.subr.bf16.mxu0 0
      %4540 = vmatpush1.bf16.msra.mxu0 0
      %4541 = vmatprep.subr.bf16.mxu0 0
      %4542 = vmatpush1.bf16.msra.mxu0 0
      %4543 = vmatprep.subr.bf16.mxu0 0
      %4544 = vmatpush1.bf16.msra.mxu0 0
      %4545 = vmatprep.subr.bf16.mxu0 0
      %4546 = vmatpush1.bf16.msra.mxu0 0
      %4547 = vmatprep.subr.bf16.mxu0 0
      %4548 = vmatpush1.bf16.msra.mxu0 0
      %4549 = vmatprep.subr.bf16.mxu0 0
      %4550 = vmatpush1.bf16.msra.mxu0 0
      %4551 = vmatprep.subr.bf16.mxu0 0
      %4552 = vmatpush1.bf16.msra.mxu0 0
      %4553 = vmatprep.subr.bf16.mxu0 0
      %4554 = vmatpush1.bf16.msra.mxu0 0
      %4555 = vmatprep.subr.bf16.mxu0 0
      %4556 = vmatpush1.bf16.msra.mxu0 0
      %4557 = vmatprep.subr.bf16.mxu0 0
      %4558 = vmatpush1.bf16.msra.mxu0 0
      %4559 = vmatprep.subr.bf16.mxu0 0
      %4560 = vmatpush1.bf16.msra.mxu0 0
      %4561 = vmatprep.subr.bf16.mxu0 0
      %4562 = vmatpush1.bf16.msra.mxu0 0
      %4563 = vmatprep.subr.bf16.mxu0 0
      %4564 = vmatpush1.bf16.msra.mxu0 0
      %4565 = vmatprep.mubr.bf16.mxu0 0
      %4566 = vmatmul.mubr.bf16.gmra.mrb[0].mxu0 %v4480
      %v4567 = vpop.f32.mrb[0].mxu0
      %v4568 = vadd.f32 0.0, %v4567
      %v4569 = vpop.f32.mrb[0].mxu0
      %v4570 = vpop.f32.mrb[0].mxu0
      %v4571 = vadd.f32 0.0, %v4570
      %v4572 = vpop.f32.mrb[0].mxu0
      %4573 = vmatprep.mubr.bf16.mxu0 0
      %4574 = vmatmul.mubr.bf16.gmra.mrb[0].mxu0 %v4483
      %v4575 = vpop.f32.mrb[0].mxu0
      %v4576 = vadd.f32 0.0, %v4575
      %v4577 = vpop.f32.mrb[0].mxu0
      %v4578 = vpop.f32.mrb[0].mxu0
      %v4579 = vadd.f32 0.0, %v4578
      %v4580 = vpop.f32.mrb[0].mxu0
      %4581 = vmatprep.mubr.bf16.mxu0 0
      %4582 = vmatmul.mubr.bf16.gmra.mrb[0].mxu0 %v4486
      %v4583 = vpop.f32.mrb[0].mxu0
      %v4584 = vadd.f32 0.0, %v4583
      %v4585 = vpop.f32.mrb[0].mxu0
      %v4586 = vpop.f32.mrb[0].mxu0
      %v4587 = vadd.f32 0.0, %v4586
      %v4588 = vpop.f32.mrb[0].mxu0
      %4589 = vmatprep.mubr.bf16.mxu0 0
      %4590 = vmatmul.mubr.bf16.gmra.mrb[0].mxu0 %v4489
      %v4591 = vpop.f32.mrb[0].mxu0
      %v4592 = vadd.f32 0.0, %v4591
      %v4593 = vpop.f32.mrb[0].mxu0
      %v4594 = vpop.f32.mrb[0].mxu0
      %v4595 = vadd.f32 0.0, %v4594
      %v4596 = vpop.f32.mrb[0].mxu0
      %4597 = vmatprep.mubr.bf16.mxu0 0
      %4598 = vmatmul.mubr.bf16.gmra.mrb[0].mxu0 %v4492
      %v4599 = vpop.f32.mrb[0].mxu0
      %v4600 = vadd.f32 0.0, %v4599
      %v4601 = vpop.f32.mrb[0].mxu0
      %v4602 = vpop.f32.mrb[0].mxu0
      %v4603 = vadd.f32 0.0, %v4602
      %v4604 = vpop.f32.mrb[0].mxu0
      %4605 = vmatprep.mubr.bf16.mxu0 0
      %4606 = vmatmul.mubr.bf16.gmra.mrb[0].mxu0 %v4495
      %v4607 = vpop.f32.mrb[0].mxu0
      %v4608 = vadd.f32 0.0, %v4607
      %v4609 = vpop.f32.mrb[0].mxu0
      %v4610 = vpop.f32.mrb[0].mxu0
      %v4611 = vadd.f32 0.0, %v4610
      %v4612 = vpop.f32.mrb[0].mxu0
      %4613 = vmatprep.mubr.bf16.mxu0 0
      %4614 = vmatmul.mubr.bf16.gmra.mrb[0].mxu0 %v4498
      %v4615 = vpop.f32.mrb[0].mxu0
      %v4616 = vadd.f32 0.0, %v4615
      %v4617 = vpop.f32.mrb[0].mxu0
      %v4618 = vpop.f32.mrb[0].mxu0
      %v4619 = vadd.f32 0.0, %v4618
      %v4620 = vpop.f32.mrb[0].mxu0
      %4621 = vmatprep.mubr.bf16.mxu0 0
      %4622 = vmatmul.mubr.bf16.gmra.mrb[0].mxu0 %v4501
      %v4623 = vpop.f32.mrb[0].mxu0
      %v4624 = vadd.f32 0.0, %v4623
      %v4625 = vpop.f32.mrb[0].mxu0
      %v4626 = vpop.f32.mrb[0].mxu0
      %v4627 = vadd.f32 0.0, %v4626
      %v4628 = vpop.f32.mrb[0].mxu0
      %4629 = vmatprep.mubr.bf16.mxu0 0
      %4630 = vmatmul.mubr.bf16.gmra.mrb[0].mxu0 %v4504
      %v4631 = vpop.f32.mrb[0].mxu0
      %v4632 = vadd.f32 0.0, %v4631
      %v4633 = vpop.f32.mrb[0].mxu0
      %v4634 = vpop.f32.mrb[0].mxu0
      %v4635 = vadd.f32 0.0, %v4634
      %v4636 = vpop.f32.mrb[0].mxu0
      %4637 = vmatprep.mubr.bf16.mxu0 0
      %4638 = vmatmul.mubr.bf16.gmra.mrb[0].mxu0 %v4507
      %v4639 = vpop.f32.mrb[0].mxu0
      %v4640 = vadd.f32 0.0, %v4639
      %v4641 = vpop.f32.mrb[0].mxu0
      %v4642 = vpop.f32.mrb[0].mxu0
      %v4643 = vadd.f32 0.0, %v4642
      %v4644 = vpop.f32.mrb[0].mxu0
      %4645 = vmatprep.mubr.bf16.mxu0 0
      %4646 = vmatmul.mubr.bf16.gmra.mrb[0].mxu0 %v4510
      %v4647 = vpop.f32.mrb[0].mxu0
      %v4648 = vadd.f32 0.0, %v4647
      %v4649 = vpop.f32.mrb[0].mxu0
      %v4650 = vpop.f32.mrb[0].mxu0
      %v4651 = vadd.f32 0.0, %v4650
      %v4652 = vpop.f32.mrb[0].mxu0
      %4653 = vmatprep.mubr.bf16.mxu0 0
      %4654 = vmatmul.mubr.bf16.gmra.mrb[0].mxu0 %v4513
      %v4655 = vpop.f32.mrb[0].mxu0
      %v4656 = vadd.f32 0.0, %v4655
      %v4657 = vpop.f32.mrb[0].mxu0
      %v4658 = vpop.f32.mrb[0].mxu0
      %v4659 = vadd.f32 0.0, %v4658
      %v4660 = vpop.f32.mrb[0].mxu0
      %4661 = vmatprep.mubr.bf16.mxu0 0
      %4662 = vmatmul.mubr.bf16.gmra.mrb[0].mxu0 %v4516
      %v4663 = vpop.f32.mrb[0].mxu0
      %v4664 = vadd.f32 0.0, %v4663
      %v4665 = vpop.f32.mrb[0].mxu0
      %v4666 = vpop.f32.mrb[0].mxu0
      %v4667 = vadd.f32 0.0, %v4666
      %v4668 = vpop.f32.mrb[0].mxu0
      %4669 = vmatprep.mubr.bf16.mxu0 0
      %4670 = vmatmul.mubr.bf16.gmra.mrb[0].mxu0 %v4519
      %v4671 = vpop.f32.mrb[0].mxu0
      %v4672 = vadd.f32 0.0, %v4671
      %v4673 = vpop.f32.mrb[0].mxu0
      %v4674 = vpop.f32.mrb[0].mxu0
      %v4675 = vadd.f32 0.0, %v4674
      %v4676 = vpop.f32.mrb[0].mxu0
      %4677 = vmatprep.mubr.bf16.mxu0 0
      %4678 = vmatmul.mubr.bf16.gmra.mrb[0].mxu0 %v4522
      %v4679 = vpop.f32.mrb[0].mxu0
      %v4680 = vadd.f32 0.0, %v4679
      %v4681 = vpop.f32.mrb[0].mxu0
      %v4682 = vpop.f32.mrb[0].mxu0
      %v4683 = vadd.f32 0.0, %v4682
      %v4684 = vpop.f32.mrb[0].mxu0
      %4685 = vmatprep.mubr.bf16.mxu0 0
      %4686 = vmatmul.mubr.bf16.gmra.mrb[0].mxu0 %v4525
      %v4687 = vpop.f32.mrb[0].mxu0
      %v4688 = vadd.f32 0.0, %v4687
      %v4689 = vpop.f32.mrb[0].mxu0
      %v4690 = vpop.f32.mrb[0].mxu0
      %v4691 = vadd.f32 0.0, %v4690
      %v4692 = vpop.f32.mrb[0].mxu0
      %4693 = vmatprep.mubr.bf16.mxu0 0
      %4694 = vmatmul.mubr.bf16.gmra.mrb[0].mxu0 %v4528
      %v4695 = vpop.f32.mrb[0].mxu0
      %v4696 = vadd.f32 0.0, %v4695
      %v4697 = vpop.f32.mrb[0].mxu0
      %v4698 = vpop.f32.mrb[0].mxu0
      %v4699 = vadd.f32 0.0, %v4698
      %v4700 = vpop.f32.mrb[0].mxu0
      %4701 = vmatprep.mubr.bf16.mxu0 0
      %4702 = vmatmul.mubr.bf16.gmra.mrb[0].mxu0 %v4531
      %v4703 = vpop.f32.mrb[0].mxu0
      %v4704 = vadd.f32 0.0, %v4703
      %v4705 = vpop.f32.mrb[0].mxu0
      %v4706 = vpop.f32.mrb[0].mxu0
      %v4707 = vadd.f32 0.0, %v4706
      %v4708 = vpop.f32.mrb[0].mxu0
      %4709 = vdwg.mxu0
      %v4710 = vadd.f32 %v4345, %v4568
      %v4711 = vadd.f32 %v4346, %v4571
      %v4712 = vadd.f32 %v4347, %v4576
      %v4713 = vadd.f32 %v4348, %v4579
      %v4714 = vadd.f32 %v4349, %v4584
      %v4715 = vadd.f32 %v4350, %v4587
      %v4716 = vadd.f32 %v4351, %v4592
      %v4717 = vadd.f32 %v4352, %v4595
      %v4718 = vadd.f32 %v4353, %v4600
      %v4719 = vadd.f32 %v4354, %v4603
      %v4720 = vadd.f32 %v4355, %v4608
      %v4721 = vadd.f32 %v4356, %v4611
      %v4722 = vadd.f32 %v4357, %v4616
      %v4723 = vadd.f32 %v4358, %v4619
      %v4724 = vadd.f32 %v4359, %v4624
      %v4725 = vadd.f32 %v4360, %v4627
      %v4726 = vadd.f32 %v4361, %v4632
      %v4727 = vadd.f32 %v4362, %v4635
      %v4728 = vadd.f32 %v4363, %v4640
      %v4729 = vadd.f32 %v4364, %v4643
      %v4730 = vadd.f32 %v4365, %v4648
      %v4731 = vadd.f32 %v4366, %v4651
      %v4732 = vadd.f32 %v4367, %v4656
      %v4733 = vadd.f32 %v4368, %v4659
      %v4734 = vadd.f32 %v4369, %v4664
      %v4735 = vadd.f32 %v4370, %v4667
      %v4736 = vadd.f32 %v4371, %v4672
      %v4737 = vadd.f32 %v4372, %v4675
      %v4738 = vadd.f32 %v4373, %v4680
      %v4739 = vadd.f32 %v4374, %v4683
      %v4740 = vadd.f32 %v4375, %v4688
      %v4741 = vadd.f32 %v4376, %v4691
      %v4742 = vadd.f32 %v4377, %v4696
      %v4743 = vadd.f32 %v4378, %v4699
      %v4744 = vadd.f32 %v4379, %v4704
      %v4745 = vadd.f32 %v4380, %v4707
      %v4746 = vld [vmem:[%s2] sm:$0x1]
      %v4748 = vlaneseq
      %v4749 = vshrl.u32 %v4748, 7
      %v4750 = vsub.s32 0, %v4749
      %v4751 = vrot.slane %v4746, %v4750
      %v4753 = vadd.f32 %v4710, %v4751
      %v4754 = vadd.f32 %v4711, %v4751
      %v4755 = vadd.f32 %v4712, %v4751
      %v4756 = vadd.f32 %v4713, %v4751
      %v4757 = vadd.f32 %v4714, %v4751
      %v4758 = vadd.f32 %v4715, %v4751
      %v4759 = vadd.f32 %v4716, %v4751
      %v4760 = vadd.f32 %v4717, %v4751
      %v4761 = vadd.f32 %v4718, %v4751
      %v4762 = vadd.f32 %v4719, %v4751
      %v4763 = vadd.f32 %v4720, %v4751
      %v4764 = vadd.f32 %v4721, %v4751
      %v4765 = vadd.f32 %v4722, %v4751
      %v4766 = vadd.f32 %v4723, %v4751
      %v4767 = vadd.f32 %v4724, %v4751
      %v4768 = vadd.f32 %v4725, %v4751
      %v4769 = vadd.f32 %v4726, %v4751
      %v4770 = vadd.f32 %v4727, %v4751
      %v4771 = vadd.f32 %v4728, %v4751
      %v4772 = vadd.f32 %v4729, %v4751
      %v4773 = vadd.f32 %v4730, %v4751
      %v4774 = vadd.f32 %v4731, %v4751
      %v4775 = vadd.f32 %v4732, %v4751
      %v4776 = vadd.f32 %v4733, %v4751
      %v4777 = vadd.f32 %v4734, %v4751
      %v4778 = vadd.f32 %v4735, %v4751
      %v4779 = vadd.f32 %v4736, %v4751
      %v4780 = vadd.f32 %v4737, %v4751
      %v4781 = vadd.f32 %v4738, %v4751
      %v4782 = vadd.f32 %v4739, %v4751
      %v4783 = vadd.f32 %v4740, %v4751
      %v4784 = vadd.f32 %v4741, %v4751
      %v4785 = vadd.f32 %v4742, %v4751
      %v4786 = vadd.f32 %v4743, %v4751
      %v4787 = vadd.f32 %v4744, %v4751
      %v4788 = vadd.f32 %v4745, %v4751
      %v4789 = vmax.f32 %v4753, 0.0
      %v4790 = vmax.f32 %v4754, 0.0
      %v4791 = vmax.f32 %v4755, 0.0
      %v4792 = vmax.f32 %v4756, 0.0
      %v4793 = vmax.f32 %v4757, 0.0
      %v4794 = vmax.f32 %v4758, 0.0
      %v4795 = vmax.f32 %v4759, 0.0
      %v4796 = vmax.f32 %v4760, 0.0
      %v4797 = vmax.f32 %v4761, 0.0
      %v4798 = vmax.f32 %v4762, 0.0
      %v4799 = vmax.f32 %v4763, 0.0
      %v4800 = vmax.f32 %v4764, 0.0
      %v4801 = vmax.f32 %v4765, 0.0
      %v4802 = vmax.f32 %v4766, 0.0
      %v4803 = vmax.f32 %v4767, 0.0
      %v4804 = vmax.f32 %v4768, 0.0
      %v4805 = vmax.f32 %v4769, 0.0
      %v4806 = vmax.f32 %v4770, 0.0
      %v4807 = vmax.f32 %v4771, 0.0
      %v4808 = vmax.f32 %v4772, 0.0
      %v4809 = vmax.f32 %v4773, 0.0
      %v4810 = vmax.f32 %v4774, 0.0
      %v4811 = vmax.f32 %v4775, 0.0
      %v4812 = vmax.f32 %v4776, 0.0
      %v4813 = vmax.f32 %v4777, 0.0
      %v4814 = vmax.f32 %v4778, 0.0
      %v4815 = vmax.f32 %v4779, 0.0
      %v4816 = vmax.f32 %v4780, 0.0
      %v4817 = vmax.f32 %v4781, 0.0
      %v4818 = vmax.f32 %v4782, 0.0
      %v4819 = vmax.f32 %v4783, 0.0
      %v4820 = vmax.f32 %v4784, 0.0
      %v4821 = vmax.f32 %v4785, 0.0
      %v4822 = vmax.f32 %v4786, 0.0
      %v4823 = vmax.f32 %v4787, 0.0
      %v4824 = vmax.f32 %v4788, 0.0
      %v4825 = vsel %vm866, 1, 0
      %v4826 = vsel %vm867, 1, 0
      %v4827 = vsel %vm868, 1, 0
      %v4828 = vsel %vm869, 1, 0
      %v4829 = vsel %vm870, 1, 0
      %v4830 = vsel %vm871, 1, 0
      %v4831 = vsel %vm872, 1, 0
      %v4832 = vsel %vm873, 1, 0
      %v4833 = vsel %vm874, 1, 0
      %v4834 = vsel %vm875, 1, 0
      %v4835 = vsel %vm876, 1, 0
      %v4836 = vsel %vm877, 1, 0
      %v4837 = vsel %vm878, 1, 0
      %v4838 = vsel %vm879, 1, 0
      %v4839 = vsel %vm880, 1, 0
      %v4840 = vsel %vm881, 1, 0
      %v4841 = vsel %vm882, 1, 0
      %v4842 = vsel %vm883, 1, 0
      %v4843 = vsel %vm884, 1, 0
      %v4844 = vsel %vm885, 1, 0
      %v4845 = vsel %vm886, 1, 0
      %v4846 = vsel %vm887, 1, 0
      %v4847 = vsel %vm888, 1, 0
      %v4848 = vsel %vm889, 1, 0
      %v4849 = vsel %vm890, 1, 0
      %v4850 = vsel %vm891, 1, 0
      %v4851 = vsel %vm892, 1, 0
      %v4852 = vsel %vm893, 1, 0
      %v4853 = vsel %vm894, 1, 0
      %v4854 = vsel %vm895, 1, 0
      %v4855 = vsel %vm896, 1, 0
      %v4856 = vsel %vm897, 1, 0
      %v4857 = vsel %vm898, 1, 0
      %v4858 = vsel %vm899, 1, 0
      %v4859 = vsel %vm900, 1, 0
      %v4860 = vsel %vm901, 1, 0
      %vm4861 = vcmp.eq.s32.totalorder %v4825, 1
      %vm4862 = vcmp.eq.s32.totalorder %v4826, 1
      %vm4863 = vcmp.eq.s32.totalorder %v4827, 1
      %vm4864 = vcmp.eq.s32.totalorder %v4828, 1
      %vm4865 = vcmp.eq.s32.totalorder %v4829, 1
      %vm4866 = vcmp.eq.s32.totalorder %v4830, 1
      %vm4867 = vcmp.eq.s32.totalorder %v4831, 1
      %vm4868 = vcmp.eq.s32.totalorder %v4832, 1
      %vm4869 = vcmp.eq.s32.totalorder %v4833, 1
      %vm4870 = vcmp.eq.s32.totalorder %v4834, 1
      %vm4871 = vcmp.eq.s32.totalorder %v4835, 1
      %vm4872 = vcmp.eq.s32.totalorder %v4836, 1
      %vm4873 = vcmp.eq.s32.totalorder %v4837, 1
      %vm4874 = vcmp.eq.s32.totalorder %v4838, 1
      %vm4875 = vcmp.eq.s32.totalorder %v4839, 1
      %vm4876 = vcmp.eq.s32.totalorder %v4840, 1
      %vm4877 = vcmp.eq.s32.totalorder %v4841, 1
      %vm4878 = vcmp.eq.s32.totalorder %v4842, 1
      %vm4879 = vcmp.eq.s32.totalorder %v4843, 1
      %vm4880 = vcmp.eq.s32.totalorder %v4844, 1
      %vm4881 = vcmp.eq.s32.totalorder %v4845, 1
      %vm4882 = vcmp.eq.s32.totalorder %v4846, 1
      %vm4883 = vcmp.eq.s32.totalorder %v4847, 1
      %vm4884 = vcmp.eq.s32.totalorder %v4848, 1
      %vm4885 = vcmp.eq.s32.totalorder %v4849, 1
      %vm4886 = vcmp.eq.s32.totalorder %v4850, 1
      %vm4887 = vcmp.eq.s32.totalorder %v4851, 1
      %vm4888 = vcmp.eq.s32.totalorder %v4852, 1
      %vm4889 = vcmp.eq.s32.totalorder %v4853, 1
      %vm4890 = vcmp.eq.s32.totalorder %v4854, 1
      %vm4891 = vcmp.eq.s32.totalorder %v4855, 1
      %vm4892 = vcmp.eq.s32.totalorder %v4856, 1
      %vm4893 = vcmp.eq.s32.totalorder %v4857, 1
      %vm4894 = vcmp.eq.s32.totalorder %v4858, 1
      %vm4895 = vcmp.eq.s32.totalorder %v4859, 1
      %vm4896 = vcmp.eq.s32.totalorder %v4860, 1
      %v4897 = vsel %vm4861, %v4789, 0.0
      %v4898 = vsel %vm4862, %v4790, 0.0
      %v4899 = vsel %vm4863, %v4791, 0.0
      %v4900 = vsel %vm4864, %v4792, 0.0
      %v4901 = vsel %vm4865, %v4793, 0.0
      %v4902 = vsel %vm4866, %v4794, 0.0
      %v4903 = vsel %vm4867, %v4795, 0.0
      %v4904 = vsel %vm4868, %v4796, 0.0
      %v4905 = vsel %vm4869, %v4797, 0.0
      %v4906 = vsel %vm4870, %v4798, 0.0
      %v4907 = vsel %vm4871, %v4799, 0.0
      %v4908 = vsel %vm4872, %v4800, 0.0
      %v4909 = vsel %vm4873, %v4801, 0.0
      %v4910 = vsel %vm4874, %v4802, 0.0
      %v4911 = vsel %vm4875, %v4803, 0.0
      %v4912 = vsel %vm4876, %v4804, 0.0
      %v4913 = vsel %vm4877, %v4805, 0.0
      %v4914 = vsel %vm4878, %v4806, 0.0
      %v4915 = vsel %vm4879, %v4807, 0.0
      %v4916 = vsel %vm4880, %v4808, 0.0
      %v4917 = vsel %vm4881, %v4809, 0.0
      %v4918 = vsel %vm4882, %v4810, 0.0
      %v4919 = vsel %vm4883, %v4811, 0.0
      %v4920 = vsel %vm4884, %v4812, 0.0
      %v4921 = vsel %vm4885, %v4813, 0.0
      %v4922 = vsel %vm4886, %v4814, 0.0
      %v4923 = vsel %vm4887, %v4815, 0.0
      %v4924 = vsel %vm4888, %v4816, 0.0
      %v4925 = vsel %vm4889, %v4817, 0.0
      %v4926 = vsel %vm4890, %v4818, 0.0
      %v4927 = vsel %vm4891, %v4819, 0.0
      %v4928 = vsel %vm4892, %v4820, 0.0
      %v4929 = vsel %vm4893, %v4821, 0.0
      %v4930 = vsel %vm4894, %v4822, 0.0
      %v4931 = vsel %vm4895, %v4823, 0.0
      %v4932 = vsel %vm4896, %v4824, 0.0
      %4933 = vst [vmem:[#allocation2] sm:$0xff] 0
      %4934 = vst [vmem:[#allocation2 + $0x8] sm:$0xff] 0
      %4935 = vst [vmem:[#allocation2 + $0xa0] sm:$0xff] 0
      %4936 = vst [vmem:[#allocation2 + $0xa8] sm:$0xff] 0
      %v4937 = vpack.c.bf16 %v4898, %v4897
      %v4938 = vpack.c.bf16 %v4900, %v4899
      %v4939 = vpack.c.bf16 %v4902, %v4901
      %v4940 = vpack.c.bf16 %v4904, %v4903
      %v4941 = vpack.c.bf16 %v4906, %v4905
      %v4942 = vpack.c.bf16 %v4908, %v4907
      %v4943 = vpack.c.bf16 %v4910, %v4909
      %v4944 = vpack.c.bf16 %v4912, %v4911
      %v4945 = vpack.c.bf16 %v4914, %v4913
      %v4946 = vpack.c.bf16 %v4916, %v4915
      %v4947 = vpack.c.bf16 %v4918, %v4917
      %v4948 = vpack.c.bf16 %v4920, %v4919
      %v4949 = vpack.c.bf16 %v4922, %v4921
      %v4950 = vpack.c.bf16 %v4924, %v4923
      %v4951 = vpack.c.bf16 %v4926, %v4925
      %v4952 = vpack.c.bf16 %v4928, %v4927
      %v4953 = vpack.c.bf16 %v4930, %v4929
      %v4954 = vpack.c.bf16 %v4932, %v4931
      %4955 = vst [vmem:[#allocation2 + $0x10] sm:$0xff] %v4937
      %4956 = vst [vmem:[#allocation2 + $0x18] sm:$0xff] %v4938
      %4957 = vst [vmem:[#allocation2 + $0x20] sm:$0xff] %v4939
      %4958 = vst [vmem:[#allocation2 + $0x28] sm:$0xff] %v4940
      %4959 = vst [vmem:[#allocation2 + $0x30] sm:$0xff] %v4941
      %4960 = vst [vmem:[#allocation2 + $0x38] sm:$0xff] %v4942
      %4961 = vst [vmem:[#allocation2 + $0x40] sm:$0xff] %v4943
      %4962 = vst [vmem:[#allocation2 + $0x48] sm:$0xff] %v4944
      %4963 = vst [vmem:[#allocation2 + $0x50] sm:$0xff] %v4945
      %4964 = vst [vmem:[#allocation2 + $0x58] sm:$0xff] %v4946
      %4965 = vst [vmem:[#allocation2 + $0x60] sm:$0xff] %v4947
      %4966 = vst [vmem:[#allocation2 + $0x68] sm:$0xff] %v4948
      %4967 = vst [vmem:[#allocation2 + $0x70] sm:$0xff] %v4949
      %4968 = vst [vmem:[#allocation2 + $0x78] sm:$0xff] %v4950
      %4969 = vst [vmem:[#allocation2 + $0x80] sm:$0xff] %v4951
      %4970 = vst [vmem:[#allocation2 + $0x88] sm:$0xff] %v4952
      %4971 = vst [vmem:[#allocation2 + $0x90] sm:$0xff] %v4953
      %4972 = vst [vmem:[#allocation2 + $0x98] sm:$0xff] %v4954
      %v4973 = vld [vmem:[#allocation2] sm:$0xc0]
      %v4974 = vld [vmem:[#allocation2 + $0x8] sm:$0xff]
      %v4975 = vld [vmem:[#allocation2 + $0x10] sm:$0xff]
      %v4976 = vld [vmem:[#allocation2 + $0x18] sm:$0xff]
      %v4977 = vld [vmem:[#allocation2 + $0x20] sm:$0xff]
      %v4978 = vld [vmem:[#allocation2 + $0x28] sm:$0xff]
      %v4979 = vld [vmem:[#allocation2 + $0x30] sm:$0xff]
      %v4980 = vld [vmem:[#allocation2 + $0x38] sm:$0xff]
      %v4981 = vld [vmem:[#allocation2 + $0x40] sm:$0xff]
      %v4982 = vld [vmem:[#allocation2 + $0x48] sm:$0xff]
      %v4983 = vld [vmem:[#allocation2 + $0x50] sm:$0xff]
      %v4984 = vld [vmem:[#allocation2 + $0x58] sm:$0xff]
      %v4985 = vld [vmem:[#allocation2 + $0x60] sm:$0xff]
      %v4986 = vld [vmem:[#allocation2 + $0x68] sm:$0xff]
      %v4987 = vld [vmem:[#allocation2 + $0x70] sm:$0xff]
      %v4988 = vld [vmem:[#allocation2 + $0x78] sm:$0xff]
      %v4989 = vld [vmem:[#allocation2 + $0x80] sm:$0xff]
      %v4990 = vld [vmem:[#allocation2 + $0x88] sm:$0xff]
      %v4991 = vld [vmem:[#allocation2 + $0x90] sm:$0x7f]
      %v4992 = vld [vmem:[%s3] sm:$0xf]
      %v4993 = vld [vmem:[%s3 + $0x4] sm:$0xf]
      %v4994 = vld [vmem:[%s3 + $0x8] sm:$0xf]
      %v4995 = vld [vmem:[%s3 + $0xc] sm:$0xf]
      %v4996 = vld [vmem:[%s3 + $0x10] sm:$0xf]
      %v4997 = vld [vmem:[%s3 + $0x14] sm:$0xf]
      %v4998 = vld [vmem:[%s3 + $0x18] sm:$0xf]
      %v4999 = vld [vmem:[%s3 + $0x1c] sm:$0xf]
      %v5000 = vld [vmem:[%s3 + $0x20] sm:$0xf]
      %v5001 = vld [vmem:[%s3 + $0x24] sm:$0xf]
      %v5002 = vld [vmem:[%s3 + $0x28] sm:$0xf]
      %v5003 = vld [vmem:[%s3 + $0x2c] sm:$0xf]
      %v5004 = vld [vmem:[%s3 + $0x30] sm:$0xf]
      %v5005 = vld [vmem:[%s3 + $0x34] sm:$0xf]
      %v5006 = vld [vmem:[%s3 + $0x38] sm:$0xf]
      %v5007 = vld [vmem:[%s3 + $0x3c] sm:$0xf]
      %v5008 = vld [vmem:[#allocation2] sm:$0x80]
      %v5009 = vld [vmem:[%s3 + $0x40] sm:$0xf]
      %v5010 = vld [vmem:[%s3 + $0x44] sm:$0xf]
      %v5011 = vld [vmem:[%s3 + $0x48] sm:$0xf]
      %v5012 = vld [vmem:[%s3 + $0x4c] sm:$0xf]
      %v5013 = vld [vmem:[%s3 + $0x50] sm:$0xf]
      %v5014 = vld [vmem:[%s3 + $0x54] sm:$0xf]
      %v5015 = vld [vmem:[%s3 + $0x58] sm:$0xf]
      %v5016 = vld [vmem:[%s3 + $0x5c] sm:$0xf]
      %v5017 = vld [vmem:[%s3 + $0x60] sm:$0xf]
      %v5018 = vld [vmem:[%s3 + $0x64] sm:$0xf]
      %v5019 = vld [vmem:[%s3 + $0x68] sm:$0xf]
      %v5020 = vld [vmem:[%s3 + $0x6c] sm:$0xf]
      %v5021 = vld [vmem:[%s3 + $0x70] sm:$0xf]
      %v5022 = vld [vmem:[%s3 + $0x74] sm:$0xf]
      %v5023 = vld [vmem:[%s3 + $0x78] sm:$0xf]
      %v5024 = vld [vmem:[%s3 + $0x7c] sm:$0xf]
      %vm5044 = vcmask 1040384
      %v5045 = vrot.slane %v5008, 7
      %v5046 = vrot.slane %v4974, 7
      %v5047 = vsel %vm5044, %v5045, %v5046
      %v5048 = vrot.slane %v4975, 7
      %v5049 = vsel %vm5044, %v5046, %v5048
      %v5050 = vrot.slane %v4976, 7
      %v5051 = vsel %vm5044, %v5048, %v5050
      %v5052 = vrot.slane %v4977, 7
      %v5053 = vsel %vm5044, %v5050, %v5052
      %v5054 = vrot.slane %v4978, 7
      %v5055 = vsel %vm5044, %v5052, %v5054
      %v5056 = vrot.slane %v4979, 7
      %v5057 = vsel %vm5044, %v5054, %v5056
      %v5058 = vrot.slane %v4980, 7
      %v5059 = vsel %vm5044, %v5056, %v5058
      %v5060 = vrot.slane %v4981, 7
      %v5061 = vsel %vm5044, %v5058, %v5060
      %v5062 = vrot.slane %v4982, 7
      %v5063 = vsel %vm5044, %v5060, %v5062
      %v5064 = vrot.slane %v4983, 7
      %v5065 = vsel %vm5044, %v5062, %v5064
      %v5066 = vrot.slane %v4984, 7
      %v5067 = vsel %vm5044, %v5064, %v5066
      %v5068 = vrot.slane %v4985, 7
      %v5069 = vsel %vm5044, %v5066, %v5068
      %v5070 = vrot.slane %v4986, 7
      %v5071 = vsel %vm5044, %v5068, %v5070
      %v5072 = vrot.slane %v4987, 7
      %v5073 = vsel %vm5044, %v5070, %v5072
      %v5074 = vrot.slane %v4988, 7
      %v5075 = vsel %vm5044, %v5072, %v5074
      %v5076 = vrot.slane %v4989, 7
      %v5077 = vsel %vm5044, %v5074, %v5076
      %v5078 = vrot.slane %v4990, 7
      %v5079 = vsel %vm5044, %v5076, %v5078
      %v5080 = vrot.slane %v4991, 7
      %v5081 = vsel %vm5044, %v5078, %v5080
      %v5116 = vunpack.c.l.b16 %v5009
      %v5117 = vunpack.c.l.b16 %v5010
      %v5118 = vunpack.c.l.b16 %v5011
      %v5119 = vunpack.c.l.b16 %v5012
      %v5120 = vunpack.c.l.b16 %v5013
      %v5121 = vunpack.c.l.b16 %v5014
      %v5122 = vunpack.c.l.b16 %v5015
      %v5123 = vunpack.c.l.b16 %v5016
      %v5124 = vunpack.c.l.b16 %v5017
      %v5125 = vunpack.c.l.b16 %v5018
      %v5126 = vunpack.c.l.b16 %v5019
      %v5127 = vunpack.c.l.b16 %v5020
      %v5128 = vunpack.c.l.b16 %v5021
      %v5129 = vunpack.c.l.b16 %v5022
      %v5130 = vunpack.c.l.b16 %v5023
      %v5131 = vunpack.c.l.b16 %v5024
      %v5132 = vpack.c.b16 %v5117, %v5116
      %v5133 = vpack.c.b16 %v5119, %v5118
      %v5134 = vpack.c.b16 %v5121, %v5120
      %v5135 = vpack.c.b16 %v5123, %v5122
      %v5136 = vpack.c.b16 %v5125, %v5124
      %v5137 = vpack.c.b16 %v5127, %v5126
      %v5138 = vpack.c.b16 %v5129, %v5128
      %v5139 = vpack.c.b16 %v5131, %v5130
      %5148 = vmatprep.subr.bf16.mxu0 0
      %5149 = vmatpush1.bf16.msra.mxu0 %v5132
      %5150 = vmatprep.subr.bf16.mxu0 0
      %5151 = vmatpush1.bf16.msra.mxu0 %v5133
      %5152 = vmatprep.subr.bf16.mxu0 0
      %5153 = vmatpush1.bf16.msra.mxu0 %v5134
      %5154 = vmatprep.subr.bf16.mxu0 0
      %5155 = vmatpush1.bf16.msra.mxu0 %v5135
      %5156 = vmatprep.subr.bf16.mxu0 0
      %5157 = vmatpush1.bf16.msra.mxu0 %v5136
      %5158 = vmatprep.subr.bf16.mxu0 0
      %5159 = vmatpush1.bf16.msra.mxu0 %v5137
      %5160 = vmatprep.subr.bf16.mxu0 0
      %5161 = vmatpush1.bf16.msra.mxu0 %v5138
      %5162 = vmatprep.subr.bf16.mxu0 0
      %5163 = vmatpush1.bf16.msra.mxu0 %v5139
      %5164 = vmatprep.subr.bf16.mxu0 0
      %5165 = vmatpush1.bf16.msra.mxu0 0
      %5166 = vmatprep.subr.bf16.mxu0 0
      %5167 = vmatpush1.bf16.msra.mxu0 0
      %5168 = vmatprep.subr.bf16.mxu0 0
      %5169 = vmatpush1.bf16.msra.mxu0 0
      %5170 = vmatprep.subr.bf16.mxu0 0
      %5171 = vmatpush1.bf16.msra.mxu0 0
      %5172 = vmatprep.subr.bf16.mxu0 0
      %5173 = vmatpush1.bf16.msra.mxu0 0
      %5174 = vmatprep.subr.bf16.mxu0 0
      %5175 = vmatpush1.bf16.msra.mxu0 0
      %5176 = vmatprep.subr.bf16.mxu0 0
      %5177 = vmatpush1.bf16.msra.mxu0 0
      %5178 = vmatprep.subr.bf16.mxu0 0
      %5179 = vmatpush1.bf16.msra.mxu0 0
      %5180 = vmatprep.mubr.bf16.mxu0 0
      %5181 = vmatmul.mubr.bf16.gmra.mrb[0].mxu0 %v5047
      %v5182 = vpop.f32.mrb[0].mxu0
      %v5183 = vadd.f32 0.0, %v5182
      %v5184 = vpop.f32.mrb[0].mxu0
      %v5185 = vpop.f32.mrb[0].mxu0
      %v5186 = vadd.f32 0.0, %v5185
      %v5187 = vpop.f32.mrb[0].mxu0
      %5188 = vmatprep.mubr.bf16.mxu0 0
      %5189 = vmatmul.mubr.bf16.gmra.mrb[0].mxu0 %v5049
      %v5190 = vpop.f32.mrb[0].mxu0
      %v5191 = vadd.f32 0.0, %v5190
      %v5192 = vpop.f32.mrb[0].mxu0
      %v5193 = vpop.f32.mrb[0].mxu0
      %v5194 = vadd.f32 0.0, %v5193
      %v5195 = vpop.f32.mrb[0].mxu0
      %5196 = vmatprep.mubr.bf16.mxu0 0
      %5197 = vmatmul.mubr.bf16.gmra.mrb[0].mxu0 %v5051
      %v5198 = vpop.f32.mrb[0].mxu0
      %v5199 = vadd.f32 0.0, %v5198
      %v5200 = vpop.f32.mrb[0].mxu0
      %v5201 = vpop.f32.mrb[0].mxu0
      %v5202 = vadd.f32 0.0, %v5201
      %v5203 = vpop.f32.mrb[0].mxu0
      %5204 = vmatprep.mubr.bf16.mxu0 0
      %5205 = vmatmul.mubr.bf16.gmra.mrb[0].mxu0 %v5053
      %v5206 = vpop.f32.mrb[0].mxu0
      %v5207 = vadd.f32 0.0, %v5206
      %v5208 = vpop.f32.mrb[0].mxu0
      %v5209 = vpop.f32.mrb[0].mxu0
      %v5210 = vadd.f32 0.0, %v5209
      %v5211 = vpop.f32.mrb[0].mxu0
      %5212 = vmatprep.mubr.bf16.mxu0 0
      %5213 = vmatmul.mubr.bf16.gmra.mrb[0].mxu0 %v5055
      %v5214 = vpop.f32.mrb[0].mxu0
      %v5215 = vadd.f32 0.0, %v5214
      %v5216 = vpop.f32.mrb[0].mxu0
      %v5217 = vpop.f32.mrb[0].mxu0
      %v5218 = vadd.f32 0.0, %v5217
      %v5219 = vpop.f32.mrb[0].mxu0
      %5220 = vmatprep.mubr.bf16.mxu0 0
      %5221 = vmatmul.mubr.bf16.gmra.mrb[0].mxu0 %v5057
      %v5222 = vpop.f32.mrb[0].mxu0
      %v5223 = vadd.f32 0.0, %v5222
      %v5224 = vpop.f32.mrb[0].mxu0
      %v5225 = vpop.f32.mrb[0].mxu0
      %v5226 = vadd.f32 0.0, %v5225
      %v5227 = vpop.f32.mrb[0].mxu0
      %5228 = vmatprep.mubr.bf16.mxu0 0
      %5229 = vmatmul.mubr.bf16.gmra.mrb[0].mxu0 %v5059
      %v5230 = vpop.f32.mrb[0].mxu0
      %v5231 = vadd.f32 0.0, %v5230
      %v5232 = vpop.f32.mrb[0].mxu0
      %v5233 = vpop.f32.mrb[0].mxu0
      %v5234 = vadd.f32 0.0, %v5233
      %v5235 = vpop.f32.mrb[0].mxu0
      %5236 = vmatprep.mubr.bf16.mxu0 0
      %5237 = vmatmul.mubr.bf16.gmra.mrb[0].mxu0 %v5061
      %v5238 = vpop.f32.mrb[0].mxu0
      %v5239 = vadd.f32 0.0, %v5238
      %v5240 = vpop.f32.mrb[0].mxu0
      %v5241 = vpop.f32.mrb[0].mxu0
      %v5242 = vadd.f32 0.0, %v5241
      %v5243 = vpop.f32.mrb[0].mxu0
      %5244 = vmatprep.mubr.bf16.mxu0 0
      %5245 = vmatmul.mubr.bf16.gmra.mrb[0].mxu0 %v5063
      %v5246 = vpop.f32.mrb[0].mxu0
      %v5247 = vadd.f32 0.0, %v5246
      %v5248 = vpop.f32.mrb[0].mxu0
      %v5249 = vpop.f32.mrb[0].mxu0
      %v5250 = vadd.f32 0.0, %v5249
      %v5251 = vpop.f32.mrb[0].mxu0
      %5252 = vmatprep.mubr.bf16.mxu0 0
      %5253 = vmatmul.mubr.bf16.gmra.mrb[0].mxu0 %v5065
      %v5254 = vpop.f32.mrb[0].mxu0
      %v5255 = vadd.f32 0.0, %v5254
      %v5256 = vpop.f32.mrb[0].mxu0
      %v5257 = vpop.f32.mrb[0].mxu0
      %v5258 = vadd.f32 0.0, %v5257
      %v5259 = vpop.f32.mrb[0].mxu0
      %5260 = vmatprep.mubr.bf16.mxu0 0
      %5261 = vmatmul.mubr.bf16.gmra.mrb[0].mxu0 %v5067
      %v5262 = vpop.f32.mrb[0].mxu0
      %v5263 = vadd.f32 0.0, %v5262
      %v5264 = vpop.f32.mrb[0].mxu0
      %v5265 = vpop.f32.mrb[0].mxu0
      %v5266 = vadd.f32 0.0, %v5265
      %v5267 = vpop.f32.mrb[0].mxu0
      %5268 = vmatprep.mubr.bf16.mxu0 0
      %5269 = vmatmul.mubr.bf16.gmra.mrb[0].mxu0 %v5069
      %v5270 = vpop.f32.mrb[0].mxu0
      %v5271 = vadd.f32 0.0, %v5270
      %v5272 = vpop.f32.mrb[0].mxu0
      %v5273 = vpop.f32.mrb[0].mxu0
      %v5274 = vadd.f32 0.0, %v5273
      %v5275 = vpop.f32.mrb[0].mxu0
      %5276 = vmatprep.mubr.bf16.mxu0 0
      %5277 = vmatmul.mubr.bf16.gmra.mrb[0].mxu0 %v5071
      %v5278 = vpop.f32.mrb[0].mxu0
      %v5279 = vadd.f32 0.0, %v5278
      %v5280 = vpop.f32.mrb[0].mxu0
      %v5281 = vpop.f32.mrb[0].mxu0
      %v5282 = vadd.f32 0.0, %v5281
      %v5283 = vpop.f32.mrb[0].mxu0
      %5284 = vmatprep.mubr.bf16.mxu0 0
      %5285 = vmatmul.mubr.bf16.gmra.mrb[0].mxu0 %v5073
      %v5286 = vpop.f32.mrb[0].mxu0
      %v5287 = vadd.f32 0.0, %v5286
      %v5288 = vpop.f32.mrb[0].mxu0
      %v5289 = vpop.f32.mrb[0].mxu0
      %v5290 = vadd.f32 0.0, %v5289
      %v5291 = vpop.f32.mrb[0].mxu0
      %5292 = vmatprep.mubr.bf16.mxu0 0
      %5293 = vmatmul.mubr.bf16.gmra.mrb[0].mxu0 %v5075
      %v5294 = vpop.f32.mrb[0].mxu0
      %v5295 = vadd.f32 0.0, %v5294
      %v5296 = vpop.f32.mrb[0].mxu0
      %v5297 = vpop.f32.mrb[0].mxu0
      %v5298 = vadd.f32 0.0, %v5297
      %v5299 = vpop.f32.mrb[0].mxu0
      %5300 = vmatprep.mubr.bf16.mxu0 0
      %5301 = vmatmul.mubr.bf16.gmra.mrb[0].mxu0 %v5077
      %v5302 = vpop.f32.mrb[0].mxu0
      %v5303 = vadd.f32 0.0, %v5302
      %v5304 = vpop.f32.mrb[0].mxu0
      %v5305 = vpop.f32.mrb[0].mxu0
      %v5306 = vadd.f32 0.0, %v5305
      %v5307 = vpop.f32.mrb[0].mxu0
      %5308 = vmatprep.mubr.bf16.mxu0 0
      %5309 = vmatmul.mubr.bf16.gmra.mrb[0].mxu0 %v5079
      %v5310 = vpop.f32.mrb[0].mxu0
      %v5311 = vadd.f32 0.0, %v5310
      %v5312 = vpop.f32.mrb[0].mxu0
      %v5313 = vpop.f32.mrb[0].mxu0
      %v5314 = vadd.f32 0.0, %v5313
      %v5315 = vpop.f32.mrb[0].mxu0
      %5316 = vmatprep.mubr.bf16.mxu0 0
      %5317 = vmatmul.mubr.bf16.gmra.mrb[0].mxu0 %v5081
      %v5318 = vpop.f32.mrb[0].mxu0
      %v5319 = vadd.f32 0.0, %v5318
      %v5320 = vpop.f32.mrb[0].mxu0
      %v5321 = vpop.f32.mrb[0].mxu0
      %v5322 = vadd.f32 0.0, %v5321
      %v5323 = vpop.f32.mrb[0].mxu0
      %5324 = vdwg.mxu0
      %vm5325 = vsmask.f32 1280
      %v5327 = vshrl.u32 %v4973, 16
      %v5329 = vrot.slane %v5327, 6
      %v5330 = vshll.u32 %v4973, 16
      %v5332 = vrot.slane %v5330, 7
      %v5333 = vor.u32 %v5329, %v5332
      %v5335 = vshrl.u32 %v4974, 16
      %v5337 = vrot.slane %v5335, 6
      %v5338 = vshll.u32 %v4974, 16
      %v5340 = vrot.slane %v5338, 7
      %v5341 = vor.u32 %v5337, %v5340
      %v5342 = vsel %vm5325, %v5333, %v5341
      %v5344 = vshrl.u32 %v4975, 16
      %v5346 = vrot.slane %v5344, 6
      %v5347 = vshll.u32 %v4975, 16
      %v5349 = vrot.slane %v5347, 7
      %v5350 = vor.u32 %v5346, %v5349
      %v5351 = vsel %vm5325, %v5341, %v5350
      %v5353 = vshrl.u32 %v4976, 16
      %v5355 = vrot.slane %v5353, 6
      %v5356 = vshll.u32 %v4976, 16
      %v5358 = vrot.slane %v5356, 7
      %v5359 = vor.u32 %v5355, %v5358
      %v5360 = vsel %vm5325, %v5350, %v5359
      %v5362 = vshrl.u32 %v4977, 16
      %v5364 = vrot.slane %v5362, 6
      %v5365 = vshll.u32 %v4977, 16
      %v5367 = vrot.slane %v5365, 7
      %v5368 = vor.u32 %v5364, %v5367
      %v5369 = vsel %vm5325, %v5359, %v5368
      %v5371 = vshrl.u32 %v4978, 16
      %v5373 = vrot.slane %v5371, 6
      %v5374 = vshll.u32 %v4978, 16
      %v5376 = vrot.slane %v5374, 7
      %v5377 = vor.u32 %v5373, %v5376
      %v5378 = vsel %vm5325, %v5368, %v5377
      %v5380 = vshrl.u32 %v4979, 16
      %v5382 = vrot.slane %v5380, 6
      %v5383 = vshll.u32 %v4979, 16
      %v5385 = vrot.slane %v5383, 7
      %v5386 = vor.u32 %v5382, %v5385
      %v5387 = vsel %vm5325, %v5377, %v5386
      %v5389 = vshrl.u32 %v4980, 16
      %v5391 = vrot.slane %v5389, 6
      %v5392 = vshll.u32 %v4980, 16
      %v5394 = vrot.slane %v5392, 7
      %v5395 = vor.u32 %v5391, %v5394
      %v5396 = vsel %vm5325, %v5386, %v5395
      %v5398 = vshrl.u32 %v4981, 16
      %v5400 = vrot.slane %v5398, 6
      %v5401 = vshll.u32 %v4981, 16
      %v5403 = vrot.slane %v5401, 7
      %v5404 = vor.u32 %v5400, %v5403
      %v5405 = vsel %vm5325, %v5395, %v5404
      %v5407 = vshrl.u32 %v4982, 16
      %v5409 = vrot.slane %v5407, 6
      %v5410 = vshll.u32 %v4982, 16
      %v5412 = vrot.slane %v5410, 7
      %v5413 = vor.u32 %v5409, %v5412
      %v5414 = vsel %vm5325, %v5404, %v5413
      %v5416 = vshrl.u32 %v4983, 16
      %v5418 = vrot.slane %v5416, 6
      %v5419 = vshll.u32 %v4983, 16
      %v5421 = vrot.slane %v5419, 7
      %v5422 = vor.u32 %v5418, %v5421
      %v5423 = vsel %vm5325, %v5413, %v5422
      %v5425 = vshrl.u32 %v4984, 16
      %v5427 = vrot.slane %v5425, 6
      %v5428 = vshll.u32 %v4984, 16
      %v5430 = vrot.slane %v5428, 7
      %v5431 = vor.u32 %v5427, %v5430
      %v5432 = vsel %vm5325, %v5422, %v5431
      %v5434 = vshrl.u32 %v4985, 16
      %v5436 = vrot.slane %v5434, 6
      %v5437 = vshll.u32 %v4985, 16
      %v5439 = vrot.slane %v5437, 7
      %v5440 = vor.u32 %v5436, %v5439
      %v5441 = vsel %vm5325, %v5431, %v5440
      %v5443 = vshrl.u32 %v4986, 16
      %v5445 = vrot.slane %v5443, 6
      %v5446 = vshll.u32 %v4986, 16
      %v5448 = vrot.slane %v5446, 7
      %v5449 = vor.u32 %v5445, %v5448
      %v5450 = vsel %vm5325, %v5440, %v5449
      %v5452 = vshrl.u32 %v4987, 16
      %v5454 = vrot.slane %v5452, 6
      %v5455 = vshll.u32 %v4987, 16
      %v5457 = vrot.slane %v5455, 7
      %v5458 = vor.u32 %v5454, %v5457
      %v5459 = vsel %vm5325, %v5449, %v5458
      %v5461 = vshrl.u32 %v4988, 16
      %v5463 = vrot.slane %v5461, 6
      %v5464 = vshll.u32 %v4988, 16
      %v5466 = vrot.slane %v5464, 7
      %v5467 = vor.u32 %v5463, %v5466
      %v5468 = vsel %vm5325, %v5458, %v5467
      %v5470 = vshrl.u32 %v4989, 16
      %v5472 = vrot.slane %v5470, 6
      %v5473 = vshll.u32 %v4989, 16
      %v5475 = vrot.slane %v5473, 7
      %v5476 = vor.u32 %v5472, %v5475
      %v5477 = vsel %vm5325, %v5467, %v5476
      %v5479 = vshrl.u32 %v4990, 16
      %v5481 = vrot.slane %v5479, 6
      %v5482 = vshll.u32 %v4990, 16
      %v5484 = vrot.slane %v5482, 7
      %v5485 = vor.u32 %v5481, %v5484
      %v5486 = vsel %vm5325, %v5476, %v5485
      %v5488 = vshrl.u32 %v4991, 16
      %v5490 = vrot.slane %v5488, 6
      %v5491 = vshll.u32 %v4991, 16
      %v5493 = vrot.slane %v5491, 7
      %v5494 = vor.u32 %v5490, %v5493
      %v5495 = vsel %vm5325, %v5485, %v5494
      %v5530 = vunpack.c.l.b16 %v4992
      %v5531 = vunpack.c.l.b16 %v4993
      %v5532 = vunpack.c.l.b16 %v4994
      %v5533 = vunpack.c.l.b16 %v4995
      %v5534 = vunpack.c.l.b16 %v4996
      %v5535 = vunpack.c.l.b16 %v4997
      %v5536 = vunpack.c.l.b16 %v4998
      %v5537 = vunpack.c.l.b16 %v4999
      %v5538 = vunpack.c.l.b16 %v5000
      %v5539 = vunpack.c.l.b16 %v5001
      %v5540 = vunpack.c.l.b16 %v5002
      %v5541 = vunpack.c.l.b16 %v5003
      %v5542 = vunpack.c.l.b16 %v5004
      %v5543 = vunpack.c.l.b16 %v5005
      %v5544 = vunpack.c.l.b16 %v5006
      %v5545 = vunpack.c.l.b16 %v5007
      %v5546 = vpack.c.b16 %v5531, %v5530
      %v5547 = vpack.c.b16 %v5533, %v5532
      %v5548 = vpack.c.b16 %v5535, %v5534
      %v5549 = vpack.c.b16 %v5537, %v5536
      %v5550 = vpack.c.b16 %v5539, %v5538
      %v5551 = vpack.c.b16 %v5541, %v5540
      %v5552 = vpack.c.b16 %v5543, %v5542
      %v5553 = vpack.c.b16 %v5545, %v5544
      %5562 = vmatprep.subr.bf16.mxu0 0
      %5563 = vmatpush1.bf16.msra.mxu0 %v5546
      %5564 = vmatprep.subr.bf16.mxu0 0
      %5565 = vmatpush1.bf16.msra.mxu0 %v5547
      %5566 = vmatprep.subr.bf16.mxu0 0
      %5567 = vmatpush1.bf16.msra.mxu0 %v5548
      %5568 = vmatprep.subr.bf16.mxu0 0
      %5569 = vmatpush1.bf16.msra.mxu0 %v5549
      %5570 = vmatprep.subr.bf16.mxu0 0
      %5571 = vmatpush1.bf16.msra.mxu0 %v5550
      %5572 = vmatprep.subr.bf16.mxu0 0
      %5573 = vmatpush1.bf16.msra.mxu0 %v5551
      %5574 = vmatprep.subr.bf16.mxu0 0
      %5575 = vmatpush1.bf16.msra.mxu0 %v5552
      %5576 = vmatprep.subr.bf16.mxu0 0
      %5577 = vmatpush1.bf16.msra.mxu0 %v5553
      %5578 = vmatprep.subr.bf16.mxu0 0
      %5579 = vmatpush1.bf16.msra.mxu0 0
      %5580 = vmatprep.subr.bf16.mxu0 0
      %5581 = vmatpush1.bf16.msra.mxu0 0
      %5582 = vmatprep.subr.bf16.mxu0 0
      %5583 = vmatpush1.bf16.msra.mxu0 0
      %5584 = vmatprep.subr.bf16.mxu0 0
      %5585 = vmatpush1.bf16.msra.mxu0 0
      %5586 = vmatprep.subr.bf16.mxu0 0
      %5587 = vmatpush1.bf16.msra.mxu0 0
      %5588 = vmatprep.subr.bf16.mxu0 0
      %5589 = vmatpush1.bf16.msra.mxu0 0
      %5590 = vmatprep.subr.bf16.mxu0 0
      %5591 = vmatpush1.bf16.msra.mxu0 0
      %5592 = vmatprep.subr.bf16.mxu0 0
      %5593 = vmatpush1.bf16.msra.mxu0 0
      %5594 = vmatprep.mubr.bf16.mxu0 0
      %5595 = vmatmul.mubr.bf16.gmra.mrb[0].mxu0 %v5342
      %v5596 = vpop.f32.mrb[0].mxu0
      %v5597 = vadd.f32 %v5183, %v5596
      %v5598 = vpop.f32.mrb[0].mxu0
      %v5599 = vpop.f32.mrb[0].mxu0
      %v5600 = vadd.f32 %v5186, %v5599
      %v5601 = vpop.f32.mrb[0].mxu0
      %5602 = vmatprep.mubr.bf16.mxu0 0
      %5603 = vmatmul.mubr.bf16.gmra.mrb[0].mxu0 %v5351
      %v5604 = vpop.f32.mrb[0].mxu0
      %v5605 = vadd.f32 %v5191, %v5604
      %v5606 = vpop.f32.mrb[0].mxu0
      %v5607 = vpop.f32.mrb[0].mxu0
      %v5608 = vadd.f32 %v5194, %v5607
      %v5609 = vpop.f32.mrb[0].mxu0
      %5610 = vmatprep.mubr.bf16.mxu0 0
      %5611 = vmatmul.mubr.bf16.gmra.mrb[0].mxu0 %v5360
      %v5612 = vpop.f32.mrb[0].mxu0
      %v5613 = vadd.f32 %v5199, %v5612
      %v5614 = vpop.f32.mrb[0].mxu0
      %v5615 = vpop.f32.mrb[0].mxu0
      %v5616 = vadd.f32 %v5202, %v5615
      %v5617 = vpop.f32.mrb[0].mxu0
      %5618 = vmatprep.mubr.bf16.mxu0 0
      %5619 = vmatmul.mubr.bf16.gmra.mrb[0].mxu0 %v5369
      %v5620 = vpop.f32.mrb[0].mxu0
      %v5621 = vadd.f32 %v5207, %v5620
      %v5622 = vpop.f32.mrb[0].mxu0
      %v5623 = vpop.f32.mrb[0].mxu0
      %v5624 = vadd.f32 %v5210, %v5623
      %v5625 = vpop.f32.mrb[0].mxu0
      %5626 = vmatprep.mubr.bf16.mxu0 0
      %5627 = vmatmul.mubr.bf16.gmra.mrb[0].mxu0 %v5378
      %v5628 = vpop.f32.mrb[0].mxu0
      %v5629 = vadd.f32 %v5215, %v5628
      %v5630 = vpop.f32.mrb[0].mxu0
      %v5631 = vpop.f32.mrb[0].mxu0
      %v5632 = vadd.f32 %v5218, %v5631
      %v5633 = vpop.f32.mrb[0].mxu0
      %5634 = vmatprep.mubr.bf16.mxu0 0
      %5635 = vmatmul.mubr.bf16.gmra.mrb[0].mxu0 %v5387
      %v5636 = vpop.f32.mrb[0].mxu0
      %v5637 = vadd.f32 %v5223, %v5636
      %v5638 = vpop.f32.mrb[0].mxu0
      %v5639 = vpop.f32.mrb[0].mxu0
      %v5640 = vadd.f32 %v5226, %v5639
      %v5641 = vpop.f32.mrb[0].mxu0
      %5642 = vmatprep.mubr.bf16.mxu0 0
      %5643 = vmatmul.mubr.bf16.gmra.mrb[0].mxu0 %v5396
      %v5644 = vpop.f32.mrb[0].mxu0
      %v5645 = vadd.f32 %v5231, %v5644
      %v5646 = vpop.f32.mrb[0].mxu0
      %v5647 = vpop.f32.mrb[0].mxu0
      %v5648 = vadd.f32 %v5234, %v5647
      %v5649 = vpop.f32.mrb[0].mxu0
      %5650 = vmatprep.mubr.bf16.mxu0 0
      %5651 = vmatmul.mubr.bf16.gmra.mrb[0].mxu0 %v5405
      %v5652 = vpop.f32.mrb[0].mxu0
      %v5653 = vadd.f32 %v5239, %v5652
      %v5654 = vpop.f32.mrb[0].mxu0
      %v5655 = vpop.f32.mrb[0].mxu0
      %v5656 = vadd.f32 %v5242, %v5655
      %v5657 = vpop.f32.mrb[0].mxu0
      %5658 = vmatprep.mubr.bf16.mxu0 0
      %5659 = vmatmul.mubr.bf16.gmra.mrb[0].mxu0 %v5414
      %v5660 = vpop.f32.mrb[0].mxu0
      %v5661 = vadd.f32 %v5247, %v5660
      %v5662 = vpop.f32.mrb[0].mxu0
      %v5663 = vpop.f32.mrb[0].mxu0
      %v5664 = vadd.f32 %v5250, %v5663
      %v5665 = vpop.f32.mrb[0].mxu0
      %5666 = vmatprep.mubr.bf16.mxu0 0
      %5667 = vmatmul.mubr.bf16.gmra.mrb[0].mxu0 %v5423
      %v5668 = vpop.f32.mrb[0].mxu0
      %v5669 = vadd.f32 %v5255, %v5668
      %v5670 = vpop.f32.mrb[0].mxu0
      %v5671 = vpop.f32.mrb[0].mxu0
      %v5672 = vadd.f32 %v5258, %v5671
      %v5673 = vpop.f32.mrb[0].mxu0
      %5674 = vmatprep.mubr.bf16.mxu0 0
      %5675 = vmatmul.mubr.bf16.gmra.mrb[0].mxu0 %v5432
      %v5676 = vpop.f32.mrb[0].mxu0
      %v5677 = vadd.f32 %v5263, %v5676
      %v5678 = vpop.f32.mrb[0].mxu0
      %v5679 = vpop.f32.mrb[0].mxu0
      %v5680 = vadd.f32 %v5266, %v5679
      %v5681 = vpop.f32.mrb[0].mxu0
      %5682 = vmatprep.mubr.bf16.mxu0 0
      %5683 = vmatmul.mubr.bf16.gmra.mrb[0].mxu0 %v5441
      %v5684 = vpop.f32.mrb[0].mxu0
      %v5685 = vadd.f32 %v5271, %v5684
      %v5686 = vpop.f32.mrb[0].mxu0
      %v5687 = vpop.f32.mrb[0].mxu0
      %v5688 = vadd.f32 %v5274, %v5687
      %v5689 = vpop.f32.mrb[0].mxu0
      %5690 = vmatprep.mubr.bf16.mxu0 0
      %5691 = vmatmul.mubr.bf16.gmra.mrb[0].mxu0 %v5450
      %v5692 = vpop.f32.mrb[0].mxu0
      %v5693 = vadd.f32 %v5279, %v5692
      %v5694 = vpop.f32.mrb[0].mxu0
      %v5695 = vpop.f32.mrb[0].mxu0
      %v5696 = vadd.f32 %v5282, %v5695
      %v5697 = vpop.f32.mrb[0].mxu0
      %5698 = vmatprep.mubr.bf16.mxu0 0
      %5699 = vmatmul.mubr.bf16.gmra.mrb[0].mxu0 %v5459
      %v5700 = vpop.f32.mrb[0].mxu0
      %v5701 = vadd.f32 %v5287, %v5700
      %v5702 = vpop.f32.mrb[0].mxu0
      %v5703 = vpop.f32.mrb[0].mxu0
      %v5704 = vadd.f32 %v5290, %v5703
      %v5705 = vpop.f32.mrb[0].mxu0
      %5706 = vmatprep.mubr.bf16.mxu0 0
      %5707 = vmatmul.mubr.bf16.gmra.mrb[0].mxu0 %v5468
      %v5708 = vpop.f32.mrb[0].mxu0
      %v5709 = vadd.f32 %v5295, %v5708
      %v5710 = vpop.f32.mrb[0].mxu0
      %v5711 = vpop.f32.mrb[0].mxu0
      %v5712 = vadd.f32 %v5298, %v5711
      %v5713 = vpop.f32.mrb[0].mxu0
      %5714 = vmatprep.mubr.bf16.mxu0 0
      %5715 = vmatmul.mubr.bf16.gmra.mrb[0].mxu0 %v5477
      %v5716 = vpop.f32.mrb[0].mxu0
      %v5717 = vadd.f32 %v5303, %v5716
      %v5718 = vpop.f32.mrb[0].mxu0
      %v5719 = vpop.f32.mrb[0].mxu0
      %v5720 = vadd.f32 %v5306, %v5719
      %v5721 = vpop.f32.mrb[0].mxu0
      %5722 = vmatprep.mubr.bf16.mxu0 0
      %5723 = vmatmul.mubr.bf16.gmra.mrb[0].mxu0 %v5486
      %v5724 = vpop.f32.mrb[0].mxu0
      %v5725 = vadd.f32 %v5311, %v5724
      %v5726 = vpop.f32.mrb[0].mxu0
      %v5727 = vpop.f32.mrb[0].mxu0
      %v5728 = vadd.f32 %v5314, %v5727
      %v5729 = vpop.f32.mrb[0].mxu0
      %5730 = vmatprep.mubr.bf16.mxu0 0
      %5731 = vmatmul.mubr.bf16.gmra.mrb[0].mxu0 %v5495
      %v5732 = vpop.f32.mrb[0].mxu0
      %v5733 = vadd.f32 %v5319, %v5732
      %v5734 = vpop.f32.mrb[0].mxu0
      %v5735 = vpop.f32.mrb[0].mxu0
      %v5736 = vadd.f32 %v5322, %v5735
      %v5737 = vpop.f32.mrb[0].mxu0
      %5738 = vdwg.mxu0
      %v5739 = vld [vmem:[#allocation2 + $0x90] sm:$0xff]
      %v5740 = vld [vmem:[%s3 + $0x80] sm:$0xf]
      %v5741 = vld [vmem:[%s3 + $0x84] sm:$0xf]
      %v5742 = vld [vmem:[%s3 + $0x88] sm:$0xf]
      %v5743 = vld [vmem:[%s3 + $0x8c] sm:$0xf]
      %v5744 = vld [vmem:[%s3 + $0x90] sm:$0xf]
      %v5745 = vld [vmem:[%s3 + $0x94] sm:$0xf]
      %v5746 = vld [vmem:[%s3 + $0x98] sm:$0xf]
      %v5747 = vld [vmem:[%s3 + $0x9c] sm:$0xf]
      %v5748 = vld [vmem:[%s3 + $0xa0] sm:$0xf]
      %v5749 = vld [vmem:[%s3 + $0xa4] sm:$0xf]
      %v5750 = vld [vmem:[%s3 + $0xa8] sm:$0xf]
      %v5751 = vld [vmem:[%s3 + $0xac] sm:$0xf]
      %v5752 = vld [vmem:[%s3 + $0xb0] sm:$0xf]
      %v5753 = vld [vmem:[%s3 + $0xb4] sm:$0xf]
      %v5754 = vld [vmem:[%s3 + $0xb8] sm:$0xf]
      %v5755 = vld [vmem:[%s3 + $0xbc] sm:$0xf]
      %vm5756 = vsmask.f32 256
      %v5758 = vshrl.u32 %v5008, 16
      %v5760 = vrot.slane %v5758, 7
      %v5761 = vrot.slane %v5335, 7
      %v5762 = vor.u32 %v5761, %v5338
      %v5763 = vsel %vm5756, %v5760, %v5762
      %v5764 = vrot.slane %v5344, 7
      %v5765 = vor.u32 %v5764, %v5347
      %v5766 = vsel %vm5756, %v5761, %v5765
      %v5767 = vrot.slane %v5353, 7
      %v5768 = vor.u32 %v5767, %v5356
      %v5769 = vsel %vm5756, %v5764, %v5768
      %v5770 = vrot.slane %v5362, 7
      %v5771 = vor.u32 %v5770, %v5365
      %v5772 = vsel %vm5756, %v5767, %v5771
      %v5773 = vrot.slane %v5371, 7
      %v5774 = vor.u32 %v5773, %v5374
      %v5775 = vsel %vm5756, %v5770, %v5774
      %v5776 = vrot.slane %v5380, 7
      %v5777 = vor.u32 %v5776, %v5383
      %v5778 = vsel %vm5756, %v5773, %v5777
      %v5779 = vrot.slane %v5389, 7
      %v5780 = vor.u32 %v5779, %v5392
      %v5781 = vsel %vm5756, %v5776, %v5780
      %v5782 = vrot.slane %v5398, 7
      %v5783 = vor.u32 %v5782, %v5401
      %v5784 = vsel %vm5756, %v5779, %v5783
      %v5785 = vrot.slane %v5407, 7
      %v5786 = vor.u32 %v5785, %v5410
      %v5787 = vsel %vm5756, %v5782, %v5786
      %v5788 = vrot.slane %v5416, 7
      %v5789 = vor.u32 %v5788, %v5419
      %v5790 = vsel %vm5756, %v5785, %v5789
      %v5791 = vrot.slane %v5425, 7
      %v5792 = vor.u32 %v5791, %v5428
      %v5793 = vsel %vm5756, %v5788, %v5792
      %v5794 = vrot.slane %v5434, 7
      %v5795 = vor.u32 %v5794, %v5437
      %v5796 = vsel %vm5756, %v5791, %v5795
      %v5797 = vrot.slane %v5443, 7
      %v5798 = vor.u32 %v5797, %v5446
      %v5799 = vsel %vm5756, %v5794, %v5798
      %v5800 = vrot.slane %v5452, 7
      %v5801 = vor.u32 %v5800, %v5455
      %v5802 = vsel %vm5756, %v5797, %v5801
      %v5803 = vrot.slane %v5461, 7
      %v5804 = vor.u32 %v5803, %v5464
      %v5805 = vsel %vm5756, %v5800, %v5804
      %v5806 = vrot.slane %v5470, 7
      %v5807 = vor.u32 %v5806, %v5473
      %v5808 = vsel %vm5756, %v5803, %v5807
      %v5809 = vrot.slane %v5479, 7
      %v5810 = vor.u32 %v5809, %v5482
      %v5811 = vsel %vm5756, %v5806, %v5810
      %v5813 = vshrl.u32 %v5739, 16
      %v5815 = vrot.slane %v5813, 7
      %v5816 = vshll.u32 %v5739, 16
      %v5818 = vor.u32 %v5815, %v5816
      %v5819 = vsel %vm5756, %v5809, %v5818
      %v5854 = vunpack.c.l.b16 %v5740
      %v5855 = vunpack.c.l.b16 %v5741
      %v5856 = vunpack.c.l.b16 %v5742
      %v5857 = vunpack.c.l.b16 %v5743
      %v5858 = vunpack.c.l.b16 %v5744
      %v5859 = vunpack.c.l.b16 %v5745
      %v5860 = vunpack.c.l.b16 %v5746
      %v5861 = vunpack.c.l.b16 %v5747
      %v5862 = vunpack.c.l.b16 %v5748
      %v5863 = vunpack.c.l.b16 %v5749
      %v5864 = vunpack.c.l.b16 %v5750
      %v5865 = vunpack.c.l.b16 %v5751
      %v5866 = vunpack.c.l.b16 %v5752
      %v5867 = vunpack.c.l.b16 %v5753
      %v5868 = vunpack.c.l.b16 %v5754
      %v5869 = vunpack.c.l.b16 %v5755
      %v5870 = vpack.c.b16 %v5855, %v5854
      %v5871 = vpack.c.b16 %v5857, %v5856
      %v5872 = vpack.c.b16 %v5859, %v5858
      %v5873 = vpack.c.b16 %v5861, %v5860
      %v5874 = vpack.c.b16 %v5863, %v5862
      %v5875 = vpack.c.b16 %v5865, %v5864
      %v5876 = vpack.c.b16 %v5867, %v5866
      %v5877 = vpack.c.b16 %v5869, %v5868
      %5886 = vmatprep.subr.bf16.mxu0 0
      %5887 = vmatpush1.bf16.msra.mxu0 %v5870
      %5888 = vmatprep.subr.bf16.mxu0 0
      %5889 = vmatpush1.bf16.msra.mxu0 %v5871
      %5890 = vmatprep.subr.bf16.mxu0 0
      %5891 = vmatpush1.bf16.msra.mxu0 %v5872
      %5892 = vmatprep.subr.bf16.mxu0 0
      %5893 = vmatpush1.bf16.msra.mxu0 %v5873
      %5894 = vmatprep.subr.bf16.mxu0 0
      %5895 = vmatpush1.bf16.msra.mxu0 %v5874
      %5896 = vmatprep.subr.bf16.mxu0 0
      %5897 = vmatpush1.bf16.msra.mxu0 %v5875
      %5898 = vmatprep.subr.bf16.mxu0 0
      %5899 = vmatpush1.bf16.msra.mxu0 %v5876
      %5900 = vmatprep.subr.bf16.mxu0 0
      %5901 = vmatpush1.bf16.msra.mxu0 %v5877
      %5902 = vmatprep.subr.bf16.mxu0 0
      %5903 = vmatpush1.bf16.msra.mxu0 0
      %5904 = vmatprep.subr.bf16.mxu0 0
      %5905 = vmatpush1.bf16.msra.mxu0 0
      %5906 = vmatprep.subr.bf16.mxu0 0
      %5907 = vmatpush1.bf16.msra.mxu0 0
      %5908 = vmatprep.subr.bf16.mxu0 0
      %5909 = vmatpush1.bf16.msra.mxu0 0
      %5910 = vmatprep.subr.bf16.mxu0 0
      %5911 = vmatpush1.bf16.msra.mxu0 0
      %5912 = vmatprep.subr.bf16.mxu0 0
      %5913 = vmatpush1.bf16.msra.mxu0 0
      %5914 = vmatprep.subr.bf16.mxu0 0
      %5915 = vmatpush1.bf16.msra.mxu0 0
      %5916 = vmatprep.subr.bf16.mxu0 0
      %5917 = vmatpush1.bf16.msra.mxu0 0
      %5918 = vmatprep.mubr.bf16.mxu0 0
      %5919 = vmatmul.mubr.bf16.gmra.mrb[0].mxu0 %v5763
      %v5920 = vpop.f32.mrb[0].mxu0
      %v5921 = vadd.f32 0.0, %v5920
      %v5922 = vpop.f32.mrb[0].mxu0
      %v5923 = vpop.f32.mrb[0].mxu0
      %v5924 = vadd.f32 0.0, %v5923
      %v5925 = vpop.f32.mrb[0].mxu0
      %5926 = vmatprep.mubr.bf16.mxu0 0
      %5927 = vmatmul.mubr.bf16.gmra.mrb[0].mxu0 %v5766
      %v5928 = vpop.f32.mrb[0].mxu0
      %v5929 = vadd.f32 0.0, %v5928
      %v5930 = vpop.f32.mrb[0].mxu0
      %v5931 = vpop.f32.mrb[0].mxu0
      %v5932 = vadd.f32 0.0, %v5931
      %v5933 = vpop.f32.mrb[0].mxu0
      %5934 = vmatprep.mubr.bf16.mxu0 0
      %5935 = vmatmul.mubr.bf16.gmra.mrb[0].mxu0 %v5769
      %v5936 = vpop.f32.mrb[0].mxu0
      %v5937 = vadd.f32 0.0, %v5936
      %v5938 = vpop.f32.mrb[0].mxu0
      %v5939 = vpop.f32.mrb[0].mxu0
      %v5940 = vadd.f32 0.0, %v5939
      %v5941 = vpop.f32.mrb[0].mxu0
      %5942 = vmatprep.mubr.bf16.mxu0 0
      %5943 = vmatmul.mubr.bf16.gmra.mrb[0].mxu0 %v5772
      %v5944 = vpop.f32.mrb[0].mxu0
      %v5945 = vadd.f32 0.0, %v5944
      %v5946 = vpop.f32.mrb[0].mxu0
      %v5947 = vpop.f32.mrb[0].mxu0
      %v5948 = vadd.f32 0.0, %v5947
      %v5949 = vpop.f32.mrb[0].mxu0
      %5950 = vmatprep.mubr.bf16.mxu0 0
      %5951 = vmatmul.mubr.bf16.gmra.mrb[0].mxu0 %v5775
      %v5952 = vpop.f32.mrb[0].mxu0
      %v5953 = vadd.f32 0.0, %v5952
      %v5954 = vpop.f32.mrb[0].mxu0
      %v5955 = vpop.f32.mrb[0].mxu0
      %v5956 = vadd.f32 0.0, %v5955
      %v5957 = vpop.f32.mrb[0].mxu0
      %5958 = vmatprep.mubr.bf16.mxu0 0
      %5959 = vmatmul.mubr.bf16.gmra.mrb[0].mxu0 %v5778
      %v5960 = vpop.f32.mrb[0].mxu0
      %v5961 = vadd.f32 0.0, %v5960
      %v5962 = vpop.f32.mrb[0].mxu0
      %v5963 = vpop.f32.mrb[0].mxu0
      %v5964 = vadd.f32 0.0, %v5963
      %v5965 = vpop.f32.mrb[0].mxu0
      %5966 = vmatprep.mubr.bf16.mxu0 0
      %5967 = vmatmul.mubr.bf16.gmra.mrb[0].mxu0 %v5781
      %v5968 = vpop.f32.mrb[0].mxu0
      %v5969 = vadd.f32 0.0, %v5968
      %v5970 = vpop.f32.mrb[0].mxu0
      %v5971 = vpop.f32.mrb[0].mxu0
      %v5972 = vadd.f32 0.0, %v5971
      %v5973 = vpop.f32.mrb[0].mxu0
      %5974 = vmatprep.mubr.bf16.mxu0 0
      %5975 = vmatmul.mubr.bf16.gmra.mrb[0].mxu0 %v5784
      %v5976 = vpop.f32.mrb[0].mxu0
      %v5977 = vadd.f32 0.0, %v5976
      %v5978 = vpop.f32.mrb[0].mxu0
      %v5979 = vpop.f32.mrb[0].mxu0
      %v5980 = vadd.f32 0.0, %v5979
      %v5981 = vpop.f32.mrb[0].mxu0
      %5982 = vmatprep.mubr.bf16.mxu0 0
      %5983 = vmatmul.mubr.bf16.gmra.mrb[0].mxu0 %v5787
      %v5984 = vpop.f32.mrb[0].mxu0
      %v5985 = vadd.f32 0.0, %v5984
      %v5986 = vpop.f32.mrb[0].mxu0
      %v5987 = vpop.f32.mrb[0].mxu0
      %v5988 = vadd.f32 0.0, %v5987
      %v5989 = vpop.f32.mrb[0].mxu0
      %5990 = vmatprep.mubr.bf16.mxu0 0
      %5991 = vmatmul.mubr.bf16.gmra.mrb[0].mxu0 %v5790
      %v5992 = vpop.f32.mrb[0].mxu0
      %v5993 = vadd.f32 0.0, %v5992
      %v5994 = vpop.f32.mrb[0].mxu0
      %v5995 = vpop.f32.mrb[0].mxu0
      %v5996 = vadd.f32 0.0, %v5995
      %v5997 = vpop.f32.mrb[0].mxu0
      %5998 = vmatprep.mubr.bf16.mxu0 0
      %5999 = vmatmul.mubr.bf16.gmra.mrb[0].mxu0 %v5793
      %v6000 = vpop.f32.mrb[0].mxu0
      %v6001 = vadd.f32 0.0, %v6000
      %v6002 = vpop.f32.mrb[0].mxu0
      %v6003 = vpop.f32.mrb[0].mxu0
      %v6004 = vadd.f32 0.0, %v6003
      %v6005 = vpop.f32.mrb[0].mxu0
      %6006 = vmatprep.mubr.bf16.mxu0 0
      %6007 = vmatmul.mubr.bf16.gmra.mrb[0].mxu0 %v5796
      %v6008 = vpop.f32.mrb[0].mxu0
      %v6009 = vadd.f32 0.0, %v6008
      %v6010 = vpop.f32.mrb[0].mxu0
      %v6011 = vpop.f32.mrb[0].mxu0
      %v6012 = vadd.f32 0.0, %v6011
      %v6013 = vpop.f32.mrb[0].mxu0
      %6014 = vmatprep.mubr.bf16.mxu0 0
      %6015 = vmatmul.mubr.bf16.gmra.mrb[0].mxu0 %v5799
      %v6016 = vpop.f32.mrb[0].mxu0
      %v6017 = vadd.f32 0.0, %v6016
      %v6018 = vpop.f32.mrb[0].mxu0
      %v6019 = vpop.f32.mrb[0].mxu0
      %v6020 = vadd.f32 0.0, %v6019
      %v6021 = vpop.f32.mrb[0].mxu0
      %6022 = vmatprep.mubr.bf16.mxu0 0
      %6023 = vmatmul.mubr.bf16.gmra.mrb[0].mxu0 %v5802
      %v6024 = vpop.f32.mrb[0].mxu0
      %v6025 = vadd.f32 0.0, %v6024
      %v6026 = vpop.f32.mrb[0].mxu0
      %v6027 = vpop.f32.mrb[0].mxu0
      %v6028 = vadd.f32 0.0, %v6027
      %v6029 = vpop.f32.mrb[0].mxu0
      %6030 = vmatprep.mubr.bf16.mxu0 0
      %6031 = vmatmul.mubr.bf16.gmra.mrb[0].mxu0 %v5805
      %v6032 = vpop.f32.mrb[0].mxu0
      %v6033 = vadd.f32 0.0, %v6032
      %v6034 = vpop.f32.mrb[0].mxu0
      %v6035 = vpop.f32.mrb[0].mxu0
      %v6036 = vadd.f32 0.0, %v6035
      %v6037 = vpop.f32.mrb[0].mxu0
      %6038 = vmatprep.mubr.bf16.mxu0 0
      %6039 = vmatmul.mubr.bf16.gmra.mrb[0].mxu0 %v5808
      %v6040 = vpop.f32.mrb[0].mxu0
      %v6041 = vadd.f32 0.0, %v6040
      %v6042 = vpop.f32.mrb[0].mxu0
      %v6043 = vpop.f32.mrb[0].mxu0
      %v6044 = vadd.f32 0.0, %v6043
      %v6045 = vpop.f32.mrb[0].mxu0
      %6046 = vmatprep.mubr.bf16.mxu0 0
      %6047 = vmatmul.mubr.bf16.gmra.mrb[0].mxu0 %v5811
      %v6048 = vpop.f32.mrb[0].mxu0
      %v6049 = vadd.f32 0.0, %v6048
      %v6050 = vpop.f32.mrb[0].mxu0
      %v6051 = vpop.f32.mrb[0].mxu0
      %v6052 = vadd.f32 0.0, %v6051
      %v6053 = vpop.f32.mrb[0].mxu0
      %6054 = vmatprep.mubr.bf16.mxu0 0
      %6055 = vmatmul.mubr.bf16.gmra.mrb[0].mxu0 %v5819
      %v6056 = vpop.f32.mrb[0].mxu0
      %v6057 = vadd.f32 0.0, %v6056
      %v6058 = vpop.f32.mrb[0].mxu0
      %v6059 = vpop.f32.mrb[0].mxu0
      %v6060 = vadd.f32 0.0, %v6059
      %v6061 = vpop.f32.mrb[0].mxu0
      %6062 = vdwg.mxu0
      %v6063 = vadd.f32 %v5597, %v5921
      %v6064 = vadd.f32 %v5600, %v5924
      %v6065 = vadd.f32 %v5605, %v5929
      %v6066 = vadd.f32 %v5608, %v5932
      %v6067 = vadd.f32 %v5613, %v5937
      %v6068 = vadd.f32 %v5616, %v5940
      %v6069 = vadd.f32 %v5621, %v5945
      %v6070 = vadd.f32 %v5624, %v5948
      %v6071 = vadd.f32 %v5629, %v5953
      %v6072 = vadd.f32 %v5632, %v5956
      %v6073 = vadd.f32 %v5637, %v5961
      %v6074 = vadd.f32 %v5640, %v5964
      %v6075 = vadd.f32 %v5645, %v5969
      %v6076 = vadd.f32 %v5648, %v5972
      %v6077 = vadd.f32 %v5653, %v5977
      %v6078 = vadd.f32 %v5656, %v5980
      %v6079 = vadd.f32 %v5661, %v5985
      %v6080 = vadd.f32 %v5664, %v5988
      %v6081 = vadd.f32 %v5669, %v5993
      %v6082 = vadd.f32 %v5672, %v5996
      %v6083 = vadd.f32 %v5677, %v6001
      %v6084 = vadd.f32 %v5680, %v6004
      %v6085 = vadd.f32 %v5685, %v6009
      %v6086 = vadd.f32 %v5688, %v6012
      %v6087 = vadd.f32 %v5693, %v6017
      %v6088 = vadd.f32 %v5696, %v6020
      %v6089 = vadd.f32 %v5701, %v6025
      %v6090 = vadd.f32 %v5704, %v6028
      %v6091 = vadd.f32 %v5709, %v6033
      %v6092 = vadd.f32 %v5712, %v6036
      %v6093 = vadd.f32 %v5717, %v6041
      %v6094 = vadd.f32 %v5720, %v6044
      %v6095 = vadd.f32 %v5725, %v6049
      %v6096 = vadd.f32 %v5728, %v6052
      %v6097 = vadd.f32 %v5733, %v6057
      %v6098 = vadd.f32 %v5736, %v6060
      %v6099 = vld [vmem:[#allocation2 + $0x8] sm:$0x80]
      %v6100 = vld [vmem:[#allocation2 + $0x10] sm:$0xff]
      %v6101 = vld [vmem:[#allocation2 + $0x18] sm:$0xff]
      %v6102 = vld [vmem:[#allocation2 + $0x20] sm:$0xff]
      %v6103 = vld [vmem:[#allocation2 + $0x28] sm:$0xff]
      %v6104 = vld [vmem:[#allocation2 + $0x30] sm:$0xff]
      %v6105 = vld [vmem:[#allocation2 + $0x38] sm:$0xff]
      %v6106 = vld [vmem:[#allocation2 + $0x40] sm:$0xff]
      %v6107 = vld [vmem:[#allocation2 + $0x48] sm:$0xff]
      %v6108 = vld [vmem:[#allocation2 + $0x50] sm:$0xff]
      %v6109 = vld [vmem:[#allocation2 + $0x58] sm:$0xff]
      %v6110 = vld [vmem:[#allocation2 + $0x60] sm:$0xff]
      %v6111 = vld [vmem:[#allocation2 + $0x68] sm:$0xff]
      %v6112 = vld [vmem:[#allocation2 + $0x70] sm:$0xff]
      %v6113 = vld [vmem:[#allocation2 + $0x78] sm:$0xff]
      %v6114 = vld [vmem:[#allocation2 + $0x80] sm:$0xff]
      %v6115 = vld [vmem:[#allocation2 + $0x88] sm:$0xff]
      %v6116 = vld [vmem:[#allocation2 + $0x90] sm:$0xff]
      %v6117 = vld [vmem:[#allocation2 + $0x98] sm:$0xff]
      %v6118 = vld [vmem:[%s3 + $0xc0] sm:$0xf]
      %v6119 = vld [vmem:[%s3 + $0xc4] sm:$0xf]
      %v6120 = vld [vmem:[%s3 + $0xc8] sm:$0xf]
      %v6121 = vld [vmem:[%s3 + $0xcc] sm:$0xf]
      %v6122 = vld [vmem:[%s3 + $0xd0] sm:$0xf]
      %v6123 = vld [vmem:[%s3 + $0xd4] sm:$0xf]
      %v6124 = vld [vmem:[%s3 + $0xd8] sm:$0xf]
      %v6125 = vld [vmem:[%s3 + $0xdc] sm:$0xf]
      %v6126 = vld [vmem:[%s3 + $0xe0] sm:$0xf]
      %v6127 = vld [vmem:[%s3 + $0xe4] sm:$0xf]
      %v6128 = vld [vmem:[%s3 + $0xe8] sm:$0xf]
      %v6129 = vld [vmem:[%s3 + $0xec] sm:$0xf]
      %v6130 = vld [vmem:[%s3 + $0xf0] sm:$0xf]
      %v6131 = vld [vmem:[%s3 + $0xf4] sm:$0xf]
      %v6132 = vld [vmem:[%s3 + $0xf8] sm:$0xf]
      %v6133 = vld [vmem:[%s3 + $0xfc] sm:$0xf]
      %v6135 = vshrl.u32 %v6099, 16
      %v6137 = vrot.slane %v6135, 7
      %v6139 = vshrl.u32 %v6100, 16
      %v6141 = vrot.slane %v6139, 7
      %v6142 = vshll.u32 %v6100, 16
      %v6144 = vor.u32 %v6141, %v6142
      %v6145 = vsel %vm5756, %v6137, %v6144
      %v6147 = vshrl.u32 %v6101, 16
      %v6149 = vrot.slane %v6147, 7
      %v6150 = vshll.u32 %v6101, 16
      %v6152 = vor.u32 %v6149, %v6150
      %v6153 = vsel %vm5756, %v6141, %v6152
      %v6155 = vshrl.u32 %v6102, 16
      %v6157 = vrot.slane %v6155, 7
      %v6158 = vshll.u32 %v6102, 16
      %v6160 = vor.u32 %v6157, %v6158
      %v6161 = vsel %vm5756, %v6149, %v6160
      %v6163 = vshrl.u32 %v6103, 16
      %v6165 = vrot.slane %v6163, 7
      %v6166 = vshll.u32 %v6103, 16
      %v6168 = vor.u32 %v6165, %v6166
      %v6169 = vsel %vm5756, %v6157, %v6168
      %v6171 = vshrl.u32 %v6104, 16
      %v6173 = vrot.slane %v6171, 7
      %v6174 = vshll.u32 %v6104, 16
      %v6176 = vor.u32 %v6173, %v6174
      %v6177 = vsel %vm5756, %v6165, %v6176
      %v6179 = vshrl.u32 %v6105, 16
      %v6181 = vrot.slane %v6179, 7
      %v6182 = vshll.u32 %v6105, 16
      %v6184 = vor.u32 %v6181, %v6182
      %v6185 = vsel %vm5756, %v6173, %v6184
      %v6187 = vshrl.u32 %v6106, 16
      %v6189 = vrot.slane %v6187, 7
      %v6190 = vshll.u32 %v6106, 16
      %v6192 = vor.u32 %v6189, %v6190
      %v6193 = vsel %vm5756, %v6181, %v6192
      %v6195 = vshrl.u32 %v6107, 16
      %v6197 = vrot.slane %v6195, 7
      %v6198 = vshll.u32 %v6107, 16
      %v6200 = vor.u32 %v6197, %v6198
      %v6201 = vsel %vm5756, %v6189, %v6200
      %v6203 = vshrl.u32 %v6108, 16
      %v6205 = vrot.slane %v6203, 7
      %v6206 = vshll.u32 %v6108, 16
      %v6208 = vor.u32 %v6205, %v6206
      %v6209 = vsel %vm5756, %v6197, %v6208
      %v6211 = vshrl.u32 %v6109, 16
      %v6213 = vrot.slane %v6211, 7
      %v6214 = vshll.u32 %v6109, 16
      %v6216 = vor.u32 %v6213, %v6214
      %v6217 = vsel %vm5756, %v6205, %v6216
      %v6219 = vshrl.u32 %v6110, 16
      %v6221 = vrot.slane %v6219, 7
      %v6222 = vshll.u32 %v6110, 16
      %v6224 = vor.u32 %v6221, %v6222
      %v6225 = vsel %vm5756, %v6213, %v6224
      %v6227 = vshrl.u32 %v6111, 16
      %v6229 = vrot.slane %v6227, 7
      %v6230 = vshll.u32 %v6111, 16
      %v6232 = vor.u32 %v6229, %v6230
      %v6233 = vsel %vm5756, %v6221, %v6232
      %v6235 = vshrl.u32 %v6112, 16
      %v6237 = vrot.slane %v6235, 7
      %v6238 = vshll.u32 %v6112, 16
      %v6240 = vor.u32 %v6237, %v6238
      %v6241 = vsel %vm5756, %v6229, %v6240
      %v6243 = vshrl.u32 %v6113, 16
      %v6245 = vrot.slane %v6243, 7
      %v6246 = vshll.u32 %v6113, 16
      %v6248 = vor.u32 %v6245, %v6246
      %v6249 = vsel %vm5756, %v6237, %v6248
      %v6251 = vshrl.u32 %v6114, 16
      %v6253 = vrot.slane %v6251, 7
      %v6254 = vshll.u32 %v6114, 16
      %v6256 = vor.u32 %v6253, %v6254
      %v6257 = vsel %vm5756, %v6245, %v6256
      %v6259 = vshrl.u32 %v6115, 16
      %v6261 = vrot.slane %v6259, 7
      %v6262 = vshll.u32 %v6115, 16
      %v6264 = vor.u32 %v6261, %v6262
      %v6265 = vsel %vm5756, %v6253, %v6264
      %v6267 = vshrl.u32 %v6116, 16
      %v6269 = vrot.slane %v6267, 7
      %v6270 = vshll.u32 %v6116, 16
      %v6272 = vor.u32 %v6269, %v6270
      %v6273 = vsel %vm5756, %v6261, %v6272
      %v6275 = vshrl.u32 %v6117, 16
      %v6277 = vrot.slane %v6275, 7
      %v6278 = vshll.u32 %v6117, 16
      %v6280 = vor.u32 %v6277, %v6278
      %v6281 = vsel %vm5756, %v6269, %v6280
      %v6316 = vunpack.c.l.b16 %v6118
      %v6317 = vunpack.c.l.b16 %v6119
      %v6318 = vunpack.c.l.b16 %v6120
      %v6319 = vunpack.c.l.b16 %v6121
      %v6320 = vunpack.c.l.b16 %v6122
      %v6321 = vunpack.c.l.b16 %v6123
      %v6322 = vunpack.c.l.b16 %v6124
      %v6323 = vunpack.c.l.b16 %v6125
      %v6324 = vunpack.c.l.b16 %v6126
      %v6325 = vunpack.c.l.b16 %v6127
      %v6326 = vunpack.c.l.b16 %v6128
      %v6327 = vunpack.c.l.b16 %v6129
      %v6328 = vunpack.c.l.b16 %v6130
      %v6329 = vunpack.c.l.b16 %v6131
      %v6330 = vunpack.c.l.b16 %v6132
      %v6331 = vunpack.c.l.b16 %v6133
      %v6332 = vpack.c.b16 %v6317, %v6316
      %v6333 = vpack.c.b16 %v6319, %v6318
      %v6334 = vpack.c.b16 %v6321, %v6320
      %v6335 = vpack.c.b16 %v6323, %v6322
      %v6336 = vpack.c.b16 %v6325, %v6324
      %v6337 = vpack.c.b16 %v6327, %v6326
      %v6338 = vpack.c.b16 %v6329, %v6328
      %v6339 = vpack.c.b16 %v6331, %v6330
      %6348 = vmatprep.subr.bf16.mxu0 0
      %6349 = vmatpush1.bf16.msra.mxu0 %v6332
      %6350 = vmatprep.subr.bf16.mxu0 0
      %6351 = vmatpush1.bf16.msra.mxu0 %v6333
      %6352 = vmatprep.subr.bf16.mxu0 0
      %6353 = vmatpush1.bf16.msra.mxu0 %v6334
      %6354 = vmatprep.subr.bf16.mxu0 0
      %6355 = vmatpush1.bf16.msra.mxu0 %v6335
      %6356 = vmatprep.subr.bf16.mxu0 0
      %6357 = vmatpush1.bf16.msra.mxu0 %v6336
      %6358 = vmatprep.subr.bf16.mxu0 0
      %6359 = vmatpush1.bf16.msra.mxu0 %v6337
      %6360 = vmatprep.subr.bf16.mxu0 0
      %6361 = vmatpush1.bf16.msra.mxu0 %v6338
      %6362 = vmatprep.subr.bf16.mxu0 0
      %6363 = vmatpush1.bf16.msra.mxu0 %v6339
      %6364 = vmatprep.subr.bf16.mxu0 0
      %6365 = vmatpush1.bf16.msra.mxu0 0
      %6366 = vmatprep.subr.bf16.mxu0 0
      %6367 = vmatpush1.bf16.msra.mxu0 0
      %6368 = vmatprep.subr.bf16.mxu0 0
      %6369 = vmatpush1.bf16.msra.mxu0 0
      %6370 = vmatprep.subr.bf16.mxu0 0
      %6371 = vmatpush1.bf16.msra.mxu0 0
      %6372 = vmatprep.subr.bf16.mxu0 0
      %6373 = vmatpush1.bf16.msra.mxu0 0
      %6374 = vmatprep.subr.bf16.mxu0 0
      %6375 = vmatpush1.bf16.msra.mxu0 0
      %6376 = vmatprep.subr.bf16.mxu0 0
      %6377 = vmatpush1.bf16.msra.mxu0 0
      %6378 = vmatprep.subr.bf16.mxu0 0
      %6379 = vmatpush1.bf16.msra.mxu0 0
      %6380 = vmatprep.mubr.bf16.mxu0 0
      %6381 = vmatmul.mubr.bf16.gmra.mrb[0].mxu0 %v6145
      %v6382 = vpop.f32.mrb[0].mxu0
      %v6383 = vadd.f32 0.0, %v6382
      %v6384 = vpop.f32.mrb[0].mxu0
      %v6385 = vpop.f32.mrb[0].mxu0
      %v6386 = vadd.f32 0.0, %v6385
      %v6387 = vpop.f32.mrb[0].mxu0
      %6388 = vmatprep.mubr.bf16.mxu0 0
      %6389 = vmatmul.mubr.bf16.gmra.mrb[0].mxu0 %v6153
      %v6390 = vpop.f32.mrb[0].mxu0
      %v6391 = vadd.f32 0.0, %v6390
      %v6392 = vpop.f32.mrb[0].mxu0
      %v6393 = vpop.f32.mrb[0].mxu0
      %v6394 = vadd.f32 0.0, %v6393
      %v6395 = vpop.f32.mrb[0].mxu0
      %6396 = vmatprep.mubr.bf16.mxu0 0
      %6397 = vmatmul.mubr.bf16.gmra.mrb[0].mxu0 %v6161
      %v6398 = vpop.f32.mrb[0].mxu0
      %v6399 = vadd.f32 0.0, %v6398
      %v6400 = vpop.f32.mrb[0].mxu0
      %v6401 = vpop.f32.mrb[0].mxu0
      %v6402 = vadd.f32 0.0, %v6401
      %v6403 = vpop.f32.mrb[0].mxu0
      %6404 = vmatprep.mubr.bf16.mxu0 0
      %6405 = vmatmul.mubr.bf16.gmra.mrb[0].mxu0 %v6169
      %v6406 = vpop.f32.mrb[0].mxu0
      %v6407 = vadd.f32 0.0, %v6406
      %v6408 = vpop.f32.mrb[0].mxu0
      %v6409 = vpop.f32.mrb[0].mxu0
      %v6410 = vadd.f32 0.0, %v6409
      %v6411 = vpop.f32.mrb[0].mxu0
      %6412 = vmatprep.mubr.bf16.mxu0 0
      %6413 = vmatmul.mubr.bf16.gmra.mrb[0].mxu0 %v6177
      %v6414 = vpop.f32.mrb[0].mxu0
      %v6415 = vadd.f32 0.0, %v6414
      %v6416 = vpop.f32.mrb[0].mxu0
      %v6417 = vpop.f32.mrb[0].mxu0
      %v6418 = vadd.f32 0.0, %v6417
      %v6419 = vpop.f32.mrb[0].mxu0
      %6420 = vmatprep.mubr.bf16.mxu0 0
      %6421 = vmatmul.mubr.bf16.gmra.mrb[0].mxu0 %v6185
      %v6422 = vpop.f32.mrb[0].mxu0
      %v6423 = vadd.f32 0.0, %v6422
      %v6424 = vpop.f32.mrb[0].mxu0
      %v6425 = vpop.f32.mrb[0].mxu0
      %v6426 = vadd.f32 0.0, %v6425
      %v6427 = vpop.f32.mrb[0].mxu0
      %6428 = vmatprep.mubr.bf16.mxu0 0
      %6429 = vmatmul.mubr.bf16.gmra.mrb[0].mxu0 %v6193
      %v6430 = vpop.f32.mrb[0].mxu0
      %v6431 = vadd.f32 0.0, %v6430
      %v6432 = vpop.f32.mrb[0].mxu0
      %v6433 = vpop.f32.mrb[0].mxu0
      %v6434 = vadd.f32 0.0, %v6433
      %v6435 = vpop.f32.mrb[0].mxu0
      %6436 = vmatprep.mubr.bf16.mxu0 0
      %6437 = vmatmul.mubr.bf16.gmra.mrb[0].mxu0 %v6201
      %v6438 = vpop.f32.mrb[0].mxu0
      %v6439 = vadd.f32 0.0, %v6438
      %v6440 = vpop.f32.mrb[0].mxu0
      %v6441 = vpop.f32.mrb[0].mxu0
      %v6442 = vadd.f32 0.0, %v6441
      %v6443 = vpop.f32.mrb[0].mxu0
      %6444 = vmatprep.mubr.bf16.mxu0 0
      %6445 = vmatmul.mubr.bf16.gmra.mrb[0].mxu0 %v6209
      %v6446 = vpop.f32.mrb[0].mxu0
      %v6447 = vadd.f32 0.0, %v6446
      %v6448 = vpop.f32.mrb[0].mxu0
      %v6449 = vpop.f32.mrb[0].mxu0
      %v6450 = vadd.f32 0.0, %v6449
      %v6451 = vpop.f32.mrb[0].mxu0
      %6452 = vmatprep.mubr.bf16.mxu0 0
      %6453 = vmatmul.mubr.bf16.gmra.mrb[0].mxu0 %v6217
      %v6454 = vpop.f32.mrb[0].mxu0
      %v6455 = vadd.f32 0.0, %v6454
      %v6456 = vpop.f32.mrb[0].mxu0
      %v6457 = vpop.f32.mrb[0].mxu0
      %v6458 = vadd.f32 0.0, %v6457
      %v6459 = vpop.f32.mrb[0].mxu0
      %6460 = vmatprep.mubr.bf16.mxu0 0
      %6461 = vmatmul.mubr.bf16.gmra.mrb[0].mxu0 %v6225
      %v6462 = vpop.f32.mrb[0].mxu0
      %v6463 = vadd.f32 0.0, %v6462
      %v6464 = vpop.f32.mrb[0].mxu0
      %v6465 = vpop.f32.mrb[0].mxu0
      %v6466 = vadd.f32 0.0, %v6465
      %v6467 = vpop.f32.mrb[0].mxu0
      %6468 = vmatprep.mubr.bf16.mxu0 0
      %6469 = vmatmul.mubr.bf16.gmra.mrb[0].mxu0 %v6233
      %v6470 = vpop.f32.mrb[0].mxu0
      %v6471 = vadd.f32 0.0, %v6470
      %v6472 = vpop.f32.mrb[0].mxu0
      %v6473 = vpop.f32.mrb[0].mxu0
      %v6474 = vadd.f32 0.0, %v6473
      %v6475 = vpop.f32.mrb[0].mxu0
      %6476 = vmatprep.mubr.bf16.mxu0 0
      %6477 = vmatmul.mubr.bf16.gmra.mrb[0].mxu0 %v6241
      %v6478 = vpop.f32.mrb[0].mxu0
      %v6479 = vadd.f32 0.0, %v6478
      %v6480 = vpop.f32.mrb[0].mxu0
      %v6481 = vpop.f32.mrb[0].mxu0
      %v6482 = vadd.f32 0.0, %v6481
      %v6483 = vpop.f32.mrb[0].mxu0
      %6484 = vmatprep.mubr.bf16.mxu0 0
      %6485 = vmatmul.mubr.bf16.gmra.mrb[0].mxu0 %v6249
      %v6486 = vpop.f32.mrb[0].mxu0
      %v6487 = vadd.f32 0.0, %v6486
      %v6488 = vpop.f32.mrb[0].mxu0
      %v6489 = vpop.f32.mrb[0].mxu0
      %v6490 = vadd.f32 0.0, %v6489
      %v6491 = vpop.f32.mrb[0].mxu0
      %6492 = vmatprep.mubr.bf16.mxu0 0
      %6493 = vmatmul.mubr.bf16.gmra.mrb[0].mxu0 %v6257
      %v6494 = vpop.f32.mrb[0].mxu0
      %v6495 = vadd.f32 0.0, %v6494
      %v6496 = vpop.f32.mrb[0].mxu0
      %v6497 = vpop.f32.mrb[0].mxu0
      %v6498 = vadd.f32 0.0, %v6497
      %v6499 = vpop.f32.mrb[0].mxu0
      %6500 = vmatprep.mubr.bf16.mxu0 0
      %6501 = vmatmul.mubr.bf16.gmra.mrb[0].mxu0 %v6265
      %v6502 = vpop.f32.mrb[0].mxu0
      %v6503 = vadd.f32 0.0, %v6502
      %v6504 = vpop.f32.mrb[0].mxu0
      %v6505 = vpop.f32.mrb[0].mxu0
      %v6506 = vadd.f32 0.0, %v6505
      %v6507 = vpop.f32.mrb[0].mxu0
      %6508 = vmatprep.mubr.bf16.mxu0 0
      %6509 = vmatmul.mubr.bf16.gmra.mrb[0].mxu0 %v6273
      %v6510 = vpop.f32.mrb[0].mxu0
      %v6511 = vadd.f32 0.0, %v6510
      %v6512 = vpop.f32.mrb[0].mxu0
      %v6513 = vpop.f32.mrb[0].mxu0
      %v6514 = vadd.f32 0.0, %v6513
      %v6515 = vpop.f32.mrb[0].mxu0
      %6516 = vmatprep.mubr.bf16.mxu0 0
      %6517 = vmatmul.mubr.bf16.gmra.mrb[0].mxu0 %v6281
      %v6518 = vpop.f32.mrb[0].mxu0
      %v6519 = vadd.f32 0.0, %v6518
      %v6520 = vpop.f32.mrb[0].mxu0
      %v6521 = vpop.f32.mrb[0].mxu0
      %v6522 = vadd.f32 0.0, %v6521
      %v6523 = vpop.f32.mrb[0].mxu0
      %6524 = vdwg.mxu0
      %v6525 = vadd.f32 %v6063, %v6383
      %v6526 = vadd.f32 %v6064, %v6386
      %v6527 = vadd.f32 %v6065, %v6391
      %v6528 = vadd.f32 %v6066, %v6394
      %v6529 = vadd.f32 %v6067, %v6399
      %v6530 = vadd.f32 %v6068, %v6402
      %v6531 = vadd.f32 %v6069, %v6407
      %v6532 = vadd.f32 %v6070, %v6410
      %v6533 = vadd.f32 %v6071, %v6415
      %v6534 = vadd.f32 %v6072, %v6418
      %v6535 = vadd.f32 %v6073, %v6423
      %v6536 = vadd.f32 %v6074, %v6426
      %v6537 = vadd.f32 %v6075, %v6431
      %v6538 = vadd.f32 %v6076, %v6434
      %v6539 = vadd.f32 %v6077, %v6439
      %v6540 = vadd.f32 %v6078, %v6442
      %v6541 = vadd.f32 %v6079, %v6447
      %v6542 = vadd.f32 %v6080, %v6450
      %v6543 = vadd.f32 %v6081, %v6455
      %v6544 = vadd.f32 %v6082, %v6458
      %v6545 = vadd.f32 %v6083, %v6463
      %v6546 = vadd.f32 %v6084, %v6466
      %v6547 = vadd.f32 %v6085, %v6471
      %v6548 = vadd.f32 %v6086, %v6474
      %v6549 = vadd.f32 %v6087, %v6479
      %v6550 = vadd.f32 %v6088, %v6482
      %v6551 = vadd.f32 %v6089, %v6487
      %v6552 = vadd.f32 %v6090, %v6490
      %v6553 = vadd.f32 %v6091, %v6495
      %v6554 = vadd.f32 %v6092, %v6498
      %v6555 = vadd.f32 %v6093, %v6503
      %v6556 = vadd.f32 %v6094, %v6506
      %v6557 = vadd.f32 %v6095, %v6511
      %v6558 = vadd.f32 %v6096, %v6514
      %v6559 = vadd.f32 %v6097, %v6519
      %v6560 = vadd.f32 %v6098, %v6522
      %v6561 = vld [vmem:[%s3 + $0x100] sm:$0xf]
      %v6562 = vld [vmem:[%s3 + $0x104] sm:$0xf]
      %v6563 = vld [vmem:[%s3 + $0x108] sm:$0xf]
      %v6564 = vld [vmem:[%s3 + $0x10c] sm:$0xf]
      %v6565 = vld [vmem:[%s3 + $0x110] sm:$0xf]
      %v6566 = vld [vmem:[%s3 + $0x114] sm:$0xf]
      %v6567 = vld [vmem:[%s3 + $0x118] sm:$0xf]
      %v6568 = vld [vmem:[%s3 + $0x11c] sm:$0xf]
      %v6569 = vld [vmem:[%s3 + $0x120] sm:$0xf]
      %v6570 = vld [vmem:[%s3 + $0x124] sm:$0xf]
      %v6571 = vld [vmem:[%s3 + $0x128] sm:$0xf]
      %v6572 = vld [vmem:[%s3 + $0x12c] sm:$0xf]
      %v6573 = vld [vmem:[%s3 + $0x130] sm:$0xf]
      %v6574 = vld [vmem:[%s3 + $0x134] sm:$0xf]
      %v6575 = vld [vmem:[%s3 + $0x138] sm:$0xf]
      %v6576 = vld [vmem:[%s3 + $0x13c] sm:$0xf]
      %v6593 = vunpack.c.l.b16 %v6561
      %v6594 = vunpack.c.l.b16 %v6562
      %v6595 = vunpack.c.l.b16 %v6563
      %v6596 = vunpack.c.l.b16 %v6564
      %v6597 = vunpack.c.l.b16 %v6565
      %v6598 = vunpack.c.l.b16 %v6566
      %v6599 = vunpack.c.l.b16 %v6567
      %v6600 = vunpack.c.l.b16 %v6568
      %v6601 = vunpack.c.l.b16 %v6569
      %v6602 = vunpack.c.l.b16 %v6570
      %v6603 = vunpack.c.l.b16 %v6571
      %v6604 = vunpack.c.l.b16 %v6572
      %v6605 = vunpack.c.l.b16 %v6573
      %v6606 = vunpack.c.l.b16 %v6574
      %v6607 = vunpack.c.l.b16 %v6575
      %v6608 = vunpack.c.l.b16 %v6576
      %v6609 = vpack.c.b16 %v6594, %v6593
      %v6610 = vpack.c.b16 %v6596, %v6595
      %v6611 = vpack.c.b16 %v6598, %v6597
      %v6612 = vpack.c.b16 %v6600, %v6599
      %v6613 = vpack.c.b16 %v6602, %v6601
      %v6614 = vpack.c.b16 %v6604, %v6603
      %v6615 = vpack.c.b16 %v6606, %v6605
      %v6616 = vpack.c.b16 %v6608, %v6607
      %6625 = vmatprep.subr.bf16.mxu0 0
      %6626 = vmatpush1.bf16.msra.mxu0 %v6609
      %6627 = vmatprep.subr.bf16.mxu0 0
      %6628 = vmatpush1.bf16.msra.mxu0 %v6610
      %6629 = vmatprep.subr.bf16.mxu0 0
      %6630 = vmatpush1.bf16.msra.mxu0 %v6611
      %6631 = vmatprep.subr.bf16.mxu0 0
      %6632 = vmatpush1.bf16.msra.mxu0 %v6612
      %6633 = vmatprep.subr.bf16.mxu0 0
      %6634 = vmatpush1.bf16.msra.mxu0 %v6613
      %6635 = vmatprep.subr.bf16.mxu0 0
      %6636 = vmatpush1.bf16.msra.mxu0 %v6614
      %6637 = vmatprep.subr.bf16.mxu0 0
      %6638 = vmatpush1.bf16.msra.mxu0 %v6615
      %6639 = vmatprep.subr.bf16.mxu0 0
      %6640 = vmatpush1.bf16.msra.mxu0 %v6616
      %6641 = vmatprep.subr.bf16.mxu0 0
      %6642 = vmatpush1.bf16.msra.mxu0 0
      %6643 = vmatprep.subr.bf16.mxu0 0
      %6644 = vmatpush1.bf16.msra.mxu0 0
      %6645 = vmatprep.subr.bf16.mxu0 0
      %6646 = vmatpush1.bf16.msra.mxu0 0
      %6647 = vmatprep.subr.bf16.mxu0 0
      %6648 = vmatpush1.bf16.msra.mxu0 0
      %6649 = vmatprep.subr.bf16.mxu0 0
      %6650 = vmatpush1.bf16.msra.mxu0 0
      %6651 = vmatprep.subr.bf16.mxu0 0
      %6652 = vmatpush1.bf16.msra.mxu0 0
      %6653 = vmatprep.subr.bf16.mxu0 0
      %6654 = vmatpush1.bf16.msra.mxu0 0
      %6655 = vmatprep.subr.bf16.mxu0 0
      %6656 = vmatpush1.bf16.msra.mxu0 0
      %6657 = vmatprep.mubr.bf16.mxu0 0
      %6658 = vmatmul.mubr.bf16.gmra.mrb[0].mxu0 %v6100
      %v6659 = vpop.f32.mrb[0].mxu0
      %v6660 = vadd.f32 0.0, %v6659
      %v6661 = vpop.f32.mrb[0].mxu0
      %v6662 = vpop.f32.mrb[0].mxu0
      %v6663 = vadd.f32 0.0, %v6662
      %v6664 = vpop.f32.mrb[0].mxu0
      %6665 = vmatprep.mubr.bf16.mxu0 0
      %6666 = vmatmul.mubr.bf16.gmra.mrb[0].mxu0 %v6101
      %v6667 = vpop.f32.mrb[0].mxu0
      %v6668 = vadd.f32 0.0, %v6667
      %v6669 = vpop.f32.mrb[0].mxu0
      %v6670 = vpop.f32.mrb[0].mxu0
      %v6671 = vadd.f32 0.0, %v6670
      %v6672 = vpop.f32.mrb[0].mxu0
      %6673 = vmatprep.mubr.bf16.mxu0 0
      %6674 = vmatmul.mubr.bf16.gmra.mrb[0].mxu0 %v6102
      %v6675 = vpop.f32.mrb[0].mxu0
      %v6676 = vadd.f32 0.0, %v6675
      %v6677 = vpop.f32.mrb[0].mxu0
      %v6678 = vpop.f32.mrb[0].mxu0
      %v6679 = vadd.f32 0.0, %v6678
      %v6680 = vpop.f32.mrb[0].mxu0
      %6681 = vmatprep.mubr.bf16.mxu0 0
      %6682 = vmatmul.mubr.bf16.gmra.mrb[0].mxu0 %v6103
      %v6683 = vpop.f32.mrb[0].mxu0
      %v6684 = vadd.f32 0.0, %v6683
      %v6685 = vpop.f32.mrb[0].mxu0
      %v6686 = vpop.f32.mrb[0].mxu0
      %v6687 = vadd.f32 0.0, %v6686
      %v6688 = vpop.f32.mrb[0].mxu0
      %6689 = vmatprep.mubr.bf16.mxu0 0
      %6690 = vmatmul.mubr.bf16.gmra.mrb[0].mxu0 %v6104
      %v6691 = vpop.f32.mrb[0].mxu0
      %v6692 = vadd.f32 0.0, %v6691
      %v6693 = vpop.f32.mrb[0].mxu0
      %v6694 = vpop.f32.mrb[0].mxu0
      %v6695 = vadd.f32 0.0, %v6694
      %v6696 = vpop.f32.mrb[0].mxu0
      %6697 = vmatprep.mubr.bf16.mxu0 0
      %6698 = vmatmul.mubr.bf16.gmra.mrb[0].mxu0 %v6105
      %v6699 = vpop.f32.mrb[0].mxu0
      %v6700 = vadd.f32 0.0, %v6699
      %v6701 = vpop.f32.mrb[0].mxu0
      %v6702 = vpop.f32.mrb[0].mxu0
      %v6703 = vadd.f32 0.0, %v6702
      %v6704 = vpop.f32.mrb[0].mxu0
      %6705 = vmatprep.mubr.bf16.mxu0 0
      %6706 = vmatmul.mubr.bf16.gmra.mrb[0].mxu0 %v6106
      %v6707 = vpop.f32.mrb[0].mxu0
      %v6708 = vadd.f32 0.0, %v6707
      %v6709 = vpop.f32.mrb[0].mxu0
      %v6710 = vpop.f32.mrb[0].mxu0
      %v6711 = vadd.f32 0.0, %v6710
      %v6712 = vpop.f32.mrb[0].mxu0
      %6713 = vmatprep.mubr.bf16.mxu0 0
      %6714 = vmatmul.mubr.bf16.gmra.mrb[0].mxu0 %v6107
      %v6715 = vpop.f32.mrb[0].mxu0
      %v6716 = vadd.f32 0.0, %v6715
      %v6717 = vpop.f32.mrb[0].mxu0
      %v6718 = vpop.f32.mrb[0].mxu0
      %v6719 = vadd.f32 0.0, %v6718
      %v6720 = vpop.f32.mrb[0].mxu0
      %6721 = vmatprep.mubr.bf16.mxu0 0
      %6722 = vmatmul.mubr.bf16.gmra.mrb[0].mxu0 %v6108
      %v6723 = vpop.f32.mrb[0].mxu0
      %v6724 = vadd.f32 0.0, %v6723
      %v6725 = vpop.f32.mrb[0].mxu0
      %v6726 = vpop.f32.mrb[0].mxu0
      %v6727 = vadd.f32 0.0, %v6726
      %v6728 = vpop.f32.mrb[0].mxu0
      %6729 = vmatprep.mubr.bf16.mxu0 0
      %6730 = vmatmul.mubr.bf16.gmra.mrb[0].mxu0 %v6109
      %v6731 = vpop.f32.mrb[0].mxu0
      %v6732 = vadd.f32 0.0, %v6731
      %v6733 = vpop.f32.mrb[0].mxu0
      %v6734 = vpop.f32.mrb[0].mxu0
      %v6735 = vadd.f32 0.0, %v6734
      %v6736 = vpop.f32.mrb[0].mxu0
      %6737 = vmatprep.mubr.bf16.mxu0 0
      %6738 = vmatmul.mubr.bf16.gmra.mrb[0].mxu0 %v6110
      %v6739 = vpop.f32.mrb[0].mxu0
      %v6740 = vadd.f32 0.0, %v6739
      %v6741 = vpop.f32.mrb[0].mxu0
      %v6742 = vpop.f32.mrb[0].mxu0
      %v6743 = vadd.f32 0.0, %v6742
      %v6744 = vpop.f32.mrb[0].mxu0
      %6745 = vmatprep.mubr.bf16.mxu0 0
      %6746 = vmatmul.mubr.bf16.gmra.mrb[0].mxu0 %v6111
      %v6747 = vpop.f32.mrb[0].mxu0
      %v6748 = vadd.f32 0.0, %v6747
      %v6749 = vpop.f32.mrb[0].mxu0
      %v6750 = vpop.f32.mrb[0].mxu0
      %v6751 = vadd.f32 0.0, %v6750
      %v6752 = vpop.f32.mrb[0].mxu0
      %6753 = vmatprep.mubr.bf16.mxu0 0
      %6754 = vmatmul.mubr.bf16.gmra.mrb[0].mxu0 %v6112
      %v6755 = vpop.f32.mrb[0].mxu0
      %v6756 = vadd.f32 0.0, %v6755
      %v6757 = vpop.f32.mrb[0].mxu0
      %v6758 = vpop.f32.mrb[0].mxu0
      %v6759 = vadd.f32 0.0, %v6758
      %v6760 = vpop.f32.mrb[0].mxu0
      %6761 = vmatprep.mubr.bf16.mxu0 0
      %6762 = vmatmul.mubr.bf16.gmra.mrb[0].mxu0 %v6113
      %v6763 = vpop.f32.mrb[0].mxu0
      %v6764 = vadd.f32 0.0, %v6763
      %v6765 = vpop.f32.mrb[0].mxu0
      %v6766 = vpop.f32.mrb[0].mxu0
      %v6767 = vadd.f32 0.0, %v6766
      %v6768 = vpop.f32.mrb[0].mxu0
      %6769 = vmatprep.mubr.bf16.mxu0 0
      %6770 = vmatmul.mubr.bf16.gmra.mrb[0].mxu0 %v6114
      %v6771 = vpop.f32.mrb[0].mxu0
      %v6772 = vadd.f32 0.0, %v6771
      %v6773 = vpop.f32.mrb[0].mxu0
      %v6774 = vpop.f32.mrb[0].mxu0
      %v6775 = vadd.f32 0.0, %v6774
      %v6776 = vpop.f32.mrb[0].mxu0
      %6777 = vmatprep.mubr.bf16.mxu0 0
      %6778 = vmatmul.mubr.bf16.gmra.mrb[0].mxu0 %v6115
      %v6779 = vpop.f32.mrb[0].mxu0
      %v6780 = vadd.f32 0.0, %v6779
      %v6781 = vpop.f32.mrb[0].mxu0
      %v6782 = vpop.f32.mrb[0].mxu0
      %v6783 = vadd.f32 0.0, %v6782
      %v6784 = vpop.f32.mrb[0].mxu0
      %6785 = vmatprep.mubr.bf16.mxu0 0
      %6786 = vmatmul.mubr.bf16.gmra.mrb[0].mxu0 %v6116
      %v6787 = vpop.f32.mrb[0].mxu0
      %v6788 = vadd.f32 0.0, %v6787
      %v6789 = vpop.f32.mrb[0].mxu0
      %v6790 = vpop.f32.mrb[0].mxu0
      %v6791 = vadd.f32 0.0, %v6790
      %v6792 = vpop.f32.mrb[0].mxu0
      %6793 = vmatprep.mubr.bf16.mxu0 0
      %6794 = vmatmul.mubr.bf16.gmra.mrb[0].mxu0 %v6117
      %v6795 = vpop.f32.mrb[0].mxu0
      %v6796 = vadd.f32 0.0, %v6795
      %v6797 = vpop.f32.mrb[0].mxu0
      %v6798 = vpop.f32.mrb[0].mxu0
      %v6799 = vadd.f32 0.0, %v6798
      %v6800 = vpop.f32.mrb[0].mxu0
      %6801 = vdwg.mxu0
      %v6802 = vadd.f32 %v6525, %v6660
      %v6803 = vadd.f32 %v6526, %v6663
      %v6804 = vadd.f32 %v6527, %v6668
      %v6805 = vadd.f32 %v6528, %v6671
      %v6806 = vadd.f32 %v6529, %v6676
      %v6807 = vadd.f32 %v6530, %v6679
      %v6808 = vadd.f32 %v6531, %v6684
      %v6809 = vadd.f32 %v6532, %v6687
      %v6810 = vadd.f32 %v6533, %v6692
      %v6811 = vadd.f32 %v6534, %v6695
      %v6812 = vadd.f32 %v6535, %v6700
      %v6813 = vadd.f32 %v6536, %v6703
      %v6814 = vadd.f32 %v6537, %v6708
      %v6815 = vadd.f32 %v6538, %v6711
      %v6816 = vadd.f32 %v6539, %v6716
      %v6817 = vadd.f32 %v6540, %v6719
      %v6818 = vadd.f32 %v6541, %v6724
      %v6819 = vadd.f32 %v6542, %v6727
      %v6820 = vadd.f32 %v6543, %v6732
      %v6821 = vadd.f32 %v6544, %v6735
      %v6822 = vadd.f32 %v6545, %v6740
      %v6823 = vadd.f32 %v6546, %v6743
      %v6824 = vadd.f32 %v6547, %v6748
      %v6825 = vadd.f32 %v6548, %v6751
      %v6826 = vadd.f32 %v6549, %v6756
      %v6827 = vadd.f32 %v6550, %v6759
      %v6828 = vadd.f32 %v6551, %v6764
      %v6829 = vadd.f32 %v6552, %v6767
      %v6830 = vadd.f32 %v6553, %v6772
      %v6831 = vadd.f32 %v6554, %v6775
      %v6832 = vadd.f32 %v6555, %v6780
      %v6833 = vadd.f32 %v6556, %v6783
      %v6834 = vadd.f32 %v6557, %v6788
      %v6835 = vadd.f32 %v6558, %v6791
      %v6836 = vadd.f32 %v6559, %v6796
      %v6837 = vadd.f32 %v6560, %v6799
      %v6838 = vld [vmem:[#allocation2 + $0x10] sm:$0xff]
      %v6839 = vld [vmem:[#allocation2 + $0x18] sm:$0xff]
      %v6840 = vld [vmem:[#allocation2 + $0x20] sm:$0xff]
      %v6841 = vld [vmem:[#allocation2 + $0x28] sm:$0xff]
      %v6842 = vld [vmem:[#allocation2 + $0x30] sm:$0xff]
      %v6843 = vld [vmem:[#allocation2 + $0x38] sm:$0xff]
      %v6844 = vld [vmem:[#allocation2 + $0x40] sm:$0xff]
      %v6845 = vld [vmem:[#allocation2 + $0x48] sm:$0xff]
      %v6846 = vld [vmem:[#allocation2 + $0x50] sm:$0xff]
      %v6847 = vld [vmem:[#allocation2 + $0x58] sm:$0xff]
      %v6848 = vld [vmem:[#allocation2 + $0x60] sm:$0xff]
      %v6849 = vld [vmem:[#allocation2 + $0x68] sm:$0xff]
      %v6850 = vld [vmem:[#allocation2 + $0x70] sm:$0xff]
      %v6851 = vld [vmem:[#allocation2 + $0x78] sm:$0xff]
      %v6852 = vld [vmem:[#allocation2 + $0x80] sm:$0xff]
      %v6853 = vld [vmem:[#allocation2 + $0x88] sm:$0xff]
      %v6854 = vld [vmem:[#allocation2 + $0x90] sm:$0xff]
      %v6855 = vld [vmem:[#allocation2 + $0x98] sm:$0xff]
      %v6856 = vld [vmem:[#allocation2 + $0xa0] sm:$0x1]
      %v6857 = vld [vmem:[%s3 + $0x140] sm:$0xf]
      %v6858 = vld [vmem:[%s3 + $0x144] sm:$0xf]
      %v6859 = vld [vmem:[%s3 + $0x148] sm:$0xf]
      %v6860 = vld [vmem:[%s3 + $0x14c] sm:$0xf]
      %v6861 = vld [vmem:[%s3 + $0x150] sm:$0xf]
      %v6862 = vld [vmem:[%s3 + $0x154] sm:$0xf]
      %v6863 = vld [vmem:[%s3 + $0x158] sm:$0xf]
      %v6864 = vld [vmem:[%s3 + $0x15c] sm:$0xf]
      %v6865 = vld [vmem:[%s3 + $0x160] sm:$0xf]
      %v6866 = vld [vmem:[%s3 + $0x164] sm:$0xf]
      %v6867 = vld [vmem:[%s3 + $0x168] sm:$0xf]
      %v6868 = vld [vmem:[%s3 + $0x16c] sm:$0xf]
      %v6869 = vld [vmem:[%s3 + $0x170] sm:$0xf]
      %v6870 = vld [vmem:[%s3 + $0x174] sm:$0xf]
      %v6871 = vld [vmem:[%s3 + $0x178] sm:$0xf]
      %v6872 = vld [vmem:[%s3 + $0x17c] sm:$0xf]
      %v6874 = vshrl.u32 %v6838, 16
      %v6876 = vshll.u32 %v6838, 16
      %v6878 = vrot.slane %v6876, 1
      %v6879 = vor.u32 %v6874, %v6878
      %v6881 = vshll.u32 %v6839, 16
      %v6883 = vrot.slane %v6881, 1
      %v6884 = vsel %vm3089, %v6879, %v6883
      %v6885 = vshrl.u32 %v6839, 16
      %v6887 = vor.u32 %v6885, %v6883
      %v6889 = vshll.u32 %v6840, 16
      %v6891 = vrot.slane %v6889, 1
      %v6892 = vsel %vm3089, %v6887, %v6891
      %v6893 = vshrl.u32 %v6840, 16
      %v6895 = vor.u32 %v6893, %v6891
      %v6897 = vshll.u32 %v6841, 16
      %v6899 = vrot.slane %v6897, 1
      %v6900 = vsel %vm3089, %v6895, %v6899
      %v6901 = vshrl.u32 %v6841, 16
      %v6903 = vor.u32 %v6901, %v6899
      %v6905 = vshll.u32 %v6842, 16
      %v6907 = vrot.slane %v6905, 1
      %v6908 = vsel %vm3089, %v6903, %v6907
      %v6909 = vshrl.u32 %v6842, 16
      %v6911 = vor.u32 %v6909, %v6907
      %v6913 = vshll.u32 %v6843, 16
      %v6915 = vrot.slane %v6913, 1
      %v6916 = vsel %vm3089, %v6911, %v6915
      %v6917 = vshrl.u32 %v6843, 16
      %v6919 = vor.u32 %v6917, %v6915
      %v6921 = vshll.u32 %v6844, 16
      %v6923 = vrot.slane %v6921, 1
      %v6924 = vsel %vm3089, %v6919, %v6923
      %v6925 = vshrl.u32 %v6844, 16
      %v6927 = vor.u32 %v6925, %v6923
      %v6929 = vshll.u32 %v6845, 16
      %v6931 = vrot.slane %v6929, 1
      %v6932 = vsel %vm3089, %v6927, %v6931
      %v6933 = vshrl.u32 %v6845, 16
      %v6935 = vor.u32 %v6933, %v6931
      %v6937 = vshll.u32 %v6846, 16
      %v6939 = vrot.slane %v6937, 1
      %v6940 = vsel %vm3089, %v6935, %v6939
      %v6941 = vshrl.u32 %v6846, 16
      %v6943 = vor.u32 %v6941, %v6939
      %v6945 = vshll.u32 %v6847, 16
      %v6947 = vrot.slane %v6945, 1
      %v6948 = vsel %vm3089, %v6943, %v6947
      %v6949 = vshrl.u32 %v6847, 16
      %v6951 = vor.u32 %v6949, %v6947
      %v6953 = vshll.u32 %v6848, 16
      %v6955 = vrot.slane %v6953, 1
      %v6956 = vsel %vm3089, %v6951, %v6955
      %v6957 = vshrl.u32 %v6848, 16
      %v6959 = vor.u32 %v6957, %v6955
      %v6961 = vshll.u32 %v6849, 16
      %v6963 = vrot.slane %v6961, 1
      %v6964 = vsel %vm3089, %v6959, %v6963
      %v6965 = vshrl.u32 %v6849, 16
      %v6967 = vor.u32 %v6965, %v6963
      %v6969 = vshll.u32 %v6850, 16
      %v6971 = vrot.slane %v6969, 1
      %v6972 = vsel %vm3089, %v6967, %v6971
      %v6973 = vshrl.u32 %v6850, 16
      %v6975 = vor.u32 %v6973, %v6971
      %v6977 = vshll.u32 %v6851, 16
      %v6979 = vrot.slane %v6977, 1
      %v6980 = vsel %vm3089, %v6975, %v6979
      %v6981 = vshrl.u32 %v6851, 16
      %v6983 = vor.u32 %v6981, %v6979
      %v6985 = vshll.u32 %v6852, 16
      %v6987 = vrot.slane %v6985, 1
      %v6988 = vsel %vm3089, %v6983, %v6987
      %v6989 = vshrl.u32 %v6852, 16
      %v6991 = vor.u32 %v6989, %v6987
      %v6993 = vshll.u32 %v6853, 16
      %v6995 = vrot.slane %v6993, 1
      %v6996 = vsel %vm3089, %v6991, %v6995
      %v6997 = vshrl.u32 %v6853, 16
      %v6999 = vor.u32 %v6997, %v6995
      %v7001 = vshll.u32 %v6854, 16
      %v7003 = vrot.slane %v7001, 1
      %v7004 = vsel %vm3089, %v6999, %v7003
      %v7005 = vshrl.u32 %v6854, 16
      %v7007 = vor.u32 %v7005, %v7003
      %v7009 = vshll.u32 %v6855, 16
      %v7011 = vrot.slane %v7009, 1
      %v7012 = vsel %vm3089, %v7007, %v7011
      %v7013 = vshrl.u32 %v6855, 16
      %v7015 = vor.u32 %v7013, %v7011
      %v7017 = vshll.u32 %v6856, 16
      %v7019 = vrot.slane %v7017, 1
      %v7020 = vsel %vm3089, %v7015, %v7019
      %v7055 = vunpack.c.l.b16 %v6857
      %v7056 = vunpack.c.l.b16 %v6858
      %v7057 = vunpack.c.l.b16 %v6859
      %v7058 = vunpack.c.l.b16 %v6860
      %v7059 = vunpack.c.l.b16 %v6861
      %v7060 = vunpack.c.l.b16 %v6862
      %v7061 = vunpack.c.l.b16 %v6863
      %v7062 = vunpack.c.l.b16 %v6864
      %v7063 = vunpack.c.l.b16 %v6865
      %v7064 = vunpack.c.l.b16 %v6866
      %v7065 = vunpack.c.l.b16 %v6867
      %v7066 = vunpack.c.l.b16 %v6868
      %v7067 = vunpack.c.l.b16 %v6869
      %v7068 = vunpack.c.l.b16 %v6870
      %v7069 = vunpack.c.l.b16 %v6871
      %v7070 = vunpack.c.l.b16 %v6872
      %v7071 = vpack.c.b16 %v7056, %v7055
      %v7072 = vpack.c.b16 %v7058, %v7057
      %v7073 = vpack.c.b16 %v7060, %v7059
      %v7074 = vpack.c.b16 %v7062, %v7061
      %v7075 = vpack.c.b16 %v7064, %v7063
      %v7076 = vpack.c.b16 %v7066, %v7065
      %v7077 = vpack.c.b16 %v7068, %v7067
      %v7078 = vpack.c.b16 %v7070, %v7069
      %7087 = vmatprep.subr.bf16.mxu0 0
      %7088 = vmatpush1.bf16.msra.mxu0 %v7071
      %7089 = vmatprep.subr.bf16.mxu0 0
      %7090 = vmatpush1.bf16.msra.mxu0 %v7072
      %7091 = vmatprep.subr.bf16.mxu0 0
      %7092 = vmatpush1.bf16.msra.mxu0 %v7073
      %7093 = vmatprep.subr.bf16.mxu0 0
      %7094 = vmatpush1.bf16.msra.mxu0 %v7074
      %7095 = vmatprep.subr.bf16.mxu0 0
      %7096 = vmatpush1.bf16.msra.mxu0 %v7075
      %7097 = vmatprep.subr.bf16.mxu0 0
      %7098 = vmatpush1.bf16.msra.mxu0 %v7076
      %7099 = vmatprep.subr.bf16.mxu0 0
      %7100 = vmatpush1.bf16.msra.mxu0 %v7077
      %7101 = vmatprep.subr.bf16.mxu0 0
      %7102 = vmatpush1.bf16.msra.mxu0 %v7078
      %7103 = vmatprep.subr.bf16.mxu0 0
      %7104 = vmatpush1.bf16.msra.mxu0 0
      %7105 = vmatprep.subr.bf16.mxu0 0
      %7106 = vmatpush1.bf16.msra.mxu0 0
      %7107 = vmatprep.subr.bf16.mxu0 0
      %7108 = vmatpush1.bf16.msra.mxu0 0
      %7109 = vmatprep.subr.bf16.mxu0 0
      %7110 = vmatpush1.bf16.msra.mxu0 0
      %7111 = vmatprep.subr.bf16.mxu0 0
      %7112 = vmatpush1.bf16.msra.mxu0 0
      %7113 = vmatprep.subr.bf16.mxu0 0
      %7114 = vmatpush1.bf16.msra.mxu0 0
      %7115 = vmatprep.subr.bf16.mxu0 0
      %7116 = vmatpush1.bf16.msra.mxu0 0
      %7117 = vmatprep.subr.bf16.mxu0 0
      %7118 = vmatpush1.bf16.msra.mxu0 0
      %7119 = vmatprep.mubr.bf16.mxu0 0
      %7120 = vmatmul.mubr.bf16.gmra.mrb[0].mxu0 %v6884
      %v7121 = vpop.f32.mrb[0].mxu0
      %v7122 = vadd.f32 0.0, %v7121
      %v7123 = vpop.f32.mrb[0].mxu0
      %v7124 = vpop.f32.mrb[0].mxu0
      %v7125 = vadd.f32 0.0, %v7124
      %v7126 = vpop.f32.mrb[0].mxu0
      %7127 = vmatprep.mubr.bf16.mxu0 0
      %7128 = vmatmul.mubr.bf16.gmra.mrb[0].mxu0 %v6892
      %v7129 = vpop.f32.mrb[0].mxu0
      %v7130 = vadd.f32 0.0, %v7129
      %v7131 = vpop.f32.mrb[0].mxu0
      %v7132 = vpop.f32.mrb[0].mxu0
      %v7133 = vadd.f32 0.0, %v7132
      %v7134 = vpop.f32.mrb[0].mxu0
      %7135 = vmatprep.mubr.bf16.mxu0 0
      %7136 = vmatmul.mubr.bf16.gmra.mrb[0].mxu0 %v6900
      %v7137 = vpop.f32.mrb[0].mxu0
      %v7138 = vadd.f32 0.0, %v7137
      %v7139 = vpop.f32.mrb[0].mxu0
      %v7140 = vpop.f32.mrb[0].mxu0
      %v7141 = vadd.f32 0.0, %v7140
      %v7142 = vpop.f32.mrb[0].mxu0
      %7143 = vmatprep.mubr.bf16.mxu0 0
      %7144 = vmatmul.mubr.bf16.gmra.mrb[0].mxu0 %v6908
      %v7145 = vpop.f32.mrb[0].mxu0
      %v7146 = vadd.f32 0.0, %v7145
      %v7147 = vpop.f32.mrb[0].mxu0
      %v7148 = vpop.f32.mrb[0].mxu0
      %v7149 = vadd.f32 0.0, %v7148
      %v7150 = vpop.f32.mrb[0].mxu0
      %7151 = vmatprep.mubr.bf16.mxu0 0
      %7152 = vmatmul.mubr.bf16.gmra.mrb[0].mxu0 %v6916
      %v7153 = vpop.f32.mrb[0].mxu0
      %v7154 = vadd.f32 0.0, %v7153
      %v7155 = vpop.f32.mrb[0].mxu0
      %v7156 = vpop.f32.mrb[0].mxu0
      %v7157 = vadd.f32 0.0, %v7156
      %v7158 = vpop.f32.mrb[0].mxu0
      %7159 = vmatprep.mubr.bf16.mxu0 0
      %7160 = vmatmul.mubr.bf16.gmra.mrb[0].mxu0 %v6924
      %v7161 = vpop.f32.mrb[0].mxu0
      %v7162 = vadd.f32 0.0, %v7161
      %v7163 = vpop.f32.mrb[0].mxu0
      %v7164 = vpop.f32.mrb[0].mxu0
      %v7165 = vadd.f32 0.0, %v7164
      %v7166 = vpop.f32.mrb[0].mxu0
      %7167 = vmatprep.mubr.bf16.mxu0 0
      %7168 = vmatmul.mubr.bf16.gmra.mrb[0].mxu0 %v6932
      %v7169 = vpop.f32.mrb[0].mxu0
      %v7170 = vadd.f32 0.0, %v7169
      %v7171 = vpop.f32.mrb[0].mxu0
      %v7172 = vpop.f32.mrb[0].mxu0
      %v7173 = vadd.f32 0.0, %v7172
      %v7174 = vpop.f32.mrb[0].mxu0
      %7175 = vmatprep.mubr.bf16.mxu0 0
      %7176 = vmatmul.mubr.bf16.gmra.mrb[0].mxu0 %v6940
      %v7177 = vpop.f32.mrb[0].mxu0
      %v7178 = vadd.f32 0.0, %v7177
      %v7179 = vpop.f32.mrb[0].mxu0
      %v7180 = vpop.f32.mrb[0].mxu0
      %v7181 = vadd.f32 0.0, %v7180
      %v7182 = vpop.f32.mrb[0].mxu0
      %7183 = vmatprep.mubr.bf16.mxu0 0
      %7184 = vmatmul.mubr.bf16.gmra.mrb[0].mxu0 %v6948
      %v7185 = vpop.f32.mrb[0].mxu0
      %v7186 = vadd.f32 0.0, %v7185
      %v7187 = vpop.f32.mrb[0].mxu0
      %v7188 = vpop.f32.mrb[0].mxu0
      %v7189 = vadd.f32 0.0, %v7188
      %v7190 = vpop.f32.mrb[0].mxu0
      %7191 = vmatprep.mubr.bf16.mxu0 0
      %7192 = vmatmul.mubr.bf16.gmra.mrb[0].mxu0 %v6956
      %v7193 = vpop.f32.mrb[0].mxu0
      %v7194 = vadd.f32 0.0, %v7193
      %v7195 = vpop.f32.mrb[0].mxu0
      %v7196 = vpop.f32.mrb[0].mxu0
      %v7197 = vadd.f32 0.0, %v7196
      %v7198 = vpop.f32.mrb[0].mxu0
      %7199 = vmatprep.mubr.bf16.mxu0 0
      %7200 = vmatmul.mubr.bf16.gmra.mrb[0].mxu0 %v6964
      %v7201 = vpop.f32.mrb[0].mxu0
      %v7202 = vadd.f32 0.0, %v7201
      %v7203 = vpop.f32.mrb[0].mxu0
      %v7204 = vpop.f32.mrb[0].mxu0
      %v7205 = vadd.f32 0.0, %v7204
      %v7206 = vpop.f32.mrb[0].mxu0
      %7207 = vmatprep.mubr.bf16.mxu0 0
      %7208 = vmatmul.mubr.bf16.gmra.mrb[0].mxu0 %v6972
      %v7209 = vpop.f32.mrb[0].mxu0
      %v7210 = vadd.f32 0.0, %v7209
      %v7211 = vpop.f32.mrb[0].mxu0
      %v7212 = vpop.f32.mrb[0].mxu0
      %v7213 = vadd.f32 0.0, %v7212
      %v7214 = vpop.f32.mrb[0].mxu0
      %7215 = vmatprep.mubr.bf16.mxu0 0
      %7216 = vmatmul.mubr.bf16.gmra.mrb[0].mxu0 %v6980
      %v7217 = vpop.f32.mrb[0].mxu0
      %v7218 = vadd.f32 0.0, %v7217
      %v7219 = vpop.f32.mrb[0].mxu0
      %v7220 = vpop.f32.mrb[0].mxu0
      %v7221 = vadd.f32 0.0, %v7220
      %v7222 = vpop.f32.mrb[0].mxu0
      %7223 = vmatprep.mubr.bf16.mxu0 0
      %7224 = vmatmul.mubr.bf16.gmra.mrb[0].mxu0 %v6988
      %v7225 = vpop.f32.mrb[0].mxu0
      %v7226 = vadd.f32 0.0, %v7225
      %v7227 = vpop.f32.mrb[0].mxu0
      %v7228 = vpop.f32.mrb[0].mxu0
      %v7229 = vadd.f32 0.0, %v7228
      %v7230 = vpop.f32.mrb[0].mxu0
      %7231 = vmatprep.mubr.bf16.mxu0 0
      %7232 = vmatmul.mubr.bf16.gmra.mrb[0].mxu0 %v6996
      %v7233 = vpop.f32.mrb[0].mxu0
      %v7234 = vadd.f32 0.0, %v7233
      %v7235 = vpop.f32.mrb[0].mxu0
      %v7236 = vpop.f32.mrb[0].mxu0
      %v7237 = vadd.f32 0.0, %v7236
      %v7238 = vpop.f32.mrb[0].mxu0
      %7239 = vmatprep.mubr.bf16.mxu0 0
      %7240 = vmatmul.mubr.bf16.gmra.mrb[0].mxu0 %v7004
      %v7241 = vpop.f32.mrb[0].mxu0
      %v7242 = vadd.f32 0.0, %v7241
      %v7243 = vpop.f32.mrb[0].mxu0
      %v7244 = vpop.f32.mrb[0].mxu0
      %v7245 = vadd.f32 0.0, %v7244
      %v7246 = vpop.f32.mrb[0].mxu0
      %7247 = vmatprep.mubr.bf16.mxu0 0
      %7248 = vmatmul.mubr.bf16.gmra.mrb[0].mxu0 %v7012
      %v7249 = vpop.f32.mrb[0].mxu0
      %v7250 = vadd.f32 0.0, %v7249
      %v7251 = vpop.f32.mrb[0].mxu0
      %v7252 = vpop.f32.mrb[0].mxu0
      %v7253 = vadd.f32 0.0, %v7252
      %v7254 = vpop.f32.mrb[0].mxu0
      %7255 = vmatprep.mubr.bf16.mxu0 0
      %7256 = vmatmul.mubr.bf16.gmra.mrb[0].mxu0 %v7020
      %v7257 = vpop.f32.mrb[0].mxu0
      %v7258 = vadd.f32 0.0, %v7257
      %v7259 = vpop.f32.mrb[0].mxu0
      %v7260 = vpop.f32.mrb[0].mxu0
      %v7261 = vadd.f32 0.0, %v7260
      %v7262 = vpop.f32.mrb[0].mxu0
      %7263 = vdwg.mxu0
      %v7264 = vadd.f32 %v6802, %v7122
      %v7265 = vadd.f32 %v6803, %v7125
      %v7266 = vadd.f32 %v6804, %v7130
      %v7267 = vadd.f32 %v6805, %v7133
      %v7268 = vadd.f32 %v6806, %v7138
      %v7269 = vadd.f32 %v6807, %v7141
      %v7270 = vadd.f32 %v6808, %v7146
      %v7271 = vadd.f32 %v6809, %v7149
      %v7272 = vadd.f32 %v6810, %v7154
      %v7273 = vadd.f32 %v6811, %v7157
      %v7274 = vadd.f32 %v6812, %v7162
      %v7275 = vadd.f32 %v6813, %v7165
      %v7276 = vadd.f32 %v6814, %v7170
      %v7277 = vadd.f32 %v6815, %v7173
      %v7278 = vadd.f32 %v6816, %v7178
      %v7279 = vadd.f32 %v6817, %v7181
      %v7280 = vadd.f32 %v6818, %v7186
      %v7281 = vadd.f32 %v6819, %v7189
      %v7282 = vadd.f32 %v6820, %v7194
      %v7283 = vadd.f32 %v6821, %v7197
      %v7284 = vadd.f32 %v6822, %v7202
      %v7285 = vadd.f32 %v6823, %v7205
      %v7286 = vadd.f32 %v6824, %v7210
      %v7287 = vadd.f32 %v6825, %v7213
      %v7288 = vadd.f32 %v6826, %v7218
      %v7289 = vadd.f32 %v6827, %v7221
      %v7290 = vadd.f32 %v6828, %v7226
      %v7291 = vadd.f32 %v6829, %v7229
      %v7292 = vadd.f32 %v6830, %v7234
      %v7293 = vadd.f32 %v6831, %v7237
      %v7294 = vadd.f32 %v6832, %v7242
      %v7295 = vadd.f32 %v6833, %v7245
      %v7296 = vadd.f32 %v6834, %v7250
      %v7297 = vadd.f32 %v6835, %v7253
      %v7298 = vadd.f32 %v6836, %v7258
      %v7299 = vadd.f32 %v6837, %v7261
      %v7300 = vld [vmem:[#allocation2 + $0x18] sm:$0xff]
      %v7301 = vld [vmem:[#allocation2 + $0x20] sm:$0xff]
      %v7302 = vld [vmem:[#allocation2 + $0x28] sm:$0xff]
      %v7303 = vld [vmem:[#allocation2 + $0x30] sm:$0xff]
      %v7304 = vld [vmem:[#allocation2 + $0x38] sm:$0xff]
      %v7305 = vld [vmem:[#allocation2 + $0x40] sm:$0xff]
      %v7306 = vld [vmem:[#allocation2 + $0x48] sm:$0xff]
      %v7307 = vld [vmem:[#allocation2 + $0x50] sm:$0xff]
      %v7308 = vld [vmem:[#allocation2 + $0x58] sm:$0xff]
      %v7309 = vld [vmem:[#allocation2 + $0x60] sm:$0xff]
      %v7310 = vld [vmem:[#allocation2 + $0x68] sm:$0xff]
      %v7311 = vld [vmem:[#allocation2 + $0x70] sm:$0xff]
      %v7312 = vld [vmem:[#allocation2 + $0x78] sm:$0xff]
      %v7313 = vld [vmem:[#allocation2 + $0x80] sm:$0xff]
      %v7314 = vld [vmem:[#allocation2 + $0x88] sm:$0xff]
      %v7315 = vld [vmem:[#allocation2 + $0x90] sm:$0xff]
      %v7316 = vld [vmem:[#allocation2 + $0x98] sm:$0xff]
      %v7317 = vld [vmem:[#allocation2 + $0xa0] sm:$0xff]
      %v7318 = vld [vmem:[#allocation2 + $0xa8] sm:$0x1]
      %v7319 = vld [vmem:[%s3 + $0x180] sm:$0xf]
      %v7320 = vld [vmem:[%s3 + $0x184] sm:$0xf]
      %v7321 = vld [vmem:[%s3 + $0x188] sm:$0xf]
      %v7322 = vld [vmem:[%s3 + $0x18c] sm:$0xf]
      %v7323 = vld [vmem:[%s3 + $0x190] sm:$0xf]
      %v7324 = vld [vmem:[%s3 + $0x194] sm:$0xf]
      %v7325 = vld [vmem:[%s3 + $0x198] sm:$0xf]
      %v7326 = vld [vmem:[%s3 + $0x19c] sm:$0xf]
      %v7327 = vld [vmem:[%s3 + $0x1a0] sm:$0xf]
      %v7328 = vld [vmem:[%s3 + $0x1a4] sm:$0xf]
      %v7329 = vld [vmem:[%s3 + $0x1a8] sm:$0xf]
      %v7330 = vld [vmem:[%s3 + $0x1ac] sm:$0xf]
      %v7331 = vld [vmem:[%s3 + $0x1b0] sm:$0xf]
      %v7332 = vld [vmem:[%s3 + $0x1b4] sm:$0xf]
      %v7333 = vld [vmem:[%s3 + $0x1b8] sm:$0xf]
      %v7334 = vld [vmem:[%s3 + $0x1bc] sm:$0xf]
      %v7336 = vshrl.u32 %v7300, 16
      %v7338 = vshll.u32 %v7300, 16
      %v7340 = vrot.slane %v7338, 1
      %v7341 = vor.u32 %v7336, %v7340
      %v7343 = vshll.u32 %v7301, 16
      %v7345 = vrot.slane %v7343, 1
      %v7346 = vsel %vm3089, %v7341, %v7345
      %v7347 = vshrl.u32 %v7301, 16
      %v7349 = vor.u32 %v7347, %v7345
      %v7351 = vshll.u32 %v7302, 16
      %v7353 = vrot.slane %v7351, 1
      %v7354 = vsel %vm3089, %v7349, %v7353
      %v7355 = vshrl.u32 %v7302, 16
      %v7357 = vor.u32 %v7355, %v7353
      %v7359 = vshll.u32 %v7303, 16
      %v7361 = vrot.slane %v7359, 1
      %v7362 = vsel %vm3089, %v7357, %v7361
      %v7363 = vshrl.u32 %v7303, 16
      %v7365 = vor.u32 %v7363, %v7361
      %v7367 = vshll.u32 %v7304, 16
      %v7369 = vrot.slane %v7367, 1
      %v7370 = vsel %vm3089, %v7365, %v7369
      %v7371 = vshrl.u32 %v7304, 16
      %v7373 = vor.u32 %v7371, %v7369
      %v7375 = vshll.u32 %v7305, 16
      %v7377 = vrot.slane %v7375, 1
      %v7378 = vsel %vm3089, %v7373, %v7377
      %v7379 = vshrl.u32 %v7305, 16
      %v7381 = vor.u32 %v7379, %v7377
      %v7383 = vshll.u32 %v7306, 16
      %v7385 = vrot.slane %v7383, 1
      %v7386 = vsel %vm3089, %v7381, %v7385
      %v7387 = vshrl.u32 %v7306, 16
      %v7389 = vor.u32 %v7387, %v7385
      %v7391 = vshll.u32 %v7307, 16
      %v7393 = vrot.slane %v7391, 1
      %v7394 = vsel %vm3089, %v7389, %v7393
      %v7395 = vshrl.u32 %v7307, 16
      %v7397 = vor.u32 %v7395, %v7393
      %v7399 = vshll.u32 %v7308, 16
      %v7401 = vrot.slane %v7399, 1
      %v7402 = vsel %vm3089, %v7397, %v7401
      %v7403 = vshrl.u32 %v7308, 16
      %v7405 = vor.u32 %v7403, %v7401
      %v7407 = vshll.u32 %v7309, 16
      %v7409 = vrot.slane %v7407, 1
      %v7410 = vsel %vm3089, %v7405, %v7409
      %v7411 = vshrl.u32 %v7309, 16
      %v7413 = vor.u32 %v7411, %v7409
      %v7415 = vshll.u32 %v7310, 16
      %v7417 = vrot.slane %v7415, 1
      %v7418 = vsel %vm3089, %v7413, %v7417
      %v7419 = vshrl.u32 %v7310, 16
      %v7421 = vor.u32 %v7419, %v7417
      %v7423 = vshll.u32 %v7311, 16
      %v7425 = vrot.slane %v7423, 1
      %v7426 = vsel %vm3089, %v7421, %v7425
      %v7427 = vshrl.u32 %v7311, 16
      %v7429 = vor.u32 %v7427, %v7425
      %v7431 = vshll.u32 %v7312, 16
      %v7433 = vrot.slane %v7431, 1
      %v7434 = vsel %vm3089, %v7429, %v7433
      %v7435 = vshrl.u32 %v7312, 16
      %v7437 = vor.u32 %v7435, %v7433
      %v7439 = vshll.u32 %v7313, 16
      %v7441 = vrot.slane %v7439, 1
      %v7442 = vsel %vm3089, %v7437, %v7441
      %v7443 = vshrl.u32 %v7313, 16
      %v7445 = vor.u32 %v7443, %v7441
      %v7447 = vshll.u32 %v7314, 16
      %v7449 = vrot.slane %v7447, 1
      %v7450 = vsel %vm3089, %v7445, %v7449
      %v7451 = vshrl.u32 %v7314, 16
      %v7453 = vor.u32 %v7451, %v7449
      %v7455 = vshll.u32 %v7315, 16
      %v7457 = vrot.slane %v7455, 1
      %v7458 = vsel %vm3089, %v7453, %v7457
      %v7459 = vshrl.u32 %v7315, 16
      %v7461 = vor.u32 %v7459, %v7457
      %v7463 = vshll.u32 %v7316, 16
      %v7465 = vrot.slane %v7463, 1
      %v7466 = vsel %vm3089, %v7461, %v7465
      %v7467 = vshrl.u32 %v7316, 16
      %v7469 = vor.u32 %v7467, %v7465
      %v7471 = vshll.u32 %v7317, 16
      %v7473 = vrot.slane %v7471, 1
      %v7474 = vsel %vm3089, %v7469, %v7473
      %v7475 = vshrl.u32 %v7317, 16
      %v7477 = vor.u32 %v7475, %v7473
      %v7479 = vshll.u32 %v7318, 16
      %v7481 = vrot.slane %v7479, 1
      %v7482 = vsel %vm3089, %v7477, %v7481
      %v7517 = vunpack.c.l.b16 %v7319
      %v7518 = vunpack.c.l.b16 %v7320
      %v7519 = vunpack.c.l.b16 %v7321
      %v7520 = vunpack.c.l.b16 %v7322
      %v7521 = vunpack.c.l.b16 %v7323
      %v7522 = vunpack.c.l.b16 %v7324
      %v7523 = vunpack.c.l.b16 %v7325
      %v7524 = vunpack.c.l.b16 %v7326
      %v7525 = vunpack.c.l.b16 %v7327
      %v7526 = vunpack.c.l.b16 %v7328
      %v7527 = vunpack.c.l.b16 %v7329
      %v7528 = vunpack.c.l.b16 %v7330
      %v7529 = vunpack.c.l.b16 %v7331
      %v7530 = vunpack.c.l.b16 %v7332
      %v7531 = vunpack.c.l.b16 %v7333
      %v7532 = vunpack.c.l.b16 %v7334
      %v7533 = vpack.c.b16 %v7518, %v7517
      %v7534 = vpack.c.b16 %v7520, %v7519
      %v7535 = vpack.c.b16 %v7522, %v7521
      %v7536 = vpack.c.b16 %v7524, %v7523
      %v7537 = vpack.c.b16 %v7526, %v7525
      %v7538 = vpack.c.b16 %v7528, %v7527
      %v7539 = vpack.c.b16 %v7530, %v7529
      %v7540 = vpack.c.b16 %v7532, %v7531
      %7549 = vmatprep.subr.bf16.mxu0 0
      %7550 = vmatpush1.bf16.msra.mxu0 %v7533
      %7551 = vmatprep.subr.bf16.mxu0 0
      %7552 = vmatpush1.bf16.msra.mxu0 %v7534
      %7553 = vmatprep.subr.bf16.mxu0 0
      %7554 = vmatpush1.bf16.msra.mxu0 %v7535
      %7555 = vmatprep.subr.bf16.mxu0 0
      %7556 = vmatpush1.bf16.msra.mxu0 %v7536
      %7557 = vmatprep.subr.bf16.mxu0 0
      %7558 = vmatpush1.bf16.msra.mxu0 %v7537
      %7559 = vmatprep.subr.bf16.mxu0 0
      %7560 = vmatpush1.bf16.msra.mxu0 %v7538
      %7561 = vmatprep.subr.bf16.mxu0 0
      %7562 = vmatpush1.bf16.msra.mxu0 %v7539
      %7563 = vmatprep.subr.bf16.mxu0 0
      %7564 = vmatpush1.bf16.msra.mxu0 %v7540
      %7565 = vmatprep.subr.bf16.mxu0 0
      %7566 = vmatpush1.bf16.msra.mxu0 0
      %7567 = vmatprep.subr.bf16.mxu0 0
      %7568 = vmatpush1.bf16.msra.mxu0 0
      %7569 = vmatprep.subr.bf16.mxu0 0
      %7570 = vmatpush1.bf16.msra.mxu0 0
      %7571 = vmatprep.subr.bf16.mxu0 0
      %7572 = vmatpush1.bf16.msra.mxu0 0
      %7573 = vmatprep.subr.bf16.mxu0 0
      %7574 = vmatpush1.bf16.msra.mxu0 0
      %7575 = vmatprep.subr.bf16.mxu0 0
      %7576 = vmatpush1.bf16.msra.mxu0 0
      %7577 = vmatprep.subr.bf16.mxu0 0
      %7578 = vmatpush1.bf16.msra.mxu0 0
      %7579 = vmatprep.subr.bf16.mxu0 0
      %7580 = vmatpush1.bf16.msra.mxu0 0
      %7581 = vmatprep.mubr.bf16.mxu0 0
      %7582 = vmatmul.mubr.bf16.gmra.mrb[0].mxu0 %v7346
      %v7583 = vpop.f32.mrb[0].mxu0
      %v7584 = vadd.f32 0.0, %v7583
      %v7585 = vpop.f32.mrb[0].mxu0
      %v7586 = vpop.f32.mrb[0].mxu0
      %v7587 = vadd.f32 0.0, %v7586
      %v7588 = vpop.f32.mrb[0].mxu0
      %7589 = vmatprep.mubr.bf16.mxu0 0
      %7590 = vmatmul.mubr.bf16.gmra.mrb[0].mxu0 %v7354
      %v7591 = vpop.f32.mrb[0].mxu0
      %v7592 = vadd.f32 0.0, %v7591
      %v7593 = vpop.f32.mrb[0].mxu0
      %v7594 = vpop.f32.mrb[0].mxu0
      %v7595 = vadd.f32 0.0, %v7594
      %v7596 = vpop.f32.mrb[0].mxu0
      %7597 = vmatprep.mubr.bf16.mxu0 0
      %7598 = vmatmul.mubr.bf16.gmra.mrb[0].mxu0 %v7362
      %v7599 = vpop.f32.mrb[0].mxu0
      %v7600 = vadd.f32 0.0, %v7599
      %v7601 = vpop.f32.mrb[0].mxu0
      %v7602 = vpop.f32.mrb[0].mxu0
      %v7603 = vadd.f32 0.0, %v7602
      %v7604 = vpop.f32.mrb[0].mxu0
      %7605 = vmatprep.mubr.bf16.mxu0 0
      %7606 = vmatmul.mubr.bf16.gmra.mrb[0].mxu0 %v7370
      %v7607 = vpop.f32.mrb[0].mxu0
      %v7608 = vadd.f32 0.0, %v7607
      %v7609 = vpop.f32.mrb[0].mxu0
      %v7610 = vpop.f32.mrb[0].mxu0
      %v7611 = vadd.f32 0.0, %v7610
      %v7612 = vpop.f32.mrb[0].mxu0
      %7613 = vmatprep.mubr.bf16.mxu0 0
      %7614 = vmatmul.mubr.bf16.gmra.mrb[0].mxu0 %v7378
      %v7615 = vpop.f32.mrb[0].mxu0
      %v7616 = vadd.f32 0.0, %v7615
      %v7617 = vpop.f32.mrb[0].mxu0
      %v7618 = vpop.f32.mrb[0].mxu0
      %v7619 = vadd.f32 0.0, %v7618
      %v7620 = vpop.f32.mrb[0].mxu0
      %7621 = vmatprep.mubr.bf16.mxu0 0
      %7622 = vmatmul.mubr.bf16.gmra.mrb[0].mxu0 %v7386
      %v7623 = vpop.f32.mrb[0].mxu0
      %v7624 = vadd.f32 0.0, %v7623
      %v7625 = vpop.f32.mrb[0].mxu0
      %v7626 = vpop.f32.mrb[0].mxu0
      %v7627 = vadd.f32 0.0, %v7626
      %v7628 = vpop.f32.mrb[0].mxu0
      %7629 = vmatprep.mubr.bf16.mxu0 0
      %7630 = vmatmul.mubr.bf16.gmra.mrb[0].mxu0 %v7394
      %v7631 = vpop.f32.mrb[0].mxu0
      %v7632 = vadd.f32 0.0, %v7631
      %v7633 = vpop.f32.mrb[0].mxu0
      %v7634 = vpop.f32.mrb[0].mxu0
      %v7635 = vadd.f32 0.0, %v7634
      %v7636 = vpop.f32.mrb[0].mxu0
      %7637 = vmatprep.mubr.bf16.mxu0 0
      %7638 = vmatmul.mubr.bf16.gmra.mrb[0].mxu0 %v7402
      %v7639 = vpop.f32.mrb[0].mxu0
      %v7640 = vadd.f32 0.0, %v7639
      %v7641 = vpop.f32.mrb[0].mxu0
      %v7642 = vpop.f32.mrb[0].mxu0
      %v7643 = vadd.f32 0.0, %v7642
      %v7644 = vpop.f32.mrb[0].mxu0
      %7645 = vmatprep.mubr.bf16.mxu0 0
      %7646 = vmatmul.mubr.bf16.gmra.mrb[0].mxu0 %v7410
      %v7647 = vpop.f32.mrb[0].mxu0
      %v7648 = vadd.f32 0.0, %v7647
      %v7649 = vpop.f32.mrb[0].mxu0
      %v7650 = vpop.f32.mrb[0].mxu0
      %v7651 = vadd.f32 0.0, %v7650
      %v7652 = vpop.f32.mrb[0].mxu0
      %7653 = vmatprep.mubr.bf16.mxu0 0
      %7654 = vmatmul.mubr.bf16.gmra.mrb[0].mxu0 %v7418
      %v7655 = vpop.f32.mrb[0].mxu0
      %v7656 = vadd.f32 0.0, %v7655
      %v7657 = vpop.f32.mrb[0].mxu0
      %v7658 = vpop.f32.mrb[0].mxu0
      %v7659 = vadd.f32 0.0, %v7658
      %v7660 = vpop.f32.mrb[0].mxu0
      %7661 = vmatprep.mubr.bf16.mxu0 0
      %7662 = vmatmul.mubr.bf16.gmra.mrb[0].mxu0 %v7426
      %v7663 = vpop.f32.mrb[0].mxu0
      %v7664 = vadd.f32 0.0, %v7663
      %v7665 = vpop.f32.mrb[0].mxu0
      %v7666 = vpop.f32.mrb[0].mxu0
      %v7667 = vadd.f32 0.0, %v7666
      %v7668 = vpop.f32.mrb[0].mxu0
      %7669 = vmatprep.mubr.bf16.mxu0 0
      %7670 = vmatmul.mubr.bf16.gmra.mrb[0].mxu0 %v7434
      %v7671 = vpop.f32.mrb[0].mxu0
      %v7672 = vadd.f32 0.0, %v7671
      %v7673 = vpop.f32.mrb[0].mxu0
      %v7674 = vpop.f32.mrb[0].mxu0
      %v7675 = vadd.f32 0.0, %v7674
      %v7676 = vpop.f32.mrb[0].mxu0
      %7677 = vmatprep.mubr.bf16.mxu0 0
      %7678 = vmatmul.mubr.bf16.gmra.mrb[0].mxu0 %v7442
      %v7679 = vpop.f32.mrb[0].mxu0
      %v7680 = vadd.f32 0.0, %v7679
      %v7681 = vpop.f32.mrb[0].mxu0
      %v7682 = vpop.f32.mrb[0].mxu0
      %v7683 = vadd.f32 0.0, %v7682
      %v7684 = vpop.f32.mrb[0].mxu0
      %7685 = vmatprep.mubr.bf16.mxu0 0
      %7686 = vmatmul.mubr.bf16.gmra.mrb[0].mxu0 %v7450
      %v7687 = vpop.f32.mrb[0].mxu0
      %v7688 = vadd.f32 0.0, %v7687
      %v7689 = vpop.f32.mrb[0].mxu0
      %v7690 = vpop.f32.mrb[0].mxu0
      %v7691 = vadd.f32 0.0, %v7690
      %v7692 = vpop.f32.mrb[0].mxu0
      %7693 = vmatprep.mubr.bf16.mxu0 0
      %7694 = vmatmul.mubr.bf16.gmra.mrb[0].mxu0 %v7458
      %v7695 = vpop.f32.mrb[0].mxu0
      %v7696 = vadd.f32 0.0, %v7695
      %v7697 = vpop.f32.mrb[0].mxu0
      %v7698 = vpop.f32.mrb[0].mxu0
      %v7699 = vadd.f32 0.0, %v7698
      %v7700 = vpop.f32.mrb[0].mxu0
      %7701 = vmatprep.mubr.bf16.mxu0 0
      %7702 = vmatmul.mubr.bf16.gmra.mrb[0].mxu0 %v7466
      %v7703 = vpop.f32.mrb[0].mxu0
      %v7704 = vadd.f32 0.0, %v7703
      %v7705 = vpop.f32.mrb[0].mxu0
      %v7706 = vpop.f32.mrb[0].mxu0
      %v7707 = vadd.f32 0.0, %v7706
      %v7708 = vpop.f32.mrb[0].mxu0
      %7709 = vmatprep.mubr.bf16.mxu0 0
      %7710 = vmatmul.mubr.bf16.gmra.mrb[0].mxu0 %v7474
      %v7711 = vpop.f32.mrb[0].mxu0
      %v7712 = vadd.f32 0.0, %v7711
      %v7713 = vpop.f32.mrb[0].mxu0
      %v7714 = vpop.f32.mrb[0].mxu0
      %v7715 = vadd.f32 0.0, %v7714
      %v7716 = vpop.f32.mrb[0].mxu0
      %7717 = vmatprep.mubr.bf16.mxu0 0
      %7718 = vmatmul.mubr.bf16.gmra.mrb[0].mxu0 %v7482
      %v7719 = vpop.f32.mrb[0].mxu0
      %v7720 = vadd.f32 0.0, %v7719
      %v7721 = vpop.f32.mrb[0].mxu0
      %v7722 = vpop.f32.mrb[0].mxu0
      %v7723 = vadd.f32 0.0, %v7722
      %v7724 = vpop.f32.mrb[0].mxu0
      %7725 = vdwg.mxu0
      %v7726 = vadd.f32 %v7264, %v7584
      %v7727 = vadd.f32 %v7265, %v7587
      %v7728 = vadd.f32 %v7266, %v7592
      %v7729 = vadd.f32 %v7267, %v7595
      %v7730 = vadd.f32 %v7268, %v7600
      %v7731 = vadd.f32 %v7269, %v7603
      %v7732 = vadd.f32 %v7270, %v7608
      %v7733 = vadd.f32 %v7271, %v7611
      %v7734 = vadd.f32 %v7272, %v7616
      %v7735 = vadd.f32 %v7273, %v7619
      %v7736 = vadd.f32 %v7274, %v7624
      %v7737 = vadd.f32 %v7275, %v7627
      %v7738 = vadd.f32 %v7276, %v7632
      %v7739 = vadd.f32 %v7277, %v7635
      %v7740 = vadd.f32 %v7278, %v7640
      %v7741 = vadd.f32 %v7279, %v7643
      %v7742 = vadd.f32 %v7280, %v7648
      %v7743 = vadd.f32 %v7281, %v7651
      %v7744 = vadd.f32 %v7282, %v7656
      %v7745 = vadd.f32 %v7283, %v7659
      %v7746 = vadd.f32 %v7284, %v7664
      %v7747 = vadd.f32 %v7285, %v7667
      %v7748 = vadd.f32 %v7286, %v7672
      %v7749 = vadd.f32 %v7287, %v7675
      %v7750 = vadd.f32 %v7288, %v7680
      %v7751 = vadd.f32 %v7289, %v7683
      %v7752 = vadd.f32 %v7290, %v7688
      %v7753 = vadd.f32 %v7291, %v7691
      %v7754 = vadd.f32 %v7292, %v7696
      %v7755 = vadd.f32 %v7293, %v7699
      %v7756 = vadd.f32 %v7294, %v7704
      %v7757 = vadd.f32 %v7295, %v7707
      %v7758 = vadd.f32 %v7296, %v7712
      %v7759 = vadd.f32 %v7297, %v7715
      %v7760 = vadd.f32 %v7298, %v7720
      %v7761 = vadd.f32 %v7299, %v7723
      %v7762 = vld [vmem:[#allocation2 + $0x18] sm:$0xfe]
      %v7763 = vld [vmem:[%s3 + $0x1c0] sm:$0xf]
      %v7764 = vld [vmem:[%s3 + $0x1c4] sm:$0xf]
      %v7765 = vld [vmem:[%s3 + $0x1c8] sm:$0xf]
      %v7766 = vld [vmem:[%s3 + $0x1cc] sm:$0xf]
      %v7767 = vld [vmem:[%s3 + $0x1d0] sm:$0xf]
      %v7768 = vld [vmem:[%s3 + $0x1d4] sm:$0xf]
      %v7769 = vld [vmem:[%s3 + $0x1d8] sm:$0xf]
      %v7770 = vld [vmem:[%s3 + $0x1dc] sm:$0xf]
      %v7771 = vld [vmem:[%s3 + $0x1e0] sm:$0xf]
      %v7772 = vld [vmem:[%s3 + $0x1e4] sm:$0xf]
      %v7773 = vld [vmem:[%s3 + $0x1e8] sm:$0xf]
      %v7774 = vld [vmem:[%s3 + $0x1ec] sm:$0xf]
      %v7775 = vld [vmem:[%s3 + $0x1f0] sm:$0xf]
      %v7776 = vld [vmem:[%s3 + $0x1f4] sm:$0xf]
      %v7777 = vld [vmem:[%s3 + $0x1f8] sm:$0xf]
      %v7778 = vld [vmem:[%s3 + $0x1fc] sm:$0xf]
      %v7798 = vrot.slane %v7762, 1
      %v7799 = vrot.slane %v7301, 1
      %v7800 = vsel %vm4070, %v7798, %v7799
      %v7801 = vrot.slane %v7302, 1
      %v7802 = vsel %vm4070, %v7799, %v7801
      %v7803 = vrot.slane %v7303, 1
      %v7804 = vsel %vm4070, %v7801, %v7803
      %v7805 = vrot.slane %v7304, 1
      %v7806 = vsel %vm4070, %v7803, %v7805
      %v7807 = vrot.slane %v7305, 1
      %v7808 = vsel %vm4070, %v7805, %v7807
      %v7809 = vrot.slane %v7306, 1
      %v7810 = vsel %vm4070, %v7807, %v7809
      %v7811 = vrot.slane %v7307, 1
      %v7812 = vsel %vm4070, %v7809, %v7811
      %v7813 = vrot.slane %v7308, 1
      %v7814 = vsel %vm4070, %v7811, %v7813
      %v7815 = vrot.slane %v7309, 1
      %v7816 = vsel %vm4070, %v7813, %v7815
      %v7817 = vrot.slane %v7310, 1
      %v7818 = vsel %vm4070, %v7815, %v7817
      %v7819 = vrot.slane %v7311, 1
      %v7820 = vsel %vm4070, %v7817, %v7819
      %v7821 = vrot.slane %v7312, 1
      %v7822 = vsel %vm4070, %v7819, %v7821
      %v7823 = vrot.slane %v7313, 1
      %v7824 = vsel %vm4070, %v7821, %v7823
      %v7825 = vrot.slane %v7314, 1
      %v7826 = vsel %vm4070, %v7823, %v7825
      %v7827 = vrot.slane %v7315, 1
      %v7828 = vsel %vm4070, %v7825, %v7827
      %v7829 = vrot.slane %v7316, 1
      %v7830 = vsel %vm4070, %v7827, %v7829
      %v7831 = vrot.slane %v7317, 1
      %v7832 = vsel %vm4070, %v7829, %v7831
      %v7833 = vrot.slane %v7318, 1
      %v7834 = vsel %vm4070, %v7831, %v7833
      %v7869 = vunpack.c.l.b16 %v7763
      %v7870 = vunpack.c.l.b16 %v7764
      %v7871 = vunpack.c.l.b16 %v7765
      %v7872 = vunpack.c.l.b16 %v7766
      %v7873 = vunpack.c.l.b16 %v7767
      %v7874 = vunpack.c.l.b16 %v7768
      %v7875 = vunpack.c.l.b16 %v7769
      %v7876 = vunpack.c.l.b16 %v7770
      %v7877 = vunpack.c.l.b16 %v7771
      %v7878 = vunpack.c.l.b16 %v7772
      %v7879 = vunpack.c.l.b16 %v7773
      %v7880 = vunpack.c.l.b16 %v7774
      %v7881 = vunpack.c.l.b16 %v7775
      %v7882 = vunpack.c.l.b16 %v7776
      %v7883 = vunpack.c.l.b16 %v7777
      %v7884 = vunpack.c.l.b16 %v7778
      %v7885 = vpack.c.b16 %v7870, %v7869
      %v7886 = vpack.c.b16 %v7872, %v7871
      %v7887 = vpack.c.b16 %v7874, %v7873
      %v7888 = vpack.c.b16 %v7876, %v7875
      %v7889 = vpack.c.b16 %v7878, %v7877
      %v7890 = vpack.c.b16 %v7880, %v7879
      %v7891 = vpack.c.b16 %v7882, %v7881
      %v7892 = vpack.c.b16 %v7884, %v7883
      %7901 = vmatprep.subr.bf16.mxu0 0
      %7902 = vmatpush1.bf16.msra.mxu0 %v7885
      %7903 = vmatprep.subr.bf16.mxu0 0
      %7904 = vmatpush1.bf16.msra.mxu0 %v7886
      %7905 = vmatprep.subr.bf16.mxu0 0
      %7906 = vmatpush1.bf16.msra.mxu0 %v7887
      %7907 = vmatprep.subr.bf16.mxu0 0
      %7908 = vmatpush1.bf16.msra.mxu0 %v7888
      %7909 = vmatprep.subr.bf16.mxu0 0
      %7910 = vmatpush1.bf16.msra.mxu0 %v7889
      %7911 = vmatprep.subr.bf16.mxu0 0
      %7912 = vmatpush1.bf16.msra.mxu0 %v7890
      %7913 = vmatprep.subr.bf16.mxu0 0
      %7914 = vmatpush1.bf16.msra.mxu0 %v7891
      %7915 = vmatprep.subr.bf16.mxu0 0
      %7916 = vmatpush1.bf16.msra.mxu0 %v7892
      %7917 = vmatprep.subr.bf16.mxu0 0
      %7918 = vmatpush1.bf16.msra.mxu0 0
      %7919 = vmatprep.subr.bf16.mxu0 0
      %7920 = vmatpush1.bf16.msra.mxu0 0
      %7921 = vmatprep.subr.bf16.mxu0 0
      %7922 = vmatpush1.bf16.msra.mxu0 0
      %7923 = vmatprep.subr.bf16.mxu0 0
      %7924 = vmatpush1.bf16.msra.mxu0 0
      %7925 = vmatprep.subr.bf16.mxu0 0
      %7926 = vmatpush1.bf16.msra.mxu0 0
      %7927 = vmatprep.subr.bf16.mxu0 0
      %7928 = vmatpush1.bf16.msra.mxu0 0
      %7929 = vmatprep.subr.bf16.mxu0 0
      %7930 = vmatpush1.bf16.msra.mxu0 0
      %7931 = vmatprep.subr.bf16.mxu0 0
      %7932 = vmatpush1.bf16.msra.mxu0 0
      %7933 = vmatprep.mubr.bf16.mxu0 0
      %7934 = vmatmul.mubr.bf16.gmra.mrb[0].mxu0 %v7800
      %v7935 = vpop.f32.mrb[0].mxu0
      %v7936 = vadd.f32 0.0, %v7935
      %v7937 = vpop.f32.mrb[0].mxu0
      %v7938 = vpop.f32.mrb[0].mxu0
      %v7939 = vadd.f32 0.0, %v7938
      %v7940 = vpop.f32.mrb[0].mxu0
      %7941 = vmatprep.mubr.bf16.mxu0 0
      %7942 = vmatmul.mubr.bf16.gmra.mrb[0].mxu0 %v7802
      %v7943 = vpop.f32.mrb[0].mxu0
      %v7944 = vadd.f32 0.0, %v7943
      %v7945 = vpop.f32.mrb[0].mxu0
      %v7946 = vpop.f32.mrb[0].mxu0
      %v7947 = vadd.f32 0.0, %v7946
      %v7948 = vpop.f32.mrb[0].mxu0
      %7949 = vmatprep.mubr.bf16.mxu0 0
      %7950 = vmatmul.mubr.bf16.gmra.mrb[0].mxu0 %v7804
      %v7951 = vpop.f32.mrb[0].mxu0
      %v7952 = vadd.f32 0.0, %v7951
      %v7953 = vpop.f32.mrb[0].mxu0
      %v7954 = vpop.f32.mrb[0].mxu0
      %v7955 = vadd.f32 0.0, %v7954
      %v7956 = vpop.f32.mrb[0].mxu0
      %7957 = vmatprep.mubr.bf16.mxu0 0
      %7958 = vmatmul.mubr.bf16.gmra.mrb[0].mxu0 %v7806
      %v7959 = vpop.f32.mrb[0].mxu0
      %v7960 = vadd.f32 0.0, %v7959
      %v7961 = vpop.f32.mrb[0].mxu0
      %v7962 = vpop.f32.mrb[0].mxu0
      %v7963 = vadd.f32 0.0, %v7962
      %v7964 = vpop.f32.mrb[0].mxu0
      %7965 = vmatprep.mubr.bf16.mxu0 0
      %7966 = vmatmul.mubr.bf16.gmra.mrb[0].mxu0 %v7808
      %v7967 = vpop.f32.mrb[0].mxu0
      %v7968 = vadd.f32 0.0, %v7967
      %v7969 = vpop.f32.mrb[0].mxu0
      %v7970 = vpop.f32.mrb[0].mxu0
      %v7971 = vadd.f32 0.0, %v7970
      %v7972 = vpop.f32.mrb[0].mxu0
      %7973 = vmatprep.mubr.bf16.mxu0 0
      %7974 = vmatmul.mubr.bf16.gmra.mrb[0].mxu0 %v7810
      %v7975 = vpop.f32.mrb[0].mxu0
      %v7976 = vadd.f32 0.0, %v7975
      %v7977 = vpop.f32.mrb[0].mxu0
      %v7978 = vpop.f32.mrb[0].mxu0
      %v7979 = vadd.f32 0.0, %v7978
      %v7980 = vpop.f32.mrb[0].mxu0
      %7981 = vmatprep.mubr.bf16.mxu0 0
      %7982 = vmatmul.mubr.bf16.gmra.mrb[0].mxu0 %v7812
      %v7983 = vpop.f32.mrb[0].mxu0
      %v7984 = vadd.f32 0.0, %v7983
      %v7985 = vpop.f32.mrb[0].mxu0
      %v7986 = vpop.f32.mrb[0].mxu0
      %v7987 = vadd.f32 0.0, %v7986
      %v7988 = vpop.f32.mrb[0].mxu0
      %7989 = vmatprep.mubr.bf16.mxu0 0
      %7990 = vmatmul.mubr.bf16.gmra.mrb[0].mxu0 %v7814
      %v7991 = vpop.f32.mrb[0].mxu0
      %v7992 = vadd.f32 0.0, %v7991
      %v7993 = vpop.f32.mrb[0].mxu0
      %v7994 = vpop.f32.mrb[0].mxu0
      %v7995 = vadd.f32 0.0, %v7994
      %v7996 = vpop.f32.mrb[0].mxu0
      %7997 = vmatprep.mubr.bf16.mxu0 0
      %7998 = vmatmul.mubr.bf16.gmra.mrb[0].mxu0 %v7816
      %v7999 = vpop.f32.mrb[0].mxu0
      %v8000 = vadd.f32 0.0, %v7999
      %v8001 = vpop.f32.mrb[0].mxu0
      %v8002 = vpop.f32.mrb[0].mxu0
      %v8003 = vadd.f32 0.0, %v8002
      %v8004 = vpop.f32.mrb[0].mxu0
      %8005 = vmatprep.mubr.bf16.mxu0 0
      %8006 = vmatmul.mubr.bf16.gmra.mrb[0].mxu0 %v7818
      %v8007 = vpop.f32.mrb[0].mxu0
      %v8008 = vadd.f32 0.0, %v8007
      %v8009 = vpop.f32.mrb[0].mxu0
      %v8010 = vpop.f32.mrb[0].mxu0
      %v8011 = vadd.f32 0.0, %v8010
      %v8012 = vpop.f32.mrb[0].mxu0
      %8013 = vmatprep.mubr.bf16.mxu0 0
      %8014 = vmatmul.mubr.bf16.gmra.mrb[0].mxu0 %v7820
      %v8015 = vpop.f32.mrb[0].mxu0
      %v8016 = vadd.f32 0.0, %v8015
      %v8017 = vpop.f32.mrb[0].mxu0
      %v8018 = vpop.f32.mrb[0].mxu0
      %v8019 = vadd.f32 0.0, %v8018
      %v8020 = vpop.f32.mrb[0].mxu0
      %8021 = vmatprep.mubr.bf16.mxu0 0
      %8022 = vmatmul.mubr.bf16.gmra.mrb[0].mxu0 %v7822
      %v8023 = vpop.f32.mrb[0].mxu0
      %v8024 = vadd.f32 0.0, %v8023
      %v8025 = vpop.f32.mrb[0].mxu0
      %v8026 = vpop.f32.mrb[0].mxu0
      %v8027 = vadd.f32 0.0, %v8026
      %v8028 = vpop.f32.mrb[0].mxu0
      %8029 = vmatprep.mubr.bf16.mxu0 0
      %8030 = vmatmul.mubr.bf16.gmra.mrb[0].mxu0 %v7824
      %v8031 = vpop.f32.mrb[0].mxu0
      %v8032 = vadd.f32 0.0, %v8031
      %v8033 = vpop.f32.mrb[0].mxu0
      %v8034 = vpop.f32.mrb[0].mxu0
      %v8035 = vadd.f32 0.0, %v8034
      %v8036 = vpop.f32.mrb[0].mxu0
      %8037 = vmatprep.mubr.bf16.mxu0 0
      %8038 = vmatmul.mubr.bf16.gmra.mrb[0].mxu0 %v7826
      %v8039 = vpop.f32.mrb[0].mxu0
      %v8040 = vadd.f32 0.0, %v8039
      %v8041 = vpop.f32.mrb[0].mxu0
      %v8042 = vpop.f32.mrb[0].mxu0
      %v8043 = vadd.f32 0.0, %v8042
      %v8044 = vpop.f32.mrb[0].mxu0
      %8045 = vmatprep.mubr.bf16.mxu0 0
      %8046 = vmatmul.mubr.bf16.gmra.mrb[0].mxu0 %v7828
      %v8047 = vpop.f32.mrb[0].mxu0
      %v8048 = vadd.f32 0.0, %v8047
      %v8049 = vpop.f32.mrb[0].mxu0
      %v8050 = vpop.f32.mrb[0].mxu0
      %v8051 = vadd.f32 0.0, %v8050
      %v8052 = vpop.f32.mrb[0].mxu0
      %8053 = vmatprep.mubr.bf16.mxu0 0
      %8054 = vmatmul.mubr.bf16.gmra.mrb[0].mxu0 %v7830
      %v8055 = vpop.f32.mrb[0].mxu0
      %v8056 = vadd.f32 0.0, %v8055
      %v8057 = vpop.f32.mrb[0].mxu0
      %v8058 = vpop.f32.mrb[0].mxu0
      %v8059 = vadd.f32 0.0, %v8058
      %v8060 = vpop.f32.mrb[0].mxu0
      %8061 = vmatprep.mubr.bf16.mxu0 0
      %8062 = vmatmul.mubr.bf16.gmra.mrb[0].mxu0 %v7832
      %v8063 = vpop.f32.mrb[0].mxu0
      %v8064 = vadd.f32 0.0, %v8063
      %v8065 = vpop.f32.mrb[0].mxu0
      %v8066 = vpop.f32.mrb[0].mxu0
      %v8067 = vadd.f32 0.0, %v8066
      %v8068 = vpop.f32.mrb[0].mxu0
      %8069 = vmatprep.mubr.bf16.mxu0 0
      %8070 = vmatmul.mubr.bf16.gmra.mrb[0].mxu0 %v7834
      %v8071 = vpop.f32.mrb[0].mxu0
      %v8072 = vadd.f32 0.0, %v8071
      %v8073 = vpop.f32.mrb[0].mxu0
      %v8074 = vpop.f32.mrb[0].mxu0
      %v8075 = vadd.f32 0.0, %v8074
      %v8076 = vpop.f32.mrb[0].mxu0
      %8077 = vdwg.mxu0
      %v8078 = vadd.f32 %v7726, %v7936
      %v8079 = vadd.f32 %v7727, %v7939
      %v8080 = vadd.f32 %v7728, %v7944
      %v8081 = vadd.f32 %v7729, %v7947
      %v8082 = vadd.f32 %v7730, %v7952
      %v8083 = vadd.f32 %v7731, %v7955
      %v8084 = vadd.f32 %v7732, %v7960
      %v8085 = vadd.f32 %v7733, %v7963
      %v8086 = vadd.f32 %v7734, %v7968
      %v8087 = vadd.f32 %v7735, %v7971
      %v8088 = vadd.f32 %v7736, %v7976
      %v8089 = vadd.f32 %v7737, %v7979
      %v8090 = vadd.f32 %v7738, %v7984
      %v8091 = vadd.f32 %v7739, %v7987
      %v8092 = vadd.f32 %v7740, %v7992
      %v8093 = vadd.f32 %v7741, %v7995
      %v8094 = vadd.f32 %v7742, %v8000
      %v8095 = vadd.f32 %v7743, %v8003
      %v8096 = vadd.f32 %v7744, %v8008
      %v8097 = vadd.f32 %v7745, %v8011
      %v8098 = vadd.f32 %v7746, %v8016
      %v8099 = vadd.f32 %v7747, %v8019
      %v8100 = vadd.f32 %v7748, %v8024
      %v8101 = vadd.f32 %v7749, %v8027
      %v8102 = vadd.f32 %v7750, %v8032
      %v8103 = vadd.f32 %v7751, %v8035
      %v8104 = vadd.f32 %v7752, %v8040
      %v8105 = vadd.f32 %v7753, %v8043
      %v8106 = vadd.f32 %v7754, %v8048
      %v8107 = vadd.f32 %v7755, %v8051
      %v8108 = vadd.f32 %v7756, %v8056
      %v8109 = vadd.f32 %v7757, %v8059
      %v8110 = vadd.f32 %v7758, %v8064
      %v8111 = vadd.f32 %v7759, %v8067
      %v8112 = vadd.f32 %v7760, %v8072
      %v8113 = vadd.f32 %v7761, %v8075
      %v8114 = vld [vmem:[#allocation2 + $0xa8] sm:$0x3]
      %v8115 = vld [vmem:[%s3 + $0x200] sm:$0xf]
      %v8116 = vld [vmem:[%s3 + $0x204] sm:$0xf]
      %v8117 = vld [vmem:[%s3 + $0x208] sm:$0xf]
      %v8118 = vld [vmem:[%s3 + $0x20c] sm:$0xf]
      %v8119 = vld [vmem:[%s3 + $0x210] sm:$0xf]
      %v8120 = vld [vmem:[%s3 + $0x214] sm:$0xf]
      %v8121 = vld [vmem:[%s3 + $0x218] sm:$0xf]
      %v8122 = vld [vmem:[%s3 + $0x21c] sm:$0xf]
      %v8123 = vld [vmem:[%s3 + $0x220] sm:$0xf]
      %v8124 = vld [vmem:[%s3 + $0x224] sm:$0xf]
      %v8125 = vld [vmem:[%s3 + $0x228] sm:$0xf]
      %v8126 = vld [vmem:[%s3 + $0x22c] sm:$0xf]
      %v8127 = vld [vmem:[%s3 + $0x230] sm:$0xf]
      %v8128 = vld [vmem:[%s3 + $0x234] sm:$0xf]
      %v8129 = vld [vmem:[%s3 + $0x238] sm:$0xf]
      %v8130 = vld [vmem:[%s3 + $0x23c] sm:$0xf]
      %v8132 = vshrl.u32 %v7762, 16
      %v8134 = vrot.slane %v8132, 1
      %v8135 = vshll.u32 %v7762, 16
      %v8137 = vrot.slane %v8135, 2
      %v8138 = vor.u32 %v8134, %v8137
      %v8139 = vrot.slane %v7347, 1
      %v8140 = vrot.slane %v7343, 2
      %v8141 = vor.u32 %v8139, %v8140
      %v8142 = vsel %vm4387, %v8138, %v8141
      %v8143 = vrot.slane %v7355, 1
      %v8144 = vrot.slane %v7351, 2
      %v8145 = vor.u32 %v8143, %v8144
      %v8146 = vsel %vm4387, %v8141, %v8145
      %v8147 = vrot.slane %v7363, 1
      %v8148 = vrot.slane %v7359, 2
      %v8149 = vor.u32 %v8147, %v8148
      %v8150 = vsel %vm4387, %v8145, %v8149
      %v8151 = vrot.slane %v7371, 1
      %v8152 = vrot.slane %v7367, 2
      %v8153 = vor.u32 %v8151, %v8152
      %v8154 = vsel %vm4387, %v8149, %v8153
      %v8155 = vrot.slane %v7379, 1
      %v8156 = vrot.slane %v7375, 2
      %v8157 = vor.u32 %v8155, %v8156
      %v8158 = vsel %vm4387, %v8153, %v8157
      %v8159 = vrot.slane %v7387, 1
      %v8160 = vrot.slane %v7383, 2
      %v8161 = vor.u32 %v8159, %v8160
      %v8162 = vsel %vm4387, %v8157, %v8161
      %v8163 = vrot.slane %v7395, 1
      %v8164 = vrot.slane %v7391, 2
      %v8165 = vor.u32 %v8163, %v8164
      %v8166 = vsel %vm4387, %v8161, %v8165
      %v8167 = vrot.slane %v7403, 1
      %v8168 = vrot.slane %v7399, 2
      %v8169 = vor.u32 %v8167, %v8168
      %v8170 = vsel %vm4387, %v8165, %v8169
      %v8171 = vrot.slane %v7411, 1
      %v8172 = vrot.slane %v7407, 2
      %v8173 = vor.u32 %v8171, %v8172
      %v8174 = vsel %vm4387, %v8169, %v8173
      %v8175 = vrot.slane %v7419, 1
      %v8176 = vrot.slane %v7415, 2
      %v8177 = vor.u32 %v8175, %v8176
      %v8178 = vsel %vm4387, %v8173, %v8177
      %v8179 = vrot.slane %v7427, 1
      %v8180 = vrot.slane %v7423, 2
      %v8181 = vor.u32 %v8179, %v8180
      %v8182 = vsel %vm4387, %v8177, %v8181
      %v8183 = vrot.slane %v7435, 1
      %v8184 = vrot.slane %v7431, 2
      %v8185 = vor.u32 %v8183, %v8184
      %v8186 = vsel %vm4387, %v8181, %v8185
      %v8187 = vrot.slane %v7443, 1
      %v8188 = vrot.slane %v7439, 2
      %v8189 = vor.u32 %v8187, %v8188
      %v8190 = vsel %vm4387, %v8185, %v8189
      %v8191 = vrot.slane %v7451, 1
      %v8192 = vrot.slane %v7447, 2
      %v8193 = vor.u32 %v8191, %v8192
      %v8194 = vsel %vm4387, %v8189, %v8193
      %v8195 = vrot.slane %v7459, 1
      %v8196 = vrot.slane %v7455, 2
      %v8197 = vor.u32 %v8195, %v8196
      %v8198 = vsel %vm4387, %v8193, %v8197
      %v8199 = vrot.slane %v7467, 1
      %v8200 = vrot.slane %v7463, 2
      %v8201 = vor.u32 %v8199, %v8200
      %v8202 = vsel %vm4387, %v8197, %v8201
      %v8203 = vrot.slane %v7475, 1
      %v8204 = vrot.slane %v7471, 2
      %v8205 = vor.u32 %v8203, %v8204
      %v8206 = vsel %vm4387, %v8201, %v8205
      %v8208 = vshrl.u32 %v8114, 16
      %v8210 = vrot.slane %v8208, 1
      %v8211 = vshll.u32 %v8114, 16
      %v8213 = vrot.slane %v8211, 2
      %v8214 = vor.u32 %v8210, %v8213
      %v8215 = vsel %vm4387, %v8205, %v8214
      %v8250 = vunpack.c.l.b16 %v8115
      %v8251 = vunpack.c.l.b16 %v8116
      %v8252 = vunpack.c.l.b16 %v8117
      %v8253 = vunpack.c.l.b16 %v8118
      %v8254 = vunpack.c.l.b16 %v8119
      %v8255 = vunpack.c.l.b16 %v8120
      %v8256 = vunpack.c.l.b16 %v8121
      %v8257 = vunpack.c.l.b16 %v8122
      %v8258 = vunpack.c.l.b16 %v8123
      %v8259 = vunpack.c.l.b16 %v8124
      %v8260 = vunpack.c.l.b16 %v8125
      %v8261 = vunpack.c.l.b16 %v8126
      %v8262 = vunpack.c.l.b16 %v8127
      %v8263 = vunpack.c.l.b16 %v8128
      %v8264 = vunpack.c.l.b16 %v8129
      %v8265 = vunpack.c.l.b16 %v8130
      %v8266 = vpack.c.b16 %v8251, %v8250
      %v8267 = vpack.c.b16 %v8253, %v8252
      %v8268 = vpack.c.b16 %v8255, %v8254
      %v8269 = vpack.c.b16 %v8257, %v8256
      %v8270 = vpack.c.b16 %v8259, %v8258
      %v8271 = vpack.c.b16 %v8261, %v8260
      %v8272 = vpack.c.b16 %v8263, %v8262
      %v8273 = vpack.c.b16 %v8265, %v8264
      %8282 = vmatprep.subr.bf16.mxu0 0
      %8283 = vmatpush1.bf16.msra.mxu0 %v8266
      %8284 = vmatprep.subr.bf16.mxu0 0
      %8285 = vmatpush1.bf16.msra.mxu0 %v8267
      %8286 = vmatprep.subr.bf16.mxu0 0
      %8287 = vmatpush1.bf16.msra.mxu0 %v8268
      %8288 = vmatprep.subr.bf16.mxu0 0
      %8289 = vmatpush1.bf16.msra.mxu0 %v8269
      %8290 = vmatprep.subr.bf16.mxu0 0
      %8291 = vmatpush1.bf16.msra.mxu0 %v8270
      %8292 = vmatprep.subr.bf16.mxu0 0
      %8293 = vmatpush1.bf16.msra.mxu0 %v8271
      %8294 = vmatprep.subr.bf16.mxu0 0
      %8295 = vmatpush1.bf16.msra.mxu0 %v8272
      %8296 = vmatprep.subr.bf16.mxu0 0
      %8297 = vmatpush1.bf16.msra.mxu0 %v8273
      %8298 = vmatprep.subr.bf16.mxu0 0
      %8299 = vmatpush1.bf16.msra.mxu0 0
      %8300 = vmatprep.subr.bf16.mxu0 0
      %8301 = vmatpush1.bf16.msra.mxu0 0
      %8302 = vmatprep.subr.bf16.mxu0 0
      %8303 = vmatpush1.bf16.msra.mxu0 0
      %8304 = vmatprep.subr.bf16.mxu0 0
      %8305 = vmatpush1.bf16.msra.mxu0 0
      %8306 = vmatprep.subr.bf16.mxu0 0
      %8307 = vmatpush1.bf16.msra.mxu0 0
      %8308 = vmatprep.subr.bf16.mxu0 0
      %8309 = vmatpush1.bf16.msra.mxu0 0
      %8310 = vmatprep.subr.bf16.mxu0 0
      %8311 = vmatpush1.bf16.msra.mxu0 0
      %8312 = vmatprep.subr.bf16.mxu0 0
      %8313 = vmatpush1.bf16.msra.mxu0 0
      %8314 = vmatprep.mubr.bf16.mxu0 0
      %8315 = vmatmul.mubr.bf16.gmra.mrb[0].mxu0 %v8142
      %v8316 = vpop.f32.mrb[0].mxu0
      %v8317 = vadd.f32 0.0, %v8316
      %v8318 = vpop.f32.mrb[0].mxu0
      %v8319 = vpop.f32.mrb[0].mxu0
      %v8320 = vadd.f32 0.0, %v8319
      %v8321 = vpop.f32.mrb[0].mxu0
      %8322 = vmatprep.mubr.bf16.mxu0 0
      %8323 = vmatmul.mubr.bf16.gmra.mrb[0].mxu0 %v8146
      %v8324 = vpop.f32.mrb[0].mxu0
      %v8325 = vadd.f32 0.0, %v8324
      %v8326 = vpop.f32.mrb[0].mxu0
      %v8327 = vpop.f32.mrb[0].mxu0
      %v8328 = vadd.f32 0.0, %v8327
      %v8329 = vpop.f32.mrb[0].mxu0
      %8330 = vmatprep.mubr.bf16.mxu0 0
      %8331 = vmatmul.mubr.bf16.gmra.mrb[0].mxu0 %v8150
      %v8332 = vpop.f32.mrb[0].mxu0
      %v8333 = vadd.f32 0.0, %v8332
      %v8334 = vpop.f32.mrb[0].mxu0
      %v8335 = vpop.f32.mrb[0].mxu0
      %v8336 = vadd.f32 0.0, %v8335
      %v8337 = vpop.f32.mrb[0].mxu0
      %8338 = vmatprep.mubr.bf16.mxu0 0
      %8339 = vmatmul.mubr.bf16.gmra.mrb[0].mxu0 %v8154
      %v8340 = vpop.f32.mrb[0].mxu0
      %v8341 = vadd.f32 0.0, %v8340
      %v8342 = vpop.f32.mrb[0].mxu0
      %v8343 = vpop.f32.mrb[0].mxu0
      %v8344 = vadd.f32 0.0, %v8343
      %v8345 = vpop.f32.mrb[0].mxu0
      %8346 = vmatprep.mubr.bf16.mxu0 0
      %8347 = vmatmul.mubr.bf16.gmra.mrb[0].mxu0 %v8158
      %v8348 = vpop.f32.mrb[0].mxu0
      %v8349 = vadd.f32 0.0, %v8348
      %v8350 = vpop.f32.mrb[0].mxu0
      %v8351 = vpop.f32.mrb[0].mxu0
      %v8352 = vadd.f32 0.0, %v8351
      %v8353 = vpop.f32.mrb[0].mxu0
      %8354 = vmatprep.mubr.bf16.mxu0 0
      %8355 = vmatmul.mubr.bf16.gmra.mrb[0].mxu0 %v8162
      %v8356 = vpop.f32.mrb[0].mxu0
      %v8357 = vadd.f32 0.0, %v8356
      %v8358 = vpop.f32.mrb[0].mxu0
      %v8359 = vpop.f32.mrb[0].mxu0
      %v8360 = vadd.f32 0.0, %v8359
      %v8361 = vpop.f32.mrb[0].mxu0
      %8362 = vmatprep.mubr.bf16.mxu0 0
      %8363 = vmatmul.mubr.bf16.gmra.mrb[0].mxu0 %v8166
      %v8364 = vpop.f32.mrb[0].mxu0
      %v8365 = vadd.f32 0.0, %v8364
      %v8366 = vpop.f32.mrb[0].mxu0
      %v8367 = vpop.f32.mrb[0].mxu0
      %v8368 = vadd.f32 0.0, %v8367
      %v8369 = vpop.f32.mrb[0].mxu0
      %8370 = vmatprep.mubr.bf16.mxu0 0
      %8371 = vmatmul.mubr.bf16.gmra.mrb[0].mxu0 %v8170
      %v8372 = vpop.f32.mrb[0].mxu0
      %v8373 = vadd.f32 0.0, %v8372
      %v8374 = vpop.f32.mrb[0].mxu0
      %v8375 = vpop.f32.mrb[0].mxu0
      %v8376 = vadd.f32 0.0, %v8375
      %v8377 = vpop.f32.mrb[0].mxu0
      %8378 = vmatprep.mubr.bf16.mxu0 0
      %8379 = vmatmul.mubr.bf16.gmra.mrb[0].mxu0 %v8174
      %v8380 = vpop.f32.mrb[0].mxu0
      %v8381 = vadd.f32 0.0, %v8380
      %v8382 = vpop.f32.mrb[0].mxu0
      %v8383 = vpop.f32.mrb[0].mxu0
      %v8384 = vadd.f32 0.0, %v8383
      %v8385 = vpop.f32.mrb[0].mxu0
      %8386 = vmatprep.mubr.bf16.mxu0 0
      %8387 = vmatmul.mubr.bf16.gmra.mrb[0].mxu0 %v8178
      %v8388 = vpop.f32.mrb[0].mxu0
      %v8389 = vadd.f32 0.0, %v8388
      %v8390 = vpop.f32.mrb[0].mxu0
      %v8391 = vpop.f32.mrb[0].mxu0
      %v8392 = vadd.f32 0.0, %v8391
      %v8393 = vpop.f32.mrb[0].mxu0
      %8394 = vmatprep.mubr.bf16.mxu0 0
      %8395 = vmatmul.mubr.bf16.gmra.mrb[0].mxu0 %v8182
      %v8396 = vpop.f32.mrb[0].mxu0
      %v8397 = vadd.f32 0.0, %v8396
      %v8398 = vpop.f32.mrb[0].mxu0
      %v8399 = vpop.f32.mrb[0].mxu0
      %v8400 = vadd.f32 0.0, %v8399
      %v8401 = vpop.f32.mrb[0].mxu0
      %8402 = vmatprep.mubr.bf16.mxu0 0
      %8403 = vmatmul.mubr.bf16.gmra.mrb[0].mxu0 %v8186
      %v8404 = vpop.f32.mrb[0].mxu0
      %v8405 = vadd.f32 0.0, %v8404
      %v8406 = vpop.f32.mrb[0].mxu0
      %v8407 = vpop.f32.mrb[0].mxu0
      %v8408 = vadd.f32 0.0, %v8407
      %v8409 = vpop.f32.mrb[0].mxu0
      %8410 = vmatprep.mubr.bf16.mxu0 0
      %8411 = vmatmul.mubr.bf16.gmra.mrb[0].mxu0 %v8190
      %v8412 = vpop.f32.mrb[0].mxu0
      %v8413 = vadd.f32 0.0, %v8412
      %v8414 = vpop.f32.mrb[0].mxu0
      %v8415 = vpop.f32.mrb[0].mxu0
      %v8416 = vadd.f32 0.0, %v8415
      %v8417 = vpop.f32.mrb[0].mxu0
      %8418 = vmatprep.mubr.bf16.mxu0 0
      %8419 = vmatmul.mubr.bf16.gmra.mrb[0].mxu0 %v8194
      %v8420 = vpop.f32.mrb[0].mxu0
      %v8421 = vadd.f32 0.0, %v8420
      %v8422 = vpop.f32.mrb[0].mxu0
      %v8423 = vpop.f32.mrb[0].mxu0
      %v8424 = vadd.f32 0.0, %v8423
      %v8425 = vpop.f32.mrb[0].mxu0
      %8426 = vmatprep.mubr.bf16.mxu0 0
      %8427 = vmatmul.mubr.bf16.gmra.mrb[0].mxu0 %v8198
      %v8428 = vpop.f32.mrb[0].mxu0
      %v8429 = vadd.f32 0.0, %v8428
      %v8430 = vpop.f32.mrb[0].mxu0
      %v8431 = vpop.f32.mrb[0].mxu0
      %v8432 = vadd.f32 0.0, %v8431
      %v8433 = vpop.f32.mrb[0].mxu0
      %8434 = vmatprep.mubr.bf16.mxu0 0
      %8435 = vmatmul.mubr.bf16.gmra.mrb[0].mxu0 %v8202
      %v8436 = vpop.f32.mrb[0].mxu0
      %v8437 = vadd.f32 0.0, %v8436
      %v8438 = vpop.f32.mrb[0].mxu0
      %v8439 = vpop.f32.mrb[0].mxu0
      %v8440 = vadd.f32 0.0, %v8439
      %v8441 = vpop.f32.mrb[0].mxu0
      %8442 = vmatprep.mubr.bf16.mxu0 0
      %8443 = vmatmul.mubr.bf16.gmra.mrb[0].mxu0 %v8206
      %v8444 = vpop.f32.mrb[0].mxu0
      %v8445 = vadd.f32 0.0, %v8444
      %v8446 = vpop.f32.mrb[0].mxu0
      %v8447 = vpop.f32.mrb[0].mxu0
      %v8448 = vadd.f32 0.0, %v8447
      %v8449 = vpop.f32.mrb[0].mxu0
      %8450 = vmatprep.mubr.bf16.mxu0 0
      %8451 = vmatmul.mubr.bf16.gmra.mrb[0].mxu0 %v8215
      %v8452 = vpop.f32.mrb[0].mxu0
      %v8453 = vadd.f32 0.0, %v8452
      %v8454 = vpop.f32.mrb[0].mxu0
      %v8455 = vpop.f32.mrb[0].mxu0
      %v8456 = vadd.f32 0.0, %v8455
      %v8457 = vpop.f32.mrb[0].mxu0
      %8458 = vdwg.mxu0
      %v8459 = vadd.f32 %v8078, %v8317
      %v8460 = vadd.f32 %v8079, %v8320
      %v8461 = vadd.f32 %v8080, %v8325
      %v8462 = vadd.f32 %v8081, %v8328
      %v8463 = vadd.f32 %v8082, %v8333
      %v8464 = vadd.f32 %v8083, %v8336
      %v8465 = vadd.f32 %v8084, %v8341
      %v8466 = vadd.f32 %v8085, %v8344
      %v8467 = vadd.f32 %v8086, %v8349
      %v8468 = vadd.f32 %v8087, %v8352
      %v8469 = vadd.f32 %v8088, %v8357
      %v8470 = vadd.f32 %v8089, %v8360
      %v8471 = vadd.f32 %v8090, %v8365
      %v8472 = vadd.f32 %v8091, %v8368
      %v8473 = vadd.f32 %v8092, %v8373
      %v8474 = vadd.f32 %v8093, %v8376
      %v8475 = vadd.f32 %v8094, %v8381
      %v8476 = vadd.f32 %v8095, %v8384
      %v8477 = vadd.f32 %v8096, %v8389
      %v8478 = vadd.f32 %v8097, %v8392
      %v8479 = vadd.f32 %v8098, %v8397
      %v8480 = vadd.f32 %v8099, %v8400
      %v8481 = vadd.f32 %v8100, %v8405
      %v8482 = vadd.f32 %v8101, %v8408
      %v8483 = vadd.f32 %v8102, %v8413
      %v8484 = vadd.f32 %v8103, %v8416
      %v8485 = vadd.f32 %v8104, %v8421
      %v8486 = vadd.f32 %v8105, %v8424
      %v8487 = vadd.f32 %v8106, %v8429
      %v8488 = vadd.f32 %v8107, %v8432
      %v8489 = vadd.f32 %v8108, %v8437
      %v8490 = vadd.f32 %v8109, %v8440
      %v8491 = vadd.f32 %v8110, %v8445
      %v8492 = vadd.f32 %v8111, %v8448
      %v8493 = vadd.f32 %v8112, %v8453
      %v8494 = vadd.f32 %v8113, %v8456
      %v8495 = vld [vmem:[%s246 + $0x10] sm:$0xf]
      %v8496 = vld [vmem:[%s246 + $0x14] sm:$0xf]
      %v8497 = vld [vmem:[%s246 + $0x18] sm:$0xf]
      %v8498 = vld [vmem:[%s246 + $0x1c] sm:$0xf]
      %v8499 = vld [vmem:[%s246 + $0x20] sm:$0xf]
      %v8500 = vld [vmem:[%s246 + $0x24] sm:$0xf]
      %v8501 = vld [vmem:[%s246 + $0x28] sm:$0xf]
      %v8502 = vld [vmem:[%s246 + $0x2c] sm:$0xf]
      %v8503 = vld [vmem:[%s246 + $0x30] sm:$0xf]
      %v8504 = vld [vmem:[%s246 + $0x34] sm:$0xf]
      %v8505 = vld [vmem:[%s246 + $0x38] sm:$0xf]
      %v8506 = vld [vmem:[%s246 + $0x3c] sm:$0xf]
      %v8507 = vld [vmem:[%s246 + $0x40] sm:$0xf]
      %v8508 = vld [vmem:[%s246 + $0x44] sm:$0xf]
      %v8509 = vld [vmem:[%s246 + $0x48] sm:$0xf]
      %v8510 = vld [vmem:[%s246 + $0x4c] sm:$0xf]
      %v8511 = vld [vmem:[%s246 + $0x50] sm:$0xf]
      %v8512 = vld [vmem:[%s246 + $0x54] sm:$0xf]
      %v8513 = vld [vmem:[%s246 + $0x58] sm:$0xf]
      %v8514 = vld [vmem:[%s246 + $0x5c] sm:$0xf]
      %v8515 = vld [vmem:[%s246 + $0x60] sm:$0xf]
      %v8516 = vld [vmem:[%s246 + $0x64] sm:$0xf]
      %v8517 = vld [vmem:[%s246 + $0x68] sm:$0xf]
      %v8518 = vld [vmem:[%s246 + $0x6c] sm:$0xf]
      %v8519 = vld [vmem:[%s246 + $0x70] sm:$0xf]
      %v8520 = vld [vmem:[%s246 + $0x74] sm:$0xf]
      %v8521 = vld [vmem:[%s246 + $0x78] sm:$0xf]
      %v8522 = vld [vmem:[%s246 + $0x7c] sm:$0xf]
      %v8523 = vld [vmem:[%s246 + $0x80] sm:$0xf]
      %v8524 = vld [vmem:[%s246 + $0x84] sm:$0xf]
      %v8525 = vld [vmem:[%s246 + $0x88] sm:$0xf]
      %v8526 = vld [vmem:[%s246 + $0x8c] sm:$0xf]
      %v8527 = vld [vmem:[%s246 + $0x90] sm:$0xf]
      %v8528 = vld [vmem:[%s246 + $0x94] sm:$0xf]
      %v8529 = vld [vmem:[%s246 + $0x98] sm:$0xf]
      %v8530 = vld [vmem:[%s246 + $0x9c] sm:$0xf]
      %v8531 = vld [vmem:[%s4] sm:$0xf]
      %v8532 = vld [vmem:[%s4 + $0x4] sm:$0xf]
      %v8569 = vunpack.c.l.b16 %v8495
      %v8570 = vunpack.c.l.b16 %v8496
      %v8571 = vunpack.c.l.b16 %v8497
      %v8572 = vunpack.c.l.b16 %v8498
      %v8573 = vunpack.c.l.b16 %v8499
      %v8574 = vunpack.c.l.b16 %v8500
      %v8575 = vunpack.c.l.b16 %v8501
      %v8576 = vunpack.c.l.b16 %v8502
      %v8577 = vunpack.c.l.b16 %v8503
      %v8578 = vunpack.c.l.b16 %v8504
      %v8579 = vunpack.c.l.b16 %v8505
      %v8580 = vunpack.c.l.b16 %v8506
      %v8581 = vunpack.c.l.b16 %v8507
      %v8582 = vunpack.c.l.b16 %v8508
      %v8583 = vunpack.c.l.b16 %v8509
      %v8584 = vunpack.c.l.b16 %v8510
      %v8585 = vunpack.c.l.b16 %v8511
      %v8586 = vunpack.c.l.b16 %v8512
      %v8587 = vunpack.c.l.b16 %v8513
      %v8588 = vunpack.c.l.b16 %v8514
      %v8589 = vunpack.c.l.b16 %v8515
      %v8590 = vunpack.c.l.b16 %v8516
      %v8591 = vunpack.c.l.b16 %v8517
      %v8592 = vunpack.c.l.b16 %v8518
      %v8593 = vunpack.c.l.b16 %v8519
      %v8594 = vunpack.c.l.b16 %v8520
      %v8595 = vunpack.c.l.b16 %v8521
      %v8596 = vunpack.c.l.b16 %v8522
      %v8597 = vunpack.c.l.b16 %v8523
      %v8598 = vunpack.c.l.b16 %v8524
      %v8599 = vunpack.c.l.b16 %v8525
      %v8600 = vunpack.c.l.b16 %v8526
      %v8601 = vunpack.c.l.b16 %v8527
      %v8602 = vunpack.c.l.b16 %v8528
      %v8603 = vunpack.c.l.b16 %v8529
      %v8604 = vunpack.c.l.b16 %v8530
      %v8605 = vpack.c.b16 %v8570, %v8569
      %v8606 = vpack.c.b16 %v8572, %v8571
      %v8607 = vpack.c.b16 %v8574, %v8573
      %v8608 = vpack.c.b16 %v8576, %v8575
      %v8609 = vpack.c.b16 %v8578, %v8577
      %v8610 = vpack.c.b16 %v8580, %v8579
      %v8611 = vpack.c.b16 %v8582, %v8581
      %v8612 = vpack.c.b16 %v8584, %v8583
      %v8613 = vpack.c.b16 %v8586, %v8585
      %v8614 = vpack.c.b16 %v8588, %v8587
      %v8615 = vpack.c.b16 %v8590, %v8589
      %v8616 = vpack.c.b16 %v8592, %v8591
      %v8617 = vpack.c.b16 %v8594, %v8593
      %v8618 = vpack.c.b16 %v8596, %v8595
      %v8619 = vpack.c.b16 %v8598, %v8597
      %v8620 = vpack.c.b16 %v8600, %v8599
      %v8621 = vpack.c.b16 %v8602, %v8601
      %v8622 = vpack.c.b16 %v8604, %v8603
      %v8625 = vunpack.c.l.b16 %v8531
      %v8626 = vunpack.c.l.b16 %v8532
      %v8627 = vpack.c.b16 %v8626, %v8625
      %v8630 = vsel %vm1081, %v8605, 0
      %v8633 = vsel %vm1081, %v8606, 0
      %v8636 = vsel %vm1081, %v8607, 0
      %v8639 = vsel %vm1081, %v8608, 0
      %v8642 = vsel %vm1081, %v8609, 0
      %v8645 = vsel %vm1081, %v8610, 0
      %v8648 = vsel %vm1081, %v8611, 0
      %v8651 = vsel %vm1081, %v8612, 0
      %v8654 = vsel %vm1081, %v8613, 0
      %v8657 = vsel %vm1081, %v8614, 0
      %v8660 = vsel %vm1081, %v8615, 0
      %v8663 = vsel %vm1081, %v8616, 0
      %v8666 = vsel %vm1081, %v8617, 0
      %v8669 = vsel %vm1081, %v8618, 0
      %v8672 = vsel %vm1081, %v8619, 0
      %v8675 = vsel %vm1081, %v8620, 0
      %v8678 = vsel %vm1081, %v8621, 0
      %v8681 = vsel %vm1081, %v8622, 0
      %8683 = vmatprep.subr.bf16.mxu0 0
      %8684 = vmatpush1.bf16.msra.mxu0 %v8627
      %8685 = vmatprep.subr.bf16.mxu0 0
      %8686 = vmatpush1.bf16.msra.mxu0 0
      %8687 = vmatprep.subr.bf16.mxu0 0
      %8688 = vmatpush1.bf16.msra.mxu0 0
      %8689 = vmatprep.subr.bf16.mxu0 0
      %8690 = vmatpush1.bf16.msra.mxu0 0
      %8691 = vmatprep.subr.bf16.mxu0 0
      %8692 = vmatpush1.bf16.msra.mxu0 0
      %8693 = vmatprep.subr.bf16.mxu0 0
      %8694 = vmatpush1.bf16.msra.mxu0 0
      %8695 = vmatprep.subr.bf16.mxu0 0
      %8696 = vmatpush1.bf16.msra.mxu0 0
      %8697 = vmatprep.subr.bf16.mxu0 0
      %8698 = vmatpush1.bf16.msra.mxu0 0
      %8699 = vmatprep.subr.bf16.mxu0 0
      %8700 = vmatpush1.bf16.msra.mxu0 0
      %8701 = vmatprep.subr.bf16.mxu0 0
      %8702 = vmatpush1.bf16.msra.mxu0 0
      %8703 = vmatprep.subr.bf16.mxu0 0
      %8704 = vmatpush1.bf16.msra.mxu0 0
      %8705 = vmatprep.subr.bf16.mxu0 0
      %8706 = vmatpush1.bf16.msra.mxu0 0
      %8707 = vmatprep.subr.bf16.mxu0 0
      %8708 = vmatpush1.bf16.msra.mxu0 0
      %8709 = vmatprep.subr.bf16.mxu0 0
      %8710 = vmatpush1.bf16.msra.mxu0 0
      %8711 = vmatprep.subr.bf16.mxu0 0
      %8712 = vmatpush1.bf16.msra.mxu0 0
      %8713 = vmatprep.subr.bf16.mxu0 0
      %8714 = vmatpush1.bf16.msra.mxu0 0
      %8715 = vmatprep.mubr.bf16.mxu0 0
      %8716 = vmatmul.mubr.bf16.gmra.mrb[0].mxu0 %v8630
      %v8717 = vpop.f32.mrb[0].mxu0
      %v8718 = vadd.f32 0.0, %v8717
      %v8719 = vpop.f32.mrb[0].mxu0
      %v8720 = vpop.f32.mrb[0].mxu0
      %v8721 = vadd.f32 0.0, %v8720
      %v8722 = vpop.f32.mrb[0].mxu0
      %8723 = vmatprep.mubr.bf16.mxu0 0
      %8724 = vmatmul.mubr.bf16.gmra.mrb[0].mxu0 %v8633
      %v8725 = vpop.f32.mrb[0].mxu0
      %v8726 = vadd.f32 0.0, %v8725
      %v8727 = vpop.f32.mrb[0].mxu0
      %v8728 = vpop.f32.mrb[0].mxu0
      %v8729 = vadd.f32 0.0, %v8728
      %v8730 = vpop.f32.mrb[0].mxu0
      %8731 = vmatprep.mubr.bf16.mxu0 0
      %8732 = vmatmul.mubr.bf16.gmra.mrb[0].mxu0 %v8636
      %v8733 = vpop.f32.mrb[0].mxu0
      %v8734 = vadd.f32 0.0, %v8733
      %v8735 = vpop.f32.mrb[0].mxu0
      %v8736 = vpop.f32.mrb[0].mxu0
      %v8737 = vadd.f32 0.0, %v8736
      %v8738 = vpop.f32.mrb[0].mxu0
      %8739 = vmatprep.mubr.bf16.mxu0 0
      %8740 = vmatmul.mubr.bf16.gmra.mrb[0].mxu0 %v8639
      %v8741 = vpop.f32.mrb[0].mxu0
      %v8742 = vadd.f32 0.0, %v8741
      %v8743 = vpop.f32.mrb[0].mxu0
      %v8744 = vpop.f32.mrb[0].mxu0
      %v8745 = vadd.f32 0.0, %v8744
      %v8746 = vpop.f32.mrb[0].mxu0
      %8747 = vmatprep.mubr.bf16.mxu0 0
      %8748 = vmatmul.mubr.bf16.gmra.mrb[0].mxu0 %v8642
      %v8749 = vpop.f32.mrb[0].mxu0
      %v8750 = vadd.f32 0.0, %v8749
      %v8751 = vpop.f32.mrb[0].mxu0
      %v8752 = vpop.f32.mrb[0].mxu0
      %v8753 = vadd.f32 0.0, %v8752
      %v8754 = vpop.f32.mrb[0].mxu0
      %8755 = vmatprep.mubr.bf16.mxu0 0
      %8756 = vmatmul.mubr.bf16.gmra.mrb[0].mxu0 %v8645
      %v8757 = vpop.f32.mrb[0].mxu0
      %v8758 = vadd.f32 0.0, %v8757
      %v8759 = vpop.f32.mrb[0].mxu0
      %v8760 = vpop.f32.mrb[0].mxu0
      %v8761 = vadd.f32 0.0, %v8760
      %v8762 = vpop.f32.mrb[0].mxu0
      %8763 = vmatprep.mubr.bf16.mxu0 0
      %8764 = vmatmul.mubr.bf16.gmra.mrb[0].mxu0 %v8648
      %v8765 = vpop.f32.mrb[0].mxu0
      %v8766 = vadd.f32 0.0, %v8765
      %v8767 = vpop.f32.mrb[0].mxu0
      %v8768 = vpop.f32.mrb[0].mxu0
      %v8769 = vadd.f32 0.0, %v8768
      %v8770 = vpop.f32.mrb[0].mxu0
      %8771 = vmatprep.mubr.bf16.mxu0 0
      %8772 = vmatmul.mubr.bf16.gmra.mrb[0].mxu0 %v8651
      %v8773 = vpop.f32.mrb[0].mxu0
      %v8774 = vadd.f32 0.0, %v8773
      %v8775 = vpop.f32.mrb[0].mxu0
      %v8776 = vpop.f32.mrb[0].mxu0
      %v8777 = vadd.f32 0.0, %v8776
      %v8778 = vpop.f32.mrb[0].mxu0
      %8779 = vmatprep.mubr.bf16.mxu0 0
      %8780 = vmatmul.mubr.bf16.gmra.mrb[0].mxu0 %v8654
      %v8781 = vpop.f32.mrb[0].mxu0
      %v8782 = vadd.f32 0.0, %v8781
      %v8783 = vpop.f32.mrb[0].mxu0
      %v8784 = vpop.f32.mrb[0].mxu0
      %v8785 = vadd.f32 0.0, %v8784
      %v8786 = vpop.f32.mrb[0].mxu0
      %8787 = vmatprep.mubr.bf16.mxu0 0
      %8788 = vmatmul.mubr.bf16.gmra.mrb[0].mxu0 %v8657
      %v8789 = vpop.f32.mrb[0].mxu0
      %v8790 = vadd.f32 0.0, %v8789
      %v8791 = vpop.f32.mrb[0].mxu0
      %v8792 = vpop.f32.mrb[0].mxu0
      %v8793 = vadd.f32 0.0, %v8792
      %v8794 = vpop.f32.mrb[0].mxu0
      %8795 = vmatprep.mubr.bf16.mxu0 0
      %8796 = vmatmul.mubr.bf16.gmra.mrb[0].mxu0 %v8660
      %v8797 = vpop.f32.mrb[0].mxu0
      %v8798 = vadd.f32 0.0, %v8797
      %v8799 = vpop.f32.mrb[0].mxu0
      %v8800 = vpop.f32.mrb[0].mxu0
      %v8801 = vadd.f32 0.0, %v8800
      %v8802 = vpop.f32.mrb[0].mxu0
      %8803 = vmatprep.mubr.bf16.mxu0 0
      %8804 = vmatmul.mubr.bf16.gmra.mrb[0].mxu0 %v8663
      %v8805 = vpop.f32.mrb[0].mxu0
      %v8806 = vadd.f32 0.0, %v8805
      %v8807 = vpop.f32.mrb[0].mxu0
      %v8808 = vpop.f32.mrb[0].mxu0
      %v8809 = vadd.f32 0.0, %v8808
      %v8810 = vpop.f32.mrb[0].mxu0
      %8811 = vmatprep.mubr.bf16.mxu0 0
      %8812 = vmatmul.mubr.bf16.gmra.mrb[0].mxu0 %v8666
      %v8813 = vpop.f32.mrb[0].mxu0
      %v8814 = vadd.f32 0.0, %v8813
      %v8815 = vpop.f32.mrb[0].mxu0
      %v8816 = vpop.f32.mrb[0].mxu0
      %v8817 = vadd.f32 0.0, %v8816
      %v8818 = vpop.f32.mrb[0].mxu0
      %8819 = vmatprep.mubr.bf16.mxu0 0
      %8820 = vmatmul.mubr.bf16.gmra.mrb[0].mxu0 %v8669
      %v8821 = vpop.f32.mrb[0].mxu0
      %v8822 = vadd.f32 0.0, %v8821
      %v8823 = vpop.f32.mrb[0].mxu0
      %v8824 = vpop.f32.mrb[0].mxu0
      %v8825 = vadd.f32 0.0, %v8824
      %v8826 = vpop.f32.mrb[0].mxu0
      %8827 = vmatprep.mubr.bf16.mxu0 0
      %8828 = vmatmul.mubr.bf16.gmra.mrb[0].mxu0 %v8672
      %v8829 = vpop.f32.mrb[0].mxu0
      %v8830 = vadd.f32 0.0, %v8829
      %v8831 = vpop.f32.mrb[0].mxu0
      %v8832 = vpop.f32.mrb[0].mxu0
      %v8833 = vadd.f32 0.0, %v8832
      %v8834 = vpop.f32.mrb[0].mxu0
      %8835 = vmatprep.mubr.bf16.mxu0 0
      %8836 = vmatmul.mubr.bf16.gmra.mrb[0].mxu0 %v8675
      %v8837 = vpop.f32.mrb[0].mxu0
      %v8838 = vadd.f32 0.0, %v8837
      %v8839 = vpop.f32.mrb[0].mxu0
      %v8840 = vpop.f32.mrb[0].mxu0
      %v8841 = vadd.f32 0.0, %v8840
      %v8842 = vpop.f32.mrb[0].mxu0
      %8843 = vmatprep.mubr.bf16.mxu0 0
      %8844 = vmatmul.mubr.bf16.gmra.mrb[0].mxu0 %v8678
      %v8845 = vpop.f32.mrb[0].mxu0
      %v8846 = vadd.f32 0.0, %v8845
      %v8847 = vpop.f32.mrb[0].mxu0
      %v8848 = vpop.f32.mrb[0].mxu0
      %v8849 = vadd.f32 0.0, %v8848
      %v8850 = vpop.f32.mrb[0].mxu0
      %8851 = vmatprep.mubr.bf16.mxu0 0
      %8852 = vmatmul.mubr.bf16.gmra.mrb[0].mxu0 %v8681
      %v8853 = vpop.f32.mrb[0].mxu0
      %v8854 = vadd.f32 0.0, %v8853
      %v8855 = vpop.f32.mrb[0].mxu0
      %v8856 = vpop.f32.mrb[0].mxu0
      %v8857 = vadd.f32 0.0, %v8856
      %v8858 = vpop.f32.mrb[0].mxu0
      %8859 = vdwg.mxu0
      %v8860 = vadd.f32 %v8459, %v8718
      %v8861 = vadd.f32 %v8460, %v8721
      %v8862 = vadd.f32 %v8461, %v8726
      %v8863 = vadd.f32 %v8462, %v8729
      %v8864 = vadd.f32 %v8463, %v8734
      %v8865 = vadd.f32 %v8464, %v8737
      %v8866 = vadd.f32 %v8465, %v8742
      %v8867 = vadd.f32 %v8466, %v8745
      %v8868 = vadd.f32 %v8467, %v8750
      %v8869 = vadd.f32 %v8468, %v8753
      %v8870 = vadd.f32 %v8469, %v8758
      %v8871 = vadd.f32 %v8470, %v8761
      %v8872 = vadd.f32 %v8471, %v8766
      %v8873 = vadd.f32 %v8472, %v8769
      %v8874 = vadd.f32 %v8473, %v8774
      %v8875 = vadd.f32 %v8474, %v8777
      %v8876 = vadd.f32 %v8475, %v8782
      %v8877 = vadd.f32 %v8476, %v8785
      %v8878 = vadd.f32 %v8477, %v8790
      %v8879 = vadd.f32 %v8478, %v8793
      %v8880 = vadd.f32 %v8479, %v8798
      %v8881 = vadd.f32 %v8480, %v8801
      %v8882 = vadd.f32 %v8481, %v8806
      %v8883 = vadd.f32 %v8482, %v8809
      %v8884 = vadd.f32 %v8483, %v8814
      %v8885 = vadd.f32 %v8484, %v8817
      %v8886 = vadd.f32 %v8485, %v8822
      %v8887 = vadd.f32 %v8486, %v8825
      %v8888 = vadd.f32 %v8487, %v8830
      %v8889 = vadd.f32 %v8488, %v8833
      %v8890 = vadd.f32 %v8489, %v8838
      %v8891 = vadd.f32 %v8490, %v8841
      %v8892 = vadd.f32 %v8491, %v8846
      %v8893 = vadd.f32 %v8492, %v8849
      %v8894 = vadd.f32 %v8493, %v8854
      %v8895 = vadd.f32 %v8494, %v8857
      %v8896 = vld [vmem:[%s5] sm:$0x1]
      %v8898 = vlaneseq
      %v8899 = vshrl.u32 %v8898, 7
      %v8900 = vsub.s32 0, %v8899
      %v8901 = vrot.slane %v8896, %v8900
      %v8903 = vadd.f32 %v8860, %v8901
      %v8904 = vadd.f32 %v8861, %v8901
      %v8905 = vadd.f32 %v8862, %v8901
      %v8906 = vadd.f32 %v8863, %v8901
      %v8907 = vadd.f32 %v8864, %v8901
      %v8908 = vadd.f32 %v8865, %v8901
      %v8909 = vadd.f32 %v8866, %v8901
      %v8910 = vadd.f32 %v8867, %v8901
      %v8911 = vadd.f32 %v8868, %v8901
      %v8912 = vadd.f32 %v8869, %v8901
      %v8913 = vadd.f32 %v8870, %v8901
      %v8914 = vadd.f32 %v8871, %v8901
      %v8915 = vadd.f32 %v8872, %v8901
      %v8916 = vadd.f32 %v8873, %v8901
      %v8917 = vadd.f32 %v8874, %v8901
      %v8918 = vadd.f32 %v8875, %v8901
      %v8919 = vadd.f32 %v8876, %v8901
      %v8920 = vadd.f32 %v8877, %v8901
      %v8921 = vadd.f32 %v8878, %v8901
      %v8922 = vadd.f32 %v8879, %v8901
      %v8923 = vadd.f32 %v8880, %v8901
      %v8924 = vadd.f32 %v8881, %v8901
      %v8925 = vadd.f32 %v8882, %v8901
      %v8926 = vadd.f32 %v8883, %v8901
      %v8927 = vadd.f32 %v8884, %v8901
      %v8928 = vadd.f32 %v8885, %v8901
      %v8929 = vadd.f32 %v8886, %v8901
      %v8930 = vadd.f32 %v8887, %v8901
      %v8931 = vadd.f32 %v8888, %v8901
      %v8932 = vadd.f32 %v8889, %v8901
      %v8933 = vadd.f32 %v8890, %v8901
      %v8934 = vadd.f32 %v8891, %v8901
      %v8935 = vadd.f32 %v8892, %v8901
      %v8936 = vadd.f32 %v8893, %v8901
      %v8937 = vadd.f32 %v8894, %v8901
      %v8938 = vadd.f32 %v8895, %v8901
      %v8939 = vmax.f32 %v8903, 0.0
      %v8940 = vmax.f32 %v8904, 0.0
      %v8941 = vmax.f32 %v8905, 0.0
      %v8942 = vmax.f32 %v8906, 0.0
      %v8943 = vmax.f32 %v8907, 0.0
      %v8944 = vmax.f32 %v8908, 0.0
      %v8945 = vmax.f32 %v8909, 0.0
      %v8946 = vmax.f32 %v8910, 0.0
      %v8947 = vmax.f32 %v8911, 0.0
      %v8948 = vmax.f32 %v8912, 0.0
      %v8949 = vmax.f32 %v8913, 0.0
      %v8950 = vmax.f32 %v8914, 0.0
      %v8951 = vmax.f32 %v8915, 0.0
      %v8952 = vmax.f32 %v8916, 0.0
      %v8953 = vmax.f32 %v8917, 0.0
      %v8954 = vmax.f32 %v8918, 0.0
      %v8955 = vmax.f32 %v8919, 0.0
      %v8956 = vmax.f32 %v8920, 0.0
      %v8957 = vmax.f32 %v8921, 0.0
      %v8958 = vmax.f32 %v8922, 0.0
      %v8959 = vmax.f32 %v8923, 0.0
      %v8960 = vmax.f32 %v8924, 0.0
      %v8961 = vmax.f32 %v8925, 0.0
      %v8962 = vmax.f32 %v8926, 0.0
      %v8963 = vmax.f32 %v8927, 0.0
      %v8964 = vmax.f32 %v8928, 0.0
      %v8965 = vmax.f32 %v8929, 0.0
      %v8966 = vmax.f32 %v8930, 0.0
      %v8967 = vmax.f32 %v8931, 0.0
      %v8968 = vmax.f32 %v8932, 0.0
      %v8969 = vmax.f32 %v8933, 0.0
      %v8970 = vmax.f32 %v8934, 0.0
      %v8971 = vmax.f32 %v8935, 0.0
      %v8972 = vmax.f32 %v8936, 0.0
      %v8973 = vmax.f32 %v8937, 0.0
      %v8974 = vmax.f32 %v8938, 0.0
      %8975 = vst [vmem:[%s251] sm:$0xff] %v8939
      %8976 = vst [vmem:[%s251 + $0x8] sm:$0xff] %v8940
      %8977 = vst [vmem:[%s251 + $0x10] sm:$0xff] %v8941
      %8978 = vst [vmem:[%s251 + $0x18] sm:$0xff] %v8942
      %8979 = vst [vmem:[%s251 + $0x20] sm:$0xff] %v8943
      %8980 = vst [vmem:[%s251 + $0x28] sm:$0xff] %v8944
      %8981 = vst [vmem:[%s251 + $0x30] sm:$0xff] %v8945
      %8982 = vst [vmem:[%s251 + $0x38] sm:$0xff] %v8946
      %8983 = vst [vmem:[%s251 + $0x40] sm:$0xff] %v8947
      %8984 = vst [vmem:[%s251 + $0x48] sm:$0xff] %v8948
      %8985 = vst [vmem:[%s251 + $0x50] sm:$0xff] %v8949
      %8986 = vst [vmem:[%s251 + $0x58] sm:$0xff] %v8950
      %8987 = vst [vmem:[%s251 + $0x60] sm:$0xff] %v8951
      %8988 = vst [vmem:[%s251 + $0x68] sm:$0xff] %v8952
      %8989 = vst [vmem:[%s251 + $0x70] sm:$0xff] %v8953
      %8990 = vst [vmem:[%s251 + $0x78] sm:$0xff] %v8954
      %8991 = vst [vmem:[%s251 + $0x80] sm:$0xff] %v8955
      %8992 = vst [vmem:[%s251 + $0x88] sm:$0xff] %v8956
      %8993 = vst [vmem:[%s251 + $0x90] sm:$0xff] %v8957
      %8994 = vst [vmem:[%s251 + $0x98] sm:$0xff] %v8958
      %8995 = vst [vmem:[%s251 + $0xa0] sm:$0xff] %v8959
      %8996 = vst [vmem:[%s251 + $0xa8] sm:$0xff] %v8960
      %8997 = vst [vmem:[%s251 + $0xb0] sm:$0xff] %v8961
      %8998 = vst [vmem:[%s251 + $0xb8] sm:$0xff] %v8962
      %8999 = vst [vmem:[%s251 + $0xc0] sm:$0xff] %v8963
      %9000 = vst [vmem:[%s251 + $0xc8] sm:$0xff] %v8964
      %9001 = vst [vmem:[%s251 + $0xd0] sm:$0xff] %v8965
      %9002 = vst [vmem:[%s251 + $0xd8] sm:$0xff] %v8966
      %9003 = vst [vmem:[%s251 + $0xe0] sm:$0xff] %v8967
      %9004 = vst [vmem:[%s251 + $0xe8] sm:$0xff] %v8968
      %9005 = vst [vmem:[%s251 + $0xf0] sm:$0xff] %v8969
      %9006 = vst [vmem:[%s251 + $0xf8] sm:$0xff] %v8970
      %9007 = vst [vmem:[%s251 + $0x100] sm:$0xff] %v8971
      %9008 = vst [vmem:[%s251 + $0x108] sm:$0xff] %v8972
      %9009 = vst [vmem:[%s251 + $0x110] sm:$0xff] %v8973
      %9010 = vst [vmem:[%s251 + $0x118] sm:$0xff] %v8974
      %p9011 = scmp.lt.s32.totalorder %s17, 1
      %s9012 = scalar_select %p9011, %s17, 1
      %s9013 = smul.addr %s9012, 36
      %s9014 = smul.addr %s9013, 8
      %s9015 = scalar_lea.vmem %s6, %s9014
      // Predicated region
      $region45: #{double_conv_bottleneck.1} parent=43 // pred_check
        %p9016 = pneg %p166
      $region46: #{double_conv_bottleneck.1} parent=43 // pred_check_branch
        %9018 = sbr.rel (%p9016) target = $region48
      $region47: #{double_conv_bottleneck.1} parent=43 // pred_region
        _
      $region48: #{double_conv_bottleneck.1} parent=43 // pred_fallthru
        _
    $region44: #{double_conv_bottleneck.1} parent=5 // pred_fallthru
      _
    %p9019 = scmp.le.s32.totalorder 2, %s12
    // Predicated region
    $region49: #{double_conv_bottleneck.1} parent=5 // pred_check
      %p9020 = pneg %p9019
    $region50: #{double_conv_bottleneck.1} parent=5 // pred_check_branch
      %9022 = sbr.rel (%p9020) target = $region52
    $region51: #{double_conv_bottleneck.1} parent=5 // pred_region
      %s9023 = ssub.s32 %s12, 2
      // Predicated region
      $region53: #{double_conv_bottleneck.1} parent=51 // pred_check
        %p9024 = pneg %p172
      $region54: #{double_conv_bottleneck.1} parent=51 // pred_check_branch
        %9026 = sbr.rel (%p9024) target = $region56
      $region55: #{double_conv_bottleneck.1} parent=51 // pred_region
        %p9027 = scmp.lt.s32.totalorder %s18, 1
        %s9028 = scalar_select %p9027, %s18, 1
        %s9029 = smul.addr %s9028, 36
        %s9030 = smul.addr %s9029, 8
        %s9031 = scalar_lea.vmem %s6, %s9030
      $region56: #{double_conv_bottleneck.1} parent=51 // pred_fallthru
        _
    $region52: #{double_conv_bottleneck.1} parent=5 // pred_fallthru
      _
  $region6: #{double_conv_bottleneck.1} parent=0 // loop_footer
    %s16 = sadd.s32 1, %s12
  $region7: #{double_conv_bottleneck.1} parent=0 // loop_footer_branch
    %11 = sbr.rel target = $region3
  $region8: #{double_conv_bottleneck.1} parent=0 // loop_exit
    _

</llo_original>
